<compile_context>
chip_gen: v5e
topology: v5e:2x2
jax: 0.10.0
libtpu: 0.0.40
codegen_flags: <defaults>
</compile_context>

<pallas_src>
import functools

import jax
import jax.numpy as jnp
from jax.experimental import pallas as pl
from jax.experimental.pallas import tpu as pltpu

BN_EPS = 1e-5
VMEM_LIMIT = 48 * 1024 * 1024  # > v5e's 16-MiB scoped default, < v7x's 64-MiB physical


# ---------------------------------------------------------------------------
# Fused Linear (no bias) + BatchNorm1d (training-mode batch stats) + ReLU
# grid = (N // tn, K // tk); K (reduction) is the last grid axis.
# Batch rows >= b_real are zero-padded; stats are computed over real rows only
# and padded rows of the output are forced to zero.
# ---------------------------------------------------------------------------
def _linear_bn_relu_kernel(x_ref, w_ref, g_ref, be_ref, o_ref, acc_ref, *, b_real):
    k = pl.program_id(1)

    @pl.when(k == 0)
    def _():
        acc_ref[...] = jnp.zeros_like(acc_ref)

    # bf16 x bf16 -> f32 accumulate on the MXU (weights are stored in bf16).
    acc_ref[...] += jnp.dot(x_ref[...].astype(jnp.bfloat16), w_ref[...],
                            preferred_element_type=jnp.float32)

    @pl.when(k == pl.num_programs(1) - 1)
    def _():
        y = acc_ref[...]                                     # (B_pad, tn) f32
        rows = jax.lax.broadcasted_iota(jnp.int32, y.shape, 0)
        valid = rows < b_real
        inv_b = 1.0 / b_real
        # Padded rows of y are exactly 0 (no bias), so the plain sum / b_real
        # is the real-batch mean.
        mean = jnp.sum(y, axis=0, keepdims=True) * inv_b
        d = jnp.where(valid, y - mean, 0.0)
        var = jnp.sum(d * d, axis=0, keepdims=True) * inv_b  # biased var (PyTorch BN)
        yhat = d * jax.lax.rsqrt(var + BN_EPS)
        out = jnp.maximum(g_ref[...] * yhat + be_ref[...], 0.0)
        # Zero the padded rows so the next layer's stats stay correct.
        o_ref[...] = jnp.where(valid, out, 0.0).astype(o_ref.dtype)


def linear_bn_relu(x, w, gamma, beta, *, b_real, tn, tk):
    B, K = x.shape
    Kw, N = w.shape
    assert K == Kw and N % tn == 0 and K % tk == 0 and B % 8 == 0
    kernel = functools.partial(_linear_bn_relu_kernel, b_real=b_real)
    return pl.pallas_call(
        kernel,
        out_shape=jax.ShapeDtypeStruct((B, N), jnp.float32),
        grid_spec=pltpu.PrefetchScalarGridSpec(
            num_scalar_prefetch=0,
            grid=(N // tn, K // tk),
            in_specs=[
                pl.BlockSpec((B, tk), lambda n, k: (0, k)),    # x (f32)
                pl.BlockSpec((tk, tn), lambda n, k: (k, n)),   # W (bf16)
                pl.BlockSpec((1, tn), lambda n, k: (0, n)),    # gamma (f32)
                pl.BlockSpec((1, tn), lambda n, k: (0, n)),    # beta  (f32)
            ],
            out_specs=pl.BlockSpec((B, tn), lambda n, k: (0, n)),
            scratch_shapes=[pltpu.VMEM((B, tn), jnp.float32)],
        ),
        compiler_params=pltpu.CompilerParams(
            dimension_semantics=("parallel", "arbitrary"),
            vmem_limit_bytes=VMEM_LIMIT),
    )(x, w, gamma, beta)


# ---------------------------------------------------------------------------
# Plain Linear (final layer, num_domains outputs). Weight is tiny (~12 KB bf16)
# so this runs as a single grid step with full blocks — no K loop, no scratch.
# ---------------------------------------------------------------------------
def _linear_kernel(x_ref, w_ref, b_ref, o_ref):
    o_ref[...] = (jnp.dot(x_ref[...].astype(jnp.bfloat16), w_ref[...],
                          preferred_element_type=jnp.float32)
                  + b_ref[...]).astype(o_ref.dtype)


def linear_single(x, w, b):
    B, K = x.shape
    Kw, N = w.shape
    assert K == Kw
    return pl.pallas_call(
        _linear_kernel,
        out_shape=jax.ShapeDtypeStruct((B, N), jnp.float32),
        grid_spec=pltpu.PrefetchScalarGridSpec(
            num_scalar_prefetch=0,
            grid=(1,),
            in_specs=[
                pl.BlockSpec((B, K), lambda i: (0, 0)),
                pl.BlockSpec((K, N), lambda i: (0, 0)),
                pl.BlockSpec((1, N), lambda i: (0, 0)),
            ],
            out_specs=pl.BlockSpec((B, N), lambda i: (0, 0)),
        ),
        compiler_params=pltpu.CompilerParams(
            dimension_semantics=("arbitrary",),
            vmem_limit_bytes=VMEM_LIMIT),
    )(x, w, b)


# ---------------------------------------------------------------------------
# Parameter init (deterministic, PyTorch-Linear-style uniform bounds) & forward
# Weights cast to bf16 once here (halves HBM traffic); bias/gamma/beta stay f32.
# ---------------------------------------------------------------------------
def init_params(key, num_domains):
    dims = [(128 * 8 * 8, 3072), (3072, 2048), (2048, num_domains)]
    params = []
    for i, (fin, fout) in enumerate(dims):
        key, kw, kb = jax.random.split(key, 3)
        bound = 1.0 / (fin ** 0.5)
        layer = {
            "w": jax.random.uniform(kw, (fin, fout), jnp.float32,
                                    -bound, bound).astype(jnp.bfloat16),
            "b": jax.random.uniform(kb, (1, fout), jnp.float32, -bound, bound),
        }
        if i < 2:  # layers followed by BatchNorm1d (default affine init)
            layer["gamma"] = jnp.ones((1, fout), jnp.float32)
            layer["beta"] = jnp.zeros((1, fout), jnp.float32)
        params.append(layer)
    return params


def discriminator32_forward(params, x, lambda_p):
    # ReverseLayerF.apply(x, lambda_p): identity in forward (affects grads only).
    del lambda_p
    B = x.shape[0]
    B_pad = ((B + 7) // 8) * 8            # pad batch to sublane multiple
    if B_pad != B:
        x = jnp.pad(x, ((0, B_pad - B), (0, 0)))
    # Layer 1: K=8192, N=3072 -> grid (2, 4); weight tile 6 MiB bf16.
    h = linear_bn_relu(x, params[0]["w"], params[0]["gamma"], params[0]["beta"],
                       b_real=B, tn=1536, tk=2048)
    # Layer 2: K=3072, N=2048 -> grid (2, 2); weight tile 3 MiB bf16.
    h = linear_bn_relu(h, params[1]["w"], params[1]["gamma"], params[1]["beta"],
                       b_real=B, tn=1024, tk=1536)
    out = linear_single(h, params[2]["w"], params[2]["b"])
    return out[:B]


# ---------------------------------------------------------------------------
# Pure-JAX reference (f32 math on the same bf16-rounded weights/activations).
# Note it DOES add the Linear bias before the BN layers — training-mode BN
# cancels it exactly, which the kernel exploits by skipping it.
# ---------------------------------------------------------------------------
def _reference_forward(params, x):
    h = x
    for i in range(2):
        hb = h.astype(jnp.bfloat16).astype(jnp.float32)
        w = params[i]["w"].astype(jnp.float32)
        y = hb @ w + params[i]["b"]
        mean = jnp.mean(y, axis=0, keepdims=True)
        var = jnp.mean((y - mean) ** 2, axis=0, keepdims=True)
        y = params[i]["gamma"] * (y - mean) * jax.lax.rsqrt(var + BN_EPS) \
            + params[i]["beta"]
        h = jnp.maximum(y, 0.0)
    hb = h.astype(jnp.bfloat16).astype(jnp.float32)
    return hb @ params[2]["w"].astype(jnp.float32) + params[2]["b"]


if __name__ == "__main__":
    B = 4                 # batch (>1 so training-mode BatchNorm is well defined)
    NUM_DOMAINS = 3
    key = jax.random.PRNGKey(0)
    kx, kp = jax.random.split(key)

    x = jax.random.normal(kx, (B, 128 * 8 * 8), jnp.float32)
    lambda_p = 1.0
    params = init_params(kp, NUM_DOMAINS)

    out = discriminator32_forward(params, x, lambda_p)
    out = jax.block_until_ready(out)
    assert out.shape == (B, NUM_DOMAINS), out.shape

    ref = jax.block_until_ready(_reference_forward(params, x))
    assert jnp.allclose(out, ref, rtol=2e-3, atol=2e-3), \
        float(jnp.max(jnp.abs(out - ref)))

    print("KERNEL_OK")
</pallas_src>

<mosaic_0001>
module attributes {stable_mosaic.version = 11 : i64} {
  func.func @_linear_bn_relu_kernel(%arg0: i32, %arg1: i32, %arg2: memref<8x2048xf32, #tpu.memory_space<vmem>>, %arg3: memref<2048x1536xbf16, #tpu.memory_space<vmem>>, %arg4: memref<1x1536xf32, #tpu.memory_space<vmem>>, %arg5: memref<1x1536xf32, #tpu.memory_space<vmem>>, %arg6: memref<8x1536xf32, #tpu.memory_space<vmem>>, %arg7: memref<8x1536xf32, #tpu.memory_space<vmem>>) attributes {dimension_semantics = [#tpu.dimension_semantics<parallel>, #tpu.dimension_semantics<arbitrary>], iteration_bounds = array<i64: 2, 4>, scalar_prefetch = 0 : i64, scratch_operands = 1 : i64, tpu.core_type = #tpu.core_type<tc>, window_params = [{transform_indices = @transform_0, window_bounds = array<i64: 8, 2048>}, {transform_indices = @transform_1, window_bounds = array<i64: 2048, 1536>}, {transform_indices = @transform_2, window_bounds = array<i64: 1, 1536>}, {transform_indices = @transform_3, window_bounds = array<i64: 1, 1536>}, {transform_indices = @transform_4, window_bounds = array<i64: 8, 1536>}]} {
    %c0_i32 = arith.constant 0 : i32
    %0 = arith.cmpi eq, %arg1, %c0_i32 : i32
    %1 = arith.extui %0 : i1 to i32
    %c0_i32_0 = arith.constant 0 : i32
    %2 = arith.cmpi ne, %1, %c0_i32_0 : i32
    scf.if %2 {
      %cst_9 = arith.constant 0.000000e+00 : f32
      %13 = vector.broadcast %cst_9 : f32 to vector<8x1536xf32>
      %c0_10 = arith.constant 0 : index
      %c0_11 = arith.constant 0 : index
      %14 = vector.load %arg7[%c0_10, %c0_11] : memref<8x1536xf32, #tpu.memory_space<vmem>>, vector<8x1536xf32>
      tpu.vector_store %arg7[%c0_10, %c0_11], %13 {strides = array<i32>} : memref<8x1536xf32, #tpu.memory_space<vmem>>, vector<8x1536xf32>,
    } else {
    }
    %c0 = arith.constant 0 : index
    %c0_1 = arith.constant 0 : index
    %3 = vector.load %arg7[%c0, %c0_1] : memref<8x1536xf32, #tpu.memory_space<vmem>>, vector<8x1536xf32>
    %c0_2 = arith.constant 0 : index
    %c0_3 = arith.constant 0 : index
    %4 = vector.load %arg2[%c0_2, %c0_3] : memref<8x2048xf32, #tpu.memory_space<vmem>>, vector<8x2048xf32>
    %5 = arith.truncf %4 : vector<8x2048xf32> to vector<8x2048xbf16>
    %c0_4 = arith.constant 0 : index
    %c0_5 = arith.constant 0 : index
    %6 = vector.load %arg3[%c0_4, %c0_5] : memref<2048x1536xbf16, #tpu.memory_space<vmem>>, vector<2048x1536xbf16>
    %cst = arith.constant dense<0.000000e+00> : vector<8x1536xf32>
    %7 = tpu.matmul %5, %6, %cst {dimension_numbers = #tpu.dot_dimension_numbers<[1], [0], [0], [1], [0, 0, 1, 1], [], []>} : vector<8x2048xbf16>, vector<2048x1536xbf16>, vector<8x1536xf32> -> vector<8x1536xf32>
    %8 = arith.addf %3, %7 : vector<8x1536xf32>
    %c0_6 = arith.constant 0 : index
    %c0_7 = arith.constant 0 : index
    %9 = vector.load %arg7[%c0_6, %c0_7] : memref<8x1536xf32, #tpu.memory_space<vmem>>, vector<8x1536xf32>
    tpu.vector_store %arg7[%c0_6, %c0_7], %8 {strides = array<i32>} : memref<8x1536xf32, #tpu.memory_space<vmem>>, vector<8x1536xf32>,
    %c3_i32 = arith.constant 3 : i32
    %10 = arith.cmpi eq, %arg1, %c3_i32 : i32
    %11 = arith.extui %10 : i1 to i32
    %c0_i32_8 = arith.constant 0 : i32
    %12 = arith.cmpi ne, %11, %c0_i32_8 : i32
    scf.if %12 {
      %c0_9 = arith.constant 0 : index
      %c0_10 = arith.constant 0 : index
      %13 = vector.load %arg7[%c0_9, %c0_10] : memref<8x1536xf32, #tpu.memory_space<vmem>>, vector<8x1536xf32>
      %14 = tpu.iota {dimensions = array<i32: 0>} : vector<8x1536xi32>
      %c4_i32 = arith.constant 4 : i32
      %15 = vector.broadcast %c4_i32 : i32 to vector<8x1536xi32>
      %16 = arith.cmpi slt, %14, %15 : vector<8x1536xi32>
      %cst_11 = arith.constant dense<0.000000e+00> : vector<1536xf32>
      %17 = vector.multi_reduction <add>, %13, %cst_11 [0] : vector<8x1536xf32> to vector<1536xf32>
      %18 = vector.shape_cast %17 : vector<1536xf32> to vector<1x1536xf32>
      %cst_12 = arith.constant 2.500000e-01 : f32
      %19 = vector.broadcast %cst_12 : f32 to vector<1x1536xf32>
      %20 = arith.mulf %18, %19 : vector<1x1536xf32>
      %21 = vector.broadcast %20 : vector<1x1536xf32> to vector<8x1536xf32>
      %22 = arith.subf %13, %21 : vector<8x1536xf32>
      %cst_13 = arith.constant 0.000000e+00 : f32
      %23 = vector.broadcast %cst_13 : f32 to vector<8x1536xf32>
      %24 = arith.select %16, %22, %23 : vector<8x1536xi1>, vector<8x1536xf32>
      %25 = arith.mulf %24, %24 : vector<8x1536xf32>
      %cst_14 = arith.constant dense<0.000000e+00> : vector<1536xf32>
      %26 = vector.multi_reduction <add>, %25, %cst_14 [0] : vector<8x1536xf32> to vector<1536xf32>
      %27 = vector.shape_cast %26 : vector<1536xf32> to vector<1x1536xf32>
      %cst_15 = arith.constant 2.500000e-01 : f32
      %28 = vector.broadcast %cst_15 : f32 to vector<1x1536xf32>
      %29 = arith.mulf %27, %28 : vector<1x1536xf32>
      %cst_16 = arith.constant 9.99999974E-6 : f32
      %30 = vector.broadcast %cst_16 : f32 to vector<1x1536xf32>
      %31 = arith.addf %29, %30 : vector<1x1536xf32>
      %32 = math.rsqrt %31 : vector<1x1536xf32>
      %33 = vector.broadcast %32 : vector<1x1536xf32> to vector<8x1536xf32>
      %34 = arith.mulf %24, %33 : vector<8x1536xf32>
      %c0_17 = arith.constant 0 : index
      %c0_18 = arith.constant 0 : index
      %35 = vector.load %arg4[%c0_17, %c0_18] : memref<1x1536xf32, #tpu.memory_space<vmem>>, vector<1x1536xf32>
      %36 = vector.broadcast %35 : vector<1x1536xf32> to vector<8x1536xf32>
      %37 = arith.mulf %36, %34 : vector<8x1536xf32>
      %c0_19 = arith.constant 0 : index
      %c0_20 = arith.constant 0 : index
      %38 = vector.load %arg5[%c0_19, %c0_20] : memref<1x1536xf32, #tpu.memory_space<vmem>>, vector<1x1536xf32>
      %39 = vector.broadcast %38 : vector<1x1536xf32> to vector<8x1536xf32>
      %40 = arith.addf %37, %39 : vector<8x1536xf32>
      %cst_21 = arith.constant 0.000000e+00 : f32
      %41 = vector.broadcast %cst_21 : f32 to vector<8x1536xf32>
      %42 = arith.maximumf %40, %41 : vector<8x1536xf32>
      %cst_22 = arith.constant 0.000000e+00 : f32
      %43 = vector.broadcast %cst_22 : f32 to vector<8x1536xf32>
      %44 = arith.select %16, %42, %43 : vector<8x1536xi1>, vector<8x1536xf32>
      %c0_23 = arith.constant 0 : index
      %c0_24 = arith.constant 0 : index
      %45 = vector.load %arg6[%c0_23, %c0_24] : memref<8x1536xf32, #tpu.memory_space<vmem>>, vector<8x1536xf32>
      tpu.vector_store %arg6[%c0_23, %c0_24], %44 {strides = array<i32>} : memref<8x1536xf32, #tpu.memory_space<vmem>>, vector<8x1536xf32>,
    } else {
    }
    return
  }
  func.func @transform_0(%arg0: i32, %arg1: i32) -> (i32, i32) {
    %c0_i32 = arith.constant 0 : i32
    %c0_i32_0 = arith.constant 0 : i32
    return %c0_i32, %arg1 : i32, i32
  }
  func.func @transform_1(%arg0: i32, %arg1: i32) -> (i32, i32) {
    %c0_i32 = arith.constant 0 : i32
    return %arg1, %arg0 : i32, i32
  }
  func.func @transform_2(%arg0: i32, %arg1: i32) -> (i32, i32) {
    %c0_i32 = arith.constant 0 : i32
    %c0_i32_0 = arith.constant 0 : i32
    return %c0_i32, %arg0 : i32, i32
  }
  func.func @transform_3(%arg0: i32, %arg1: i32) -> (i32, i32) {
    %c0_i32 = arith.constant 0 : i32
    %c0_i32_0 = arith.constant 0 : i32
    return %c0_i32, %arg0 : i32, i32
  }
  func.func @transform_4(%arg0: i32, %arg1: i32) -> (i32, i32) {
    %c0_i32 = arith.constant 0 : i32
    %c0_i32_0 = arith.constant 0 : i32
    return %c0_i32, %arg0 : i32, i32
  }
}

</mosaic_0001>

<llo_original>
// kernel: tpu_custom_call.1
$region0: #{tpu_custom_call.1}
  #allocation0 [shape = 'u32[]', space=smem, size = 0x4, offset = 0x4, fixed_abs, tag = 'smem constant byte address 0x4 - core index']
  #allocation1 [shape = 'u32[72,128]{1,0:T(1,128)}', space=vmem, size = 0x9000, scoped, tag = 'internal scratch']
  #allocation2 [shape = 'f32[8,1536]{1,0:T(8,128)}', space=vmem, size = 0xc000, scoped, tag = 'scratch operand']
  %s0 = inlined_call_operand.hbm [shape: f32[8,8192], index: 0, kind: input, shape index: {}]
  %s1 = inlined_call_operand.hbm [shape: bf16[8192,3072], index: 1, kind: input, shape index: {}]
  %s2 = inlined_call_operand.hbm [shape: f32[1,3072], index: 2, kind: input, shape index: {}]
  %s3 = inlined_call_operand.hbm [shape: f32[1,3072], index: 3, kind: input, shape index: {}]
  %s4 = inlined_call_operand.hbm [shape: f32[8,3072], index: 4, kind: output, shape index: {}]
  %s5 = sld [smem:[#allocation0]]
  $region73: #{tpu_custom_call.1} parent=0
    _
  %s7 = ssub.s32 1, %s5
  %s8 = scalar_select 0, %s7, %s5
  $region1: #{tpu_custom_call.1} parent=0
    #allocation3 [shape = 'u8[131072]{0}', space=vmem, size = 0x20000, scoped, tag = 'input window, operand 0']
    #allocation4 [shape = 's32[2]{0}', space=sflag, size = 0x8, scoped, tag = 'scoped memory for tpu_custom_call.1']
    #allocation5 [shape = 's32[2]{0}', space=sflag, size = 0x8, scoped, tag = 'scoped memory for tpu_custom_call.1']
    #allocation6 [shape = 'u8[12582912]{0}', space=vmem, size = 0xc00000, scoped, tag = 'input window, operand 1']
    #allocation7 [shape = 's32[2]{0}', space=sflag, size = 0x8, scoped, tag = 'scoped memory for tpu_custom_call.1']
    #allocation8 [shape = 'u8[12288]{0}', space=vmem, size = 0x3000, scoped, tag = 'input window, operand 2']
    #allocation9 [shape = 'u8[12288]{0}', space=vmem, size = 0x3000, scoped, tag = 'input window, operand 3']
    #allocation10 [shape = 's32[2]{0}', space=sflag, size = 0x8, scoped, tag = 'scoped memory for tpu_custom_call.1']
    #allocation11 [shape = 'u8[98304]{0}', space=vmem, size = 0x18000, scoped, tag = 'output window, operand 0']
    %9 = vsyncpa [#allocation4], 0
    %s10 = scalar_lea.sflag [#allocation4], 1
    %11 = vsyncpa %s10, 0
    %12 = vsyncpa [#allocation7], 0
    %s13 = scalar_lea.sflag [#allocation7], 1
    %14 = vsyncpa %s13, 0
    %15 = vsyncpa [#allocation10], 0
    %s16 = scalar_lea.sflag [#allocation10], 1
    %17 = vsyncpa %s16, 0
    %18 = vsyncpa [#allocation5], 0
    %s19 = scalar_lea.sflag [#allocation5], 1
    %20 = vsyncpa %s19, 0
    loop: start=0, step=1, limit=10
    $region2: #{tpu_custom_call.1} parent=1 // loop_pre_header
      _
    $region3: #{tpu_custom_call.1} parent=1 // loop_header
      %s22 = sphi 0, %s26
      %p23 = scmp.ge.s32.totalorder %s22, 10
      %s29 = sphi 0, %s41
      %s30 = sphi 0, %s37
      %s31 = sphi 0, %s29
      %s32 = sphi 0, %s30
      %s33 = sphi 0, %s31
      %s34 = sphi 0, %s32
      %s44 = sphi 0, %s46
      %s47 = sphi 0, %s44
      %s48 = sphi 0, %s47
      %s64 = sphi 0, %s48
      %s72 = sphi 0, %s74
      %s75 = sphi 0, %s72
      %s76 = sphi 0, %s75
      %s92 = sphi 0, %s76
      %s98 = sphi 0, %s100
      %s101 = sphi 0, %s98
      %s102 = sphi 0, %s101
      %s118 = sphi 0, %s102
      %s124 = sphi 0, %s126
      %s127 = sphi 0, %s124
      %s128 = sphi 0, %s127
      %s144 = sphi 0, %s128
      %s150 = sphi 0, %s152
      %s153 = sphi 0, %s150
      %s154 = sphi 0, %s153
      %s170 = sphi 0, %s154
    $region4: #{tpu_custom_call.1} parent=1 // loop_header_branch
      %25 = sbr.rel (%p23) target = $region8
    $region5: #{tpu_custom_call.1} parent=1 // loop_body
      %s27 = ssub.s32 %s22, 1
      %s28 = ssub.s32 %s22, 2
      %s35 = sadd.s32 1, %s30
      %p36 = scmp.ge.s32.totalorder %s35, 4
      %s37 = scalar_select %p36, 0, %s35
      %s38 = sadd.s32 1, %s29
      %s39 = scalar_select %p36, %s38, %s29
      %p40 = scmp.ge.s32.totalorder %s39, 2
      %s41 = scalar_select %p40, 0, %s39
      %s42 = ssub.s32 %s30, %s37
      %p43 = scmp.eq.s32.totalorder %s42, 0
      %s45 = sadd.s32 %s44, 1
      %s46 = scalar_select %p43, %s44, %s45
      %p49 = pneg %p43
      %p50 = scmp.eq.s32.totalorder %s22, 7
      %p51 = por %p49, %p50
      %p52 = scmp.ne.s32.totalorder %s44, %s47
      %p53 = scmp.eq.s32.totalorder %s22, 0
      %p54 = por %p52, %p53
      %p55 = scmp.ne.s32.totalorder %s44, %s47
      %p56 = scmp.eq.s32.totalorder %s27, 7
      %p57 = por %p55, %p56
      %p58 = scmp.ne.s32.totalorder %s47, %s48
      %p59 = scmp.eq.s32.totalorder %s27, 0
      %p60 = por %p58, %p59
      %p61 = scmp.ne.s32.totalorder %s47, %s48
      %p62 = scmp.eq.s32.totalorder %s28, 7
      %p63 = por %p61, %p62
      %p65 = scmp.ne.s32.totalorder %s48, %s64
      %p66 = scmp.eq.s32.totalorder %s28, 0
      %p67 = por %p65, %p66
      %s68 = ssub.s32 %s30, %s37
      %s69 = ssub.s32 %s29, %s41
      %s70 = sor.u32 %s68, %s69
      %p71 = scmp.eq.s32.totalorder %s70, 0
      %s73 = sadd.s32 %s72, 1
      %s74 = scalar_select %p71, %s72, %s73
      %p77 = pneg %p71
      %p78 = scmp.eq.s32.totalorder %s22, 7
      %p79 = por %p77, %p78
      %p80 = scmp.ne.s32.totalorder %s72, %s75
      %p81 = scmp.eq.s32.totalorder %s22, 0
      %p82 = por %p80, %p81
      %p83 = scmp.ne.s32.totalorder %s72, %s75
      %p84 = scmp.eq.s32.totalorder %s27, 7
      %p85 = por %p83, %p84
      %p86 = scmp.ne.s32.totalorder %s75, %s76
      %p87 = scmp.eq.s32.totalorder %s27, 0
      %p88 = por %p86, %p87
      %p89 = scmp.ne.s32.totalorder %s75, %s76
      %p90 = scmp.eq.s32.totalorder %s28, 7
      %p91 = por %p89, %p90
      %p93 = scmp.ne.s32.totalorder %s76, %s92
      %p94 = scmp.eq.s32.totalorder %s28, 0
      %p95 = por %p93, %p94
      %s96 = ssub.s32 %s29, %s41
      %p97 = scmp.eq.s32.totalorder %s96, 0
      %s99 = sadd.s32 %s98, 1
      %s100 = scalar_select %p97, %s98, %s99
      %p103 = pneg %p97
      %p104 = scmp.eq.s32.totalorder %s22, 7
      %p105 = por %p103, %p104
      %p106 = scmp.ne.s32.totalorder %s98, %s101
      %p107 = scmp.eq.s32.totalorder %s22, 0
      %p108 = por %p106, %p107
      %p109 = scmp.ne.s32.totalorder %s98, %s101
      %p110 = scmp.eq.s32.totalorder %s27, 7
      %p111 = por %p109, %p110
      %p112 = scmp.ne.s32.totalorder %s101, %s102
      %p113 = scmp.eq.s32.totalorder %s27, 0
      %p114 = por %p112, %p113
      %p115 = scmp.ne.s32.totalorder %s101, %s102
      %p116 = scmp.eq.s32.totalorder %s28, 7
      %p117 = por %p115, %p116
      %p119 = scmp.ne.s32.totalorder %s102, %s118
      %p120 = scmp.eq.s32.totalorder %s28, 0
      %p121 = por %p119, %p120
      %s122 = ssub.s32 %s29, %s41
      %p123 = scmp.eq.s32.totalorder %s122, 0
      %s125 = sadd.s32 %s124, 1
      %s126 = scalar_select %p123, %s124, %s125
      %p129 = pneg %p123
      %p130 = scmp.eq.s32.totalorder %s22, 7
      %p131 = por %p129, %p130
      %p132 = scmp.ne.s32.totalorder %s124, %s127
      %p133 = scmp.eq.s32.totalorder %s22, 0
      %p134 = por %p132, %p133
      %p135 = scmp.ne.s32.totalorder %s124, %s127
      %p136 = scmp.eq.s32.totalorder %s27, 7
      %p137 = por %p135, %p136
      %p138 = scmp.ne.s32.totalorder %s127, %s128
      %p139 = scmp.eq.s32.totalorder %s27, 0
      %p140 = por %p138, %p139
      %p141 = scmp.ne.s32.totalorder %s127, %s128
      %p142 = scmp.eq.s32.totalorder %s28, 7
      %p143 = por %p141, %p142
      %p145 = scmp.ne.s32.totalorder %s128, %s144
      %p146 = scmp.eq.s32.totalorder %s28, 0
      %p147 = por %p145, %p146
      %s148 = ssub.s32 %s29, %s41
      %p149 = scmp.eq.s32.totalorder %s148, 0
      %s151 = sadd.s32 %s150, 1
      %s152 = scalar_select %p149, %s150, %s151
      %p155 = pneg %p149
      %p156 = scmp.eq.s32.totalorder %s22, 7
      %p157 = por %p155, %p156
      %p158 = scmp.ne.s32.totalorder %s150, %s153
      %p159 = scmp.eq.s32.totalorder %s22, 0
      %p160 = por %p158, %p159
      %p161 = scmp.ne.s32.totalorder %s150, %s153
      %p162 = scmp.eq.s32.totalorder %s27, 7
      %p163 = por %p161, %p162
      %p164 = scmp.ne.s32.totalorder %s153, %s154
      %p165 = scmp.eq.s32.totalorder %s27, 0
      %p166 = por %p164, %p165
      %p167 = scmp.ne.s32.totalorder %s153, %s154
      %p168 = scmp.eq.s32.totalorder %s28, 7
      %p169 = por %p167, %p168
      %p171 = scmp.ne.s32.totalorder %s154, %s170
      %p172 = scmp.eq.s32.totalorder %s28, 0
      %p173 = por %p171, %p172
      %p174 = scmp.le.s32.totalorder 1, %s22
      %p175 = scmp.lt.s32.totalorder %s22, 9
      %p176 = pnand %p174, %p175
      %p177 = pneg %p176
      // Predicated region
      $region9: #{tpu_custom_call.1} parent=5 // pred_check
        _
      $region10: #{tpu_custom_call.1} parent=5 // pred_check_branch
        %179 = sbr.rel (%p176) target = $region12
      $region11: #{tpu_custom_call.1} parent=5 // pred_region
        %s180 = ssub.s32 %s22, 1
      $region12: #{tpu_custom_call.1} parent=5 // pred_fallthru
        _
      %p181 = scmp.lt.s32.totalorder %s22, 8
      // Predicated region
      $region13: #{tpu_custom_call.1} parent=5 // pred_check
        %p182 = pneg %p181
      $region14: #{tpu_custom_call.1} parent=5 // pred_check_branch
        %184 = sbr.rel (%p182) target = $region16
      $region15: #{tpu_custom_call.1} parent=5 // pred_region
        // Predicated region
        $region17: #{tpu_custom_call.1} parent=15 // pred_check
          %p185 = pneg %p54
        $region18: #{tpu_custom_call.1} parent=15 // pred_check_branch
          %187 = sbr.rel (%p185) target = $region20
        $region19: #{tpu_custom_call.1} parent=15 // pred_region
          %s188 = sand.u32 %s44, 1
          %s189 = scalar_lea.sflag [#allocation4], %s188
          %s190 = sand.u32 %s44, 1
          %s191 = smul.addr %s190, 128
          %s192 = scalar_lea.vmem [#allocation3], %s191
          %s193 = smul.u32 16, %s30
          %195 = vsyncadd %s189, 0
          %s196 = smul.addr %s193, 8
          %s197 = scalar_lea.hbm %s0, %s196
          %s199 = sshll.u32 %s197, 4
          %s200 = int_to_ptr.hbm [resolvable:$true] %s199
          %s201 = sshll.u32 %s192, 4
          %s202 = int_to_ptr.vmem [resolvable:$true] %s201
          %204 = dma.hbm_to_vmem [thread:$0]  %s200, 2048, %s202, %s189
        $region20: #{tpu_custom_call.1} parent=15 // pred_fallthru
          _
        // Predicated region
        $region21: #{tpu_custom_call.1} parent=15 // pred_check
          %p205 = pneg %p82
        $region22: #{tpu_custom_call.1} parent=15 // pred_check_branch
          %207 = sbr.rel (%p205) target = $region24
        $region23: #{tpu_custom_call.1} parent=15 // pred_region
          %s208 = sand.u32 %s22, 1
          %s209 = scalar_lea.sflag [#allocation7], %s208
          %s210 = sand.u32 %s72, 1
          %s211 = smul.addr %s210, 12288
          %s212 = scalar_lea.vmem [#allocation6], %s211
          %s213 = smul.u32 256, %s30
          %s214 = smul.u32 12, %s29
          %216 = vsyncadd %s209, 0
          %s217 = smul.addr %s213, 24
          %s218 = sadd.s32 %s214, %s217
          %s219 = smul.addr %s218, 4
          %s220 = scalar_lea.hbm %s1, %s219
          %s221 = sshll.u32 %s220, 4
          %s222 = int_to_ptr.hbm [resolvable:$true] %s221
          %s223 = sshll.u32 %s212, 4
          %s224 = int_to_ptr.vmem [resolvable:$true] %s223
          %229 = dma.hbm_to_vmem [thread:$0]  %s222, 196608, %s224, %s209, 1536, 768, 48
        $region24: #{tpu_custom_call.1} parent=15 // pred_fallthru
          _
        // Predicated region
        $region25: #{tpu_custom_call.1} parent=15 // pred_check
          %p230 = pneg %p108
        $region26: #{tpu_custom_call.1} parent=15 // pred_check_branch
          %232 = sbr.rel (%p230) target = $region28
        $region27: #{tpu_custom_call.1} parent=15 // pred_region
          %s233 = sand.u32 %s22, 1
          %s234 = scalar_lea.sflag [#allocation7], %s233
          %s235 = sand.u32 %s98, 1
          %s236 = smul.addr %s235, 12
          %s237 = scalar_lea.vmem [#allocation8], %s236
          %s238 = smul.u32 12, %s29
          %240 = vsyncadd %s234, 0
          %s241 = scalar_lea.hbm %s2, %s238
          %s243 = sshll.u32 %s241, 4
          %s244 = int_to_ptr.hbm [resolvable:$true] %s243
          %s245 = sshll.u32 %s237, 4
          %s246 = int_to_ptr.vmem [resolvable:$true] %s245
          %248 = dma.hbm_to_vmem [thread:$0]  %s244, 192, %s246, %s234
        $region28: #{tpu_custom_call.1} parent=15 // pred_fallthru
          _
        // Predicated region
        $region29: #{tpu_custom_call.1} parent=15 // pred_check
          %p249 = pneg %p134
        $region30: #{tpu_custom_call.1} parent=15 // pred_check_branch
          %251 = sbr.rel (%p249) target = $region32
        $region31: #{tpu_custom_call.1} parent=15 // pred_region
          %s252 = sand.u32 %s124, 1
          %s253 = scalar_lea.sflag [#allocation10], %s252
          %s254 = sand.u32 %s124, 1
          %s255 = smul.addr %s254, 12
          %s256 = scalar_lea.vmem [#allocation9], %s255
          %s257 = smul.u32 12, %s29
          %259 = vsyncadd %s253, 0
          %s260 = scalar_lea.hbm %s3, %s257
          %s262 = sshll.u32 %s260, 4
          %s263 = int_to_ptr.hbm [resolvable:$true] %s262
          %s264 = sshll.u32 %s256, 4
          %s265 = int_to_ptr.vmem [resolvable:$true] %s264
          %267 = dma.hbm_to_vmem [thread:$0]  %s263, 192, %s265, %s253
        $region32: #{tpu_custom_call.1} parent=15 // pred_fallthru
          _
      $region16: #{tpu_custom_call.1} parent=5 // pred_fallthru
        _
      %p268 = scmp.le.s32.totalorder 1, %s22
      %p269 = scmp.lt.s32.totalorder %s22, 9
      %p270 = pnand %p268, %p269
      %p271 = pneg %p270
      // Predicated region
      $region33: #{tpu_custom_call.1} parent=5 // pred_check
        _
      $region34: #{tpu_custom_call.1} parent=5 // pred_check_branch
        %273 = sbr.rel (%p270) target = $region36
      $region35: #{tpu_custom_call.1} parent=5 // pred_region
        %s274 = ssub.s32 %s22, 1
        %s275 = sand.u32 %s47, 1
        %s276 = scalar_lea.sflag [#allocation4], %s275
        %s277 = sand.u32 %s47, 1
        %s278 = smul.addr %s277, 128
        %s279 = scalar_lea.vmem [#allocation3], %s278
        // Predicated region
        $region37: #{tpu_custom_call.1} parent=35 // pred_check
          %p280 = pneg %p60
        $region38: #{tpu_custom_call.1} parent=35 // pred_check_branch
          %282 = sbr.rel (%p280) target = $region40
        $region39: #{tpu_custom_call.1} parent=35 // pred_region
          %284 = dma.done %s276, 2048
        $region40: #{tpu_custom_call.1} parent=35 // pred_fallthru
          _
        %s285 = sand.u32 %s27, 1
        %s286 = scalar_lea.sflag [#allocation7], %s285
        %s287 = sand.u32 %s75, 1
        %s288 = smul.addr %s287, 12288
        %s289 = scalar_lea.vmem [#allocation6], %s288
        // Predicated region
        $region41: #{tpu_custom_call.1} parent=35 // pred_check
          %p290 = pneg %p88
        $region42: #{tpu_custom_call.1} parent=35 // pred_check_branch
          %292 = sbr.rel (%p290) target = $region44
        $region43: #{tpu_custom_call.1} parent=35 // pred_region
          %294 = dma.done %s286, 196608
        $region44: #{tpu_custom_call.1} parent=35 // pred_fallthru
          _
        %s295 = sand.u32 %s27, 1
        %s296 = scalar_lea.sflag [#allocation7], %s295
        %s297 = sand.u32 %s101, 1
        %s298 = smul.addr %s297, 12
        %s299 = scalar_lea.vmem [#allocation8], %s298
        // Predicated region
        $region45: #{tpu_custom_call.1} parent=35 // pred_check
          %p300 = pneg %p114
        $region46: #{tpu_custom_call.1} parent=35 // pred_check_branch
          %302 = sbr.rel (%p300) target = $region48
        $region47: #{tpu_custom_call.1} parent=35 // pred_region
          %304 = dma.done %s296, 192
        $region48: #{tpu_custom_call.1} parent=35 // pred_fallthru
          _
        %s305 = sand.u32 %s127, 1
        %s306 = scalar_lea.sflag [#allocation10], %s305
        %s307 = sand.u32 %s127, 1
        %s308 = smul.addr %s307, 12
        %s309 = scalar_lea.vmem [#allocation9], %s308
        // Predicated region
        $region49: #{tpu_custom_call.1} parent=35 // pred_check
          %p310 = pneg %p140
        $region50: #{tpu_custom_call.1} parent=35 // pred_check_branch
          %312 = sbr.rel (%p310) target = $region52
        $region51: #{tpu_custom_call.1} parent=35 // pred_region
          %314 = dma.done %s306, 192
        $region52: #{tpu_custom_call.1} parent=35 // pred_fallthru
          _
        %s315 = sand.u32 %s47, 1
        %s316 = scalar_lea.sflag [#allocation4], %s315
        %s317 = sand.u32 %s47, 1
        %s318 = smul.addr %s317, 128
        %s319 = scalar_lea.vmem [#allocation3], %s318
        %p320 = pneg %p60
        %p321 = pneg %p57
        %s322 = sand.u32 %s27, 1
        %s323 = scalar_lea.sflag [#allocation7], %s322
        %s324 = sand.u32 %s75, 1
        %s325 = smul.addr %s324, 12288
        %s326 = scalar_lea.vmem [#allocation6], %s325
        %p327 = pneg %p88
        %p328 = pneg %p85
        %s329 = sand.u32 %s27, 1
        %s330 = scalar_lea.sflag [#allocation7], %s329
        %s331 = sand.u32 %s101, 1
        %s332 = smul.addr %s331, 12
        %s333 = scalar_lea.vmem [#allocation8], %s332
        %p334 = pneg %p114
        %p335 = pneg %p111
        %s336 = sand.u32 %s127, 1
        %s337 = scalar_lea.sflag [#allocation10], %s336
        %s338 = sand.u32 %s127, 1
        %s339 = smul.addr %s338, 12
        %s340 = scalar_lea.vmem [#allocation9], %s339
        %p341 = pneg %p140
        %p342 = pneg %p137
        %p343 = pneg %p166
        %p344 = pneg %p163
        %s345 = sand.u32 %s153, 1
        %s346 = scalar_lea.sflag [#allocation5], %s345
        %s347 = sand.u32 %s153, 1
        %s348 = smul.addr %s347, 96
        %s349 = scalar_lea.vmem [#allocation11], %s348
        %s350 = smul.u32 16, %s32
        %s351 = smul.u32 256, %s32
        %s352 = smul.u32 12, %s31
        %s353 = smul.u32 12, %s31
        %s354 = smul.u32 12, %s31
        %s355 = smul.u32 12, %s31
        %p356 = scmp.eq.s32.totalorder %s32, 0
        // Predicated region
        $region53: #{tpu_custom_call.1} parent=35 // pred_check
          %p357 = pneg %p356
        $region54: #{tpu_custom_call.1} parent=35 // pred_check_branch
          %359 = sbr.rel (%p357) target = $region56
        $region55: #{tpu_custom_call.1} parent=35 // pred_region
          %360 = vst [vmem:[#allocation2] sm:$0xff] 0.0
          %361 = vst [vmem:[#allocation2 + $0x8] sm:$0xff] 0.0
          %362 = vst [vmem:[#allocation2 + $0x10] sm:$0xff] 0.0
          %363 = vst [vmem:[#allocation2 + $0x18] sm:$0xff] 0.0
          %364 = vst [vmem:[#allocation2 + $0x20] sm:$0xff] 0.0
          %365 = vst [vmem:[#allocation2 + $0x28] sm:$0xff] 0.0
          %366 = vst [vmem:[#allocation2 + $0x30] sm:$0xff] 0.0
          %367 = vst [vmem:[#allocation2 + $0x38] sm:$0xff] 0.0
          %368 = vst [vmem:[#allocation2 + $0x40] sm:$0xff] 0.0
          %369 = vst [vmem:[#allocation2 + $0x48] sm:$0xff] 0.0
          %370 = vst [vmem:[#allocation2 + $0x50] sm:$0xff] 0.0
          %371 = vst [vmem:[#allocation2 + $0x58] sm:$0xff] 0.0
        $region56: #{tpu_custom_call.1} parent=35 // pred_fallthru
          _
        %v372 = vld [vmem:[#allocation2] sm:$0xff]
        %v373 = vld [vmem:[#allocation2 + $0x8] sm:$0xff]
        %v374 = vld [vmem:[#allocation2 + $0x10] sm:$0xff]
        %v375 = vld [vmem:[#allocation2 + $0x18] sm:$0xff]
        %v376 = vld [vmem:[#allocation2 + $0x20] sm:$0xff]
        %v377 = vld [vmem:[#allocation2 + $0x28] sm:$0xff]
        %v378 = vld [vmem:[#allocation2 + $0x30] sm:$0xff]
        %v379 = vld [vmem:[#allocation2 + $0x38] sm:$0xff]
        %v380 = vld [vmem:[#allocation2 + $0x40] sm:$0xff]
        %v381 = vld [vmem:[#allocation2 + $0x48] sm:$0xff]
        %v382 = vld [vmem:[#allocation2 + $0x50] sm:$0xff]
        %v383 = vld [vmem:[#allocation2 + $0x58] sm:$0xff]
        %v384 = vld [vmem:[%s279] sm:$0xff]
        %v385 = vld [vmem:[%s279 + $0x8] sm:$0xff]
        %v386 = vld [vmem:[%s279 + $0x10] sm:$0xff]
        %v387 = vld [vmem:[%s279 + $0x18] sm:$0xff]
        %v388 = vld [vmem:[%s279 + $0x20] sm:$0xff]
        %v389 = vld [vmem:[%s279 + $0x28] sm:$0xff]
        %v390 = vld [vmem:[%s279 + $0x30] sm:$0xff]
        %v391 = vld [vmem:[%s279 + $0x38] sm:$0xff]
        %v392 = vld [vmem:[%s279 + $0x40] sm:$0xff]
        %v393 = vld [vmem:[%s279 + $0x48] sm:$0xff]
        %v394 = vld [vmem:[%s279 + $0x50] sm:$0xff]
        %v395 = vld [vmem:[%s279 + $0x58] sm:$0xff]
        %v396 = vld [vmem:[%s279 + $0x60] sm:$0xff]
        %v397 = vld [vmem:[%s279 + $0x68] sm:$0xff]
        %v398 = vld [vmem:[%s279 + $0x70] sm:$0xff]
        %v399 = vld [vmem:[%s279 + $0x78] sm:$0xff]
        %v400 = vpack.c.bf16 %v384, %v384
        %v401 = vpack.c.bf16 %v385, %v385
        %v402 = vpack.c.bf16 %v386, %v386
        %v403 = vpack.c.bf16 %v387, %v387
        %v404 = vpack.c.bf16 %v388, %v388
        %v405 = vpack.c.bf16 %v389, %v389
        %v406 = vpack.c.bf16 %v390, %v390
        %v407 = vpack.c.bf16 %v391, %v391
        %v408 = vpack.c.bf16 %v392, %v392
        %v409 = vpack.c.bf16 %v393, %v393
        %v410 = vpack.c.bf16 %v394, %v394
        %v411 = vpack.c.bf16 %v395, %v395
        %v412 = vpack.c.bf16 %v396, %v396
        %v413 = vpack.c.bf16 %v397, %v397
        %v414 = vpack.c.bf16 %v398, %v398
        %v415 = vpack.c.bf16 %v399, %v399
        %v416 = vld [vmem:[%s289] sm:$0xff]
        %v417 = vld [vmem:[%s289 + $0x8] sm:$0xff]
        %v418 = vld [vmem:[%s289 + $0x10] sm:$0xff]
        %v419 = vld [vmem:[%s289 + $0x18] sm:$0xff]
        %v420 = vld [vmem:[%s289 + $0x20] sm:$0xff]
        %v421 = vld [vmem:[%s289 + $0x28] sm:$0xff]
        %v422 = vld [vmem:[%s289 + $0x30] sm:$0xff]
        %v423 = vld [vmem:[%s289 + $0x38] sm:$0xff]
        %v424 = vld [vmem:[%s289 + $0x40] sm:$0xff]
        %v425 = vld [vmem:[%s289 + $0x48] sm:$0xff]
        %v426 = vld [vmem:[%s289 + $0x50] sm:$0xff]
        %v427 = vld [vmem:[%s289 + $0x58] sm:$0xff]
        %v428 = vld [vmem:[%s289 + $0x60] sm:$0xff]
        %v429 = vld [vmem:[%s289 + $0x68] sm:$0xff]
        %v430 = vld [vmem:[%s289 + $0x70] sm:$0xff]
        %v431 = vld [vmem:[%s289 + $0x78] sm:$0xff]
        %v432 = vld [vmem:[%s289 + $0x80] sm:$0xff]
        %v433 = vld [vmem:[%s289 + $0x88] sm:$0xff]
        %v434 = vld [vmem:[%s289 + $0x90] sm:$0xff]
        %v435 = vld [vmem:[%s289 + $0x98] sm:$0xff]
        %v436 = vld [vmem:[%s289 + $0xa0] sm:$0xff]
        %v437 = vld [vmem:[%s289 + $0xa8] sm:$0xff]
        %v438 = vld [vmem:[%s289 + $0xb0] sm:$0xff]
        %v439 = vld [vmem:[%s289 + $0xb8] sm:$0xff]
        %v440 = vld [vmem:[%s289 + $0xc0] sm:$0xff]
        %v441 = vld [vmem:[%s289 + $0xc8] sm:$0xff]
        %v442 = vld [vmem:[%s289 + $0xd0] sm:$0xff]
        %v443 = vld [vmem:[%s289 + $0xd8] sm:$0xff]
        %v444 = vld [vmem:[%s289 + $0xe0] sm:$0xff]
        %v445 = vld [vmem:[%s289 + $0xe8] sm:$0xff]
        %v446 = vld [vmem:[%s289 + $0xf0] sm:$0xff]
        %v447 = vld [vmem:[%s289 + $0xf8] sm:$0xff]
        %v448 = vld [vmem:[%s289 + $0x100] sm:$0xff]
        %v449 = vld [vmem:[%s289 + $0x108] sm:$0xff]
        %v450 = vld [vmem:[%s289 + $0x110] sm:$0xff]
        %v451 = vld [vmem:[%s289 + $0x118] sm:$0xff]
        %v452 = vld [vmem:[%s289 + $0x120] sm:$0xff]
        %v453 = vld [vmem:[%s289 + $0x128] sm:$0xff]
        %v454 = vld [vmem:[%s289 + $0x130] sm:$0xff]
        %v455 = vld [vmem:[%s289 + $0x138] sm:$0xff]
        %v456 = vld [vmem:[%s289 + $0x140] sm:$0xff]
        %v457 = vld [vmem:[%s289 + $0x148] sm:$0xff]
        %v458 = vld [vmem:[%s289 + $0x150] sm:$0xff]
        %v459 = vld [vmem:[%s289 + $0x158] sm:$0xff]
        %v460 = vld [vmem:[%s289 + $0x160] sm:$0xff]
        %v461 = vld [vmem:[%s289 + $0x168] sm:$0xff]
        %v462 = vld [vmem:[%s289 + $0x170] sm:$0xff]
        %v463 = vld [vmem:[%s289 + $0x178] sm:$0xff]
        %v464 = vld [vmem:[%s289 + $0x180] sm:$0xff]
        %v465 = vld [vmem:[%s289 + $0x188] sm:$0xff]
        %v466 = vld [vmem:[%s289 + $0x190] sm:$0xff]
        %v467 = vld [vmem:[%s289 + $0x198] sm:$0xff]
        %v468 = vld [vmem:[%s289 + $0x1a0] sm:$0xff]
        %v469 = vld [vmem:[%s289 + $0x1a8] sm:$0xff]
        %v470 = vld [vmem:[%s289 + $0x1b0] sm:$0xff]
        %v471 = vld [vmem:[%s289 + $0x1b8] sm:$0xff]
        %v472 = vld [vmem:[%s289 + $0x1c0] sm:$0xff]
        %v473 = vld [vmem:[%s289 + $0x1c8] sm:$0xff]
        %v474 = vld [vmem:[%s289 + $0x1d0] sm:$0xff]
        %v475 = vld [vmem:[%s289 + $0x1d8] sm:$0xff]
        %v476 = vld [vmem:[%s289 + $0x1e0] sm:$0xff]
        %v477 = vld [vmem:[%s289 + $0x1e8] sm:$0xff]
        %v478 = vld [vmem:[%s289 + $0x1f0] sm:$0xff]
        %v479 = vld [vmem:[%s289 + $0x1f8] sm:$0xff]
        %v480 = vld [vmem:[%s289 + $0x200] sm:$0xff]
        %v481 = vld [vmem:[%s289 + $0x208] sm:$0xff]
        %v482 = vld [vmem:[%s289 + $0x210] sm:$0xff]
        %v483 = vld [vmem:[%s289 + $0x218] sm:$0xff]
        %v484 = vld [vmem:[%s289 + $0x220] sm:$0xff]
        %v485 = vld [vmem:[%s289 + $0x228] sm:$0xff]
        %v486 = vld [vmem:[%s289 + $0x230] sm:$0xff]
        %v487 = vld [vmem:[%s289 + $0x238] sm:$0xff]
        %v488 = vld [vmem:[%s289 + $0x240] sm:$0xff]
        %v489 = vld [vmem:[%s289 + $0x248] sm:$0xff]
        %v490 = vld [vmem:[%s289 + $0x250] sm:$0xff]
        %v491 = vld [vmem:[%s289 + $0x258] sm:$0xff]
        %v492 = vld [vmem:[%s289 + $0x260] sm:$0xff]
        %v493 = vld [vmem:[%s289 + $0x268] sm:$0xff]
        %v494 = vld [vmem:[%s289 + $0x270] sm:$0xff]
        %v495 = vld [vmem:[%s289 + $0x278] sm:$0xff]
        %v496 = vld [vmem:[%s289 + $0x280] sm:$0xff]
        %v497 = vld [vmem:[%s289 + $0x288] sm:$0xff]
        %v498 = vld [vmem:[%s289 + $0x290] sm:$0xff]
        %v499 = vld [vmem:[%s289 + $0x298] sm:$0xff]
        %v500 = vld [vmem:[%s289 + $0x2a0] sm:$0xff]
        %v501 = vld [vmem:[%s289 + $0x2a8] sm:$0xff]
        %v502 = vld [vmem:[%s289 + $0x2b0] sm:$0xff]
        %v503 = vld [vmem:[%s289 + $0x2b8] sm:$0xff]
        %v504 = vld [vmem:[%s289 + $0x2c0] sm:$0xff]
        %v505 = vld [vmem:[%s289 + $0x2c8] sm:$0xff]
        %v506 = vld [vmem:[%s289 + $0x2d0] sm:$0xff]
        %v507 = vld [vmem:[%s289 + $0x2d8] sm:$0xff]
        %v508 = vld [vmem:[%s289 + $0x2e0] sm:$0xff]
        %v509 = vld [vmem:[%s289 + $0x2e8] sm:$0xff]
        %v510 = vld [vmem:[%s289 + $0x2f0] sm:$0xff]
        %v511 = vld [vmem:[%s289 + $0x2f8] sm:$0xff]
        %v512 = vld [vmem:[%s289 + $0x300] sm:$0xff]
        %v513 = vld [vmem:[%s289 + $0x308] sm:$0xff]
        %v514 = vld [vmem:[%s289 + $0x310] sm:$0xff]
        %v515 = vld [vmem:[%s289 + $0x318] sm:$0xff]
        %v516 = vld [vmem:[%s289 + $0x320] sm:$0xff]
        %v517 = vld [vmem:[%s289 + $0x328] sm:$0xff]
        %v518 = vld [vmem:[%s289 + $0x330] sm:$0xff]
        %v519 = vld [vmem:[%s289 + $0x338] sm:$0xff]
        %v520 = vld [vmem:[%s289 + $0x340] sm:$0xff]
        %v521 = vld [vmem:[%s289 + $0x348] sm:$0xff]
        %v522 = vld [vmem:[%s289 + $0x350] sm:$0xff]
        %v523 = vld [vmem:[%s289 + $0x358] sm:$0xff]
        %v524 = vld [vmem:[%s289 + $0x360] sm:$0xff]
        %v525 = vld [vmem:[%s289 + $0x368] sm:$0xff]
        %v526 = vld [vmem:[%s289 + $0x370] sm:$0xff]
        %v527 = vld [vmem:[%s289 + $0x378] sm:$0xff]
        %v528 = vld [vmem:[%s289 + $0x380] sm:$0xff]
        %v529 = vld [vmem:[%s289 + $0x388] sm:$0xff]
        %v530 = vld [vmem:[%s289 + $0x390] sm:$0xff]
        %v531 = vld [vmem:[%s289 + $0x398] sm:$0xff]
        %v532 = vld [vmem:[%s289 + $0x3a0] sm:$0xff]
        %v533 = vld [vmem:[%s289 + $0x3a8] sm:$0xff]
        %v534 = vld [vmem:[%s289 + $0x3b0] sm:$0xff]
        %v535 = vld [vmem:[%s289 + $0x3b8] sm:$0xff]
        %v536 = vld [vmem:[%s289 + $0x3c0] sm:$0xff]
        %v537 = vld [vmem:[%s289 + $0x3c8] sm:$0xff]
        %v538 = vld [vmem:[%s289 + $0x3d0] sm:$0xff]
        %v539 = vld [vmem:[%s289 + $0x3d8] sm:$0xff]
        %v540 = vld [vmem:[%s289 + $0x3e0] sm:$0xff]
        %v541 = vld [vmem:[%s289 + $0x3e8] sm:$0xff]
        %v542 = vld [vmem:[%s289 + $0x3f0] sm:$0xff]
        %v543 = vld [vmem:[%s289 + $0x3f8] sm:$0xff]
        %v544 = vld [vmem:[%s289 + $0x400] sm:$0xff]
        %v545 = vld [vmem:[%s289 + $0x408] sm:$0xff]
        %v546 = vld [vmem:[%s289 + $0x410] sm:$0xff]
        %v547 = vld [vmem:[%s289 + $0x418] sm:$0xff]
        %v548 = vld [vmem:[%s289 + $0x420] sm:$0xff]
        %v549 = vld [vmem:[%s289 + $0x428] sm:$0xff]
        %v550 = vld [vmem:[%s289 + $0x430] sm:$0xff]
        %v551 = vld [vmem:[%s289 + $0x438] sm:$0xff]
        %v552 = vld [vmem:[%s289 + $0x440] sm:$0xff]
        %v553 = vld [vmem:[%s289 + $0x448] sm:$0xff]
        %v554 = vld [vmem:[%s289 + $0x450] sm:$0xff]
        %v555 = vld [vmem:[%s289 + $0x458] sm:$0xff]
        %v556 = vld [vmem:[%s289 + $0x460] sm:$0xff]
        %v557 = vld [vmem:[%s289 + $0x468] sm:$0xff]
        %v558 = vld [vmem:[%s289 + $0x470] sm:$0xff]
        %v559 = vld [vmem:[%s289 + $0x478] sm:$0xff]
        %v560 = vld [vmem:[%s289 + $0x480] sm:$0xff]
        %v561 = vld [vmem:[%s289 + $0x488] sm:$0xff]
        %v562 = vld [vmem:[%s289 + $0x490] sm:$0xff]
        %v563 = vld [vmem:[%s289 + $0x498] sm:$0xff]
        %v564 = vld [vmem:[%s289 + $0x4a0] sm:$0xff]
        %v565 = vld [vmem:[%s289 + $0x4a8] sm:$0xff]
        %v566 = vld [vmem:[%s289 + $0x4b0] sm:$0xff]
        %v567 = vld [vmem:[%s289 + $0x4b8] sm:$0xff]
        %v568 = vld [vmem:[%s289 + $0x4c0] sm:$0xff]
        %v569 = vld [vmem:[%s289 + $0x4c8] sm:$0xff]
        %v570 = vld [vmem:[%s289 + $0x4d0] sm:$0xff]
        %v571 = vld [vmem:[%s289 + $0x4d8] sm:$0xff]
        %v572 = vld [vmem:[%s289 + $0x4e0] sm:$0xff]
        %v573 = vld [vmem:[%s289 + $0x4e8] sm:$0xff]
        %v574 = vld [vmem:[%s289 + $0x4f0] sm:$0xff]
        %v575 = vld [vmem:[%s289 + $0x4f8] sm:$0xff]
        %v576 = vld [vmem:[%s289 + $0x500] sm:$0xff]
        %v577 = vld [vmem:[%s289 + $0x508] sm:$0xff]
        %v578 = vld [vmem:[%s289 + $0x510] sm:$0xff]
        %v579 = vld [vmem:[%s289 + $0x518] sm:$0xff]
        %v580 = vld [vmem:[%s289 + $0x520] sm:$0xff]
        %v581 = vld [vmem:[%s289 + $0x528] sm:$0xff]
        %v582 = vld [vmem:[%s289 + $0x530] sm:$0xff]
        %v583 = vld [vmem:[%s289 + $0x538] sm:$0xff]
        %v584 = vld [vmem:[%s289 + $0x540] sm:$0xff]
        %v585 = vld [vmem:[%s289 + $0x548] sm:$0xff]
        %v586 = vld [vmem:[%s289 + $0x550] sm:$0xff]
        %v587 = vld [vmem:[%s289 + $0x558] sm:$0xff]
        %v588 = vld [vmem:[%s289 + $0x560] sm:$0xff]
        %v589 = vld [vmem:[%s289 + $0x568] sm:$0xff]
        %v590 = vld [vmem:[%s289 + $0x570] sm:$0xff]
        %v591 = vld [vmem:[%s289 + $0x578] sm:$0xff]
        %v592 = vld [vmem:[%s289 + $0x580] sm:$0xff]
        %v593 = vld [vmem:[%s289 + $0x588] sm:$0xff]
        %v594 = vld [vmem:[%s289 + $0x590] sm:$0xff]
        %v595 = vld [vmem:[%s289 + $0x598] sm:$0xff]
        %v596 = vld [vmem:[%s289 + $0x5a0] sm:$0xff]
        %v597 = vld [vmem:[%s289 + $0x5a8] sm:$0xff]
        %v598 = vld [vmem:[%s289 + $0x5b0] sm:$0xff]
        %v599 = vld [vmem:[%s289 + $0x5b8] sm:$0xff]
        %v600 = vld [vmem:[%s289 + $0x5c0] sm:$0xff]
        %v601 = vld [vmem:[%s289 + $0x5c8] sm:$0xff]
        %v602 = vld [vmem:[%s289 + $0x5d0] sm:$0xff]
        %v603 = vld [vmem:[%s289 + $0x5d8] sm:$0xff]
        %v604 = vld [vmem:[%s289 + $0x5e0] sm:$0xff]
        %v605 = vld [vmem:[%s289 + $0x5e8] sm:$0xff]
        %v606 = vld [vmem:[%s289 + $0x5f0] sm:$0xff]
        %v607 = vld [vmem:[%s289 + $0x5f8] sm:$0xff]
        %v608 = vld [vmem:[%s289 + $0x600] sm:$0xff]
        %v609 = vld [vmem:[%s289 + $0x608] sm:$0xff]
        %v610 = vld [vmem:[%s289 + $0x610] sm:$0xff]
        %v611 = vld [vmem:[%s289 + $0x618] sm:$0xff]
        %v612 = vld [vmem:[%s289 + $0x620] sm:$0xff]
        %v613 = vld [vmem:[%s289 + $0x628] sm:$0xff]
        %v614 = vld [vmem:[%s289 + $0x630] sm:$0xff]
        %v615 = vld [vmem:[%s289 + $0x638] sm:$0xff]
        %v616 = vld [vmem:[%s289 + $0x640] sm:$0xff]
        %v617 = vld [vmem:[%s289 + $0x648] sm:$0xff]
        %v618 = vld [vmem:[%s289 + $0x650] sm:$0xff]
        %v619 = vld [vmem:[%s289 + $0x658] sm:$0xff]
        %v620 = vld [vmem:[%s289 + $0x660] sm:$0xff]
        %v621 = vld [vmem:[%s289 + $0x668] sm:$0xff]
        %v622 = vld [vmem:[%s289 + $0x670] sm:$0xff]
        %v623 = vld [vmem:[%s289 + $0x678] sm:$0xff]
        %v624 = vld [vmem:[%s289 + $0x680] sm:$0xff]
        %v625 = vld [vmem:[%s289 + $0x688] sm:$0xff]
        %v626 = vld [vmem:[%s289 + $0x690] sm:$0xff]
        %v627 = vld [vmem:[%s289 + $0x698] sm:$0xff]
        %v628 = vld [vmem:[%s289 + $0x6a0] sm:$0xff]
        %v629 = vld [vmem:[%s289 + $0x6a8] sm:$0xff]
        %v630 = vld [vmem:[%s289 + $0x6b0] sm:$0xff]
        %v631 = vld [vmem:[%s289 + $0x6b8] sm:$0xff]
        %v632 = vld [vmem:[%s289 + $0x6c0] sm:$0xff]
        %v633 = vld [vmem:[%s289 + $0x6c8] sm:$0xff]
        %v634 = vld [vmem:[%s289 + $0x6d0] sm:$0xff]
        %v635 = vld [vmem:[%s289 + $0x6d8] sm:$0xff]
        %v636 = vld [vmem:[%s289 + $0x6e0] sm:$0xff]
        %v637 = vld [vmem:[%s289 + $0x6e8] sm:$0xff]
        %v638 = vld [vmem:[%s289 + $0x6f0] sm:$0xff]
        %v639 = vld [vmem:[%s289 + $0x6f8] sm:$0xff]
        %v640 = vld [vmem:[%s289 + $0x700] sm:$0xff]
        %v641 = vld [vmem:[%s289 + $0x708] sm:$0xff]
        %v642 = vld [vmem:[%s289 + $0x710] sm:$0xff]
        %v643 = vld [vmem:[%s289 + $0x718] sm:$0xff]
        %v644 = vld [vmem:[%s289 + $0x720] sm:$0xff]
        %v645 = vld [vmem:[%s289 + $0x728] sm:$0xff]
        %v646 = vld [vmem:[%s289 + $0x730] sm:$0xff]
        %v647 = vld [vmem:[%s289 + $0x738] sm:$0xff]
        %v648 = vld [vmem:[%s289 + $0x740] sm:$0xff]
        %v649 = vld [vmem:[%s289 + $0x748] sm:$0xff]
        %v650 = vld [vmem:[%s289 + $0x750] sm:$0xff]
        %v651 = vld [vmem:[%s289 + $0x758] sm:$0xff]
        %v652 = vld [vmem:[%s289 + $0x760] sm:$0xff]
        %v653 = vld [vmem:[%s289 + $0x768] sm:$0xff]
        %v654 = vld [vmem:[%s289 + $0x770] sm:$0xff]
        %v655 = vld [vmem:[%s289 + $0x778] sm:$0xff]
        %v656 = vld [vmem:[%s289 + $0x780] sm:$0xff]
        %v657 = vld [vmem:[%s289 + $0x788] sm:$0xff]
        %v658 = vld [vmem:[%s289 + $0x790] sm:$0xff]
        %v659 = vld [vmem:[%s289 + $0x798] sm:$0xff]
        %v660 = vld [vmem:[%s289 + $0x7a0] sm:$0xff]
        %v661 = vld [vmem:[%s289 + $0x7a8] sm:$0xff]
        %v662 = vld [vmem:[%s289 + $0x7b0] sm:$0xff]
        %v663 = vld [vmem:[%s289 + $0x7b8] sm:$0xff]
        %v664 = vld [vmem:[%s289 + $0x7c0] sm:$0xff]
        %v665 = vld [vmem:[%s289 + $0x7c8] sm:$0xff]
        %v666 = vld [vmem:[%s289 + $0x7d0] sm:$0xff]
        %v667 = vld [vmem:[%s289 + $0x7d8] sm:$0xff]
        %v668 = vld [vmem:[%s289 + $0x7e0] sm:$0xff]
        %v669 = vld [vmem:[%s289 + $0x7e8] sm:$0xff]
        %v670 = vld [vmem:[%s289 + $0x7f0] sm:$0xff]
        %v671 = vld [vmem:[%s289 + $0x7f8] sm:$0xff]
        %v672 = vld [vmem:[%s289 + $0x800] sm:$0xff]
        %v673 = vld [vmem:[%s289 + $0x808] sm:$0xff]
        %v674 = vld [vmem:[%s289 + $0x810] sm:$0xff]
        %v675 = vld [vmem:[%s289 + $0x818] sm:$0xff]
        %v676 = vld [vmem:[%s289 + $0x820] sm:$0xff]
        %v677 = vld [vmem:[%s289 + $0x828] sm:$0xff]
        %v678 = vld [vmem:[%s289 + $0x830] sm:$0xff]
        %v679 = vld [vmem:[%s289 + $0x838] sm:$0xff]
        %v680 = vld [vmem:[%s289 + $0x840] sm:$0xff]
        %v681 = vld [vmem:[%s289 + $0x848] sm:$0xff]
        %v682 = vld [vmem:[%s289 + $0x850] sm:$0xff]
        %v683 = vld [vmem:[%s289 + $0x858] sm:$0xff]
        %v684 = vld [vmem:[%s289 + $0x860] sm:$0xff]
        %v685 = vld [vmem:[%s289 + $0x868] sm:$0xff]
        %v686 = vld [vmem:[%s289 + $0x870] sm:$0xff]
        %v687 = vld [vmem:[%s289 + $0x878] sm:$0xff]
        %v688 = vld [vmem:[%s289 + $0x880] sm:$0xff]
        %v689 = vld [vmem:[%s289 + $0x888] sm:$0xff]
        %v690 = vld [vmem:[%s289 + $0x890] sm:$0xff]
        %v691 = vld [vmem:[%s289 + $0x898] sm:$0xff]
        %v692 = vld [vmem:[%s289 + $0x8a0] sm:$0xff]
        %v693 = vld [vmem:[%s289 + $0x8a8] sm:$0xff]
        %v694 = vld [vmem:[%s289 + $0x8b0] sm:$0xff]
        %v695 = vld [vmem:[%s289 + $0x8b8] sm:$0xff]
        %v696 = vld [vmem:[%s289 + $0x8c0] sm:$0xff]
        %v697 = vld [vmem:[%s289 + $0x8c8] sm:$0xff]
        %v698 = vld [vmem:[%s289 + $0x8d0] sm:$0xff]
        %v699 = vld [vmem:[%s289 + $0x8d8] sm:$0xff]
        %v700 = vld [vmem:[%s289 + $0x8e0] sm:$0xff]
        %v701 = vld [vmem:[%s289 + $0x8e8] sm:$0xff]
        %v702 = vld [vmem:[%s289 + $0x8f0] sm:$0xff]
        %v703 = vld [vmem:[%s289 + $0x8f8] sm:$0xff]
        %v704 = vld [vmem:[%s289 + $0x900] sm:$0xff]
        %v705 = vld [vmem:[%s289 + $0x908] sm:$0xff]
        %v706 = vld [vmem:[%s289 + $0x910] sm:$0xff]
        %v707 = vld [vmem:[%s289 + $0x918] sm:$0xff]
        %v708 = vld [vmem:[%s289 + $0x920] sm:$0xff]
        %v709 = vld [vmem:[%s289 + $0x928] sm:$0xff]
        %v710 = vld [vmem:[%s289 + $0x930] sm:$0xff]
        %v711 = vld [vmem:[%s289 + $0x938] sm:$0xff]
        %v712 = vld [vmem:[%s289 + $0x940] sm:$0xff]
        %v713 = vld [vmem:[%s289 + $0x948] sm:$0xff]
        %v714 = vld [vmem:[%s289 + $0x950] sm:$0xff]
        %v715 = vld [vmem:[%s289 + $0x958] sm:$0xff]
        %v716 = vld [vmem:[%s289 + $0x960] sm:$0xff]
        %v717 = vld [vmem:[%s289 + $0x968] sm:$0xff]
        %v718 = vld [vmem:[%s289 + $0x970] sm:$0xff]
        %v719 = vld [vmem:[%s289 + $0x978] sm:$0xff]
        %v720 = vld [vmem:[%s289 + $0x980] sm:$0xff]
        %v721 = vld [vmem:[%s289 + $0x988] sm:$0xff]
        %v722 = vld [vmem:[%s289 + $0x990] sm:$0xff]
        %v723 = vld [vmem:[%s289 + $0x998] sm:$0xff]
        %v724 = vld [vmem:[%s289 + $0x9a0] sm:$0xff]
        %v725 = vld [vmem:[%s289 + $0x9a8] sm:$0xff]
        %v726 = vld [vmem:[%s289 + $0x9b0] sm:$0xff]
        %v727 = vld [vmem:[%s289 + $0x9b8] sm:$0xff]
        %v728 = vld [vmem:[%s289 + $0x9c0] sm:$0xff]
        %v729 = vld [vmem:[%s289 + $0x9c8] sm:$0xff]
        %v730 = vld [vmem:[%s289 + $0x9d0] sm:$0xff]
        %v731 = vld [vmem:[%s289 + $0x9d8] sm:$0xff]
        %v732 = vld [vmem:[%s289 + $0x9e0] sm:$0xff]
        %v733 = vld [vmem:[%s289 + $0x9e8] sm:$0xff]
        %v734 = vld [vmem:[%s289 + $0x9f0] sm:$0xff]
        %v735 = vld [vmem:[%s289 + $0x9f8] sm:$0xff]
        %v736 = vld [vmem:[%s289 + $0xa00] sm:$0xff]
        %v737 = vld [vmem:[%s289 + $0xa08] sm:$0xff]
        %v738 = vld [vmem:[%s289 + $0xa10] sm:$0xff]
        %v739 = vld [vmem:[%s289 + $0xa18] sm:$0xff]
        %v740 = vld [vmem:[%s289 + $0xa20] sm:$0xff]
        %v741 = vld [vmem:[%s289 + $0xa28] sm:$0xff]
        %v742 = vld [vmem:[%s289 + $0xa30] sm:$0xff]
        %v743 = vld [vmem:[%s289 + $0xa38] sm:$0xff]
        %v744 = vld [vmem:[%s289 + $0xa40] sm:$0xff]
        %v745 = vld [vmem:[%s289 + $0xa48] sm:$0xff]
        %v746 = vld [vmem:[%s289 + $0xa50] sm:$0xff]
        %v747 = vld [vmem:[%s289 + $0xa58] sm:$0xff]
        %v748 = vld [vmem:[%s289 + $0xa60] sm:$0xff]
        %v749 = vld [vmem:[%s289 + $0xa68] sm:$0xff]
        %v750 = vld [vmem:[%s289 + $0xa70] sm:$0xff]
        %v751 = vld [vmem:[%s289 + $0xa78] sm:$0xff]
        %v752 = vld [vmem:[%s289 + $0xa80] sm:$0xff]
        %v753 = vld [vmem:[%s289 + $0xa88] sm:$0xff]
        %v754 = vld [vmem:[%s289 + $0xa90] sm:$0xff]
        %v755 = vld [vmem:[%s289 + $0xa98] sm:$0xff]
        %v756 = vld [vmem:[%s289 + $0xaa0] sm:$0xff]
        %v757 = vld [vmem:[%s289 + $0xaa8] sm:$0xff]
        %v758 = vld [vmem:[%s289 + $0xab0] sm:$0xff]
        %v759 = vld [vmem:[%s289 + $0xab8] sm:$0xff]
        %v760 = vld [vmem:[%s289 + $0xac0] sm:$0xff]
        %v761 = vld [vmem:[%s289 + $0xac8] sm:$0xff]
        %v762 = vld [vmem:[%s289 + $0xad0] sm:$0xff]
        %v763 = vld [vmem:[%s289 + $0xad8] sm:$0xff]
        %v764 = vld [vmem:[%s289 + $0xae0] sm:$0xff]
        %v765 = vld [vmem:[%s289 + $0xae8] sm:$0xff]
        %v766 = vld [vmem:[%s289 + $0xaf0] sm:$0xff]
        %v767 = vld [vmem:[%s289 + $0xaf8] sm:$0xff]
        %v768 = vld [vmem:[%s289 + $0xb00] sm:$0xff]
        %v769 = vld [vmem:[%s289 + $0xb08] sm:$0xff]
        %v770 = vld [vmem:[%s289 + $0xb10] sm:$0xff]
        %v771 = vld [vmem:[%s289 + $0xb18] sm:$0xff]
        %v772 = vld [vmem:[%s289 + $0xb20] sm:$0xff]
        %v773 = vld [vmem:[%s289 + $0xb28] sm:$0xff]
        %v774 = vld [vmem:[%s289 + $0xb30] sm:$0xff]
        %v775 = vld [vmem:[%s289 + $0xb38] sm:$0xff]
        %v776 = vld [vmem:[%s289 + $0xb40] sm:$0xff]
        %v777 = vld [vmem:[%s289 + $0xb48] sm:$0xff]
        %v778 = vld [vmem:[%s289 + $0xb50] sm:$0xff]
        %v779 = vld [vmem:[%s289 + $0xb58] sm:$0xff]
        %v780 = vld [vmem:[%s289 + $0xb60] sm:$0xff]
        %v781 = vld [vmem:[%s289 + $0xb68] sm:$0xff]
        %v782 = vld [vmem:[%s289 + $0xb70] sm:$0xff]
        %v783 = vld [vmem:[%s289 + $0xb78] sm:$0xff]
        %v784 = vld [vmem:[%s289 + $0xb80] sm:$0xff]
        %v785 = vld [vmem:[%s289 + $0xb88] sm:$0xff]
        %v786 = vld [vmem:[%s289 + $0xb90] sm:$0xff]
        %v787 = vld [vmem:[%s289 + $0xb98] sm:$0xff]
        %v788 = vld [vmem:[%s289 + $0xba0] sm:$0xff]
        %v789 = vld [vmem:[%s289 + $0xba8] sm:$0xff]
        %v790 = vld [vmem:[%s289 + $0xbb0] sm:$0xff]
        %v791 = vld [vmem:[%s289 + $0xbb8] sm:$0xff]
        %v792 = vld [vmem:[%s289 + $0xbc0] sm:$0xff]
        %v793 = vld [vmem:[%s289 + $0xbc8] sm:$0xff]
        %v794 = vld [vmem:[%s289 + $0xbd0] sm:$0xff]
        %v795 = vld [vmem:[%s289 + $0xbd8] sm:$0xff]
        %v796 = vld [vmem:[%s289 + $0xbe0] sm:$0xff]
        %v797 = vld [vmem:[%s289 + $0xbe8] sm:$0xff]
        %v798 = vld [vmem:[%s289 + $0xbf0] sm:$0xff]
        %v799 = vld [vmem:[%s289 + $0xbf8] sm:$0xff]
        %v800 = vld [vmem:[%s289 + $0xc00] sm:$0xff]
        %v801 = vld [vmem:[%s289 + $0xc08] sm:$0xff]
        %v802 = vld [vmem:[%s289 + $0xc10] sm:$0xff]
        %v803 = vld [vmem:[%s289 + $0xc18] sm:$0xff]
        %v804 = vld [vmem:[%s289 + $0xc20] sm:$0xff]
        %v805 = vld [vmem:[%s289 + $0xc28] sm:$0xff]
        %v806 = vld [vmem:[%s289 + $0xc30] sm:$0xff]
        %v807 = vld [vmem:[%s289 + $0xc38] sm:$0xff]
        %v808 = vld [vmem:[%s289 + $0xc40] sm:$0xff]
        %v809 = vld [vmem:[%s289 + $0xc48] sm:$0xff]
        %v810 = vld [vmem:[%s289 + $0xc50] sm:$0xff]
        %v811 = vld [vmem:[%s289 + $0xc58] sm:$0xff]
        %v812 = vld [vmem:[%s289 + $0xc60] sm:$0xff]
        %v813 = vld [vmem:[%s289 + $0xc68] sm:$0xff]
        %v814 = vld [vmem:[%s289 + $0xc70] sm:$0xff]
        %v815 = vld [vmem:[%s289 + $0xc78] sm:$0xff]
        %v816 = vld [vmem:[%s289 + $0xc80] sm:$0xff]
        %v817 = vld [vmem:[%s289 + $0xc88] sm:$0xff]
        %v818 = vld [vmem:[%s289 + $0xc90] sm:$0xff]
        %v819 = vld [vmem:[%s289 + $0xc98] sm:$0xff]
        %v820 = vld [vmem:[%s289 + $0xca0] sm:$0xff]
        %v821 = vld [vmem:[%s289 + $0xca8] sm:$0xff]
        %v822 = vld [vmem:[%s289 + $0xcb0] sm:$0xff]
        %v823 = vld [vmem:[%s289 + $0xcb8] sm:$0xff]
        %v824 = vld [vmem:[%s289 + $0xcc0] sm:$0xff]
        %v825 = vld [vmem:[%s289 + $0xcc8] sm:$0xff]
        %v826 = vld [vmem:[%s289 + $0xcd0] sm:$0xff]
        %v827 = vld [vmem:[%s289 + $0xcd8] sm:$0xff]
        %v828 = vld [vmem:[%s289 + $0xce0] sm:$0xff]
        %v829 = vld [vmem:[%s289 + $0xce8] sm:$0xff]
        %v830 = vld [vmem:[%s289 + $0xcf0] sm:$0xff]
        %v831 = vld [vmem:[%s289 + $0xcf8] sm:$0xff]
        %v832 = vld [vmem:[%s289 + $0xd00] sm:$0xff]
        %v833 = vld [vmem:[%s289 + $0xd08] sm:$0xff]
        %v834 = vld [vmem:[%s289 + $0xd10] sm:$0xff]
        %v835 = vld [vmem:[%s289 + $0xd18] sm:$0xff]
        %v836 = vld [vmem:[%s289 + $0xd20] sm:$0xff]
        %v837 = vld [vmem:[%s289 + $0xd28] sm:$0xff]
        %v838 = vld [vmem:[%s289 + $0xd30] sm:$0xff]
        %v839 = vld [vmem:[%s289 + $0xd38] sm:$0xff]
        %v840 = vld [vmem:[%s289 + $0xd40] sm:$0xff]
        %v841 = vld [vmem:[%s289 + $0xd48] sm:$0xff]
        %v842 = vld [vmem:[%s289 + $0xd50] sm:$0xff]
        %v843 = vld [vmem:[%s289 + $0xd58] sm:$0xff]
        %v844 = vld [vmem:[%s289 + $0xd60] sm:$0xff]
        %v845 = vld [vmem:[%s289 + $0xd68] sm:$0xff]
        %v846 = vld [vmem:[%s289 + $0xd70] sm:$0xff]
        %v847 = vld [vmem:[%s289 + $0xd78] sm:$0xff]
        %v848 = vld [vmem:[%s289 + $0xd80] sm:$0xff]
        %v849 = vld [vmem:[%s289 + $0xd88] sm:$0xff]
        %v850 = vld [vmem:[%s289 + $0xd90] sm:$0xff]
        %v851 = vld [vmem:[%s289 + $0xd98] sm:$0xff]
        %v852 = vld [vmem:[%s289 + $0xda0] sm:$0xff]
        %v853 = vld [vmem:[%s289 + $0xda8] sm:$0xff]
        %v854 = vld [vmem:[%s289 + $0xdb0] sm:$0xff]
        %v855 = vld [vmem:[%s289 + $0xdb8] sm:$0xff]
        %v856 = vld [vmem:[%s289 + $0xdc0] sm:$0xff]
        %v857 = vld [vmem:[%s289 + $0xdc8] sm:$0xff]
        %v858 = vld [vmem:[%s289 + $0xdd0] sm:$0xff]
        %v859 = vld [vmem:[%s289 + $0xdd8] sm:$0xff]
        %v860 = vld [vmem:[%s289 + $0xde0] sm:$0xff]
        %v861 = vld [vmem:[%s289 + $0xde8] sm:$0xff]
        %v862 = vld [vmem:[%s289 + $0xdf0] sm:$0xff]
        %v863 = vld [vmem:[%s289 + $0xdf8] sm:$0xff]
        %v864 = vld [vmem:[%s289 + $0xe00] sm:$0xff]
        %v865 = vld [vmem:[%s289 + $0xe08] sm:$0xff]
        %v866 = vld [vmem:[%s289 + $0xe10] sm:$0xff]
        %v867 = vld [vmem:[%s289 + $0xe18] sm:$0xff]
        %v868 = vld [vmem:[%s289 + $0xe20] sm:$0xff]
        %v869 = vld [vmem:[%s289 + $0xe28] sm:$0xff]
        %v870 = vld [vmem:[%s289 + $0xe30] sm:$0xff]
        %v871 = vld [vmem:[%s289 + $0xe38] sm:$0xff]
        %v872 = vld [vmem:[%s289 + $0xe40] sm:$0xff]
        %v873 = vld [vmem:[%s289 + $0xe48] sm:$0xff]
        %v874 = vld [vmem:[%s289 + $0xe50] sm:$0xff]
        %v875 = vld [vmem:[%s289 + $0xe58] sm:$0xff]
        %v876 = vld [vmem:[%s289 + $0xe60] sm:$0xff]
        %v877 = vld [vmem:[%s289 + $0xe68] sm:$0xff]
        %v878 = vld [vmem:[%s289 + $0xe70] sm:$0xff]
        %v879 = vld [vmem:[%s289 + $0xe78] sm:$0xff]
        %v880 = vld [vmem:[%s289 + $0xe80] sm:$0xff]
        %v881 = vld [vmem:[%s289 + $0xe88] sm:$0xff]
        %v882 = vld [vmem:[%s289 + $0xe90] sm:$0xff]
        %v883 = vld [vmem:[%s289 + $0xe98] sm:$0xff]
        %v884 = vld [vmem:[%s289 + $0xea0] sm:$0xff]
        %v885 = vld [vmem:[%s289 + $0xea8] sm:$0xff]
        %v886 = vld [vmem:[%s289 + $0xeb0] sm:$0xff]
        %v887 = vld [vmem:[%s289 + $0xeb8] sm:$0xff]
        %v888 = vld [vmem:[%s289 + $0xec0] sm:$0xff]
        %v889 = vld [vmem:[%s289 + $0xec8] sm:$0xff]
        %v890 = vld [vmem:[%s289 + $0xed0] sm:$0xff]
        %v891 = vld [vmem:[%s289 + $0xed8] sm:$0xff]
        %v892 = vld [vmem:[%s289 + $0xee0] sm:$0xff]
        %v893 = vld [vmem:[%s289 + $0xee8] sm:$0xff]
        %v894 = vld [vmem:[%s289 + $0xef0] sm:$0xff]
        %v895 = vld [vmem:[%s289 + $0xef8] sm:$0xff]
        %v896 = vld [vmem:[%s289 + $0xf00] sm:$0xff]
        %v897 = vld [vmem:[%s289 + $0xf08] sm:$0xff]
        %v898 = vld [vmem:[%s289 + $0xf10] sm:$0xff]
        %v899 = vld [vmem:[%s289 + $0xf18] sm:$0xff]
        %v900 = vld [vmem:[%s289 + $0xf20] sm:$0xff]
        %v901 = vld [vmem:[%s289 + $0xf28] sm:$0xff]
        %v902 = vld [vmem:[%s289 + $0xf30] sm:$0xff]
        %v903 = vld [vmem:[%s289 + $0xf38] sm:$0xff]
        %v904 = vld [vmem:[%s289 + $0xf40] sm:$0xff]
        %v905 = vld [vmem:[%s289 + $0xf48] sm:$0xff]
        %v906 = vld [vmem:[%s289 + $0xf50] sm:$0xff]
        %v907 = vld [vmem:[%s289 + $0xf58] sm:$0xff]
        %v908 = vld [vmem:[%s289 + $0xf60] sm:$0xff]
        %v909 = vld [vmem:[%s289 + $0xf68] sm:$0xff]
        %v910 = vld [vmem:[%s289 + $0xf70] sm:$0xff]
        %v911 = vld [vmem:[%s289 + $0xf78] sm:$0xff]
        %v912 = vld [vmem:[%s289 + $0xf80] sm:$0xff]
        %v913 = vld [vmem:[%s289 + $0xf88] sm:$0xff]
        %v914 = vld [vmem:[%s289 + $0xf90] sm:$0xff]
        %v915 = vld [vmem:[%s289 + $0xf98] sm:$0xff]
        %v916 = vld [vmem:[%s289 + $0xfa0] sm:$0xff]
        %v917 = vld [vmem:[%s289 + $0xfa8] sm:$0xff]
        %v918 = vld [vmem:[%s289 + $0xfb0] sm:$0xff]
        %v919 = vld [vmem:[%s289 + $0xfb8] sm:$0xff]
        %v920 = vld [vmem:[%s289 + $0xfc0] sm:$0xff]
        %v921 = vld [vmem:[%s289 + $0xfc8] sm:$0xff]
        %v922 = vld [vmem:[%s289 + $0xfd0] sm:$0xff]
        %v923 = vld [vmem:[%s289 + $0xfd8] sm:$0xff]
        %v924 = vld [vmem:[%s289 + $0xfe0] sm:$0xff]
        %v925 = vld [vmem:[%s289 + $0xfe8] sm:$0xff]
        %v926 = vld [vmem:[%s289 + $0xff0] sm:$0xff]
        %v927 = vld [vmem:[%s289 + $0xff8] sm:$0xff]
        %v928 = vld [vmem:[%s289 + $0x1000] sm:$0xff]
        %v929 = vld [vmem:[%s289 + $0x1008] sm:$0xff]
        %v930 = vld [vmem:[%s289 + $0x1010] sm:$0xff]
        %v931 = vld [vmem:[%s289 + $0x1018] sm:$0xff]
        %v932 = vld [vmem:[%s289 + $0x1020] sm:$0xff]
        %v933 = vld [vmem:[%s289 + $0x1028] sm:$0xff]
        %v934 = vld [vmem:[%s289 + $0x1030] sm:$0xff]
        %v935 = vld [vmem:[%s289 + $0x1038] sm:$0xff]
        %v936 = vld [vmem:[%s289 + $0x1040] sm:$0xff]
        %v937 = vld [vmem:[%s289 + $0x1048] sm:$0xff]
        %v938 = vld [vmem:[%s289 + $0x1050] sm:$0xff]
        %v939 = vld [vmem:[%s289 + $0x1058] sm:$0xff]
        %v940 = vld [vmem:[%s289 + $0x1060] sm:$0xff]
        %v941 = vld [vmem:[%s289 + $0x1068] sm:$0xff]
        %v942 = vld [vmem:[%s289 + $0x1070] sm:$0xff]
        %v943 = vld [vmem:[%s289 + $0x1078] sm:$0xff]
        %v944 = vld [vmem:[%s289 + $0x1080] sm:$0xff]
        %v945 = vld [vmem:[%s289 + $0x1088] sm:$0xff]
        %v946 = vld [vmem:[%s289 + $0x1090] sm:$0xff]
        %v947 = vld [vmem:[%s289 + $0x1098] sm:$0xff]
        %v948 = vld [vmem:[%s289 + $0x10a0] sm:$0xff]
        %v949 = vld [vmem:[%s289 + $0x10a8] sm:$0xff]
        %v950 = vld [vmem:[%s289 + $0x10b0] sm:$0xff]
        %v951 = vld [vmem:[%s289 + $0x10b8] sm:$0xff]
        %v952 = vld [vmem:[%s289 + $0x10c0] sm:$0xff]
        %v953 = vld [vmem:[%s289 + $0x10c8] sm:$0xff]
        %v954 = vld [vmem:[%s289 + $0x10d0] sm:$0xff]
        %v955 = vld [vmem:[%s289 + $0x10d8] sm:$0xff]
        %v956 = vld [vmem:[%s289 + $0x10e0] sm:$0xff]
        %v957 = vld [vmem:[%s289 + $0x10e8] sm:$0xff]
        %v958 = vld [vmem:[%s289 + $0x10f0] sm:$0xff]
        %v959 = vld [vmem:[%s289 + $0x10f8] sm:$0xff]
        %v960 = vld [vmem:[%s289 + $0x1100] sm:$0xff]
        %v961 = vld [vmem:[%s289 + $0x1108] sm:$0xff]
        %v962 = vld [vmem:[%s289 + $0x1110] sm:$0xff]
        %v963 = vld [vmem:[%s289 + $0x1118] sm:$0xff]
        %v964 = vld [vmem:[%s289 + $0x1120] sm:$0xff]
        %v965 = vld [vmem:[%s289 + $0x1128] sm:$0xff]
        %v966 = vld [vmem:[%s289 + $0x1130] sm:$0xff]
        %v967 = vld [vmem:[%s289 + $0x1138] sm:$0xff]
        %v968 = vld [vmem:[%s289 + $0x1140] sm:$0xff]
        %v969 = vld [vmem:[%s289 + $0x1148] sm:$0xff]
        %v970 = vld [vmem:[%s289 + $0x1150] sm:$0xff]
        %v971 = vld [vmem:[%s289 + $0x1158] sm:$0xff]
        %v972 = vld [vmem:[%s289 + $0x1160] sm:$0xff]
        %v973 = vld [vmem:[%s289 + $0x1168] sm:$0xff]
        %v974 = vld [vmem:[%s289 + $0x1170] sm:$0xff]
        %v975 = vld [vmem:[%s289 + $0x1178] sm:$0xff]
        %v976 = vld [vmem:[%s289 + $0x1180] sm:$0xff]
        %v977 = vld [vmem:[%s289 + $0x1188] sm:$0xff]
        %v978 = vld [vmem:[%s289 + $0x1190] sm:$0xff]
        %v979 = vld [vmem:[%s289 + $0x1198] sm:$0xff]
        %v980 = vld [vmem:[%s289 + $0x11a0] sm:$0xff]
        %v981 = vld [vmem:[%s289 + $0x11a8] sm:$0xff]
        %v982 = vld [vmem:[%s289 + $0x11b0] sm:$0xff]
        %v983 = vld [vmem:[%s289 + $0x11b8] sm:$0xff]
        %v984 = vld [vmem:[%s289 + $0x11c0] sm:$0xff]
        %v985 = vld [vmem:[%s289 + $0x11c8] sm:$0xff]
        %v986 = vld [vmem:[%s289 + $0x11d0] sm:$0xff]
        %v987 = vld [vmem:[%s289 + $0x11d8] sm:$0xff]
        %v988 = vld [vmem:[%s289 + $0x11e0] sm:$0xff]
        %v989 = vld [vmem:[%s289 + $0x11e8] sm:$0xff]
        %v990 = vld [vmem:[%s289 + $0x11f0] sm:$0xff]
        %v991 = vld [vmem:[%s289 + $0x11f8] sm:$0xff]
        %v992 = vld [vmem:[%s289 + $0x1200] sm:$0xff]
        %v993 = vld [vmem:[%s289 + $0x1208] sm:$0xff]
        %v994 = vld [vmem:[%s289 + $0x1210] sm:$0xff]
        %v995 = vld [vmem:[%s289 + $0x1218] sm:$0xff]
        %v996 = vld [vmem:[%s289 + $0x1220] sm:$0xff]
        %v997 = vld [vmem:[%s289 + $0x1228] sm:$0xff]
        %v998 = vld [vmem:[%s289 + $0x1230] sm:$0xff]
        %v999 = vld [vmem:[%s289 + $0x1238] sm:$0xff]
        %v1000 = vld [vmem:[%s289 + $0x1240] sm:$0xff]
        %v1001 = vld [vmem:[%s289 + $0x1248] sm:$0xff]
        %v1002 = vld [vmem:[%s289 + $0x1250] sm:$0xff]
        %v1003 = vld [vmem:[%s289 + $0x1258] sm:$0xff]
        %v1004 = vld [vmem:[%s289 + $0x1260] sm:$0xff]
        %v1005 = vld [vmem:[%s289 + $0x1268] sm:$0xff]
        %v1006 = vld [vmem:[%s289 + $0x1270] sm:$0xff]
        %v1007 = vld [vmem:[%s289 + $0x1278] sm:$0xff]
        %v1008 = vld [vmem:[%s289 + $0x1280] sm:$0xff]
        %v1009 = vld [vmem:[%s289 + $0x1288] sm:$0xff]
        %v1010 = vld [vmem:[%s289 + $0x1290] sm:$0xff]
        %v1011 = vld [vmem:[%s289 + $0x1298] sm:$0xff]
        %v1012 = vld [vmem:[%s289 + $0x12a0] sm:$0xff]
        %v1013 = vld [vmem:[%s289 + $0x12a8] sm:$0xff]
        %v1014 = vld [vmem:[%s289 + $0x12b0] sm:$0xff]
        %v1015 = vld [vmem:[%s289 + $0x12b8] sm:$0xff]
        %v1016 = vld [vmem:[%s289 + $0x12c0] sm:$0xff]
        %v1017 = vld [vmem:[%s289 + $0x12c8] sm:$0xff]
        %v1018 = vld [vmem:[%s289 + $0x12d0] sm:$0xff]
        %v1019 = vld [vmem:[%s289 + $0x12d8] sm:$0xff]
        %v1020 = vld [vmem:[%s289 + $0x12e0] sm:$0xff]
        %v1021 = vld [vmem:[%s289 + $0x12e8] sm:$0xff]
        %v1022 = vld [vmem:[%s289 + $0x12f0] sm:$0xff]
        %v1023 = vld [vmem:[%s289 + $0x12f8] sm:$0xff]
        %v1024 = vld [vmem:[%s289 + $0x1300] sm:$0xff]
        %v1025 = vld [vmem:[%s289 + $0x1308] sm:$0xff]
        %v1026 = vld [vmem:[%s289 + $0x1310] sm:$0xff]
        %v1027 = vld [vmem:[%s289 + $0x1318] sm:$0xff]
        %v1028 = vld [vmem:[%s289 + $0x1320] sm:$0xff]
        %v1029 = vld [vmem:[%s289 + $0x1328] sm:$0xff]
        %v1030 = vld [vmem:[%s289 + $0x1330] sm:$0xff]
        %v1031 = vld [vmem:[%s289 + $0x1338] sm:$0xff]
        %v1032 = vld [vmem:[%s289 + $0x1340] sm:$0xff]
        %v1033 = vld [vmem:[%s289 + $0x1348] sm:$0xff]
        %v1034 = vld [vmem:[%s289 + $0x1350] sm:$0xff]
        %v1035 = vld [vmem:[%s289 + $0x1358] sm:$0xff]
        %v1036 = vld [vmem:[%s289 + $0x1360] sm:$0xff]
        %v1037 = vld [vmem:[%s289 + $0x1368] sm:$0xff]
        %v1038 = vld [vmem:[%s289 + $0x1370] sm:$0xff]
        %v1039 = vld [vmem:[%s289 + $0x1378] sm:$0xff]
        %v1040 = vld [vmem:[%s289 + $0x1380] sm:$0xff]
        %v1041 = vld [vmem:[%s289 + $0x1388] sm:$0xff]
        %v1042 = vld [vmem:[%s289 + $0x1390] sm:$0xff]
        %v1043 = vld [vmem:[%s289 + $0x1398] sm:$0xff]
        %v1044 = vld [vmem:[%s289 + $0x13a0] sm:$0xff]
        %v1045 = vld [vmem:[%s289 + $0x13a8] sm:$0xff]
        %v1046 = vld [vmem:[%s289 + $0x13b0] sm:$0xff]
        %v1047 = vld [vmem:[%s289 + $0x13b8] sm:$0xff]
        %v1048 = vld [vmem:[%s289 + $0x13c0] sm:$0xff]
        %v1049 = vld [vmem:[%s289 + $0x13c8] sm:$0xff]
        %v1050 = vld [vmem:[%s289 + $0x13d0] sm:$0xff]
        %v1051 = vld [vmem:[%s289 + $0x13d8] sm:$0xff]
        %v1052 = vld [vmem:[%s289 + $0x13e0] sm:$0xff]
        %v1053 = vld [vmem:[%s289 + $0x13e8] sm:$0xff]
        %v1054 = vld [vmem:[%s289 + $0x13f0] sm:$0xff]
        %v1055 = vld [vmem:[%s289 + $0x13f8] sm:$0xff]
        %v1056 = vld [vmem:[%s289 + $0x1400] sm:$0xff]
        %v1057 = vld [vmem:[%s289 + $0x1408] sm:$0xff]
        %v1058 = vld [vmem:[%s289 + $0x1410] sm:$0xff]
        %v1059 = vld [vmem:[%s289 + $0x1418] sm:$0xff]
        %v1060 = vld [vmem:[%s289 + $0x1420] sm:$0xff]
        %v1061 = vld [vmem:[%s289 + $0x1428] sm:$0xff]
        %v1062 = vld [vmem:[%s289 + $0x1430] sm:$0xff]
        %v1063 = vld [vmem:[%s289 + $0x1438] sm:$0xff]
        %v1064 = vld [vmem:[%s289 + $0x1440] sm:$0xff]
        %v1065 = vld [vmem:[%s289 + $0x1448] sm:$0xff]
        %v1066 = vld [vmem:[%s289 + $0x1450] sm:$0xff]
        %v1067 = vld [vmem:[%s289 + $0x1458] sm:$0xff]
        %v1068 = vld [vmem:[%s289 + $0x1460] sm:$0xff]
        %v1069 = vld [vmem:[%s289 + $0x1468] sm:$0xff]
        %v1070 = vld [vmem:[%s289 + $0x1470] sm:$0xff]
        %v1071 = vld [vmem:[%s289 + $0x1478] sm:$0xff]
        %v1072 = vld [vmem:[%s289 + $0x1480] sm:$0xff]
        %v1073 = vld [vmem:[%s289 + $0x1488] sm:$0xff]
        %v1074 = vld [vmem:[%s289 + $0x1490] sm:$0xff]
        %v1075 = vld [vmem:[%s289 + $0x1498] sm:$0xff]
        %v1076 = vld [vmem:[%s289 + $0x14a0] sm:$0xff]
        %v1077 = vld [vmem:[%s289 + $0x14a8] sm:$0xff]
        %v1078 = vld [vmem:[%s289 + $0x14b0] sm:$0xff]
        %v1079 = vld [vmem:[%s289 + $0x14b8] sm:$0xff]
        %v1080 = vld [vmem:[%s289 + $0x14c0] sm:$0xff]
        %v1081 = vld [vmem:[%s289 + $0x14c8] sm:$0xff]
        %v1082 = vld [vmem:[%s289 + $0x14d0] sm:$0xff]
        %v1083 = vld [vmem:[%s289 + $0x14d8] sm:$0xff]
        %v1084 = vld [vmem:[%s289 + $0x14e0] sm:$0xff]
        %v1085 = vld [vmem:[%s289 + $0x14e8] sm:$0xff]
        %v1086 = vld [vmem:[%s289 + $0x14f0] sm:$0xff]
        %v1087 = vld [vmem:[%s289 + $0x14f8] sm:$0xff]
        %v1088 = vld [vmem:[%s289 + $0x1500] sm:$0xff]
        %v1089 = vld [vmem:[%s289 + $0x1508] sm:$0xff]
        %v1090 = vld [vmem:[%s289 + $0x1510] sm:$0xff]
        %v1091 = vld [vmem:[%s289 + $0x1518] sm:$0xff]
        %v1092 = vld [vmem:[%s289 + $0x1520] sm:$0xff]
        %v1093 = vld [vmem:[%s289 + $0x1528] sm:$0xff]
        %v1094 = vld [vmem:[%s289 + $0x1530] sm:$0xff]
        %v1095 = vld [vmem:[%s289 + $0x1538] sm:$0xff]
        %v1096 = vld [vmem:[%s289 + $0x1540] sm:$0xff]
        %v1097 = vld [vmem:[%s289 + $0x1548] sm:$0xff]
        %v1098 = vld [vmem:[%s289 + $0x1550] sm:$0xff]
        %v1099 = vld [vmem:[%s289 + $0x1558] sm:$0xff]
        %v1100 = vld [vmem:[%s289 + $0x1560] sm:$0xff]
        %v1101 = vld [vmem:[%s289 + $0x1568] sm:$0xff]
        %v1102 = vld [vmem:[%s289 + $0x1570] sm:$0xff]
        %v1103 = vld [vmem:[%s289 + $0x1578] sm:$0xff]
        %v1104 = vld [vmem:[%s289 + $0x1580] sm:$0xff]
        %v1105 = vld [vmem:[%s289 + $0x1588] sm:$0xff]
        %v1106 = vld [vmem:[%s289 + $0x1590] sm:$0xff]
        %v1107 = vld [vmem:[%s289 + $0x1598] sm:$0xff]
        %v1108 = vld [vmem:[%s289 + $0x15a0] sm:$0xff]
        %v1109 = vld [vmem:[%s289 + $0x15a8] sm:$0xff]
        %v1110 = vld [vmem:[%s289 + $0x15b0] sm:$0xff]
        %v1111 = vld [vmem:[%s289 + $0x15b8] sm:$0xff]
        %v1112 = vld [vmem:[%s289 + $0x15c0] sm:$0xff]
        %v1113 = vld [vmem:[%s289 + $0x15c8] sm:$0xff]
        %v1114 = vld [vmem:[%s289 + $0x15d0] sm:$0xff]
        %v1115 = vld [vmem:[%s289 + $0x15d8] sm:$0xff]
        %v1116 = vld [vmem:[%s289 + $0x15e0] sm:$0xff]
        %v1117 = vld [vmem:[%s289 + $0x15e8] sm:$0xff]
        %v1118 = vld [vmem:[%s289 + $0x15f0] sm:$0xff]
        %v1119 = vld [vmem:[%s289 + $0x15f8] sm:$0xff]
        %v1120 = vld [vmem:[%s289 + $0x1600] sm:$0xff]
        %v1121 = vld [vmem:[%s289 + $0x1608] sm:$0xff]
        %v1122 = vld [vmem:[%s289 + $0x1610] sm:$0xff]
        %v1123 = vld [vmem:[%s289 + $0x1618] sm:$0xff]
        %v1124 = vld [vmem:[%s289 + $0x1620] sm:$0xff]
        %v1125 = vld [vmem:[%s289 + $0x1628] sm:$0xff]
        %v1126 = vld [vmem:[%s289 + $0x1630] sm:$0xff]
        %v1127 = vld [vmem:[%s289 + $0x1638] sm:$0xff]
        %v1128 = vld [vmem:[%s289 + $0x1640] sm:$0xff]
        %v1129 = vld [vmem:[%s289 + $0x1648] sm:$0xff]
        %v1130 = vld [vmem:[%s289 + $0x1650] sm:$0xff]
        %v1131 = vld [vmem:[%s289 + $0x1658] sm:$0xff]
        %v1132 = vld [vmem:[%s289 + $0x1660] sm:$0xff]
        %v1133 = vld [vmem:[%s289 + $0x1668] sm:$0xff]
        %v1134 = vld [vmem:[%s289 + $0x1670] sm:$0xff]
        %v1135 = vld [vmem:[%s289 + $0x1678] sm:$0xff]
        %v1136 = vld [vmem:[%s289 + $0x1680] sm:$0xff]
        %v1137 = vld [vmem:[%s289 + $0x1688] sm:$0xff]
        %v1138 = vld [vmem:[%s289 + $0x1690] sm:$0xff]
        %v1139 = vld [vmem:[%s289 + $0x1698] sm:$0xff]
        %v1140 = vld [vmem:[%s289 + $0x16a0] sm:$0xff]
        %v1141 = vld [vmem:[%s289 + $0x16a8] sm:$0xff]
        %v1142 = vld [vmem:[%s289 + $0x16b0] sm:$0xff]
        %v1143 = vld [vmem:[%s289 + $0x16b8] sm:$0xff]
        %v1144 = vld [vmem:[%s289 + $0x16c0] sm:$0xff]
        %v1145 = vld [vmem:[%s289 + $0x16c8] sm:$0xff]
        %v1146 = vld [vmem:[%s289 + $0x16d0] sm:$0xff]
        %v1147 = vld [vmem:[%s289 + $0x16d8] sm:$0xff]
        %v1148 = vld [vmem:[%s289 + $0x16e0] sm:$0xff]
        %v1149 = vld [vmem:[%s289 + $0x16e8] sm:$0xff]
        %v1150 = vld [vmem:[%s289 + $0x16f0] sm:$0xff]
        %v1151 = vld [vmem:[%s289 + $0x16f8] sm:$0xff]
        %v1152 = vld [vmem:[%s289 + $0x1700] sm:$0xff]
        %v1153 = vld [vmem:[%s289 + $0x1708] sm:$0xff]
        %v1154 = vld [vmem:[%s289 + $0x1710] sm:$0xff]
        %v1155 = vld [vmem:[%s289 + $0x1718] sm:$0xff]
        %v1156 = vld [vmem:[%s289 + $0x1720] sm:$0xff]
        %v1157 = vld [vmem:[%s289 + $0x1728] sm:$0xff]
        %v1158 = vld [vmem:[%s289 + $0x1730] sm:$0xff]
        %v1159 = vld [vmem:[%s289 + $0x1738] sm:$0xff]
        %v1160 = vld [vmem:[%s289 + $0x1740] sm:$0xff]
        %v1161 = vld [vmem:[%s289 + $0x1748] sm:$0xff]
        %v1162 = vld [vmem:[%s289 + $0x1750] sm:$0xff]
        %v1163 = vld [vmem:[%s289 + $0x1758] sm:$0xff]
        %v1164 = vld [vmem:[%s289 + $0x1760] sm:$0xff]
        %v1165 = vld [vmem:[%s289 + $0x1768] sm:$0xff]
        %v1166 = vld [vmem:[%s289 + $0x1770] sm:$0xff]
        %v1167 = vld [vmem:[%s289 + $0x1778] sm:$0xff]
        %v1168 = vld [vmem:[%s289 + $0x1780] sm:$0xff]
        %v1169 = vld [vmem:[%s289 + $0x1788] sm:$0xff]
        %v1170 = vld [vmem:[%s289 + $0x1790] sm:$0xff]
        %v1171 = vld [vmem:[%s289 + $0x1798] sm:$0xff]
        %v1172 = vld [vmem:[%s289 + $0x17a0] sm:$0xff]
        %v1173 = vld [vmem:[%s289 + $0x17a8] sm:$0xff]
        %v1174 = vld [vmem:[%s289 + $0x17b0] sm:$0xff]
        %v1175 = vld [vmem:[%s289 + $0x17b8] sm:$0xff]
        %v1176 = vld [vmem:[%s289 + $0x17c0] sm:$0xff]
        %v1177 = vld [vmem:[%s289 + $0x17c8] sm:$0xff]
        %v1178 = vld [vmem:[%s289 + $0x17d0] sm:$0xff]
        %v1179 = vld [vmem:[%s289 + $0x17d8] sm:$0xff]
        %v1180 = vld [vmem:[%s289 + $0x17e0] sm:$0xff]
        %v1181 = vld [vmem:[%s289 + $0x17e8] sm:$0xff]
        %v1182 = vld [vmem:[%s289 + $0x17f0] sm:$0xff]
        %v1183 = vld [vmem:[%s289 + $0x17f8] sm:$0xff]
        %v1184 = vld [vmem:[%s289 + $0x1800] sm:$0xff]
        %v1185 = vld [vmem:[%s289 + $0x1808] sm:$0xff]
        %v1186 = vld [vmem:[%s289 + $0x1810] sm:$0xff]
        %v1187 = vld [vmem:[%s289 + $0x1818] sm:$0xff]
        %v1188 = vld [vmem:[%s289 + $0x1820] sm:$0xff]
        %v1189 = vld [vmem:[%s289 + $0x1828] sm:$0xff]
        %v1190 = vld [vmem:[%s289 + $0x1830] sm:$0xff]
        %v1191 = vld [vmem:[%s289 + $0x1838] sm:$0xff]
        %v1192 = vld [vmem:[%s289 + $0x1840] sm:$0xff]
        %v1193 = vld [vmem:[%s289 + $0x1848] sm:$0xff]
        %v1194 = vld [vmem:[%s289 + $0x1850] sm:$0xff]
        %v1195 = vld [vmem:[%s289 + $0x1858] sm:$0xff]
        %v1196 = vld [vmem:[%s289 + $0x1860] sm:$0xff]
        %v1197 = vld [vmem:[%s289 + $0x1868] sm:$0xff]
        %v1198 = vld [vmem:[%s289 + $0x1870] sm:$0xff]
        %v1199 = vld [vmem:[%s289 + $0x1878] sm:$0xff]
        %v1200 = vld [vmem:[%s289 + $0x1880] sm:$0xff]
        %v1201 = vld [vmem:[%s289 + $0x1888] sm:$0xff]
        %v1202 = vld [vmem:[%s289 + $0x1890] sm:$0xff]
        %v1203 = vld [vmem:[%s289 + $0x1898] sm:$0xff]
        %v1204 = vld [vmem:[%s289 + $0x18a0] sm:$0xff]
        %v1205 = vld [vmem:[%s289 + $0x18a8] sm:$0xff]
        %v1206 = vld [vmem:[%s289 + $0x18b0] sm:$0xff]
        %v1207 = vld [vmem:[%s289 + $0x18b8] sm:$0xff]
        %v1208 = vld [vmem:[%s289 + $0x18c0] sm:$0xff]
        %v1209 = vld [vmem:[%s289 + $0x18c8] sm:$0xff]
        %v1210 = vld [vmem:[%s289 + $0x18d0] sm:$0xff]
        %v1211 = vld [vmem:[%s289 + $0x18d8] sm:$0xff]
        %v1212 = vld [vmem:[%s289 + $0x18e0] sm:$0xff]
        %v1213 = vld [vmem:[%s289 + $0x18e8] sm:$0xff]
        %v1214 = vld [vmem:[%s289 + $0x18f0] sm:$0xff]
        %v1215 = vld [vmem:[%s289 + $0x18f8] sm:$0xff]
        %v1216 = vld [vmem:[%s289 + $0x1900] sm:$0xff]
        %v1217 = vld [vmem:[%s289 + $0x1908] sm:$0xff]
        %v1218 = vld [vmem:[%s289 + $0x1910] sm:$0xff]
        %v1219 = vld [vmem:[%s289 + $0x1918] sm:$0xff]
        %v1220 = vld [vmem:[%s289 + $0x1920] sm:$0xff]
        %v1221 = vld [vmem:[%s289 + $0x1928] sm:$0xff]
        %v1222 = vld [vmem:[%s289 + $0x1930] sm:$0xff]
        %v1223 = vld [vmem:[%s289 + $0x1938] sm:$0xff]
        %v1224 = vld [vmem:[%s289 + $0x1940] sm:$0xff]
        %v1225 = vld [vmem:[%s289 + $0x1948] sm:$0xff]
        %v1226 = vld [vmem:[%s289 + $0x1950] sm:$0xff]
        %v1227 = vld [vmem:[%s289 + $0x1958] sm:$0xff]
        %v1228 = vld [vmem:[%s289 + $0x1960] sm:$0xff]
        %v1229 = vld [vmem:[%s289 + $0x1968] sm:$0xff]
        %v1230 = vld [vmem:[%s289 + $0x1970] sm:$0xff]
        %v1231 = vld [vmem:[%s289 + $0x1978] sm:$0xff]
        %v1232 = vld [vmem:[%s289 + $0x1980] sm:$0xff]
        %v1233 = vld [vmem:[%s289 + $0x1988] sm:$0xff]
        %v1234 = vld [vmem:[%s289 + $0x1990] sm:$0xff]
        %v1235 = vld [vmem:[%s289 + $0x1998] sm:$0xff]
        %v1236 = vld [vmem:[%s289 + $0x19a0] sm:$0xff]
        %v1237 = vld [vmem:[%s289 + $0x19a8] sm:$0xff]
        %v1238 = vld [vmem:[%s289 + $0x19b0] sm:$0xff]
        %v1239 = vld [vmem:[%s289 + $0x19b8] sm:$0xff]
        %v1240 = vld [vmem:[%s289 + $0x19c0] sm:$0xff]
        %v1241 = vld [vmem:[%s289 + $0x19c8] sm:$0xff]
        %v1242 = vld [vmem:[%s289 + $0x19d0] sm:$0xff]
        %v1243 = vld [vmem:[%s289 + $0x19d8] sm:$0xff]
        %v1244 = vld [vmem:[%s289 + $0x19e0] sm:$0xff]
        %v1245 = vld [vmem:[%s289 + $0x19e8] sm:$0xff]
        %v1246 = vld [vmem:[%s289 + $0x19f0] sm:$0xff]
        %v1247 = vld [vmem:[%s289 + $0x19f8] sm:$0xff]
        %v1248 = vld [vmem:[%s289 + $0x1a00] sm:$0xff]
        %v1249 = vld [vmem:[%s289 + $0x1a08] sm:$0xff]
        %v1250 = vld [vmem:[%s289 + $0x1a10] sm:$0xff]
        %v1251 = vld [vmem:[%s289 + $0x1a18] sm:$0xff]
        %v1252 = vld [vmem:[%s289 + $0x1a20] sm:$0xff]
        %v1253 = vld [vmem:[%s289 + $0x1a28] sm:$0xff]
        %v1254 = vld [vmem:[%s289 + $0x1a30] sm:$0xff]
        %v1255 = vld [vmem:[%s289 + $0x1a38] sm:$0xff]
        %v1256 = vld [vmem:[%s289 + $0x1a40] sm:$0xff]
        %v1257 = vld [vmem:[%s289 + $0x1a48] sm:$0xff]
        %v1258 = vld [vmem:[%s289 + $0x1a50] sm:$0xff]
        %v1259 = vld [vmem:[%s289 + $0x1a58] sm:$0xff]
        %v1260 = vld [vmem:[%s289 + $0x1a60] sm:$0xff]
        %v1261 = vld [vmem:[%s289 + $0x1a68] sm:$0xff]
        %v1262 = vld [vmem:[%s289 + $0x1a70] sm:$0xff]
        %v1263 = vld [vmem:[%s289 + $0x1a78] sm:$0xff]
        %v1264 = vld [vmem:[%s289 + $0x1a80] sm:$0xff]
        %v1265 = vld [vmem:[%s289 + $0x1a88] sm:$0xff]
        %v1266 = vld [vmem:[%s289 + $0x1a90] sm:$0xff]
        %v1267 = vld [vmem:[%s289 + $0x1a98] sm:$0xff]
        %v1268 = vld [vmem:[%s289 + $0x1aa0] sm:$0xff]
        %v1269 = vld [vmem:[%s289 + $0x1aa8] sm:$0xff]
        %v1270 = vld [vmem:[%s289 + $0x1ab0] sm:$0xff]
        %v1271 = vld [vmem:[%s289 + $0x1ab8] sm:$0xff]
        %v1272 = vld [vmem:[%s289 + $0x1ac0] sm:$0xff]
        %v1273 = vld [vmem:[%s289 + $0x1ac8] sm:$0xff]
        %v1274 = vld [vmem:[%s289 + $0x1ad0] sm:$0xff]
        %v1275 = vld [vmem:[%s289 + $0x1ad8] sm:$0xff]
        %v1276 = vld [vmem:[%s289 + $0x1ae0] sm:$0xff]
        %v1277 = vld [vmem:[%s289 + $0x1ae8] sm:$0xff]
        %v1278 = vld [vmem:[%s289 + $0x1af0] sm:$0xff]
        %v1279 = vld [vmem:[%s289 + $0x1af8] sm:$0xff]
        %v1280 = vld [vmem:[%s289 + $0x1b00] sm:$0xff]
        %v1281 = vld [vmem:[%s289 + $0x1b08] sm:$0xff]
        %v1282 = vld [vmem:[%s289 + $0x1b10] sm:$0xff]
        %v1283 = vld [vmem:[%s289 + $0x1b18] sm:$0xff]
        %v1284 = vld [vmem:[%s289 + $0x1b20] sm:$0xff]
        %v1285 = vld [vmem:[%s289 + $0x1b28] sm:$0xff]
        %v1286 = vld [vmem:[%s289 + $0x1b30] sm:$0xff]
        %v1287 = vld [vmem:[%s289 + $0x1b38] sm:$0xff]
        %v1288 = vld [vmem:[%s289 + $0x1b40] sm:$0xff]
        %v1289 = vld [vmem:[%s289 + $0x1b48] sm:$0xff]
        %v1290 = vld [vmem:[%s289 + $0x1b50] sm:$0xff]
        %v1291 = vld [vmem:[%s289 + $0x1b58] sm:$0xff]
        %v1292 = vld [vmem:[%s289 + $0x1b60] sm:$0xff]
        %v1293 = vld [vmem:[%s289 + $0x1b68] sm:$0xff]
        %v1294 = vld [vmem:[%s289 + $0x1b70] sm:$0xff]
        %v1295 = vld [vmem:[%s289 + $0x1b78] sm:$0xff]
        %v1296 = vld [vmem:[%s289 + $0x1b80] sm:$0xff]
        %v1297 = vld [vmem:[%s289 + $0x1b88] sm:$0xff]
        %v1298 = vld [vmem:[%s289 + $0x1b90] sm:$0xff]
        %v1299 = vld [vmem:[%s289 + $0x1b98] sm:$0xff]
        %v1300 = vld [vmem:[%s289 + $0x1ba0] sm:$0xff]
        %v1301 = vld [vmem:[%s289 + $0x1ba8] sm:$0xff]
        %v1302 = vld [vmem:[%s289 + $0x1bb0] sm:$0xff]
        %v1303 = vld [vmem:[%s289 + $0x1bb8] sm:$0xff]
        %v1304 = vld [vmem:[%s289 + $0x1bc0] sm:$0xff]
        %v1305 = vld [vmem:[%s289 + $0x1bc8] sm:$0xff]
        %v1306 = vld [vmem:[%s289 + $0x1bd0] sm:$0xff]
        %v1307 = vld [vmem:[%s289 + $0x1bd8] sm:$0xff]
        %v1308 = vld [vmem:[%s289 + $0x1be0] sm:$0xff]
        %v1309 = vld [vmem:[%s289 + $0x1be8] sm:$0xff]
        %v1310 = vld [vmem:[%s289 + $0x1bf0] sm:$0xff]
        %v1311 = vld [vmem:[%s289 + $0x1bf8] sm:$0xff]
        %v1312 = vld [vmem:[%s289 + $0x1c00] sm:$0xff]
        %v1313 = vld [vmem:[%s289 + $0x1c08] sm:$0xff]
        %v1314 = vld [vmem:[%s289 + $0x1c10] sm:$0xff]
        %v1315 = vld [vmem:[%s289 + $0x1c18] sm:$0xff]
        %v1316 = vld [vmem:[%s289 + $0x1c20] sm:$0xff]
        %v1317 = vld [vmem:[%s289 + $0x1c28] sm:$0xff]
        %v1318 = vld [vmem:[%s289 + $0x1c30] sm:$0xff]
        %v1319 = vld [vmem:[%s289 + $0x1c38] sm:$0xff]
        %v1320 = vld [vmem:[%s289 + $0x1c40] sm:$0xff]
        %v1321 = vld [vmem:[%s289 + $0x1c48] sm:$0xff]
        %v1322 = vld [vmem:[%s289 + $0x1c50] sm:$0xff]
        %v1323 = vld [vmem:[%s289 + $0x1c58] sm:$0xff]
        %v1324 = vld [vmem:[%s289 + $0x1c60] sm:$0xff]
        %v1325 = vld [vmem:[%s289 + $0x1c68] sm:$0xff]
        %v1326 = vld [vmem:[%s289 + $0x1c70] sm:$0xff]
        %v1327 = vld [vmem:[%s289 + $0x1c78] sm:$0xff]
        %v1328 = vld [vmem:[%s289 + $0x1c80] sm:$0xff]
        %v1329 = vld [vmem:[%s289 + $0x1c88] sm:$0xff]
        %v1330 = vld [vmem:[%s289 + $0x1c90] sm:$0xff]
        %v1331 = vld [vmem:[%s289 + $0x1c98] sm:$0xff]
        %v1332 = vld [vmem:[%s289 + $0x1ca0] sm:$0xff]
        %v1333 = vld [vmem:[%s289 + $0x1ca8] sm:$0xff]
        %v1334 = vld [vmem:[%s289 + $0x1cb0] sm:$0xff]
        %v1335 = vld [vmem:[%s289 + $0x1cb8] sm:$0xff]
        %v1336 = vld [vmem:[%s289 + $0x1cc0] sm:$0xff]
        %v1337 = vld [vmem:[%s289 + $0x1cc8] sm:$0xff]
        %v1338 = vld [vmem:[%s289 + $0x1cd0] sm:$0xff]
        %v1339 = vld [vmem:[%s289 + $0x1cd8] sm:$0xff]
        %v1340 = vld [vmem:[%s289 + $0x1ce0] sm:$0xff]
        %v1341 = vld [vmem:[%s289 + $0x1ce8] sm:$0xff]
        %v1342 = vld [vmem:[%s289 + $0x1cf0] sm:$0xff]
        %v1343 = vld [vmem:[%s289 + $0x1cf8] sm:$0xff]
        %v1344 = vld [vmem:[%s289 + $0x1d00] sm:$0xff]
        %v1345 = vld [vmem:[%s289 + $0x1d08] sm:$0xff]
        %v1346 = vld [vmem:[%s289 + $0x1d10] sm:$0xff]
        %v1347 = vld [vmem:[%s289 + $0x1d18] sm:$0xff]
        %v1348 = vld [vmem:[%s289 + $0x1d20] sm:$0xff]
        %v1349 = vld [vmem:[%s289 + $0x1d28] sm:$0xff]
        %v1350 = vld [vmem:[%s289 + $0x1d30] sm:$0xff]
        %v1351 = vld [vmem:[%s289 + $0x1d38] sm:$0xff]
        %v1352 = vld [vmem:[%s289 + $0x1d40] sm:$0xff]
        %v1353 = vld [vmem:[%s289 + $0x1d48] sm:$0xff]
        %v1354 = vld [vmem:[%s289 + $0x1d50] sm:$0xff]
        %v1355 = vld [vmem:[%s289 + $0x1d58] sm:$0xff]
        %v1356 = vld [vmem:[%s289 + $0x1d60] sm:$0xff]
        %v1357 = vld [vmem:[%s289 + $0x1d68] sm:$0xff]
        %v1358 = vld [vmem:[%s289 + $0x1d70] sm:$0xff]
        %v1359 = vld [vmem:[%s289 + $0x1d78] sm:$0xff]
        %v1360 = vld [vmem:[%s289 + $0x1d80] sm:$0xff]
        %v1361 = vld [vmem:[%s289 + $0x1d88] sm:$0xff]
        %v1362 = vld [vmem:[%s289 + $0x1d90] sm:$0xff]
        %v1363 = vld [vmem:[%s289 + $0x1d98] sm:$0xff]
        %v1364 = vld [vmem:[%s289 + $0x1da0] sm:$0xff]
        %v1365 = vld [vmem:[%s289 + $0x1da8] sm:$0xff]
        %v1366 = vld [vmem:[%s289 + $0x1db0] sm:$0xff]
        %v1367 = vld [vmem:[%s289 + $0x1db8] sm:$0xff]
        %v1368 = vld [vmem:[%s289 + $0x1dc0] sm:$0xff]
        %v1369 = vld [vmem:[%s289 + $0x1dc8] sm:$0xff]
        %v1370 = vld [vmem:[%s289 + $0x1dd0] sm:$0xff]
        %v1371 = vld [vmem:[%s289 + $0x1dd8] sm:$0xff]
        %v1372 = vld [vmem:[%s289 + $0x1de0] sm:$0xff]
        %v1373 = vld [vmem:[%s289 + $0x1de8] sm:$0xff]
        %v1374 = vld [vmem:[%s289 + $0x1df0] sm:$0xff]
        %v1375 = vld [vmem:[%s289 + $0x1df8] sm:$0xff]
        %v1376 = vld [vmem:[%s289 + $0x1e00] sm:$0xff]
        %v1377 = vld [vmem:[%s289 + $0x1e08] sm:$0xff]
        %v1378 = vld [vmem:[%s289 + $0x1e10] sm:$0xff]
        %v1379 = vld [vmem:[%s289 + $0x1e18] sm:$0xff]
        %v1380 = vld [vmem:[%s289 + $0x1e20] sm:$0xff]
        %v1381 = vld [vmem:[%s289 + $0x1e28] sm:$0xff]
        %v1382 = vld [vmem:[%s289 + $0x1e30] sm:$0xff]
        %v1383 = vld [vmem:[%s289 + $0x1e38] sm:$0xff]
        %v1384 = vld [vmem:[%s289 + $0x1e40] sm:$0xff]
        %v1385 = vld [vmem:[%s289 + $0x1e48] sm:$0xff]
        %v1386 = vld [vmem:[%s289 + $0x1e50] sm:$0xff]
        %v1387 = vld [vmem:[%s289 + $0x1e58] sm:$0xff]
        %v1388 = vld [vmem:[%s289 + $0x1e60] sm:$0xff]
        %v1389 = vld [vmem:[%s289 + $0x1e68] sm:$0xff]
        %v1390 = vld [vmem:[%s289 + $0x1e70] sm:$0xff]
        %v1391 = vld [vmem:[%s289 + $0x1e78] sm:$0xff]
        %v1392 = vld [vmem:[%s289 + $0x1e80] sm:$0xff]
        %v1393 = vld [vmem:[%s289 + $0x1e88] sm:$0xff]
        %v1394 = vld [vmem:[%s289 + $0x1e90] sm:$0xff]
        %v1395 = vld [vmem:[%s289 + $0x1e98] sm:$0xff]
        %v1396 = vld [vmem:[%s289 + $0x1ea0] sm:$0xff]
        %v1397 = vld [vmem:[%s289 + $0x1ea8] sm:$0xff]
        %v1398 = vld [vmem:[%s289 + $0x1eb0] sm:$0xff]
        %v1399 = vld [vmem:[%s289 + $0x1eb8] sm:$0xff]
        %v1400 = vld [vmem:[%s289 + $0x1ec0] sm:$0xff]
        %v1401 = vld [vmem:[%s289 + $0x1ec8] sm:$0xff]
        %v1402 = vld [vmem:[%s289 + $0x1ed0] sm:$0xff]
        %v1403 = vld [vmem:[%s289 + $0x1ed8] sm:$0xff]
        %v1404 = vld [vmem:[%s289 + $0x1ee0] sm:$0xff]
        %v1405 = vld [vmem:[%s289 + $0x1ee8] sm:$0xff]
        %v1406 = vld [vmem:[%s289 + $0x1ef0] sm:$0xff]
        %v1407 = vld [vmem:[%s289 + $0x1ef8] sm:$0xff]
        %v1408 = vld [vmem:[%s289 + $0x1f00] sm:$0xff]
        %v1409 = vld [vmem:[%s289 + $0x1f08] sm:$0xff]
        %v1410 = vld [vmem:[%s289 + $0x1f10] sm:$0xff]
        %v1411 = vld [vmem:[%s289 + $0x1f18] sm:$0xff]
        %v1412 = vld [vmem:[%s289 + $0x1f20] sm:$0xff]
        %v1413 = vld [vmem:[%s289 + $0x1f28] sm:$0xff]
        %v1414 = vld [vmem:[%s289 + $0x1f30] sm:$0xff]
        %v1415 = vld [vmem:[%s289 + $0x1f38] sm:$0xff]
        %v1416 = vld [vmem:[%s289 + $0x1f40] sm:$0xff]
        %v1417 = vld [vmem:[%s289 + $0x1f48] sm:$0xff]
        %v1418 = vld [vmem:[%s289 + $0x1f50] sm:$0xff]
        %v1419 = vld [vmem:[%s289 + $0x1f58] sm:$0xff]
        %v1420 = vld [vmem:[%s289 + $0x1f60] sm:$0xff]
        %v1421 = vld [vmem:[%s289 + $0x1f68] sm:$0xff]
        %v1422 = vld [vmem:[%s289 + $0x1f70] sm:$0xff]
        %v1423 = vld [vmem:[%s289 + $0x1f78] sm:$0xff]
        %v1424 = vld [vmem:[%s289 + $0x1f80] sm:$0xff]
        %v1425 = vld [vmem:[%s289 + $0x1f88] sm:$0xff]
        %v1426 = vld [vmem:[%s289 + $0x1f90] sm:$0xff]
        %v1427 = vld [vmem:[%s289 + $0x1f98] sm:$0xff]
        %v1428 = vld [vmem:[%s289 + $0x1fa0] sm:$0xff]
        %v1429 = vld [vmem:[%s289 + $0x1fa8] sm:$0xff]
        %v1430 = vld [vmem:[%s289 + $0x1fb0] sm:$0xff]
        %v1431 = vld [vmem:[%s289 + $0x1fb8] sm:$0xff]
        %v1432 = vld [vmem:[%s289 + $0x1fc0] sm:$0xff]
        %v1433 = vld [vmem:[%s289 + $0x1fc8] sm:$0xff]
        %v1434 = vld [vmem:[%s289 + $0x1fd0] sm:$0xff]
        %v1435 = vld [vmem:[%s289 + $0x1fd8] sm:$0xff]
        %v1436 = vld [vmem:[%s289 + $0x1fe0] sm:$0xff]
        %v1437 = vld [vmem:[%s289 + $0x1fe8] sm:$0xff]
        %v1438 = vld [vmem:[%s289 + $0x1ff0] sm:$0xff]
        %v1439 = vld [vmem:[%s289 + $0x1ff8] sm:$0xff]
        %v1440 = vld [vmem:[%s289 + $0x2000] sm:$0xff]
        %v1441 = vld [vmem:[%s289 + $0x2008] sm:$0xff]
        %v1442 = vld [vmem:[%s289 + $0x2010] sm:$0xff]
        %v1443 = vld [vmem:[%s289 + $0x2018] sm:$0xff]
        %v1444 = vld [vmem:[%s289 + $0x2020] sm:$0xff]
        %v1445 = vld [vmem:[%s289 + $0x2028] sm:$0xff]
        %v1446 = vld [vmem:[%s289 + $0x2030] sm:$0xff]
        %v1447 = vld [vmem:[%s289 + $0x2038] sm:$0xff]
        %v1448 = vld [vmem:[%s289 + $0x2040] sm:$0xff]
        %v1449 = vld [vmem:[%s289 + $0x2048] sm:$0xff]
        %v1450 = vld [vmem:[%s289 + $0x2050] sm:$0xff]
        %v1451 = vld [vmem:[%s289 + $0x2058] sm:$0xff]
        %v1452 = vld [vmem:[%s289 + $0x2060] sm:$0xff]
        %v1453 = vld [vmem:[%s289 + $0x2068] sm:$0xff]
        %v1454 = vld [vmem:[%s289 + $0x2070] sm:$0xff]
        %v1455 = vld [vmem:[%s289 + $0x2078] sm:$0xff]
        %v1456 = vld [vmem:[%s289 + $0x2080] sm:$0xff]
        %v1457 = vld [vmem:[%s289 + $0x2088] sm:$0xff]
        %v1458 = vld [vmem:[%s289 + $0x2090] sm:$0xff]
        %v1459 = vld [vmem:[%s289 + $0x2098] sm:$0xff]
        %v1460 = vld [vmem:[%s289 + $0x20a0] sm:$0xff]
        %v1461 = vld [vmem:[%s289 + $0x20a8] sm:$0xff]
        %v1462 = vld [vmem:[%s289 + $0x20b0] sm:$0xff]
        %v1463 = vld [vmem:[%s289 + $0x20b8] sm:$0xff]
        %v1464 = vld [vmem:[%s289 + $0x20c0] sm:$0xff]
        %v1465 = vld [vmem:[%s289 + $0x20c8] sm:$0xff]
        %v1466 = vld [vmem:[%s289 + $0x20d0] sm:$0xff]
        %v1467 = vld [vmem:[%s289 + $0x20d8] sm:$0xff]
        %v1468 = vld [vmem:[%s289 + $0x20e0] sm:$0xff]
        %v1469 = vld [vmem:[%s289 + $0x20e8] sm:$0xff]
        %v1470 = vld [vmem:[%s289 + $0x20f0] sm:$0xff]
        %v1471 = vld [vmem:[%s289 + $0x20f8] sm:$0xff]
        %v1472 = vld [vmem:[%s289 + $0x2100] sm:$0xff]
        %v1473 = vld [vmem:[%s289 + $0x2108] sm:$0xff]
        %v1474 = vld [vmem:[%s289 + $0x2110] sm:$0xff]
        %v1475 = vld [vmem:[%s289 + $0x2118] sm:$0xff]
        %v1476 = vld [vmem:[%s289 + $0x2120] sm:$0xff]
        %v1477 = vld [vmem:[%s289 + $0x2128] sm:$0xff]
        %v1478 = vld [vmem:[%s289 + $0x2130] sm:$0xff]
        %v1479 = vld [vmem:[%s289 + $0x2138] sm:$0xff]
        %v1480 = vld [vmem:[%s289 + $0x2140] sm:$0xff]
        %v1481 = vld [vmem:[%s289 + $0x2148] sm:$0xff]
        %v1482 = vld [vmem:[%s289 + $0x2150] sm:$0xff]
        %v1483 = vld [vmem:[%s289 + $0x2158] sm:$0xff]
        %v1484 = vld [vmem:[%s289 + $0x2160] sm:$0xff]
        %v1485 = vld [vmem:[%s289 + $0x2168] sm:$0xff]
        %v1486 = vld [vmem:[%s289 + $0x2170] sm:$0xff]
        %v1487 = vld [vmem:[%s289 + $0x2178] sm:$0xff]
        %v1488 = vld [vmem:[%s289 + $0x2180] sm:$0xff]
        %v1489 = vld [vmem:[%s289 + $0x2188] sm:$0xff]
        %v1490 = vld [vmem:[%s289 + $0x2190] sm:$0xff]
        %v1491 = vld [vmem:[%s289 + $0x2198] sm:$0xff]
        %v1492 = vld [vmem:[%s289 + $0x21a0] sm:$0xff]
        %v1493 = vld [vmem:[%s289 + $0x21a8] sm:$0xff]
        %v1494 = vld [vmem:[%s289 + $0x21b0] sm:$0xff]
        %v1495 = vld [vmem:[%s289 + $0x21b8] sm:$0xff]
        %v1496 = vld [vmem:[%s289 + $0x21c0] sm:$0xff]
        %v1497 = vld [vmem:[%s289 + $0x21c8] sm:$0xff]
        %v1498 = vld [vmem:[%s289 + $0x21d0] sm:$0xff]
        %v1499 = vld [vmem:[%s289 + $0x21d8] sm:$0xff]
        %v1500 = vld [vmem:[%s289 + $0x21e0] sm:$0xff]
        %v1501 = vld [vmem:[%s289 + $0x21e8] sm:$0xff]
        %v1502 = vld [vmem:[%s289 + $0x21f0] sm:$0xff]
        %v1503 = vld [vmem:[%s289 + $0x21f8] sm:$0xff]
        %v1504 = vld [vmem:[%s289 + $0x2200] sm:$0xff]
        %v1505 = vld [vmem:[%s289 + $0x2208] sm:$0xff]
        %v1506 = vld [vmem:[%s289 + $0x2210] sm:$0xff]
        %v1507 = vld [vmem:[%s289 + $0x2218] sm:$0xff]
        %v1508 = vld [vmem:[%s289 + $0x2220] sm:$0xff]
        %v1509 = vld [vmem:[%s289 + $0x2228] sm:$0xff]
        %v1510 = vld [vmem:[%s289 + $0x2230] sm:$0xff]
        %v1511 = vld [vmem:[%s289 + $0x2238] sm:$0xff]
        %v1512 = vld [vmem:[%s289 + $0x2240] sm:$0xff]
        %v1513 = vld [vmem:[%s289 + $0x2248] sm:$0xff]
        %v1514 = vld [vmem:[%s289 + $0x2250] sm:$0xff]
        %v1515 = vld [vmem:[%s289 + $0x2258] sm:$0xff]
        %v1516 = vld [vmem:[%s289 + $0x2260] sm:$0xff]
        %v1517 = vld [vmem:[%s289 + $0x2268] sm:$0xff]
        %v1518 = vld [vmem:[%s289 + $0x2270] sm:$0xff]
        %v1519 = vld [vmem:[%s289 + $0x2278] sm:$0xff]
        %v1520 = vld [vmem:[%s289 + $0x2280] sm:$0xff]
        %v1521 = vld [vmem:[%s289 + $0x2288] sm:$0xff]
        %v1522 = vld [vmem:[%s289 + $0x2290] sm:$0xff]
        %v1523 = vld [vmem:[%s289 + $0x2298] sm:$0xff]
        %v1524 = vld [vmem:[%s289 + $0x22a0] sm:$0xff]
        %v1525 = vld [vmem:[%s289 + $0x22a8] sm:$0xff]
        %v1526 = vld [vmem:[%s289 + $0x22b0] sm:$0xff]
        %v1527 = vld [vmem:[%s289 + $0x22b8] sm:$0xff]
        %v1528 = vld [vmem:[%s289 + $0x22c0] sm:$0xff]
        %v1529 = vld [vmem:[%s289 + $0x22c8] sm:$0xff]
        %v1530 = vld [vmem:[%s289 + $0x22d0] sm:$0xff]
        %v1531 = vld [vmem:[%s289 + $0x22d8] sm:$0xff]
        %v1532 = vld [vmem:[%s289 + $0x22e0] sm:$0xff]
        %v1533 = vld [vmem:[%s289 + $0x22e8] sm:$0xff]
        %v1534 = vld [vmem:[%s289 + $0x22f0] sm:$0xff]
        %v1535 = vld [vmem:[%s289 + $0x22f8] sm:$0xff]
        %v1536 = vld [vmem:[%s289 + $0x2300] sm:$0xff]
        %v1537 = vld [vmem:[%s289 + $0x2308] sm:$0xff]
        %v1538 = vld [vmem:[%s289 + $0x2310] sm:$0xff]
        %v1539 = vld [vmem:[%s289 + $0x2318] sm:$0xff]
        %v1540 = vld [vmem:[%s289 + $0x2320] sm:$0xff]
        %v1541 = vld [vmem:[%s289 + $0x2328] sm:$0xff]
        %v1542 = vld [vmem:[%s289 + $0x2330] sm:$0xff]
        %v1543 = vld [vmem:[%s289 + $0x2338] sm:$0xff]
        %v1544 = vld [vmem:[%s289 + $0x2340] sm:$0xff]
        %v1545 = vld [vmem:[%s289 + $0x2348] sm:$0xff]
        %v1546 = vld [vmem:[%s289 + $0x2350] sm:$0xff]
        %v1547 = vld [vmem:[%s289 + $0x2358] sm:$0xff]
        %v1548 = vld [vmem:[%s289 + $0x2360] sm:$0xff]
        %v1549 = vld [vmem:[%s289 + $0x2368] sm:$0xff]
        %v1550 = vld [vmem:[%s289 + $0x2370] sm:$0xff]
        %v1551 = vld [vmem:[%s289 + $0x2378] sm:$0xff]
        %v1552 = vld [vmem:[%s289 + $0x2380] sm:$0xff]
        %v1553 = vld [vmem:[%s289 + $0x2388] sm:$0xff]
        %v1554 = vld [vmem:[%s289 + $0x2390] sm:$0xff]
        %v1555 = vld [vmem:[%s289 + $0x2398] sm:$0xff]
        %v1556 = vld [vmem:[%s289 + $0x23a0] sm:$0xff]
        %v1557 = vld [vmem:[%s289 + $0x23a8] sm:$0xff]
        %v1558 = vld [vmem:[%s289 + $0x23b0] sm:$0xff]
        %v1559 = vld [vmem:[%s289 + $0x23b8] sm:$0xff]
        %v1560 = vld [vmem:[%s289 + $0x23c0] sm:$0xff]
        %v1561 = vld [vmem:[%s289 + $0x23c8] sm:$0xff]
        %v1562 = vld [vmem:[%s289 + $0x23d0] sm:$0xff]
        %v1563 = vld [vmem:[%s289 + $0x23d8] sm:$0xff]
        %v1564 = vld [vmem:[%s289 + $0x23e0] sm:$0xff]
        %v1565 = vld [vmem:[%s289 + $0x23e8] sm:$0xff]
        %v1566 = vld [vmem:[%s289 + $0x23f0] sm:$0xff]
        %v1567 = vld [vmem:[%s289 + $0x23f8] sm:$0xff]
        %v1568 = vld [vmem:[%s289 + $0x2400] sm:$0xff]
        %v1569 = vld [vmem:[%s289 + $0x2408] sm:$0xff]
        %v1570 = vld [vmem:[%s289 + $0x2410] sm:$0xff]
        %v1571 = vld [vmem:[%s289 + $0x2418] sm:$0xff]
        %v1572 = vld [vmem:[%s289 + $0x2420] sm:$0xff]
        %v1573 = vld [vmem:[%s289 + $0x2428] sm:$0xff]
        %v1574 = vld [vmem:[%s289 + $0x2430] sm:$0xff]
        %v1575 = vld [vmem:[%s289 + $0x2438] sm:$0xff]
        %v1576 = vld [vmem:[%s289 + $0x2440] sm:$0xff]
        %v1577 = vld [vmem:[%s289 + $0x2448] sm:$0xff]
        %v1578 = vld [vmem:[%s289 + $0x2450] sm:$0xff]
        %v1579 = vld [vmem:[%s289 + $0x2458] sm:$0xff]
        %v1580 = vld [vmem:[%s289 + $0x2460] sm:$0xff]
        %v1581 = vld [vmem:[%s289 + $0x2468] sm:$0xff]
        %v1582 = vld [vmem:[%s289 + $0x2470] sm:$0xff]
        %v1583 = vld [vmem:[%s289 + $0x2478] sm:$0xff]
        %v1584 = vld [vmem:[%s289 + $0x2480] sm:$0xff]
        %v1585 = vld [vmem:[%s289 + $0x2488] sm:$0xff]
        %v1586 = vld [vmem:[%s289 + $0x2490] sm:$0xff]
        %v1587 = vld [vmem:[%s289 + $0x2498] sm:$0xff]
        %v1588 = vld [vmem:[%s289 + $0x24a0] sm:$0xff]
        %v1589 = vld [vmem:[%s289 + $0x24a8] sm:$0xff]
        %v1590 = vld [vmem:[%s289 + $0x24b0] sm:$0xff]
        %v1591 = vld [vmem:[%s289 + $0x24b8] sm:$0xff]
        %v1592 = vld [vmem:[%s289 + $0x24c0] sm:$0xff]
        %v1593 = vld [vmem:[%s289 + $0x24c8] sm:$0xff]
        %v1594 = vld [vmem:[%s289 + $0x24d0] sm:$0xff]
        %v1595 = vld [vmem:[%s289 + $0x24d8] sm:$0xff]
        %v1596 = vld [vmem:[%s289 + $0x24e0] sm:$0xff]
        %v1597 = vld [vmem:[%s289 + $0x24e8] sm:$0xff]
        %v1598 = vld [vmem:[%s289 + $0x24f0] sm:$0xff]
        %v1599 = vld [vmem:[%s289 + $0x24f8] sm:$0xff]
        %v1600 = vld [vmem:[%s289 + $0x2500] sm:$0xff]
        %v1601 = vld [vmem:[%s289 + $0x2508] sm:$0xff]
        %v1602 = vld [vmem:[%s289 + $0x2510] sm:$0xff]
        %v1603 = vld [vmem:[%s289 + $0x2518] sm:$0xff]
        %v1604 = vld [vmem:[%s289 + $0x2520] sm:$0xff]
        %v1605 = vld [vmem:[%s289 + $0x2528] sm:$0xff]
        %v1606 = vld [vmem:[%s289 + $0x2530] sm:$0xff]
        %v1607 = vld [vmem:[%s289 + $0x2538] sm:$0xff]
        %v1608 = vld [vmem:[%s289 + $0x2540] sm:$0xff]
        %v1609 = vld [vmem:[%s289 + $0x2548] sm:$0xff]
        %v1610 = vld [vmem:[%s289 + $0x2550] sm:$0xff]
        %v1611 = vld [vmem:[%s289 + $0x2558] sm:$0xff]
        %v1612 = vld [vmem:[%s289 + $0x2560] sm:$0xff]
        %v1613 = vld [vmem:[%s289 + $0x2568] sm:$0xff]
        %v1614 = vld [vmem:[%s289 + $0x2570] sm:$0xff]
        %v1615 = vld [vmem:[%s289 + $0x2578] sm:$0xff]
        %v1616 = vld [vmem:[%s289 + $0x2580] sm:$0xff]
        %v1617 = vld [vmem:[%s289 + $0x2588] sm:$0xff]
        %v1618 = vld [vmem:[%s289 + $0x2590] sm:$0xff]
        %v1619 = vld [vmem:[%s289 + $0x2598] sm:$0xff]
        %v1620 = vld [vmem:[%s289 + $0x25a0] sm:$0xff]
        %v1621 = vld [vmem:[%s289 + $0x25a8] sm:$0xff]
        %v1622 = vld [vmem:[%s289 + $0x25b0] sm:$0xff]
        %v1623 = vld [vmem:[%s289 + $0x25b8] sm:$0xff]
        %v1624 = vld [vmem:[%s289 + $0x25c0] sm:$0xff]
        %v1625 = vld [vmem:[%s289 + $0x25c8] sm:$0xff]
        %v1626 = vld [vmem:[%s289 + $0x25d0] sm:$0xff]
        %v1627 = vld [vmem:[%s289 + $0x25d8] sm:$0xff]
        %v1628 = vld [vmem:[%s289 + $0x25e0] sm:$0xff]
        %v1629 = vld [vmem:[%s289 + $0x25e8] sm:$0xff]
        %v1630 = vld [vmem:[%s289 + $0x25f0] sm:$0xff]
        %v1631 = vld [vmem:[%s289 + $0x25f8] sm:$0xff]
        %v1632 = vld [vmem:[%s289 + $0x2600] sm:$0xff]
        %v1633 = vld [vmem:[%s289 + $0x2608] sm:$0xff]
        %v1634 = vld [vmem:[%s289 + $0x2610] sm:$0xff]
        %v1635 = vld [vmem:[%s289 + $0x2618] sm:$0xff]
        %v1636 = vld [vmem:[%s289 + $0x2620] sm:$0xff]
        %v1637 = vld [vmem:[%s289 + $0x2628] sm:$0xff]
        %v1638 = vld [vmem:[%s289 + $0x2630] sm:$0xff]
        %v1639 = vld [vmem:[%s289 + $0x2638] sm:$0xff]
        %v1640 = vld [vmem:[%s289 + $0x2640] sm:$0xff]
        %v1641 = vld [vmem:[%s289 + $0x2648] sm:$0xff]
        %v1642 = vld [vmem:[%s289 + $0x2650] sm:$0xff]
        %v1643 = vld [vmem:[%s289 + $0x2658] sm:$0xff]
        %v1644 = vld [vmem:[%s289 + $0x2660] sm:$0xff]
        %v1645 = vld [vmem:[%s289 + $0x2668] sm:$0xff]
        %v1646 = vld [vmem:[%s289 + $0x2670] sm:$0xff]
        %v1647 = vld [vmem:[%s289 + $0x2678] sm:$0xff]
        %v1648 = vld [vmem:[%s289 + $0x2680] sm:$0xff]
        %v1649 = vld [vmem:[%s289 + $0x2688] sm:$0xff]
        %v1650 = vld [vmem:[%s289 + $0x2690] sm:$0xff]
        %v1651 = vld [vmem:[%s289 + $0x2698] sm:$0xff]
        %v1652 = vld [vmem:[%s289 + $0x26a0] sm:$0xff]
        %v1653 = vld [vmem:[%s289 + $0x26a8] sm:$0xff]
        %v1654 = vld [vmem:[%s289 + $0x26b0] sm:$0xff]
        %v1655 = vld [vmem:[%s289 + $0x26b8] sm:$0xff]
        %v1656 = vld [vmem:[%s289 + $0x26c0] sm:$0xff]
        %v1657 = vld [vmem:[%s289 + $0x26c8] sm:$0xff]
        %v1658 = vld [vmem:[%s289 + $0x26d0] sm:$0xff]
        %v1659 = vld [vmem:[%s289 + $0x26d8] sm:$0xff]
        %v1660 = vld [vmem:[%s289 + $0x26e0] sm:$0xff]
        %v1661 = vld [vmem:[%s289 + $0x26e8] sm:$0xff]
        %v1662 = vld [vmem:[%s289 + $0x26f0] sm:$0xff]
        %v1663 = vld [vmem:[%s289 + $0x26f8] sm:$0xff]
        %v1664 = vld [vmem:[%s289 + $0x2700] sm:$0xff]
        %v1665 = vld [vmem:[%s289 + $0x2708] sm:$0xff]
        %v1666 = vld [vmem:[%s289 + $0x2710] sm:$0xff]
        %v1667 = vld [vmem:[%s289 + $0x2718] sm:$0xff]
        %v1668 = vld [vmem:[%s289 + $0x2720] sm:$0xff]
        %v1669 = vld [vmem:[%s289 + $0x2728] sm:$0xff]
        %v1670 = vld [vmem:[%s289 + $0x2730] sm:$0xff]
        %v1671 = vld [vmem:[%s289 + $0x2738] sm:$0xff]
        %v1672 = vld [vmem:[%s289 + $0x2740] sm:$0xff]
        %v1673 = vld [vmem:[%s289 + $0x2748] sm:$0xff]
        %v1674 = vld [vmem:[%s289 + $0x2750] sm:$0xff]
        %v1675 = vld [vmem:[%s289 + $0x2758] sm:$0xff]
        %v1676 = vld [vmem:[%s289 + $0x2760] sm:$0xff]
        %v1677 = vld [vmem:[%s289 + $0x2768] sm:$0xff]
        %v1678 = vld [vmem:[%s289 + $0x2770] sm:$0xff]
        %v1679 = vld [vmem:[%s289 + $0x2778] sm:$0xff]
        %v1680 = vld [vmem:[%s289 + $0x2780] sm:$0xff]
        %v1681 = vld [vmem:[%s289 + $0x2788] sm:$0xff]
        %v1682 = vld [vmem:[%s289 + $0x2790] sm:$0xff]
        %v1683 = vld [vmem:[%s289 + $0x2798] sm:$0xff]
        %v1684 = vld [vmem:[%s289 + $0x27a0] sm:$0xff]
        %v1685 = vld [vmem:[%s289 + $0x27a8] sm:$0xff]
        %v1686 = vld [vmem:[%s289 + $0x27b0] sm:$0xff]
        %v1687 = vld [vmem:[%s289 + $0x27b8] sm:$0xff]
        %v1688 = vld [vmem:[%s289 + $0x27c0] sm:$0xff]
        %v1689 = vld [vmem:[%s289 + $0x27c8] sm:$0xff]
        %v1690 = vld [vmem:[%s289 + $0x27d0] sm:$0xff]
        %v1691 = vld [vmem:[%s289 + $0x27d8] sm:$0xff]
        %v1692 = vld [vmem:[%s289 + $0x27e0] sm:$0xff]
        %v1693 = vld [vmem:[%s289 + $0x27e8] sm:$0xff]
        %v1694 = vld [vmem:[%s289 + $0x27f0] sm:$0xff]
        %v1695 = vld [vmem:[%s289 + $0x27f8] sm:$0xff]
        %v1696 = vld [vmem:[%s289 + $0x2800] sm:$0xff]
        %v1697 = vld [vmem:[%s289 + $0x2808] sm:$0xff]
        %v1698 = vld [vmem:[%s289 + $0x2810] sm:$0xff]
        %v1699 = vld [vmem:[%s289 + $0x2818] sm:$0xff]
        %v1700 = vld [vmem:[%s289 + $0x2820] sm:$0xff]
        %v1701 = vld [vmem:[%s289 + $0x2828] sm:$0xff]
        %v1702 = vld [vmem:[%s289 + $0x2830] sm:$0xff]
        %v1703 = vld [vmem:[%s289 + $0x2838] sm:$0xff]
        %v1704 = vld [vmem:[%s289 + $0x2840] sm:$0xff]
        %v1705 = vld [vmem:[%s289 + $0x2848] sm:$0xff]
        %v1706 = vld [vmem:[%s289 + $0x2850] sm:$0xff]
        %v1707 = vld [vmem:[%s289 + $0x2858] sm:$0xff]
        %v1708 = vld [vmem:[%s289 + $0x2860] sm:$0xff]
        %v1709 = vld [vmem:[%s289 + $0x2868] sm:$0xff]
        %v1710 = vld [vmem:[%s289 + $0x2870] sm:$0xff]
        %v1711 = vld [vmem:[%s289 + $0x2878] sm:$0xff]
        %v1712 = vld [vmem:[%s289 + $0x2880] sm:$0xff]
        %v1713 = vld [vmem:[%s289 + $0x2888] sm:$0xff]
        %v1714 = vld [vmem:[%s289 + $0x2890] sm:$0xff]
        %v1715 = vld [vmem:[%s289 + $0x2898] sm:$0xff]
        %v1716 = vld [vmem:[%s289 + $0x28a0] sm:$0xff]
        %v1717 = vld [vmem:[%s289 + $0x28a8] sm:$0xff]
        %v1718 = vld [vmem:[%s289 + $0x28b0] sm:$0xff]
        %v1719 = vld [vmem:[%s289 + $0x28b8] sm:$0xff]
        %v1720 = vld [vmem:[%s289 + $0x28c0] sm:$0xff]
        %v1721 = vld [vmem:[%s289 + $0x28c8] sm:$0xff]
        %v1722 = vld [vmem:[%s289 + $0x28d0] sm:$0xff]
        %v1723 = vld [vmem:[%s289 + $0x28d8] sm:$0xff]
        %v1724 = vld [vmem:[%s289 + $0x28e0] sm:$0xff]
        %v1725 = vld [vmem:[%s289 + $0x28e8] sm:$0xff]
        %v1726 = vld [vmem:[%s289 + $0x28f0] sm:$0xff]
        %v1727 = vld [vmem:[%s289 + $0x28f8] sm:$0xff]
        %v1728 = vld [vmem:[%s289 + $0x2900] sm:$0xff]
        %v1729 = vld [vmem:[%s289 + $0x2908] sm:$0xff]
        %v1730 = vld [vmem:[%s289 + $0x2910] sm:$0xff]
        %v1731 = vld [vmem:[%s289 + $0x2918] sm:$0xff]
        %v1732 = vld [vmem:[%s289 + $0x2920] sm:$0xff]
        %v1733 = vld [vmem:[%s289 + $0x2928] sm:$0xff]
        %v1734 = vld [vmem:[%s289 + $0x2930] sm:$0xff]
        %v1735 = vld [vmem:[%s289 + $0x2938] sm:$0xff]
        %v1736 = vld [vmem:[%s289 + $0x2940] sm:$0xff]
        %v1737 = vld [vmem:[%s289 + $0x2948] sm:$0xff]
        %v1738 = vld [vmem:[%s289 + $0x2950] sm:$0xff]
        %v1739 = vld [vmem:[%s289 + $0x2958] sm:$0xff]
        %v1740 = vld [vmem:[%s289 + $0x2960] sm:$0xff]
        %v1741 = vld [vmem:[%s289 + $0x2968] sm:$0xff]
        %v1742 = vld [vmem:[%s289 + $0x2970] sm:$0xff]
        %v1743 = vld [vmem:[%s289 + $0x2978] sm:$0xff]
        %v1744 = vld [vmem:[%s289 + $0x2980] sm:$0xff]
        %v1745 = vld [vmem:[%s289 + $0x2988] sm:$0xff]
        %v1746 = vld [vmem:[%s289 + $0x2990] sm:$0xff]
        %v1747 = vld [vmem:[%s289 + $0x2998] sm:$0xff]
        %v1748 = vld [vmem:[%s289 + $0x29a0] sm:$0xff]
        %v1749 = vld [vmem:[%s289 + $0x29a8] sm:$0xff]
        %v1750 = vld [vmem:[%s289 + $0x29b0] sm:$0xff]
        %v1751 = vld [vmem:[%s289 + $0x29b8] sm:$0xff]
        %v1752 = vld [vmem:[%s289 + $0x29c0] sm:$0xff]
        %v1753 = vld [vmem:[%s289 + $0x29c8] sm:$0xff]
        %v1754 = vld [vmem:[%s289 + $0x29d0] sm:$0xff]
        %v1755 = vld [vmem:[%s289 + $0x29d8] sm:$0xff]
        %v1756 = vld [vmem:[%s289 + $0x29e0] sm:$0xff]
        %v1757 = vld [vmem:[%s289 + $0x29e8] sm:$0xff]
        %v1758 = vld [vmem:[%s289 + $0x29f0] sm:$0xff]
        %v1759 = vld [vmem:[%s289 + $0x29f8] sm:$0xff]
        %v1760 = vld [vmem:[%s289 + $0x2a00] sm:$0xff]
        %v1761 = vld [vmem:[%s289 + $0x2a08] sm:$0xff]
        %v1762 = vld [vmem:[%s289 + $0x2a10] sm:$0xff]
        %v1763 = vld [vmem:[%s289 + $0x2a18] sm:$0xff]
        %v1764 = vld [vmem:[%s289 + $0x2a20] sm:$0xff]
        %v1765 = vld [vmem:[%s289 + $0x2a28] sm:$0xff]
        %v1766 = vld [vmem:[%s289 + $0x2a30] sm:$0xff]
        %v1767 = vld [vmem:[%s289 + $0x2a38] sm:$0xff]
        %v1768 = vld [vmem:[%s289 + $0x2a40] sm:$0xff]
        %v1769 = vld [vmem:[%s289 + $0x2a48] sm:$0xff]
        %v1770 = vld [vmem:[%s289 + $0x2a50] sm:$0xff]
        %v1771 = vld [vmem:[%s289 + $0x2a58] sm:$0xff]
        %v1772 = vld [vmem:[%s289 + $0x2a60] sm:$0xff]
        %v1773 = vld [vmem:[%s289 + $0x2a68] sm:$0xff]
        %v1774 = vld [vmem:[%s289 + $0x2a70] sm:$0xff]
        %v1775 = vld [vmem:[%s289 + $0x2a78] sm:$0xff]
        %v1776 = vld [vmem:[%s289 + $0x2a80] sm:$0xff]
        %v1777 = vld [vmem:[%s289 + $0x2a88] sm:$0xff]
        %v1778 = vld [vmem:[%s289 + $0x2a90] sm:$0xff]
        %v1779 = vld [vmem:[%s289 + $0x2a98] sm:$0xff]
        %v1780 = vld [vmem:[%s289 + $0x2aa0] sm:$0xff]
        %v1781 = vld [vmem:[%s289 + $0x2aa8] sm:$0xff]
        %v1782 = vld [vmem:[%s289 + $0x2ab0] sm:$0xff]
        %v1783 = vld [vmem:[%s289 + $0x2ab8] sm:$0xff]
        %v1784 = vld [vmem:[%s289 + $0x2ac0] sm:$0xff]
        %v1785 = vld [vmem:[%s289 + $0x2ac8] sm:$0xff]
        %v1786 = vld [vmem:[%s289 + $0x2ad0] sm:$0xff]
        %v1787 = vld [vmem:[%s289 + $0x2ad8] sm:$0xff]
        %v1788 = vld [vmem:[%s289 + $0x2ae0] sm:$0xff]
        %v1789 = vld [vmem:[%s289 + $0x2ae8] sm:$0xff]
        %v1790 = vld [vmem:[%s289 + $0x2af0] sm:$0xff]
        %v1791 = vld [vmem:[%s289 + $0x2af8] sm:$0xff]
        %v1792 = vld [vmem:[%s289 + $0x2b00] sm:$0xff]
        %v1793 = vld [vmem:[%s289 + $0x2b08] sm:$0xff]
        %v1794 = vld [vmem:[%s289 + $0x2b10] sm:$0xff]
        %v1795 = vld [vmem:[%s289 + $0x2b18] sm:$0xff]
        %v1796 = vld [vmem:[%s289 + $0x2b20] sm:$0xff]
        %v1797 = vld [vmem:[%s289 + $0x2b28] sm:$0xff]
        %v1798 = vld [vmem:[%s289 + $0x2b30] sm:$0xff]
        %v1799 = vld [vmem:[%s289 + $0x2b38] sm:$0xff]
        %v1800 = vld [vmem:[%s289 + $0x2b40] sm:$0xff]
        %v1801 = vld [vmem:[%s289 + $0x2b48] sm:$0xff]
        %v1802 = vld [vmem:[%s289 + $0x2b50] sm:$0xff]
        %v1803 = vld [vmem:[%s289 + $0x2b58] sm:$0xff]
        %v1804 = vld [vmem:[%s289 + $0x2b60] sm:$0xff]
        %v1805 = vld [vmem:[%s289 + $0x2b68] sm:$0xff]
        %v1806 = vld [vmem:[%s289 + $0x2b70] sm:$0xff]
        %v1807 = vld [vmem:[%s289 + $0x2b78] sm:$0xff]
        %v1808 = vld [vmem:[%s289 + $0x2b80] sm:$0xff]
        %v1809 = vld [vmem:[%s289 + $0x2b88] sm:$0xff]
        %v1810 = vld [vmem:[%s289 + $0x2b90] sm:$0xff]
        %v1811 = vld [vmem:[%s289 + $0x2b98] sm:$0xff]
        %v1812 = vld [vmem:[%s289 + $0x2ba0] sm:$0xff]
        %v1813 = vld [vmem:[%s289 + $0x2ba8] sm:$0xff]
        %v1814 = vld [vmem:[%s289 + $0x2bb0] sm:$0xff]
        %v1815 = vld [vmem:[%s289 + $0x2bb8] sm:$0xff]
        %v1816 = vld [vmem:[%s289 + $0x2bc0] sm:$0xff]
        %v1817 = vld [vmem:[%s289 + $0x2bc8] sm:$0xff]
        %v1818 = vld [vmem:[%s289 + $0x2bd0] sm:$0xff]
        %v1819 = vld [vmem:[%s289 + $0x2bd8] sm:$0xff]
        %v1820 = vld [vmem:[%s289 + $0x2be0] sm:$0xff]
        %v1821 = vld [vmem:[%s289 + $0x2be8] sm:$0xff]
        %v1822 = vld [vmem:[%s289 + $0x2bf0] sm:$0xff]
        %v1823 = vld [vmem:[%s289 + $0x2bf8] sm:$0xff]
        %v1824 = vld [vmem:[%s289 + $0x2c00] sm:$0xff]
        %v1825 = vld [vmem:[%s289 + $0x2c08] sm:$0xff]
        %v1826 = vld [vmem:[%s289 + $0x2c10] sm:$0xff]
        %v1827 = vld [vmem:[%s289 + $0x2c18] sm:$0xff]
        %v1828 = vld [vmem:[%s289 + $0x2c20] sm:$0xff]
        %v1829 = vld [vmem:[%s289 + $0x2c28] sm:$0xff]
        %v1830 = vld [vmem:[%s289 + $0x2c30] sm:$0xff]
        %v1831 = vld [vmem:[%s289 + $0x2c38] sm:$0xff]
        %v1832 = vld [vmem:[%s289 + $0x2c40] sm:$0xff]
        %v1833 = vld [vmem:[%s289 + $0x2c48] sm:$0xff]
        %v1834 = vld [vmem:[%s289 + $0x2c50] sm:$0xff]
        %v1835 = vld [vmem:[%s289 + $0x2c58] sm:$0xff]
        %v1836 = vld [vmem:[%s289 + $0x2c60] sm:$0xff]
        %v1837 = vld [vmem:[%s289 + $0x2c68] sm:$0xff]
        %v1838 = vld [vmem:[%s289 + $0x2c70] sm:$0xff]
        %v1839 = vld [vmem:[%s289 + $0x2c78] sm:$0xff]
        %v1840 = vld [vmem:[%s289 + $0x2c80] sm:$0xff]
        %v1841 = vld [vmem:[%s289 + $0x2c88] sm:$0xff]
        %v1842 = vld [vmem:[%s289 + $0x2c90] sm:$0xff]
        %v1843 = vld [vmem:[%s289 + $0x2c98] sm:$0xff]
        %v1844 = vld [vmem:[%s289 + $0x2ca0] sm:$0xff]
        %v1845 = vld [vmem:[%s289 + $0x2ca8] sm:$0xff]
        %v1846 = vld [vmem:[%s289 + $0x2cb0] sm:$0xff]
        %v1847 = vld [vmem:[%s289 + $0x2cb8] sm:$0xff]
        %v1848 = vld [vmem:[%s289 + $0x2cc0] sm:$0xff]
        %v1849 = vld [vmem:[%s289 + $0x2cc8] sm:$0xff]
        %v1850 = vld [vmem:[%s289 + $0x2cd0] sm:$0xff]
        %v1851 = vld [vmem:[%s289 + $0x2cd8] sm:$0xff]
        %v1852 = vld [vmem:[%s289 + $0x2ce0] sm:$0xff]
        %v1853 = vld [vmem:[%s289 + $0x2ce8] sm:$0xff]
        %v1854 = vld [vmem:[%s289 + $0x2cf0] sm:$0xff]
        %v1855 = vld [vmem:[%s289 + $0x2cf8] sm:$0xff]
        %v1856 = vld [vmem:[%s289 + $0x2d00] sm:$0xff]
        %v1857 = vld [vmem:[%s289 + $0x2d08] sm:$0xff]
        %v1858 = vld [vmem:[%s289 + $0x2d10] sm:$0xff]
        %v1859 = vld [vmem:[%s289 + $0x2d18] sm:$0xff]
        %v1860 = vld [vmem:[%s289 + $0x2d20] sm:$0xff]
        %v1861 = vld [vmem:[%s289 + $0x2d28] sm:$0xff]
        %v1862 = vld [vmem:[%s289 + $0x2d30] sm:$0xff]
        %v1863 = vld [vmem:[%s289 + $0x2d38] sm:$0xff]
        %v1864 = vld [vmem:[%s289 + $0x2d40] sm:$0xff]
        %v1865 = vld [vmem:[%s289 + $0x2d48] sm:$0xff]
        %v1866 = vld [vmem:[%s289 + $0x2d50] sm:$0xff]
        %v1867 = vld [vmem:[%s289 + $0x2d58] sm:$0xff]
        %v1868 = vld [vmem:[%s289 + $0x2d60] sm:$0xff]
        %v1869 = vld [vmem:[%s289 + $0x2d68] sm:$0xff]
        %v1870 = vld [vmem:[%s289 + $0x2d70] sm:$0xff]
        %v1871 = vld [vmem:[%s289 + $0x2d78] sm:$0xff]
        %v1872 = vld [vmem:[%s289 + $0x2d80] sm:$0xff]
        %v1873 = vld [vmem:[%s289 + $0x2d88] sm:$0xff]
        %v1874 = vld [vmem:[%s289 + $0x2d90] sm:$0xff]
        %v1875 = vld [vmem:[%s289 + $0x2d98] sm:$0xff]
        %v1876 = vld [vmem:[%s289 + $0x2da0] sm:$0xff]
        %v1877 = vld [vmem:[%s289 + $0x2da8] sm:$0xff]
        %v1878 = vld [vmem:[%s289 + $0x2db0] sm:$0xff]
        %v1879 = vld [vmem:[%s289 + $0x2db8] sm:$0xff]
        %v1880 = vld [vmem:[%s289 + $0x2dc0] sm:$0xff]
        %v1881 = vld [vmem:[%s289 + $0x2dc8] sm:$0xff]
        %v1882 = vld [vmem:[%s289 + $0x2dd0] sm:$0xff]
        %v1883 = vld [vmem:[%s289 + $0x2dd8] sm:$0xff]
        %v1884 = vld [vmem:[%s289 + $0x2de0] sm:$0xff]
        %v1885 = vld [vmem:[%s289 + $0x2de8] sm:$0xff]
        %v1886 = vld [vmem:[%s289 + $0x2df0] sm:$0xff]
        %v1887 = vld [vmem:[%s289 + $0x2df8] sm:$0xff]
        %v1888 = vld [vmem:[%s289 + $0x2e00] sm:$0xff]
        %v1889 = vld [vmem:[%s289 + $0x2e08] sm:$0xff]
        %v1890 = vld [vmem:[%s289 + $0x2e10] sm:$0xff]
        %v1891 = vld [vmem:[%s289 + $0x2e18] sm:$0xff]
        %v1892 = vld [vmem:[%s289 + $0x2e20] sm:$0xff]
        %v1893 = vld [vmem:[%s289 + $0x2e28] sm:$0xff]
        %v1894 = vld [vmem:[%s289 + $0x2e30] sm:$0xff]
        %v1895 = vld [vmem:[%s289 + $0x2e38] sm:$0xff]
        %v1896 = vld [vmem:[%s289 + $0x2e40] sm:$0xff]
        %v1897 = vld [vmem:[%s289 + $0x2e48] sm:$0xff]
        %v1898 = vld [vmem:[%s289 + $0x2e50] sm:$0xff]
        %v1899 = vld [vmem:[%s289 + $0x2e58] sm:$0xff]
        %v1900 = vld [vmem:[%s289 + $0x2e60] sm:$0xff]
        %v1901 = vld [vmem:[%s289 + $0x2e68] sm:$0xff]
        %v1902 = vld [vmem:[%s289 + $0x2e70] sm:$0xff]
        %v1903 = vld [vmem:[%s289 + $0x2e78] sm:$0xff]
        %v1904 = vld [vmem:[%s289 + $0x2e80] sm:$0xff]
        %v1905 = vld [vmem:[%s289 + $0x2e88] sm:$0xff]
        %v1906 = vld [vmem:[%s289 + $0x2e90] sm:$0xff]
        %v1907 = vld [vmem:[%s289 + $0x2e98] sm:$0xff]
        %v1908 = vld [vmem:[%s289 + $0x2ea0] sm:$0xff]
        %v1909 = vld [vmem:[%s289 + $0x2ea8] sm:$0xff]
        %v1910 = vld [vmem:[%s289 + $0x2eb0] sm:$0xff]
        %v1911 = vld [vmem:[%s289 + $0x2eb8] sm:$0xff]
        %v1912 = vld [vmem:[%s289 + $0x2ec0] sm:$0xff]
        %v1913 = vld [vmem:[%s289 + $0x2ec8] sm:$0xff]
        %v1914 = vld [vmem:[%s289 + $0x2ed0] sm:$0xff]
        %v1915 = vld [vmem:[%s289 + $0x2ed8] sm:$0xff]
        %v1916 = vld [vmem:[%s289 + $0x2ee0] sm:$0xff]
        %v1917 = vld [vmem:[%s289 + $0x2ee8] sm:$0xff]
        %v1918 = vld [vmem:[%s289 + $0x2ef0] sm:$0xff]
        %v1919 = vld [vmem:[%s289 + $0x2ef8] sm:$0xff]
        %v1920 = vld [vmem:[%s289 + $0x2f00] sm:$0xff]
        %v1921 = vld [vmem:[%s289 + $0x2f08] sm:$0xff]
        %v1922 = vld [vmem:[%s289 + $0x2f10] sm:$0xff]
        %v1923 = vld [vmem:[%s289 + $0x2f18] sm:$0xff]
        %v1924 = vld [vmem:[%s289 + $0x2f20] sm:$0xff]
        %v1925 = vld [vmem:[%s289 + $0x2f28] sm:$0xff]
        %v1926 = vld [vmem:[%s289 + $0x2f30] sm:$0xff]
        %v1927 = vld [vmem:[%s289 + $0x2f38] sm:$0xff]
        %v1928 = vld [vmem:[%s289 + $0x2f40] sm:$0xff]
        %v1929 = vld [vmem:[%s289 + $0x2f48] sm:$0xff]
        %v1930 = vld [vmem:[%s289 + $0x2f50] sm:$0xff]
        %v1931 = vld [vmem:[%s289 + $0x2f58] sm:$0xff]
        %v1932 = vld [vmem:[%s289 + $0x2f60] sm:$0xff]
        %v1933 = vld [vmem:[%s289 + $0x2f68] sm:$0xff]
        %v1934 = vld [vmem:[%s289 + $0x2f70] sm:$0xff]
        %v1935 = vld [vmem:[%s289 + $0x2f78] sm:$0xff]
        %v1936 = vld [vmem:[%s289 + $0x2f80] sm:$0xff]
        %v1937 = vld [vmem:[%s289 + $0x2f88] sm:$0xff]
        %v1938 = vld [vmem:[%s289 + $0x2f90] sm:$0xff]
        %v1939 = vld [vmem:[%s289 + $0x2f98] sm:$0xff]
        %v1940 = vld [vmem:[%s289 + $0x2fa0] sm:$0xff]
        %v1941 = vld [vmem:[%s289 + $0x2fa8] sm:$0xff]
        %v1942 = vld [vmem:[%s289 + $0x2fb0] sm:$0xff]
        %v1943 = vld [vmem:[%s289 + $0x2fb8] sm:$0xff]
        %v1944 = vld [vmem:[%s289 + $0x2fc0] sm:$0xff]
        %v1945 = vld [vmem:[%s289 + $0x2fc8] sm:$0xff]
        %v1946 = vld [vmem:[%s289 + $0x2fd0] sm:$0xff]
        %v1947 = vld [vmem:[%s289 + $0x2fd8] sm:$0xff]
        %v1948 = vld [vmem:[%s289 + $0x2fe0] sm:$0xff]
        %v1949 = vld [vmem:[%s289 + $0x2fe8] sm:$0xff]
        %v1950 = vld [vmem:[%s289 + $0x2ff0] sm:$0xff]
        %v1951 = vld [vmem:[%s289 + $0x2ff8] sm:$0xff]
        %v3488 = vunpack.c.l.b16 %v416
        %v3489 = vunpack.c.h.b16 %v416
        %v3490 = vunpack.c.l.b16 %v417
        %v3491 = vunpack.c.h.b16 %v417
        %v3492 = vunpack.c.l.b16 %v418
        %v3493 = vunpack.c.h.b16 %v418
        %v3494 = vunpack.c.l.b16 %v419
        %v3495 = vunpack.c.h.b16 %v419
        %v3496 = vunpack.c.l.b16 %v420
        %v3497 = vunpack.c.h.b16 %v420
        %v3498 = vunpack.c.l.b16 %v421
        %v3499 = vunpack.c.h.b16 %v421
        %v3500 = vunpack.c.l.b16 %v422
        %v3501 = vunpack.c.h.b16 %v422
        %v3502 = vunpack.c.l.b16 %v423
        %v3503 = vunpack.c.h.b16 %v423
        %v3504 = vunpack.c.l.b16 %v424
        %v3505 = vunpack.c.h.b16 %v424
        %v3506 = vunpack.c.l.b16 %v425
        %v3507 = vunpack.c.h.b16 %v425
        %v3508 = vunpack.c.l.b16 %v426
        %v3509 = vunpack.c.h.b16 %v426
        %v3510 = vunpack.c.l.b16 %v427
        %v3511 = vunpack.c.h.b16 %v427
        %v3512 = vunpack.c.l.b16 %v428
        %v3513 = vunpack.c.h.b16 %v428
        %v3514 = vunpack.c.l.b16 %v429
        %v3515 = vunpack.c.h.b16 %v429
        %v3516 = vunpack.c.l.b16 %v430
        %v3517 = vunpack.c.h.b16 %v430
        %v3518 = vunpack.c.l.b16 %v431
        %v3519 = vunpack.c.h.b16 %v431
        %v3520 = vunpack.c.l.b16 %v432
        %v3521 = vunpack.c.h.b16 %v432
        %v3522 = vunpack.c.l.b16 %v433
        %v3523 = vunpack.c.h.b16 %v433
        %v3524 = vunpack.c.l.b16 %v434
        %v3525 = vunpack.c.h.b16 %v434
        %v3526 = vunpack.c.l.b16 %v435
        %v3527 = vunpack.c.h.b16 %v435
        %v3528 = vunpack.c.l.b16 %v436
        %v3529 = vunpack.c.h.b16 %v436
        %v3530 = vunpack.c.l.b16 %v437
        %v3531 = vunpack.c.h.b16 %v437
        %v3532 = vunpack.c.l.b16 %v438
        %v3533 = vunpack.c.h.b16 %v438
        %v3534 = vunpack.c.l.b16 %v439
        %v3535 = vunpack.c.h.b16 %v439
        %v3536 = vunpack.c.l.b16 %v440
        %v3537 = vunpack.c.h.b16 %v440
        %v3538 = vunpack.c.l.b16 %v441
        %v3539 = vunpack.c.h.b16 %v441
        %v3540 = vunpack.c.l.b16 %v442
        %v3541 = vunpack.c.h.b16 %v442
        %v3542 = vunpack.c.l.b16 %v443
        %v3543 = vunpack.c.h.b16 %v443
        %v3544 = vunpack.c.l.b16 %v444
        %v3545 = vunpack.c.h.b16 %v444
        %v3546 = vunpack.c.l.b16 %v445
        %v3547 = vunpack.c.h.b16 %v445
        %v3548 = vunpack.c.l.b16 %v446
        %v3549 = vunpack.c.h.b16 %v446
        %v3550 = vunpack.c.l.b16 %v447
        %v3551 = vunpack.c.h.b16 %v447
        %v3552 = vunpack.c.l.b16 %v448
        %v3553 = vunpack.c.h.b16 %v448
        %v3554 = vunpack.c.l.b16 %v449
        %v3555 = vunpack.c.h.b16 %v449
        %v3556 = vunpack.c.l.b16 %v450
        %v3557 = vunpack.c.h.b16 %v450
        %v3558 = vunpack.c.l.b16 %v451
        %v3559 = vunpack.c.h.b16 %v451
        %v3560 = vunpack.c.l.b16 %v452
        %v3561 = vunpack.c.h.b16 %v452
        %v3562 = vunpack.c.l.b16 %v453
        %v3563 = vunpack.c.h.b16 %v453
        %v3564 = vunpack.c.l.b16 %v454
        %v3565 = vunpack.c.h.b16 %v454
        %v3566 = vunpack.c.l.b16 %v455
        %v3567 = vunpack.c.h.b16 %v455
        %v3568 = vunpack.c.l.b16 %v456
        %v3569 = vunpack.c.h.b16 %v456
        %v3570 = vunpack.c.l.b16 %v457
        %v3571 = vunpack.c.h.b16 %v457
        %v3572 = vunpack.c.l.b16 %v458
        %v3573 = vunpack.c.h.b16 %v458
        %v3574 = vunpack.c.l.b16 %v459
        %v3575 = vunpack.c.h.b16 %v459
        %v3576 = vunpack.c.l.b16 %v460
        %v3577 = vunpack.c.h.b16 %v460
        %v3578 = vunpack.c.l.b16 %v461
        %v3579 = vunpack.c.h.b16 %v461
        %v3580 = vunpack.c.l.b16 %v462
        %v3581 = vunpack.c.h.b16 %v462
        %v3582 = vunpack.c.l.b16 %v463
        %v3583 = vunpack.c.h.b16 %v463
        %v3584 = vunpack.c.l.b16 %v464
        %v3585 = vunpack.c.h.b16 %v464
        %v3586 = vunpack.c.l.b16 %v465
        %v3587 = vunpack.c.h.b16 %v465
        %v3588 = vunpack.c.l.b16 %v466
        %v3589 = vunpack.c.h.b16 %v466
        %v3590 = vunpack.c.l.b16 %v467
        %v3591 = vunpack.c.h.b16 %v467
        %v3592 = vunpack.c.l.b16 %v468
        %v3593 = vunpack.c.h.b16 %v468
        %v3594 = vunpack.c.l.b16 %v469
        %v3595 = vunpack.c.h.b16 %v469
        %v3596 = vunpack.c.l.b16 %v470
        %v3597 = vunpack.c.h.b16 %v470
        %v3598 = vunpack.c.l.b16 %v471
        %v3599 = vunpack.c.h.b16 %v471
        %v3600 = vunpack.c.l.b16 %v472
        %v3601 = vunpack.c.h.b16 %v472
        %v3602 = vunpack.c.l.b16 %v473
        %v3603 = vunpack.c.h.b16 %v473
        %v3604 = vunpack.c.l.b16 %v474
        %v3605 = vunpack.c.h.b16 %v474
        %v3606 = vunpack.c.l.b16 %v475
        %v3607 = vunpack.c.h.b16 %v475
        %v3608 = vunpack.c.l.b16 %v476
        %v3609 = vunpack.c.h.b16 %v476
        %v3610 = vunpack.c.l.b16 %v477
        %v3611 = vunpack.c.h.b16 %v477
        %v3612 = vunpack.c.l.b16 %v478
        %v3613 = vunpack.c.h.b16 %v478
        %v3614 = vunpack.c.l.b16 %v479
        %v3615 = vunpack.c.h.b16 %v479
        %v3616 = vunpack.c.l.b16 %v480
        %v3617 = vunpack.c.h.b16 %v480
        %v3618 = vunpack.c.l.b16 %v481
        %v3619 = vunpack.c.h.b16 %v481
        %v3620 = vunpack.c.l.b16 %v482
        %v3621 = vunpack.c.h.b16 %v482
        %v3622 = vunpack.c.l.b16 %v483
        %v3623 = vunpack.c.h.b16 %v483
        %v3624 = vunpack.c.l.b16 %v484
        %v3625 = vunpack.c.h.b16 %v484
        %v3626 = vunpack.c.l.b16 %v485
        %v3627 = vunpack.c.h.b16 %v485
        %v3628 = vunpack.c.l.b16 %v486
        %v3629 = vunpack.c.h.b16 %v486
        %v3630 = vunpack.c.l.b16 %v487
        %v3631 = vunpack.c.h.b16 %v487
        %v3632 = vunpack.c.l.b16 %v488
        %v3633 = vunpack.c.h.b16 %v488
        %v3634 = vunpack.c.l.b16 %v489
        %v3635 = vunpack.c.h.b16 %v489
        %v3636 = vunpack.c.l.b16 %v490
        %v3637 = vunpack.c.h.b16 %v490
        %v3638 = vunpack.c.l.b16 %v491
        %v3639 = vunpack.c.h.b16 %v491
        %v3640 = vunpack.c.l.b16 %v492
        %v3641 = vunpack.c.h.b16 %v492
        %v3642 = vunpack.c.l.b16 %v493
        %v3643 = vunpack.c.h.b16 %v493
        %v3644 = vunpack.c.l.b16 %v494
        %v3645 = vunpack.c.h.b16 %v494
        %v3646 = vunpack.c.l.b16 %v495
        %v3647 = vunpack.c.h.b16 %v495
        %v3648 = vunpack.c.l.b16 %v496
        %v3649 = vunpack.c.h.b16 %v496
        %v3650 = vunpack.c.l.b16 %v497
        %v3651 = vunpack.c.h.b16 %v497
        %v3652 = vunpack.c.l.b16 %v498
        %v3653 = vunpack.c.h.b16 %v498
        %v3654 = vunpack.c.l.b16 %v499
        %v3655 = vunpack.c.h.b16 %v499
        %v3656 = vunpack.c.l.b16 %v500
        %v3657 = vunpack.c.h.b16 %v500
        %v3658 = vunpack.c.l.b16 %v501
        %v3659 = vunpack.c.h.b16 %v501
        %v3660 = vunpack.c.l.b16 %v502
        %v3661 = vunpack.c.h.b16 %v502
        %v3662 = vunpack.c.l.b16 %v503
        %v3663 = vunpack.c.h.b16 %v503
        %v3664 = vunpack.c.l.b16 %v504
        %v3665 = vunpack.c.h.b16 %v504
        %v3666 = vunpack.c.l.b16 %v505
        %v3667 = vunpack.c.h.b16 %v505
        %v3668 = vunpack.c.l.b16 %v506
        %v3669 = vunpack.c.h.b16 %v506
        %v3670 = vunpack.c.l.b16 %v507
        %v3671 = vunpack.c.h.b16 %v507
        %v3672 = vunpack.c.l.b16 %v508
        %v3673 = vunpack.c.h.b16 %v508
        %v3674 = vunpack.c.l.b16 %v509
        %v3675 = vunpack.c.h.b16 %v509
        %v3676 = vunpack.c.l.b16 %v510
        %v3677 = vunpack.c.h.b16 %v510
        %v3678 = vunpack.c.l.b16 %v511
        %v3679 = vunpack.c.h.b16 %v511
        %v3680 = vunpack.c.l.b16 %v512
        %v3681 = vunpack.c.h.b16 %v512
        %v3682 = vunpack.c.l.b16 %v513
        %v3683 = vunpack.c.h.b16 %v513
        %v3684 = vunpack.c.l.b16 %v514
        %v3685 = vunpack.c.h.b16 %v514
        %v3686 = vunpack.c.l.b16 %v515
        %v3687 = vunpack.c.h.b16 %v515
        %v3688 = vunpack.c.l.b16 %v516
        %v3689 = vunpack.c.h.b16 %v516
        %v3690 = vunpack.c.l.b16 %v517
        %v3691 = vunpack.c.h.b16 %v517
        %v3692 = vunpack.c.l.b16 %v518
        %v3693 = vunpack.c.h.b16 %v518
        %v3694 = vunpack.c.l.b16 %v519
        %v3695 = vunpack.c.h.b16 %v519
        %v3696 = vunpack.c.l.b16 %v520
        %v3697 = vunpack.c.h.b16 %v520
        %v3698 = vunpack.c.l.b16 %v521
        %v3699 = vunpack.c.h.b16 %v521
        %v3700 = vunpack.c.l.b16 %v522
        %v3701 = vunpack.c.h.b16 %v522
        %v3702 = vunpack.c.l.b16 %v523
        %v3703 = vunpack.c.h.b16 %v523
        %v3704 = vunpack.c.l.b16 %v524
        %v3705 = vunpack.c.h.b16 %v524
        %v3706 = vunpack.c.l.b16 %v525
        %v3707 = vunpack.c.h.b16 %v525
        %v3708 = vunpack.c.l.b16 %v526
        %v3709 = vunpack.c.h.b16 %v526
        %v3710 = vunpack.c.l.b16 %v527
        %v3711 = vunpack.c.h.b16 %v527
        %v3712 = vunpack.c.l.b16 %v528
        %v3713 = vunpack.c.h.b16 %v528
        %v3714 = vunpack.c.l.b16 %v529
        %v3715 = vunpack.c.h.b16 %v529
        %v3716 = vunpack.c.l.b16 %v530
        %v3717 = vunpack.c.h.b16 %v530
        %v3718 = vunpack.c.l.b16 %v531
        %v3719 = vunpack.c.h.b16 %v531
        %v3720 = vunpack.c.l.b16 %v532
        %v3721 = vunpack.c.h.b16 %v532
        %v3722 = vunpack.c.l.b16 %v533
        %v3723 = vunpack.c.h.b16 %v533
        %v3724 = vunpack.c.l.b16 %v534
        %v3725 = vunpack.c.h.b16 %v534
        %v3726 = vunpack.c.l.b16 %v535
        %v3727 = vunpack.c.h.b16 %v535
        %v3728 = vunpack.c.l.b16 %v536
        %v3729 = vunpack.c.h.b16 %v536
        %v3730 = vunpack.c.l.b16 %v537
        %v3731 = vunpack.c.h.b16 %v537
        %v3732 = vunpack.c.l.b16 %v538
        %v3733 = vunpack.c.h.b16 %v538
        %v3734 = vunpack.c.l.b16 %v539
        %v3735 = vunpack.c.h.b16 %v539
        %v3736 = vunpack.c.l.b16 %v540
        %v3737 = vunpack.c.h.b16 %v540
        %v3738 = vunpack.c.l.b16 %v541
        %v3739 = vunpack.c.h.b16 %v541
        %v3740 = vunpack.c.l.b16 %v542
        %v3741 = vunpack.c.h.b16 %v542
        %v3742 = vunpack.c.l.b16 %v543
        %v3743 = vunpack.c.h.b16 %v543
        %v3744 = vunpack.c.l.b16 %v544
        %v3745 = vunpack.c.h.b16 %v544
        %v3746 = vunpack.c.l.b16 %v545
        %v3747 = vunpack.c.h.b16 %v545
        %v3748 = vunpack.c.l.b16 %v546
        %v3749 = vunpack.c.h.b16 %v546
        %v3750 = vunpack.c.l.b16 %v547
        %v3751 = vunpack.c.h.b16 %v547
        %v3752 = vunpack.c.l.b16 %v548
        %v3753 = vunpack.c.h.b16 %v548
        %v3754 = vunpack.c.l.b16 %v549
        %v3755 = vunpack.c.h.b16 %v549
        %v3756 = vunpack.c.l.b16 %v550
        %v3757 = vunpack.c.h.b16 %v550
        %v3758 = vunpack.c.l.b16 %v551
        %v3759 = vunpack.c.h.b16 %v551
        %v3760 = vunpack.c.l.b16 %v552
        %v3761 = vunpack.c.h.b16 %v552
        %v3762 = vunpack.c.l.b16 %v553
        %v3763 = vunpack.c.h.b16 %v553
        %v3764 = vunpack.c.l.b16 %v554
        %v3765 = vunpack.c.h.b16 %v554
        %v3766 = vunpack.c.l.b16 %v555
        %v3767 = vunpack.c.h.b16 %v555
        %v3768 = vunpack.c.l.b16 %v556
        %v3769 = vunpack.c.h.b16 %v556
        %v3770 = vunpack.c.l.b16 %v557
        %v3771 = vunpack.c.h.b16 %v557
        %v3772 = vunpack.c.l.b16 %v558
        %v3773 = vunpack.c.h.b16 %v558
        %v3774 = vunpack.c.l.b16 %v559
        %v3775 = vunpack.c.h.b16 %v559
        %v3776 = vunpack.c.l.b16 %v560
        %v3777 = vunpack.c.h.b16 %v560
        %v3778 = vunpack.c.l.b16 %v561
        %v3779 = vunpack.c.h.b16 %v561
        %v3780 = vunpack.c.l.b16 %v562
        %v3781 = vunpack.c.h.b16 %v562
        %v3782 = vunpack.c.l.b16 %v563
        %v3783 = vunpack.c.h.b16 %v563
        %v3784 = vunpack.c.l.b16 %v564
        %v3785 = vunpack.c.h.b16 %v564
        %v3786 = vunpack.c.l.b16 %v565
        %v3787 = vunpack.c.h.b16 %v565
        %v3788 = vunpack.c.l.b16 %v566
        %v3789 = vunpack.c.h.b16 %v566
        %v3790 = vunpack.c.l.b16 %v567
        %v3791 = vunpack.c.h.b16 %v567
        %v3792 = vunpack.c.l.b16 %v568
        %v3793 = vunpack.c.h.b16 %v568
        %v3794 = vunpack.c.l.b16 %v569
        %v3795 = vunpack.c.h.b16 %v569
        %v3796 = vunpack.c.l.b16 %v570
        %v3797 = vunpack.c.h.b16 %v570
        %v3798 = vunpack.c.l.b16 %v571
        %v3799 = vunpack.c.h.b16 %v571
        %v3800 = vunpack.c.l.b16 %v572
        %v3801 = vunpack.c.h.b16 %v572
        %v3802 = vunpack.c.l.b16 %v573
        %v3803 = vunpack.c.h.b16 %v573
        %v3804 = vunpack.c.l.b16 %v574
        %v3805 = vunpack.c.h.b16 %v574
        %v3806 = vunpack.c.l.b16 %v575
        %v3807 = vunpack.c.h.b16 %v575
        %v3808 = vunpack.c.l.b16 %v576
        %v3809 = vunpack.c.h.b16 %v576
        %v3810 = vunpack.c.l.b16 %v577
        %v3811 = vunpack.c.h.b16 %v577
        %v3812 = vunpack.c.l.b16 %v578
        %v3813 = vunpack.c.h.b16 %v578
        %v3814 = vunpack.c.l.b16 %v579
        %v3815 = vunpack.c.h.b16 %v579
        %v3816 = vunpack.c.l.b16 %v580
        %v3817 = vunpack.c.h.b16 %v580
        %v3818 = vunpack.c.l.b16 %v581
        %v3819 = vunpack.c.h.b16 %v581
        %v3820 = vunpack.c.l.b16 %v582
        %v3821 = vunpack.c.h.b16 %v582
        %v3822 = vunpack.c.l.b16 %v583
        %v3823 = vunpack.c.h.b16 %v583
        %v3824 = vunpack.c.l.b16 %v584
        %v3825 = vunpack.c.h.b16 %v584
        %v3826 = vunpack.c.l.b16 %v585
        %v3827 = vunpack.c.h.b16 %v585
        %v3828 = vunpack.c.l.b16 %v586
        %v3829 = vunpack.c.h.b16 %v586
        %v3830 = vunpack.c.l.b16 %v587
        %v3831 = vunpack.c.h.b16 %v587
        %v3832 = vunpack.c.l.b16 %v588
        %v3833 = vunpack.c.h.b16 %v588
        %v3834 = vunpack.c.l.b16 %v589
        %v3835 = vunpack.c.h.b16 %v589
        %v3836 = vunpack.c.l.b16 %v590
        %v3837 = vunpack.c.h.b16 %v590
        %v3838 = vunpack.c.l.b16 %v591
        %v3839 = vunpack.c.h.b16 %v591
        %v3840 = vunpack.c.l.b16 %v592
        %v3841 = vunpack.c.h.b16 %v592
        %v3842 = vunpack.c.l.b16 %v593
        %v3843 = vunpack.c.h.b16 %v593
        %v3844 = vunpack.c.l.b16 %v594
        %v3845 = vunpack.c.h.b16 %v594
        %v3846 = vunpack.c.l.b16 %v595
        %v3847 = vunpack.c.h.b16 %v595
        %v3848 = vunpack.c.l.b16 %v596
        %v3849 = vunpack.c.h.b16 %v596
        %v3850 = vunpack.c.l.b16 %v597
        %v3851 = vunpack.c.h.b16 %v597
        %v3852 = vunpack.c.l.b16 %v598
        %v3853 = vunpack.c.h.b16 %v598
        %v3854 = vunpack.c.l.b16 %v599
        %v3855 = vunpack.c.h.b16 %v599
        %v3856 = vunpack.c.l.b16 %v600
        %v3857 = vunpack.c.h.b16 %v600
        %v3858 = vunpack.c.l.b16 %v601
        %v3859 = vunpack.c.h.b16 %v601
        %v3860 = vunpack.c.l.b16 %v602
        %v3861 = vunpack.c.h.b16 %v602
        %v3862 = vunpack.c.l.b16 %v603
        %v3863 = vunpack.c.h.b16 %v603
        %v3864 = vunpack.c.l.b16 %v604
        %v3865 = vunpack.c.h.b16 %v604
        %v3866 = vunpack.c.l.b16 %v605
        %v3867 = vunpack.c.h.b16 %v605
        %v3868 = vunpack.c.l.b16 %v606
        %v3869 = vunpack.c.h.b16 %v606
        %v3870 = vunpack.c.l.b16 %v607
        %v3871 = vunpack.c.h.b16 %v607
        %v3872 = vunpack.c.l.b16 %v608
        %v3873 = vunpack.c.h.b16 %v608
        %v3874 = vunpack.c.l.b16 %v609
        %v3875 = vunpack.c.h.b16 %v609
        %v3876 = vunpack.c.l.b16 %v610
        %v3877 = vunpack.c.h.b16 %v610
        %v3878 = vunpack.c.l.b16 %v611
        %v3879 = vunpack.c.h.b16 %v611
        %v3880 = vunpack.c.l.b16 %v612
        %v3881 = vunpack.c.h.b16 %v612
        %v3882 = vunpack.c.l.b16 %v613
        %v3883 = vunpack.c.h.b16 %v613
        %v3884 = vunpack.c.l.b16 %v614
        %v3885 = vunpack.c.h.b16 %v614
        %v3886 = vunpack.c.l.b16 %v615
        %v3887 = vunpack.c.h.b16 %v615
        %v3888 = vunpack.c.l.b16 %v616
        %v3889 = vunpack.c.h.b16 %v616
        %v3890 = vunpack.c.l.b16 %v617
        %v3891 = vunpack.c.h.b16 %v617
        %v3892 = vunpack.c.l.b16 %v618
        %v3893 = vunpack.c.h.b16 %v618
        %v3894 = vunpack.c.l.b16 %v619
        %v3895 = vunpack.c.h.b16 %v619
        %v3896 = vunpack.c.l.b16 %v620
        %v3897 = vunpack.c.h.b16 %v620
        %v3898 = vunpack.c.l.b16 %v621
        %v3899 = vunpack.c.h.b16 %v621
        %v3900 = vunpack.c.l.b16 %v622
        %v3901 = vunpack.c.h.b16 %v622
        %v3902 = vunpack.c.l.b16 %v623
        %v3903 = vunpack.c.h.b16 %v623
        %v3904 = vunpack.c.l.b16 %v624
        %v3905 = vunpack.c.h.b16 %v624
        %v3906 = vunpack.c.l.b16 %v625
        %v3907 = vunpack.c.h.b16 %v625
        %v3908 = vunpack.c.l.b16 %v626
        %v3909 = vunpack.c.h.b16 %v626
        %v3910 = vunpack.c.l.b16 %v627
        %v3911 = vunpack.c.h.b16 %v627
        %v3912 = vunpack.c.l.b16 %v628
        %v3913 = vunpack.c.h.b16 %v628
        %v3914 = vunpack.c.l.b16 %v629
        %v3915 = vunpack.c.h.b16 %v629
        %v3916 = vunpack.c.l.b16 %v630
        %v3917 = vunpack.c.h.b16 %v630
        %v3918 = vunpack.c.l.b16 %v631
        %v3919 = vunpack.c.h.b16 %v631
        %v3920 = vunpack.c.l.b16 %v632
        %v3921 = vunpack.c.h.b16 %v632
        %v3922 = vunpack.c.l.b16 %v633
        %v3923 = vunpack.c.h.b16 %v633
        %v3924 = vunpack.c.l.b16 %v634
        %v3925 = vunpack.c.h.b16 %v634
        %v3926 = vunpack.c.l.b16 %v635
        %v3927 = vunpack.c.h.b16 %v635
        %v3928 = vunpack.c.l.b16 %v636
        %v3929 = vunpack.c.h.b16 %v636
        %v3930 = vunpack.c.l.b16 %v637
        %v3931 = vunpack.c.h.b16 %v637
        %v3932 = vunpack.c.l.b16 %v638
        %v3933 = vunpack.c.h.b16 %v638
        %v3934 = vunpack.c.l.b16 %v639
        %v3935 = vunpack.c.h.b16 %v639
        %v3936 = vunpack.c.l.b16 %v640
        %v3937 = vunpack.c.h.b16 %v640
        %v3938 = vunpack.c.l.b16 %v641
        %v3939 = vunpack.c.h.b16 %v641
        %v3940 = vunpack.c.l.b16 %v642
        %v3941 = vunpack.c.h.b16 %v642
        %v3942 = vunpack.c.l.b16 %v643
        %v3943 = vunpack.c.h.b16 %v643
        %v3944 = vunpack.c.l.b16 %v644
        %v3945 = vunpack.c.h.b16 %v644
        %v3946 = vunpack.c.l.b16 %v645
        %v3947 = vunpack.c.h.b16 %v645
        %v3948 = vunpack.c.l.b16 %v646
        %v3949 = vunpack.c.h.b16 %v646
        %v3950 = vunpack.c.l.b16 %v647
        %v3951 = vunpack.c.h.b16 %v647
        %v3952 = vunpack.c.l.b16 %v648
        %v3953 = vunpack.c.h.b16 %v648
        %v3954 = vunpack.c.l.b16 %v649
        %v3955 = vunpack.c.h.b16 %v649
        %v3956 = vunpack.c.l.b16 %v650
        %v3957 = vunpack.c.h.b16 %v650
        %v3958 = vunpack.c.l.b16 %v651
        %v3959 = vunpack.c.h.b16 %v651
        %v3960 = vunpack.c.l.b16 %v652
        %v3961 = vunpack.c.h.b16 %v652
        %v3962 = vunpack.c.l.b16 %v653
        %v3963 = vunpack.c.h.b16 %v653
        %v3964 = vunpack.c.l.b16 %v654
        %v3965 = vunpack.c.h.b16 %v654
        %v3966 = vunpack.c.l.b16 %v655
        %v3967 = vunpack.c.h.b16 %v655
        %v3968 = vunpack.c.l.b16 %v656
        %v3969 = vunpack.c.h.b16 %v656
        %v3970 = vunpack.c.l.b16 %v657
        %v3971 = vunpack.c.h.b16 %v657
        %v3972 = vunpack.c.l.b16 %v658
        %v3973 = vunpack.c.h.b16 %v658
        %v3974 = vunpack.c.l.b16 %v659
        %v3975 = vunpack.c.h.b16 %v659
        %v3976 = vunpack.c.l.b16 %v660
        %v3977 = vunpack.c.h.b16 %v660
        %v3978 = vunpack.c.l.b16 %v661
        %v3979 = vunpack.c.h.b16 %v661
        %v3980 = vunpack.c.l.b16 %v662
        %v3981 = vunpack.c.h.b16 %v662
        %v3982 = vunpack.c.l.b16 %v663
        %v3983 = vunpack.c.h.b16 %v663
        %v3984 = vunpack.c.l.b16 %v664
        %v3985 = vunpack.c.h.b16 %v664
        %v3986 = vunpack.c.l.b16 %v665
        %v3987 = vunpack.c.h.b16 %v665
        %v3988 = vunpack.c.l.b16 %v666
        %v3989 = vunpack.c.h.b16 %v666
        %v3990 = vunpack.c.l.b16 %v667
        %v3991 = vunpack.c.h.b16 %v667
        %v3992 = vunpack.c.l.b16 %v668
        %v3993 = vunpack.c.h.b16 %v668
        %v3994 = vunpack.c.l.b16 %v669
        %v3995 = vunpack.c.h.b16 %v669
        %v3996 = vunpack.c.l.b16 %v670
        %v3997 = vunpack.c.h.b16 %v670
        %v3998 = vunpack.c.l.b16 %v671
        %v3999 = vunpack.c.h.b16 %v671
        %v4000 = vunpack.c.l.b16 %v672
        %v4001 = vunpack.c.h.b16 %v672
        %v4002 = vunpack.c.l.b16 %v673
        %v4003 = vunpack.c.h.b16 %v673
        %v4004 = vunpack.c.l.b16 %v674
        %v4005 = vunpack.c.h.b16 %v674
        %v4006 = vunpack.c.l.b16 %v675
        %v4007 = vunpack.c.h.b16 %v675
        %v4008 = vunpack.c.l.b16 %v676
        %v4009 = vunpack.c.h.b16 %v676
        %v4010 = vunpack.c.l.b16 %v677
        %v4011 = vunpack.c.h.b16 %v677
        %v4012 = vunpack.c.l.b16 %v678
        %v4013 = vunpack.c.h.b16 %v678
        %v4014 = vunpack.c.l.b16 %v679
        %v4015 = vunpack.c.h.b16 %v679
        %v4016 = vunpack.c.l.b16 %v680
        %v4017 = vunpack.c.h.b16 %v680
        %v4018 = vunpack.c.l.b16 %v681
        %v4019 = vunpack.c.h.b16 %v681
        %v4020 = vunpack.c.l.b16 %v682
        %v4021 = vunpack.c.h.b16 %v682
        %v4022 = vunpack.c.l.b16 %v683
        %v4023 = vunpack.c.h.b16 %v683
        %v4024 = vunpack.c.l.b16 %v684
        %v4025 = vunpack.c.h.b16 %v684
        %v4026 = vunpack.c.l.b16 %v685
        %v4027 = vunpack.c.h.b16 %v685
        %v4028 = vunpack.c.l.b16 %v686
        %v4029 = vunpack.c.h.b16 %v686
        %v4030 = vunpack.c.l.b16 %v687
        %v4031 = vunpack.c.h.b16 %v687
        %v4032 = vunpack.c.l.b16 %v688
        %v4033 = vunpack.c.h.b16 %v688
        %v4034 = vunpack.c.l.b16 %v689
        %v4035 = vunpack.c.h.b16 %v689
        %v4036 = vunpack.c.l.b16 %v690
        %v4037 = vunpack.c.h.b16 %v690
        %v4038 = vunpack.c.l.b16 %v691
        %v4039 = vunpack.c.h.b16 %v691
        %v4040 = vunpack.c.l.b16 %v692
        %v4041 = vunpack.c.h.b16 %v692
        %v4042 = vunpack.c.l.b16 %v693
        %v4043 = vunpack.c.h.b16 %v693
        %v4044 = vunpack.c.l.b16 %v694
        %v4045 = vunpack.c.h.b16 %v694
        %v4046 = vunpack.c.l.b16 %v695
        %v4047 = vunpack.c.h.b16 %v695
        %v4048 = vunpack.c.l.b16 %v696
        %v4049 = vunpack.c.h.b16 %v696
        %v4050 = vunpack.c.l.b16 %v697
        %v4051 = vunpack.c.h.b16 %v697
        %v4052 = vunpack.c.l.b16 %v698
        %v4053 = vunpack.c.h.b16 %v698
        %v4054 = vunpack.c.l.b16 %v699
        %v4055 = vunpack.c.h.b16 %v699
        %v4056 = vunpack.c.l.b16 %v700
        %v4057 = vunpack.c.h.b16 %v700
        %v4058 = vunpack.c.l.b16 %v701
        %v4059 = vunpack.c.h.b16 %v701
        %v4060 = vunpack.c.l.b16 %v702
        %v4061 = vunpack.c.h.b16 %v702
        %v4062 = vunpack.c.l.b16 %v703
        %v4063 = vunpack.c.h.b16 %v703
        %v4064 = vunpack.c.l.b16 %v704
        %v4065 = vunpack.c.h.b16 %v704
        %v4066 = vunpack.c.l.b16 %v705
        %v4067 = vunpack.c.h.b16 %v705
        %v4068 = vunpack.c.l.b16 %v706
        %v4069 = vunpack.c.h.b16 %v706
        %v4070 = vunpack.c.l.b16 %v707
        %v4071 = vunpack.c.h.b16 %v707
        %v4072 = vunpack.c.l.b16 %v708
        %v4073 = vunpack.c.h.b16 %v708
        %v4074 = vunpack.c.l.b16 %v709
        %v4075 = vunpack.c.h.b16 %v709
        %v4076 = vunpack.c.l.b16 %v710
        %v4077 = vunpack.c.h.b16 %v710
        %v4078 = vunpack.c.l.b16 %v711
        %v4079 = vunpack.c.h.b16 %v711
        %v4080 = vunpack.c.l.b16 %v712
        %v4081 = vunpack.c.h.b16 %v712
        %v4082 = vunpack.c.l.b16 %v713
        %v4083 = vunpack.c.h.b16 %v713
        %v4084 = vunpack.c.l.b16 %v714
        %v4085 = vunpack.c.h.b16 %v714
        %v4086 = vunpack.c.l.b16 %v715
        %v4087 = vunpack.c.h.b16 %v715
        %v4088 = vunpack.c.l.b16 %v716
        %v4089 = vunpack.c.h.b16 %v716
        %v4090 = vunpack.c.l.b16 %v717
        %v4091 = vunpack.c.h.b16 %v717
        %v4092 = vunpack.c.l.b16 %v718
        %v4093 = vunpack.c.h.b16 %v718
        %v4094 = vunpack.c.l.b16 %v719
        %v4095 = vunpack.c.h.b16 %v719
        %v4096 = vunpack.c.l.b16 %v720
        %v4097 = vunpack.c.h.b16 %v720
        %v4098 = vunpack.c.l.b16 %v721
        %v4099 = vunpack.c.h.b16 %v721
        %v4100 = vunpack.c.l.b16 %v722
        %v4101 = vunpack.c.h.b16 %v722
        %v4102 = vunpack.c.l.b16 %v723
        %v4103 = vunpack.c.h.b16 %v723
        %v4104 = vunpack.c.l.b16 %v724
        %v4105 = vunpack.c.h.b16 %v724
        %v4106 = vunpack.c.l.b16 %v725
        %v4107 = vunpack.c.h.b16 %v725
        %v4108 = vunpack.c.l.b16 %v726
        %v4109 = vunpack.c.h.b16 %v726
        %v4110 = vunpack.c.l.b16 %v727
        %v4111 = vunpack.c.h.b16 %v727
        %v4112 = vunpack.c.l.b16 %v728
        %v4113 = vunpack.c.h.b16 %v728
        %v4114 = vunpack.c.l.b16 %v729
        %v4115 = vunpack.c.h.b16 %v729
        %v4116 = vunpack.c.l.b16 %v730
        %v4117 = vunpack.c.h.b16 %v730
        %v4118 = vunpack.c.l.b16 %v731
        %v4119 = vunpack.c.h.b16 %v731
        %v4120 = vunpack.c.l.b16 %v732
        %v4121 = vunpack.c.h.b16 %v732
        %v4122 = vunpack.c.l.b16 %v733
        %v4123 = vunpack.c.h.b16 %v733
        %v4124 = vunpack.c.l.b16 %v734
        %v4125 = vunpack.c.h.b16 %v734
        %v4126 = vunpack.c.l.b16 %v735
        %v4127 = vunpack.c.h.b16 %v735
        %v4128 = vunpack.c.l.b16 %v736
        %v4129 = vunpack.c.h.b16 %v736
        %v4130 = vunpack.c.l.b16 %v737
        %v4131 = vunpack.c.h.b16 %v737
        %v4132 = vunpack.c.l.b16 %v738
        %v4133 = vunpack.c.h.b16 %v738
        %v4134 = vunpack.c.l.b16 %v739
        %v4135 = vunpack.c.h.b16 %v739
        %v4136 = vunpack.c.l.b16 %v740
        %v4137 = vunpack.c.h.b16 %v740
        %v4138 = vunpack.c.l.b16 %v741
        %v4139 = vunpack.c.h.b16 %v741
        %v4140 = vunpack.c.l.b16 %v742
        %v4141 = vunpack.c.h.b16 %v742
        %v4142 = vunpack.c.l.b16 %v743
        %v4143 = vunpack.c.h.b16 %v743
        %v4144 = vunpack.c.l.b16 %v744
        %v4145 = vunpack.c.h.b16 %v744
        %v4146 = vunpack.c.l.b16 %v745
        %v4147 = vunpack.c.h.b16 %v745
        %v4148 = vunpack.c.l.b16 %v746
        %v4149 = vunpack.c.h.b16 %v746
        %v4150 = vunpack.c.l.b16 %v747
        %v4151 = vunpack.c.h.b16 %v747
        %v4152 = vunpack.c.l.b16 %v748
        %v4153 = vunpack.c.h.b16 %v748
        %v4154 = vunpack.c.l.b16 %v749
        %v4155 = vunpack.c.h.b16 %v749
        %v4156 = vunpack.c.l.b16 %v750
        %v4157 = vunpack.c.h.b16 %v750
        %v4158 = vunpack.c.l.b16 %v751
        %v4159 = vunpack.c.h.b16 %v751
        %v4160 = vunpack.c.l.b16 %v752
        %v4161 = vunpack.c.h.b16 %v752
        %v4162 = vunpack.c.l.b16 %v753
        %v4163 = vunpack.c.h.b16 %v753
        %v4164 = vunpack.c.l.b16 %v754
        %v4165 = vunpack.c.h.b16 %v754
        %v4166 = vunpack.c.l.b16 %v755
        %v4167 = vunpack.c.h.b16 %v755
        %v4168 = vunpack.c.l.b16 %v756
        %v4169 = vunpack.c.h.b16 %v756
        %v4170 = vunpack.c.l.b16 %v757
        %v4171 = vunpack.c.h.b16 %v757
        %v4172 = vunpack.c.l.b16 %v758
        %v4173 = vunpack.c.h.b16 %v758
        %v4174 = vunpack.c.l.b16 %v759
        %v4175 = vunpack.c.h.b16 %v759
        %v4176 = vunpack.c.l.b16 %v760
        %v4177 = vunpack.c.h.b16 %v760
        %v4178 = vunpack.c.l.b16 %v761
        %v4179 = vunpack.c.h.b16 %v761
        %v4180 = vunpack.c.l.b16 %v762
        %v4181 = vunpack.c.h.b16 %v762
        %v4182 = vunpack.c.l.b16 %v763
        %v4183 = vunpack.c.h.b16 %v763
        %v4184 = vunpack.c.l.b16 %v764
        %v4185 = vunpack.c.h.b16 %v764
        %v4186 = vunpack.c.l.b16 %v765
        %v4187 = vunpack.c.h.b16 %v765
        %v4188 = vunpack.c.l.b16 %v766
        %v4189 = vunpack.c.h.b16 %v766
        %v4190 = vunpack.c.l.b16 %v767
        %v4191 = vunpack.c.h.b16 %v767
        %v4192 = vunpack.c.l.b16 %v768
        %v4193 = vunpack.c.h.b16 %v768
        %v4194 = vunpack.c.l.b16 %v769
        %v4195 = vunpack.c.h.b16 %v769
        %v4196 = vunpack.c.l.b16 %v770
        %v4197 = vunpack.c.h.b16 %v770
        %v4198 = vunpack.c.l.b16 %v771
        %v4199 = vunpack.c.h.b16 %v771
        %v4200 = vunpack.c.l.b16 %v772
        %v4201 = vunpack.c.h.b16 %v772
        %v4202 = vunpack.c.l.b16 %v773
        %v4203 = vunpack.c.h.b16 %v773
        %v4204 = vunpack.c.l.b16 %v774
        %v4205 = vunpack.c.h.b16 %v774
        %v4206 = vunpack.c.l.b16 %v775
        %v4207 = vunpack.c.h.b16 %v775
        %v4208 = vunpack.c.l.b16 %v776
        %v4209 = vunpack.c.h.b16 %v776
        %v4210 = vunpack.c.l.b16 %v777
        %v4211 = vunpack.c.h.b16 %v777
        %v4212 = vunpack.c.l.b16 %v778
        %v4213 = vunpack.c.h.b16 %v778
        %v4214 = vunpack.c.l.b16 %v779
        %v4215 = vunpack.c.h.b16 %v779
        %v4216 = vunpack.c.l.b16 %v780
        %v4217 = vunpack.c.h.b16 %v780
        %v4218 = vunpack.c.l.b16 %v781
        %v4219 = vunpack.c.h.b16 %v781
        %v4220 = vunpack.c.l.b16 %v782
        %v4221 = vunpack.c.h.b16 %v782
        %v4222 = vunpack.c.l.b16 %v783
        %v4223 = vunpack.c.h.b16 %v783
        %v4224 = vunpack.c.l.b16 %v784
        %v4225 = vunpack.c.h.b16 %v784
        %v4226 = vunpack.c.l.b16 %v785
        %v4227 = vunpack.c.h.b16 %v785
        %v4228 = vunpack.c.l.b16 %v786
        %v4229 = vunpack.c.h.b16 %v786
        %v4230 = vunpack.c.l.b16 %v787
        %v4231 = vunpack.c.h.b16 %v787
        %v4232 = vunpack.c.l.b16 %v788
        %v4233 = vunpack.c.h.b16 %v788
        %v4234 = vunpack.c.l.b16 %v789
        %v4235 = vunpack.c.h.b16 %v789
        %v4236 = vunpack.c.l.b16 %v790
        %v4237 = vunpack.c.h.b16 %v790
        %v4238 = vunpack.c.l.b16 %v791
        %v4239 = vunpack.c.h.b16 %v791
        %v4240 = vunpack.c.l.b16 %v792
        %v4241 = vunpack.c.h.b16 %v792
        %v4242 = vunpack.c.l.b16 %v793
        %v4243 = vunpack.c.h.b16 %v793
        %v4244 = vunpack.c.l.b16 %v794
        %v4245 = vunpack.c.h.b16 %v794
        %v4246 = vunpack.c.l.b16 %v795
        %v4247 = vunpack.c.h.b16 %v795
        %v4248 = vunpack.c.l.b16 %v796
        %v4249 = vunpack.c.h.b16 %v796
        %v4250 = vunpack.c.l.b16 %v797
        %v4251 = vunpack.c.h.b16 %v797
        %v4252 = vunpack.c.l.b16 %v798
        %v4253 = vunpack.c.h.b16 %v798
        %v4254 = vunpack.c.l.b16 %v799
        %v4255 = vunpack.c.h.b16 %v799
        %v4256 = vunpack.c.l.b16 %v800
        %v4257 = vunpack.c.h.b16 %v800
        %v4258 = vunpack.c.l.b16 %v801
        %v4259 = vunpack.c.h.b16 %v801
        %v4260 = vunpack.c.l.b16 %v802
        %v4261 = vunpack.c.h.b16 %v802
        %v4262 = vunpack.c.l.b16 %v803
        %v4263 = vunpack.c.h.b16 %v803
        %v4264 = vunpack.c.l.b16 %v804
        %v4265 = vunpack.c.h.b16 %v804
        %v4266 = vunpack.c.l.b16 %v805
        %v4267 = vunpack.c.h.b16 %v805
        %v4268 = vunpack.c.l.b16 %v806
        %v4269 = vunpack.c.h.b16 %v806
        %v4270 = vunpack.c.l.b16 %v807
        %v4271 = vunpack.c.h.b16 %v807
        %v4272 = vunpack.c.l.b16 %v808
        %v4273 = vunpack.c.h.b16 %v808
        %v4274 = vunpack.c.l.b16 %v809
        %v4275 = vunpack.c.h.b16 %v809
        %v4276 = vunpack.c.l.b16 %v810
        %v4277 = vunpack.c.h.b16 %v810
        %v4278 = vunpack.c.l.b16 %v811
        %v4279 = vunpack.c.h.b16 %v811
        %v4280 = vunpack.c.l.b16 %v812
        %v4281 = vunpack.c.h.b16 %v812
        %v4282 = vunpack.c.l.b16 %v813
        %v4283 = vunpack.c.h.b16 %v813
        %v4284 = vunpack.c.l.b16 %v814
        %v4285 = vunpack.c.h.b16 %v814
        %v4286 = vunpack.c.l.b16 %v815
        %v4287 = vunpack.c.h.b16 %v815
        %v4288 = vunpack.c.l.b16 %v816
        %v4289 = vunpack.c.h.b16 %v816
        %v4290 = vunpack.c.l.b16 %v817
        %v4291 = vunpack.c.h.b16 %v817
        %v4292 = vunpack.c.l.b16 %v818
        %v4293 = vunpack.c.h.b16 %v818
        %v4294 = vunpack.c.l.b16 %v819
        %v4295 = vunpack.c.h.b16 %v819
        %v4296 = vunpack.c.l.b16 %v820
        %v4297 = vunpack.c.h.b16 %v820
        %v4298 = vunpack.c.l.b16 %v821
        %v4299 = vunpack.c.h.b16 %v821
        %v4300 = vunpack.c.l.b16 %v822
        %v4301 = vunpack.c.h.b16 %v822
        %v4302 = vunpack.c.l.b16 %v823
        %v4303 = vunpack.c.h.b16 %v823
        %v4304 = vunpack.c.l.b16 %v824
        %v4305 = vunpack.c.h.b16 %v824
        %v4306 = vunpack.c.l.b16 %v825
        %v4307 = vunpack.c.h.b16 %v825
        %v4308 = vunpack.c.l.b16 %v826
        %v4309 = vunpack.c.h.b16 %v826
        %v4310 = vunpack.c.l.b16 %v827
        %v4311 = vunpack.c.h.b16 %v827
        %v4312 = vunpack.c.l.b16 %v828
        %v4313 = vunpack.c.h.b16 %v828
        %v4314 = vunpack.c.l.b16 %v829
        %v4315 = vunpack.c.h.b16 %v829
        %v4316 = vunpack.c.l.b16 %v830
        %v4317 = vunpack.c.h.b16 %v830
        %v4318 = vunpack.c.l.b16 %v831
        %v4319 = vunpack.c.h.b16 %v831
        %v4320 = vunpack.c.l.b16 %v832
        %v4321 = vunpack.c.h.b16 %v832
        %v4322 = vunpack.c.l.b16 %v833
        %v4323 = vunpack.c.h.b16 %v833
        %v4324 = vunpack.c.l.b16 %v834
        %v4325 = vunpack.c.h.b16 %v834
        %v4326 = vunpack.c.l.b16 %v835
        %v4327 = vunpack.c.h.b16 %v835
        %v4328 = vunpack.c.l.b16 %v836
        %v4329 = vunpack.c.h.b16 %v836
        %v4330 = vunpack.c.l.b16 %v837
        %v4331 = vunpack.c.h.b16 %v837
        %v4332 = vunpack.c.l.b16 %v838
        %v4333 = vunpack.c.h.b16 %v838
        %v4334 = vunpack.c.l.b16 %v839
        %v4335 = vunpack.c.h.b16 %v839
        %v4336 = vunpack.c.l.b16 %v840
        %v4337 = vunpack.c.h.b16 %v840
        %v4338 = vunpack.c.l.b16 %v841
        %v4339 = vunpack.c.h.b16 %v841
        %v4340 = vunpack.c.l.b16 %v842
        %v4341 = vunpack.c.h.b16 %v842
        %v4342 = vunpack.c.l.b16 %v843
        %v4343 = vunpack.c.h.b16 %v843
        %v4344 = vunpack.c.l.b16 %v844
        %v4345 = vunpack.c.h.b16 %v844
        %v4346 = vunpack.c.l.b16 %v845
        %v4347 = vunpack.c.h.b16 %v845
        %v4348 = vunpack.c.l.b16 %v846
        %v4349 = vunpack.c.h.b16 %v846
        %v4350 = vunpack.c.l.b16 %v847
        %v4351 = vunpack.c.h.b16 %v847
        %v4352 = vunpack.c.l.b16 %v848
        %v4353 = vunpack.c.h.b16 %v848
        %v4354 = vunpack.c.l.b16 %v849
        %v4355 = vunpack.c.h.b16 %v849
        %v4356 = vunpack.c.l.b16 %v850
        %v4357 = vunpack.c.h.b16 %v850
        %v4358 = vunpack.c.l.b16 %v851
        %v4359 = vunpack.c.h.b16 %v851
        %v4360 = vunpack.c.l.b16 %v852
        %v4361 = vunpack.c.h.b16 %v852
        %v4362 = vunpack.c.l.b16 %v853
        %v4363 = vunpack.c.h.b16 %v853
        %v4364 = vunpack.c.l.b16 %v854
        %v4365 = vunpack.c.h.b16 %v854
        %v4366 = vunpack.c.l.b16 %v855
        %v4367 = vunpack.c.h.b16 %v855
        %v4368 = vunpack.c.l.b16 %v856
        %v4369 = vunpack.c.h.b16 %v856
        %v4370 = vunpack.c.l.b16 %v857
        %v4371 = vunpack.c.h.b16 %v857
        %v4372 = vunpack.c.l.b16 %v858
        %v4373 = vunpack.c.h.b16 %v858
        %v4374 = vunpack.c.l.b16 %v859
        %v4375 = vunpack.c.h.b16 %v859
        %v4376 = vunpack.c.l.b16 %v860
        %v4377 = vunpack.c.h.b16 %v860
        %v4378 = vunpack.c.l.b16 %v861
        %v4379 = vunpack.c.h.b16 %v861
        %v4380 = vunpack.c.l.b16 %v862
        %v4381 = vunpack.c.h.b16 %v862
        %v4382 = vunpack.c.l.b16 %v863
        %v4383 = vunpack.c.h.b16 %v863
        %v4384 = vunpack.c.l.b16 %v864
        %v4385 = vunpack.c.h.b16 %v864
        %v4386 = vunpack.c.l.b16 %v865
        %v4387 = vunpack.c.h.b16 %v865
        %v4388 = vunpack.c.l.b16 %v866
        %v4389 = vunpack.c.h.b16 %v866
        %v4390 = vunpack.c.l.b16 %v867
        %v4391 = vunpack.c.h.b16 %v867
        %v4392 = vunpack.c.l.b16 %v868
        %v4393 = vunpack.c.h.b16 %v868
        %v4394 = vunpack.c.l.b16 %v869
        %v4395 = vunpack.c.h.b16 %v869
        %v4396 = vunpack.c.l.b16 %v870
        %v4397 = vunpack.c.h.b16 %v870
        %v4398 = vunpack.c.l.b16 %v871
        %v4399 = vunpack.c.h.b16 %v871
        %v4400 = vunpack.c.l.b16 %v872
        %v4401 = vunpack.c.h.b16 %v872
        %v4402 = vunpack.c.l.b16 %v873
        %v4403 = vunpack.c.h.b16 %v873
        %v4404 = vunpack.c.l.b16 %v874
        %v4405 = vunpack.c.h.b16 %v874
        %v4406 = vunpack.c.l.b16 %v875
        %v4407 = vunpack.c.h.b16 %v875
        %v4408 = vunpack.c.l.b16 %v876
        %v4409 = vunpack.c.h.b16 %v876
        %v4410 = vunpack.c.l.b16 %v877
        %v4411 = vunpack.c.h.b16 %v877
        %v4412 = vunpack.c.l.b16 %v878
        %v4413 = vunpack.c.h.b16 %v878
        %v4414 = vunpack.c.l.b16 %v879
        %v4415 = vunpack.c.h.b16 %v879
        %v4416 = vunpack.c.l.b16 %v880
        %v4417 = vunpack.c.h.b16 %v880
        %v4418 = vunpack.c.l.b16 %v881
        %v4419 = vunpack.c.h.b16 %v881
        %v4420 = vunpack.c.l.b16 %v882
        %v4421 = vunpack.c.h.b16 %v882
        %v4422 = vunpack.c.l.b16 %v883
        %v4423 = vunpack.c.h.b16 %v883
        %v4424 = vunpack.c.l.b16 %v884
        %v4425 = vunpack.c.h.b16 %v884
        %v4426 = vunpack.c.l.b16 %v885
        %v4427 = vunpack.c.h.b16 %v885
        %v4428 = vunpack.c.l.b16 %v886
        %v4429 = vunpack.c.h.b16 %v886
        %v4430 = vunpack.c.l.b16 %v887
        %v4431 = vunpack.c.h.b16 %v887
        %v4432 = vunpack.c.l.b16 %v888
        %v4433 = vunpack.c.h.b16 %v888
        %v4434 = vunpack.c.l.b16 %v889
        %v4435 = vunpack.c.h.b16 %v889
        %v4436 = vunpack.c.l.b16 %v890
        %v4437 = vunpack.c.h.b16 %v890
        %v4438 = vunpack.c.l.b16 %v891
        %v4439 = vunpack.c.h.b16 %v891
        %v4440 = vunpack.c.l.b16 %v892
        %v4441 = vunpack.c.h.b16 %v892
        %v4442 = vunpack.c.l.b16 %v893
        %v4443 = vunpack.c.h.b16 %v893
        %v4444 = vunpack.c.l.b16 %v894
        %v4445 = vunpack.c.h.b16 %v894
        %v4446 = vunpack.c.l.b16 %v895
        %v4447 = vunpack.c.h.b16 %v895
        %v4448 = vunpack.c.l.b16 %v896
        %v4449 = vunpack.c.h.b16 %v896
        %v4450 = vunpack.c.l.b16 %v897
        %v4451 = vunpack.c.h.b16 %v897
        %v4452 = vunpack.c.l.b16 %v898
        %v4453 = vunpack.c.h.b16 %v898
        %v4454 = vunpack.c.l.b16 %v899
        %v4455 = vunpack.c.h.b16 %v899
        %v4456 = vunpack.c.l.b16 %v900
        %v4457 = vunpack.c.h.b16 %v900
        %v4458 = vunpack.c.l.b16 %v901
        %v4459 = vunpack.c.h.b16 %v901
        %v4460 = vunpack.c.l.b16 %v902
        %v4461 = vunpack.c.h.b16 %v902
        %v4462 = vunpack.c.l.b16 %v903
        %v4463 = vunpack.c.h.b16 %v903
        %v4464 = vunpack.c.l.b16 %v904
        %v4465 = vunpack.c.h.b16 %v904
        %v4466 = vunpack.c.l.b16 %v905
        %v4467 = vunpack.c.h.b16 %v905
        %v4468 = vunpack.c.l.b16 %v906
        %v4469 = vunpack.c.h.b16 %v906
        %v4470 = vunpack.c.l.b16 %v907
        %v4471 = vunpack.c.h.b16 %v907
        %v4472 = vunpack.c.l.b16 %v908
        %v4473 = vunpack.c.h.b16 %v908
        %v4474 = vunpack.c.l.b16 %v909
        %v4475 = vunpack.c.h.b16 %v909
        %v4476 = vunpack.c.l.b16 %v910
        %v4477 = vunpack.c.h.b16 %v910
        %v4478 = vunpack.c.l.b16 %v911
        %v4479 = vunpack.c.h.b16 %v911
        %v4480 = vunpack.c.l.b16 %v912
        %v4481 = vunpack.c.h.b16 %v912
        %v4482 = vunpack.c.l.b16 %v913
        %v4483 = vunpack.c.h.b16 %v913
        %v4484 = vunpack.c.l.b16 %v914
        %v4485 = vunpack.c.h.b16 %v914
        %v4486 = vunpack.c.l.b16 %v915
        %v4487 = vunpack.c.h.b16 %v915
        %v4488 = vunpack.c.l.b16 %v916
        %v4489 = vunpack.c.h.b16 %v916
        %v4490 = vunpack.c.l.b16 %v917
        %v4491 = vunpack.c.h.b16 %v917
        %v4492 = vunpack.c.l.b16 %v918
        %v4493 = vunpack.c.h.b16 %v918
        %v4494 = vunpack.c.l.b16 %v919
        %v4495 = vunpack.c.h.b16 %v919
        %v4496 = vunpack.c.l.b16 %v920
        %v4497 = vunpack.c.h.b16 %v920
        %v4498 = vunpack.c.l.b16 %v921
        %v4499 = vunpack.c.h.b16 %v921
        %v4500 = vunpack.c.l.b16 %v922
        %v4501 = vunpack.c.h.b16 %v922
        %v4502 = vunpack.c.l.b16 %v923
        %v4503 = vunpack.c.h.b16 %v923
        %v4504 = vunpack.c.l.b16 %v924
        %v4505 = vunpack.c.h.b16 %v924
        %v4506 = vunpack.c.l.b16 %v925
        %v4507 = vunpack.c.h.b16 %v925
        %v4508 = vunpack.c.l.b16 %v926
        %v4509 = vunpack.c.h.b16 %v926
        %v4510 = vunpack.c.l.b16 %v927
        %v4511 = vunpack.c.h.b16 %v927
        %v4512 = vunpack.c.l.b16 %v928
        %v4513 = vunpack.c.h.b16 %v928
        %v4514 = vunpack.c.l.b16 %v929
        %v4515 = vunpack.c.h.b16 %v929
        %v4516 = vunpack.c.l.b16 %v930
        %v4517 = vunpack.c.h.b16 %v930
        %v4518 = vunpack.c.l.b16 %v931
        %v4519 = vunpack.c.h.b16 %v931
        %v4520 = vunpack.c.l.b16 %v932
        %v4521 = vunpack.c.h.b16 %v932
        %v4522 = vunpack.c.l.b16 %v933
        %v4523 = vunpack.c.h.b16 %v933
        %v4524 = vunpack.c.l.b16 %v934
        %v4525 = vunpack.c.h.b16 %v934
        %v4526 = vunpack.c.l.b16 %v935
        %v4527 = vunpack.c.h.b16 %v935
        %v4528 = vunpack.c.l.b16 %v936
        %v4529 = vunpack.c.h.b16 %v936
        %v4530 = vunpack.c.l.b16 %v937
        %v4531 = vunpack.c.h.b16 %v937
        %v4532 = vunpack.c.l.b16 %v938
        %v4533 = vunpack.c.h.b16 %v938
        %v4534 = vunpack.c.l.b16 %v939
        %v4535 = vunpack.c.h.b16 %v939
        %v4536 = vunpack.c.l.b16 %v940
        %v4537 = vunpack.c.h.b16 %v940
        %v4538 = vunpack.c.l.b16 %v941
        %v4539 = vunpack.c.h.b16 %v941
        %v4540 = vunpack.c.l.b16 %v942
        %v4541 = vunpack.c.h.b16 %v942
        %v4542 = vunpack.c.l.b16 %v943
        %v4543 = vunpack.c.h.b16 %v943
        %v4544 = vunpack.c.l.b16 %v944
        %v4545 = vunpack.c.h.b16 %v944
        %v4546 = vunpack.c.l.b16 %v945
        %v4547 = vunpack.c.h.b16 %v945
        %v4548 = vunpack.c.l.b16 %v946
        %v4549 = vunpack.c.h.b16 %v946
        %v4550 = vunpack.c.l.b16 %v947
        %v4551 = vunpack.c.h.b16 %v947
        %v4552 = vunpack.c.l.b16 %v948
        %v4553 = vunpack.c.h.b16 %v948
        %v4554 = vunpack.c.l.b16 %v949
        %v4555 = vunpack.c.h.b16 %v949
        %v4556 = vunpack.c.l.b16 %v950
        %v4557 = vunpack.c.h.b16 %v950
        %v4558 = vunpack.c.l.b16 %v951
        %v4559 = vunpack.c.h.b16 %v951
        %v4560 = vunpack.c.l.b16 %v952
        %v4561 = vunpack.c.h.b16 %v952
        %v4562 = vunpack.c.l.b16 %v953
        %v4563 = vunpack.c.h.b16 %v953
        %v4564 = vunpack.c.l.b16 %v954
        %v4565 = vunpack.c.h.b16 %v954
        %v4566 = vunpack.c.l.b16 %v955
        %v4567 = vunpack.c.h.b16 %v955
        %v4568 = vunpack.c.l.b16 %v956
        %v4569 = vunpack.c.h.b16 %v956
        %v4570 = vunpack.c.l.b16 %v957
        %v4571 = vunpack.c.h.b16 %v957
        %v4572 = vunpack.c.l.b16 %v958
        %v4573 = vunpack.c.h.b16 %v958
        %v4574 = vunpack.c.l.b16 %v959
        %v4575 = vunpack.c.h.b16 %v959
        %v4576 = vunpack.c.l.b16 %v960
        %v4577 = vunpack.c.h.b16 %v960
        %v4578 = vunpack.c.l.b16 %v961
        %v4579 = vunpack.c.h.b16 %v961
        %v4580 = vunpack.c.l.b16 %v962
        %v4581 = vunpack.c.h.b16 %v962
        %v4582 = vunpack.c.l.b16 %v963
        %v4583 = vunpack.c.h.b16 %v963
        %v4584 = vunpack.c.l.b16 %v964
        %v4585 = vunpack.c.h.b16 %v964
        %v4586 = vunpack.c.l.b16 %v965
        %v4587 = vunpack.c.h.b16 %v965
        %v4588 = vunpack.c.l.b16 %v966
        %v4589 = vunpack.c.h.b16 %v966
        %v4590 = vunpack.c.l.b16 %v967
        %v4591 = vunpack.c.h.b16 %v967
        %v4592 = vunpack.c.l.b16 %v968
        %v4593 = vunpack.c.h.b16 %v968
        %v4594 = vunpack.c.l.b16 %v969
        %v4595 = vunpack.c.h.b16 %v969
        %v4596 = vunpack.c.l.b16 %v970
        %v4597 = vunpack.c.h.b16 %v970
        %v4598 = vunpack.c.l.b16 %v971
        %v4599 = vunpack.c.h.b16 %v971
        %v4600 = vunpack.c.l.b16 %v972
        %v4601 = vunpack.c.h.b16 %v972
        %v4602 = vunpack.c.l.b16 %v973
        %v4603 = vunpack.c.h.b16 %v973
        %v4604 = vunpack.c.l.b16 %v974
        %v4605 = vunpack.c.h.b16 %v974
        %v4606 = vunpack.c.l.b16 %v975
        %v4607 = vunpack.c.h.b16 %v975
        %v4608 = vunpack.c.l.b16 %v976
        %v4609 = vunpack.c.h.b16 %v976
        %v4610 = vunpack.c.l.b16 %v977
        %v4611 = vunpack.c.h.b16 %v977
        %v4612 = vunpack.c.l.b16 %v978
        %v4613 = vunpack.c.h.b16 %v978
        %v4614 = vunpack.c.l.b16 %v979
        %v4615 = vunpack.c.h.b16 %v979
        %v4616 = vunpack.c.l.b16 %v980
        %v4617 = vunpack.c.h.b16 %v980
        %v4618 = vunpack.c.l.b16 %v981
        %v4619 = vunpack.c.h.b16 %v981
        %v4620 = vunpack.c.l.b16 %v982
        %v4621 = vunpack.c.h.b16 %v982
        %v4622 = vunpack.c.l.b16 %v983
        %v4623 = vunpack.c.h.b16 %v983
        %v4624 = vunpack.c.l.b16 %v984
        %v4625 = vunpack.c.h.b16 %v984
        %v4626 = vunpack.c.l.b16 %v985
        %v4627 = vunpack.c.h.b16 %v985
        %v4628 = vunpack.c.l.b16 %v986
        %v4629 = vunpack.c.h.b16 %v986
        %v4630 = vunpack.c.l.b16 %v987
        %v4631 = vunpack.c.h.b16 %v987
        %v4632 = vunpack.c.l.b16 %v988
        %v4633 = vunpack.c.h.b16 %v988
        %v4634 = vunpack.c.l.b16 %v989
        %v4635 = vunpack.c.h.b16 %v989
        %v4636 = vunpack.c.l.b16 %v990
        %v4637 = vunpack.c.h.b16 %v990
        %v4638 = vunpack.c.l.b16 %v991
        %v4639 = vunpack.c.h.b16 %v991
        %v4640 = vunpack.c.l.b16 %v992
        %v4641 = vunpack.c.h.b16 %v992
        %v4642 = vunpack.c.l.b16 %v993
        %v4643 = vunpack.c.h.b16 %v993
        %v4644 = vunpack.c.l.b16 %v994
        %v4645 = vunpack.c.h.b16 %v994
        %v4646 = vunpack.c.l.b16 %v995
        %v4647 = vunpack.c.h.b16 %v995
        %v4648 = vunpack.c.l.b16 %v996
        %v4649 = vunpack.c.h.b16 %v996
        %v4650 = vunpack.c.l.b16 %v997
        %v4651 = vunpack.c.h.b16 %v997
        %v4652 = vunpack.c.l.b16 %v998
        %v4653 = vunpack.c.h.b16 %v998
        %v4654 = vunpack.c.l.b16 %v999
        %v4655 = vunpack.c.h.b16 %v999
        %v4656 = vunpack.c.l.b16 %v1000
        %v4657 = vunpack.c.h.b16 %v1000
        %v4658 = vunpack.c.l.b16 %v1001
        %v4659 = vunpack.c.h.b16 %v1001
        %v4660 = vunpack.c.l.b16 %v1002
        %v4661 = vunpack.c.h.b16 %v1002
        %v4662 = vunpack.c.l.b16 %v1003
        %v4663 = vunpack.c.h.b16 %v1003
        %v4664 = vunpack.c.l.b16 %v1004
        %v4665 = vunpack.c.h.b16 %v1004
        %v4666 = vunpack.c.l.b16 %v1005
        %v4667 = vunpack.c.h.b16 %v1005
        %v4668 = vunpack.c.l.b16 %v1006
        %v4669 = vunpack.c.h.b16 %v1006
        %v4670 = vunpack.c.l.b16 %v1007
        %v4671 = vunpack.c.h.b16 %v1007
        %v4672 = vunpack.c.l.b16 %v1008
        %v4673 = vunpack.c.h.b16 %v1008
        %v4674 = vunpack.c.l.b16 %v1009
        %v4675 = vunpack.c.h.b16 %v1009
        %v4676 = vunpack.c.l.b16 %v1010
        %v4677 = vunpack.c.h.b16 %v1010
        %v4678 = vunpack.c.l.b16 %v1011
        %v4679 = vunpack.c.h.b16 %v1011
        %v4680 = vunpack.c.l.b16 %v1012
        %v4681 = vunpack.c.h.b16 %v1012
        %v4682 = vunpack.c.l.b16 %v1013
        %v4683 = vunpack.c.h.b16 %v1013
        %v4684 = vunpack.c.l.b16 %v1014
        %v4685 = vunpack.c.h.b16 %v1014
        %v4686 = vunpack.c.l.b16 %v1015
        %v4687 = vunpack.c.h.b16 %v1015
        %v4688 = vunpack.c.l.b16 %v1016
        %v4689 = vunpack.c.h.b16 %v1016
        %v4690 = vunpack.c.l.b16 %v1017
        %v4691 = vunpack.c.h.b16 %v1017
        %v4692 = vunpack.c.l.b16 %v1018
        %v4693 = vunpack.c.h.b16 %v1018
        %v4694 = vunpack.c.l.b16 %v1019
        %v4695 = vunpack.c.h.b16 %v1019
        %v4696 = vunpack.c.l.b16 %v1020
        %v4697 = vunpack.c.h.b16 %v1020
        %v4698 = vunpack.c.l.b16 %v1021
        %v4699 = vunpack.c.h.b16 %v1021
        %v4700 = vunpack.c.l.b16 %v1022
        %v4701 = vunpack.c.h.b16 %v1022
        %v4702 = vunpack.c.l.b16 %v1023
        %v4703 = vunpack.c.h.b16 %v1023
        %v4704 = vunpack.c.l.b16 %v1024
        %v4705 = vunpack.c.h.b16 %v1024
        %v4706 = vunpack.c.l.b16 %v1025
        %v4707 = vunpack.c.h.b16 %v1025
        %v4708 = vunpack.c.l.b16 %v1026
        %v4709 = vunpack.c.h.b16 %v1026
        %v4710 = vunpack.c.l.b16 %v1027
        %v4711 = vunpack.c.h.b16 %v1027
        %v4712 = vunpack.c.l.b16 %v1028
        %v4713 = vunpack.c.h.b16 %v1028
        %v4714 = vunpack.c.l.b16 %v1029
        %v4715 = vunpack.c.h.b16 %v1029
        %v4716 = vunpack.c.l.b16 %v1030
        %v4717 = vunpack.c.h.b16 %v1030
        %v4718 = vunpack.c.l.b16 %v1031
        %v4719 = vunpack.c.h.b16 %v1031
        %v4720 = vunpack.c.l.b16 %v1032
        %v4721 = vunpack.c.h.b16 %v1032
        %v4722 = vunpack.c.l.b16 %v1033
        %v4723 = vunpack.c.h.b16 %v1033
        %v4724 = vunpack.c.l.b16 %v1034
        %v4725 = vunpack.c.h.b16 %v1034
        %v4726 = vunpack.c.l.b16 %v1035
        %v4727 = vunpack.c.h.b16 %v1035
        %v4728 = vunpack.c.l.b16 %v1036
        %v4729 = vunpack.c.h.b16 %v1036
        %v4730 = vunpack.c.l.b16 %v1037
        %v4731 = vunpack.c.h.b16 %v1037
        %v4732 = vunpack.c.l.b16 %v1038
        %v4733 = vunpack.c.h.b16 %v1038
        %v4734 = vunpack.c.l.b16 %v1039
        %v4735 = vunpack.c.h.b16 %v1039
        %v4736 = vunpack.c.l.b16 %v1040
        %v4737 = vunpack.c.h.b16 %v1040
        %v4738 = vunpack.c.l.b16 %v1041
        %v4739 = vunpack.c.h.b16 %v1041
        %v4740 = vunpack.c.l.b16 %v1042
        %v4741 = vunpack.c.h.b16 %v1042
        %v4742 = vunpack.c.l.b16 %v1043
        %v4743 = vunpack.c.h.b16 %v1043
        %v4744 = vunpack.c.l.b16 %v1044
        %v4745 = vunpack.c.h.b16 %v1044
        %v4746 = vunpack.c.l.b16 %v1045
        %v4747 = vunpack.c.h.b16 %v1045
        %v4748 = vunpack.c.l.b16 %v1046
        %v4749 = vunpack.c.h.b16 %v1046
        %v4750 = vunpack.c.l.b16 %v1047
        %v4751 = vunpack.c.h.b16 %v1047
        %v4752 = vunpack.c.l.b16 %v1048
        %v4753 = vunpack.c.h.b16 %v1048
        %v4754 = vunpack.c.l.b16 %v1049
        %v4755 = vunpack.c.h.b16 %v1049
        %v4756 = vunpack.c.l.b16 %v1050
        %v4757 = vunpack.c.h.b16 %v1050
        %v4758 = vunpack.c.l.b16 %v1051
        %v4759 = vunpack.c.h.b16 %v1051
        %v4760 = vunpack.c.l.b16 %v1052
        %v4761 = vunpack.c.h.b16 %v1052
        %v4762 = vunpack.c.l.b16 %v1053
        %v4763 = vunpack.c.h.b16 %v1053
        %v4764 = vunpack.c.l.b16 %v1054
        %v4765 = vunpack.c.h.b16 %v1054
        %v4766 = vunpack.c.l.b16 %v1055
        %v4767 = vunpack.c.h.b16 %v1055
        %v4768 = vunpack.c.l.b16 %v1056
        %v4769 = vunpack.c.h.b16 %v1056
        %v4770 = vunpack.c.l.b16 %v1057
        %v4771 = vunpack.c.h.b16 %v1057
        %v4772 = vunpack.c.l.b16 %v1058
        %v4773 = vunpack.c.h.b16 %v1058
        %v4774 = vunpack.c.l.b16 %v1059
        %v4775 = vunpack.c.h.b16 %v1059
        %v4776 = vunpack.c.l.b16 %v1060
        %v4777 = vunpack.c.h.b16 %v1060
        %v4778 = vunpack.c.l.b16 %v1061
        %v4779 = vunpack.c.h.b16 %v1061
        %v4780 = vunpack.c.l.b16 %v1062
        %v4781 = vunpack.c.h.b16 %v1062
        %v4782 = vunpack.c.l.b16 %v1063
        %v4783 = vunpack.c.h.b16 %v1063
        %v4784 = vunpack.c.l.b16 %v1064
        %v4785 = vunpack.c.h.b16 %v1064
        %v4786 = vunpack.c.l.b16 %v1065
        %v4787 = vunpack.c.h.b16 %v1065
        %v4788 = vunpack.c.l.b16 %v1066
        %v4789 = vunpack.c.h.b16 %v1066
        %v4790 = vunpack.c.l.b16 %v1067
        %v4791 = vunpack.c.h.b16 %v1067
        %v4792 = vunpack.c.l.b16 %v1068
        %v4793 = vunpack.c.h.b16 %v1068
        %v4794 = vunpack.c.l.b16 %v1069
        %v4795 = vunpack.c.h.b16 %v1069
        %v4796 = vunpack.c.l.b16 %v1070
        %v4797 = vunpack.c.h.b16 %v1070
        %v4798 = vunpack.c.l.b16 %v1071
        %v4799 = vunpack.c.h.b16 %v1071
        %v4800 = vunpack.c.l.b16 %v1072
        %v4801 = vunpack.c.h.b16 %v1072
        %v4802 = vunpack.c.l.b16 %v1073
        %v4803 = vunpack.c.h.b16 %v1073
        %v4804 = vunpack.c.l.b16 %v1074
        %v4805 = vunpack.c.h.b16 %v1074
        %v4806 = vunpack.c.l.b16 %v1075
        %v4807 = vunpack.c.h.b16 %v1075
        %v4808 = vunpack.c.l.b16 %v1076
        %v4809 = vunpack.c.h.b16 %v1076
        %v4810 = vunpack.c.l.b16 %v1077
        %v4811 = vunpack.c.h.b16 %v1077
        %v4812 = vunpack.c.l.b16 %v1078
        %v4813 = vunpack.c.h.b16 %v1078
        %v4814 = vunpack.c.l.b16 %v1079
        %v4815 = vunpack.c.h.b16 %v1079
        %v4816 = vunpack.c.l.b16 %v1080
        %v4817 = vunpack.c.h.b16 %v1080
        %v4818 = vunpack.c.l.b16 %v1081
        %v4819 = vunpack.c.h.b16 %v1081
        %v4820 = vunpack.c.l.b16 %v1082
        %v4821 = vunpack.c.h.b16 %v1082
        %v4822 = vunpack.c.l.b16 %v1083
        %v4823 = vunpack.c.h.b16 %v1083
        %v4824 = vunpack.c.l.b16 %v1084
        %v4825 = vunpack.c.h.b16 %v1084
        %v4826 = vunpack.c.l.b16 %v1085
        %v4827 = vunpack.c.h.b16 %v1085
        %v4828 = vunpack.c.l.b16 %v1086
        %v4829 = vunpack.c.h.b16 %v1086
        %v4830 = vunpack.c.l.b16 %v1087
        %v4831 = vunpack.c.h.b16 %v1087
        %v4832 = vunpack.c.l.b16 %v1088
        %v4833 = vunpack.c.h.b16 %v1088
        %v4834 = vunpack.c.l.b16 %v1089
        %v4835 = vunpack.c.h.b16 %v1089
        %v4836 = vunpack.c.l.b16 %v1090
        %v4837 = vunpack.c.h.b16 %v1090
        %v4838 = vunpack.c.l.b16 %v1091
        %v4839 = vunpack.c.h.b16 %v1091
        %v4840 = vunpack.c.l.b16 %v1092
        %v4841 = vunpack.c.h.b16 %v1092
        %v4842 = vunpack.c.l.b16 %v1093
        %v4843 = vunpack.c.h.b16 %v1093
        %v4844 = vunpack.c.l.b16 %v1094
        %v4845 = vunpack.c.h.b16 %v1094
        %v4846 = vunpack.c.l.b16 %v1095
        %v4847 = vunpack.c.h.b16 %v1095
        %v4848 = vunpack.c.l.b16 %v1096
        %v4849 = vunpack.c.h.b16 %v1096
        %v4850 = vunpack.c.l.b16 %v1097
        %v4851 = vunpack.c.h.b16 %v1097
        %v4852 = vunpack.c.l.b16 %v1098
        %v4853 = vunpack.c.h.b16 %v1098
        %v4854 = vunpack.c.l.b16 %v1099
        %v4855 = vunpack.c.h.b16 %v1099
        %v4856 = vunpack.c.l.b16 %v1100
        %v4857 = vunpack.c.h.b16 %v1100
        %v4858 = vunpack.c.l.b16 %v1101
        %v4859 = vunpack.c.h.b16 %v1101
        %v4860 = vunpack.c.l.b16 %v1102
        %v4861 = vunpack.c.h.b16 %v1102
        %v4862 = vunpack.c.l.b16 %v1103
        %v4863 = vunpack.c.h.b16 %v1103
        %v4864 = vunpack.c.l.b16 %v1104
        %v4865 = vunpack.c.h.b16 %v1104
        %v4866 = vunpack.c.l.b16 %v1105
        %v4867 = vunpack.c.h.b16 %v1105
        %v4868 = vunpack.c.l.b16 %v1106
        %v4869 = vunpack.c.h.b16 %v1106
        %v4870 = vunpack.c.l.b16 %v1107
        %v4871 = vunpack.c.h.b16 %v1107
        %v4872 = vunpack.c.l.b16 %v1108
        %v4873 = vunpack.c.h.b16 %v1108
        %v4874 = vunpack.c.l.b16 %v1109
        %v4875 = vunpack.c.h.b16 %v1109
        %v4876 = vunpack.c.l.b16 %v1110
        %v4877 = vunpack.c.h.b16 %v1110
        %v4878 = vunpack.c.l.b16 %v1111
        %v4879 = vunpack.c.h.b16 %v1111
        %v4880 = vunpack.c.l.b16 %v1112
        %v4881 = vunpack.c.h.b16 %v1112
        %v4882 = vunpack.c.l.b16 %v1113
        %v4883 = vunpack.c.h.b16 %v1113
        %v4884 = vunpack.c.l.b16 %v1114
        %v4885 = vunpack.c.h.b16 %v1114
        %v4886 = vunpack.c.l.b16 %v1115
        %v4887 = vunpack.c.h.b16 %v1115
        %v4888 = vunpack.c.l.b16 %v1116
        %v4889 = vunpack.c.h.b16 %v1116
        %v4890 = vunpack.c.l.b16 %v1117
        %v4891 = vunpack.c.h.b16 %v1117
        %v4892 = vunpack.c.l.b16 %v1118
        %v4893 = vunpack.c.h.b16 %v1118
        %v4894 = vunpack.c.l.b16 %v1119
        %v4895 = vunpack.c.h.b16 %v1119
        %v4896 = vunpack.c.l.b16 %v1120
        %v4897 = vunpack.c.h.b16 %v1120
        %v4898 = vunpack.c.l.b16 %v1121
        %v4899 = vunpack.c.h.b16 %v1121
        %v4900 = vunpack.c.l.b16 %v1122
        %v4901 = vunpack.c.h.b16 %v1122
        %v4902 = vunpack.c.l.b16 %v1123
        %v4903 = vunpack.c.h.b16 %v1123
        %v4904 = vunpack.c.l.b16 %v1124
        %v4905 = vunpack.c.h.b16 %v1124
        %v4906 = vunpack.c.l.b16 %v1125
        %v4907 = vunpack.c.h.b16 %v1125
        %v4908 = vunpack.c.l.b16 %v1126
        %v4909 = vunpack.c.h.b16 %v1126
        %v4910 = vunpack.c.l.b16 %v1127
        %v4911 = vunpack.c.h.b16 %v1127
        %v4912 = vunpack.c.l.b16 %v1128
        %v4913 = vunpack.c.h.b16 %v1128
        %v4914 = vunpack.c.l.b16 %v1129
        %v4915 = vunpack.c.h.b16 %v1129
        %v4916 = vunpack.c.l.b16 %v1130
        %v4917 = vunpack.c.h.b16 %v1130
        %v4918 = vunpack.c.l.b16 %v1131
        %v4919 = vunpack.c.h.b16 %v1131
        %v4920 = vunpack.c.l.b16 %v1132
        %v4921 = vunpack.c.h.b16 %v1132
        %v4922 = vunpack.c.l.b16 %v1133
        %v4923 = vunpack.c.h.b16 %v1133
        %v4924 = vunpack.c.l.b16 %v1134
        %v4925 = vunpack.c.h.b16 %v1134
        %v4926 = vunpack.c.l.b16 %v1135
        %v4927 = vunpack.c.h.b16 %v1135
        %v4928 = vunpack.c.l.b16 %v1136
        %v4929 = vunpack.c.h.b16 %v1136
        %v4930 = vunpack.c.l.b16 %v1137
        %v4931 = vunpack.c.h.b16 %v1137
        %v4932 = vunpack.c.l.b16 %v1138
        %v4933 = vunpack.c.h.b16 %v1138
        %v4934 = vunpack.c.l.b16 %v1139
        %v4935 = vunpack.c.h.b16 %v1139
        %v4936 = vunpack.c.l.b16 %v1140
        %v4937 = vunpack.c.h.b16 %v1140
        %v4938 = vunpack.c.l.b16 %v1141
        %v4939 = vunpack.c.h.b16 %v1141
        %v4940 = vunpack.c.l.b16 %v1142
        %v4941 = vunpack.c.h.b16 %v1142
        %v4942 = vunpack.c.l.b16 %v1143
        %v4943 = vunpack.c.h.b16 %v1143
        %v4944 = vunpack.c.l.b16 %v1144
        %v4945 = vunpack.c.h.b16 %v1144
        %v4946 = vunpack.c.l.b16 %v1145
        %v4947 = vunpack.c.h.b16 %v1145
        %v4948 = vunpack.c.l.b16 %v1146
        %v4949 = vunpack.c.h.b16 %v1146
        %v4950 = vunpack.c.l.b16 %v1147
        %v4951 = vunpack.c.h.b16 %v1147
        %v4952 = vunpack.c.l.b16 %v1148
        %v4953 = vunpack.c.h.b16 %v1148
        %v4954 = vunpack.c.l.b16 %v1149
        %v4955 = vunpack.c.h.b16 %v1149
        %v4956 = vunpack.c.l.b16 %v1150
        %v4957 = vunpack.c.h.b16 %v1150
        %v4958 = vunpack.c.l.b16 %v1151
        %v4959 = vunpack.c.h.b16 %v1151
        %v4960 = vunpack.c.l.b16 %v1152
        %v4961 = vunpack.c.h.b16 %v1152
        %v4962 = vunpack.c.l.b16 %v1153
        %v4963 = vunpack.c.h.b16 %v1153
        %v4964 = vunpack.c.l.b16 %v1154
        %v4965 = vunpack.c.h.b16 %v1154
        %v4966 = vunpack.c.l.b16 %v1155
        %v4967 = vunpack.c.h.b16 %v1155
        %v4968 = vunpack.c.l.b16 %v1156
        %v4969 = vunpack.c.h.b16 %v1156
        %v4970 = vunpack.c.l.b16 %v1157
        %v4971 = vunpack.c.h.b16 %v1157
        %v4972 = vunpack.c.l.b16 %v1158
        %v4973 = vunpack.c.h.b16 %v1158
        %v4974 = vunpack.c.l.b16 %v1159
        %v4975 = vunpack.c.h.b16 %v1159
        %v4976 = vunpack.c.l.b16 %v1160
        %v4977 = vunpack.c.h.b16 %v1160
        %v4978 = vunpack.c.l.b16 %v1161
        %v4979 = vunpack.c.h.b16 %v1161
        %v4980 = vunpack.c.l.b16 %v1162
        %v4981 = vunpack.c.h.b16 %v1162
        %v4982 = vunpack.c.l.b16 %v1163
        %v4983 = vunpack.c.h.b16 %v1163
        %v4984 = vunpack.c.l.b16 %v1164
        %v4985 = vunpack.c.h.b16 %v1164
        %v4986 = vunpack.c.l.b16 %v1165
        %v4987 = vunpack.c.h.b16 %v1165
        %v4988 = vunpack.c.l.b16 %v1166
        %v4989 = vunpack.c.h.b16 %v1166
        %v4990 = vunpack.c.l.b16 %v1167
        %v4991 = vunpack.c.h.b16 %v1167
        %v4992 = vunpack.c.l.b16 %v1168
        %v4993 = vunpack.c.h.b16 %v1168
        %v4994 = vunpack.c.l.b16 %v1169
        %v4995 = vunpack.c.h.b16 %v1169
        %v4996 = vunpack.c.l.b16 %v1170
        %v4997 = vunpack.c.h.b16 %v1170
        %v4998 = vunpack.c.l.b16 %v1171
        %v4999 = vunpack.c.h.b16 %v1171
        %v5000 = vunpack.c.l.b16 %v1172
        %v5001 = vunpack.c.h.b16 %v1172
        %v5002 = vunpack.c.l.b16 %v1173
        %v5003 = vunpack.c.h.b16 %v1173
        %v5004 = vunpack.c.l.b16 %v1174
        %v5005 = vunpack.c.h.b16 %v1174
        %v5006 = vunpack.c.l.b16 %v1175
        %v5007 = vunpack.c.h.b16 %v1175
        %v5008 = vunpack.c.l.b16 %v1176
        %v5009 = vunpack.c.h.b16 %v1176
        %v5010 = vunpack.c.l.b16 %v1177
        %v5011 = vunpack.c.h.b16 %v1177
        %v5012 = vunpack.c.l.b16 %v1178
        %v5013 = vunpack.c.h.b16 %v1178
        %v5014 = vunpack.c.l.b16 %v1179
        %v5015 = vunpack.c.h.b16 %v1179
        %v5016 = vunpack.c.l.b16 %v1180
        %v5017 = vunpack.c.h.b16 %v1180
        %v5018 = vunpack.c.l.b16 %v1181
        %v5019 = vunpack.c.h.b16 %v1181
        %v5020 = vunpack.c.l.b16 %v1182
        %v5021 = vunpack.c.h.b16 %v1182
        %v5022 = vunpack.c.l.b16 %v1183
        %v5023 = vunpack.c.h.b16 %v1183
        %v5024 = vunpack.c.l.b16 %v1184
        %v5025 = vunpack.c.h.b16 %v1184
        %v5026 = vunpack.c.l.b16 %v1185
        %v5027 = vunpack.c.h.b16 %v1185
        %v5028 = vunpack.c.l.b16 %v1186
        %v5029 = vunpack.c.h.b16 %v1186
        %v5030 = vunpack.c.l.b16 %v1187
        %v5031 = vunpack.c.h.b16 %v1187
        %v5032 = vunpack.c.l.b16 %v1188
        %v5033 = vunpack.c.h.b16 %v1188
        %v5034 = vunpack.c.l.b16 %v1189
        %v5035 = vunpack.c.h.b16 %v1189
        %v5036 = vunpack.c.l.b16 %v1190
        %v5037 = vunpack.c.h.b16 %v1190
        %v5038 = vunpack.c.l.b16 %v1191
        %v5039 = vunpack.c.h.b16 %v1191
        %v5040 = vunpack.c.l.b16 %v1192
        %v5041 = vunpack.c.h.b16 %v1192
        %v5042 = vunpack.c.l.b16 %v1193
        %v5043 = vunpack.c.h.b16 %v1193
        %v5044 = vunpack.c.l.b16 %v1194
        %v5045 = vunpack.c.h.b16 %v1194
        %v5046 = vunpack.c.l.b16 %v1195
        %v5047 = vunpack.c.h.b16 %v1195
        %v5048 = vunpack.c.l.b16 %v1196
        %v5049 = vunpack.c.h.b16 %v1196
        %v5050 = vunpack.c.l.b16 %v1197
        %v5051 = vunpack.c.h.b16 %v1197
        %v5052 = vunpack.c.l.b16 %v1198
        %v5053 = vunpack.c.h.b16 %v1198
        %v5054 = vunpack.c.l.b16 %v1199
        %v5055 = vunpack.c.h.b16 %v1199
        %v5056 = vunpack.c.l.b16 %v1200
        %v5057 = vunpack.c.h.b16 %v1200
        %v5058 = vunpack.c.l.b16 %v1201
        %v5059 = vunpack.c.h.b16 %v1201
        %v5060 = vunpack.c.l.b16 %v1202
        %v5061 = vunpack.c.h.b16 %v1202
        %v5062 = vunpack.c.l.b16 %v1203
        %v5063 = vunpack.c.h.b16 %v1203
        %v5064 = vunpack.c.l.b16 %v1204
        %v5065 = vunpack.c.h.b16 %v1204
        %v5066 = vunpack.c.l.b16 %v1205
        %v5067 = vunpack.c.h.b16 %v1205
        %v5068 = vunpack.c.l.b16 %v1206
        %v5069 = vunpack.c.h.b16 %v1206
        %v5070 = vunpack.c.l.b16 %v1207
        %v5071 = vunpack.c.h.b16 %v1207
        %v5072 = vunpack.c.l.b16 %v1208
        %v5073 = vunpack.c.h.b16 %v1208
        %v5074 = vunpack.c.l.b16 %v1209
        %v5075 = vunpack.c.h.b16 %v1209
        %v5076 = vunpack.c.l.b16 %v1210
        %v5077 = vunpack.c.h.b16 %v1210
        %v5078 = vunpack.c.l.b16 %v1211
        %v5079 = vunpack.c.h.b16 %v1211
        %v5080 = vunpack.c.l.b16 %v1212
        %v5081 = vunpack.c.h.b16 %v1212
        %v5082 = vunpack.c.l.b16 %v1213
        %v5083 = vunpack.c.h.b16 %v1213
        %v5084 = vunpack.c.l.b16 %v1214
        %v5085 = vunpack.c.h.b16 %v1214
        %v5086 = vunpack.c.l.b16 %v1215
        %v5087 = vunpack.c.h.b16 %v1215
        %v5088 = vunpack.c.l.b16 %v1216
        %v5089 = vunpack.c.h.b16 %v1216
        %v5090 = vunpack.c.l.b16 %v1217
        %v5091 = vunpack.c.h.b16 %v1217
        %v5092 = vunpack.c.l.b16 %v1218
        %v5093 = vunpack.c.h.b16 %v1218
        %v5094 = vunpack.c.l.b16 %v1219
        %v5095 = vunpack.c.h.b16 %v1219
        %v5096 = vunpack.c.l.b16 %v1220
        %v5097 = vunpack.c.h.b16 %v1220
        %v5098 = vunpack.c.l.b16 %v1221
        %v5099 = vunpack.c.h.b16 %v1221
        %v5100 = vunpack.c.l.b16 %v1222
        %v5101 = vunpack.c.h.b16 %v1222
        %v5102 = vunpack.c.l.b16 %v1223
        %v5103 = vunpack.c.h.b16 %v1223
        %v5104 = vunpack.c.l.b16 %v1224
        %v5105 = vunpack.c.h.b16 %v1224
        %v5106 = vunpack.c.l.b16 %v1225
        %v5107 = vunpack.c.h.b16 %v1225
        %v5108 = vunpack.c.l.b16 %v1226
        %v5109 = vunpack.c.h.b16 %v1226
        %v5110 = vunpack.c.l.b16 %v1227
        %v5111 = vunpack.c.h.b16 %v1227
        %v5112 = vunpack.c.l.b16 %v1228
        %v5113 = vunpack.c.h.b16 %v1228
        %v5114 = vunpack.c.l.b16 %v1229
        %v5115 = vunpack.c.h.b16 %v1229
        %v5116 = vunpack.c.l.b16 %v1230
        %v5117 = vunpack.c.h.b16 %v1230
        %v5118 = vunpack.c.l.b16 %v1231
        %v5119 = vunpack.c.h.b16 %v1231
        %v5120 = vunpack.c.l.b16 %v1232
        %v5121 = vunpack.c.h.b16 %v1232
        %v5122 = vunpack.c.l.b16 %v1233
        %v5123 = vunpack.c.h.b16 %v1233
        %v5124 = vunpack.c.l.b16 %v1234
        %v5125 = vunpack.c.h.b16 %v1234
        %v5126 = vunpack.c.l.b16 %v1235
        %v5127 = vunpack.c.h.b16 %v1235
        %v5128 = vunpack.c.l.b16 %v1236
        %v5129 = vunpack.c.h.b16 %v1236
        %v5130 = vunpack.c.l.b16 %v1237
        %v5131 = vunpack.c.h.b16 %v1237
        %v5132 = vunpack.c.l.b16 %v1238
        %v5133 = vunpack.c.h.b16 %v1238
        %v5134 = vunpack.c.l.b16 %v1239
        %v5135 = vunpack.c.h.b16 %v1239
        %v5136 = vunpack.c.l.b16 %v1240
        %v5137 = vunpack.c.h.b16 %v1240
        %v5138 = vunpack.c.l.b16 %v1241
        %v5139 = vunpack.c.h.b16 %v1241
        %v5140 = vunpack.c.l.b16 %v1242
        %v5141 = vunpack.c.h.b16 %v1242
        %v5142 = vunpack.c.l.b16 %v1243
        %v5143 = vunpack.c.h.b16 %v1243
        %v5144 = vunpack.c.l.b16 %v1244
        %v5145 = vunpack.c.h.b16 %v1244
        %v5146 = vunpack.c.l.b16 %v1245
        %v5147 = vunpack.c.h.b16 %v1245
        %v5148 = vunpack.c.l.b16 %v1246
        %v5149 = vunpack.c.h.b16 %v1246
        %v5150 = vunpack.c.l.b16 %v1247
        %v5151 = vunpack.c.h.b16 %v1247
        %v5152 = vunpack.c.l.b16 %v1248
        %v5153 = vunpack.c.h.b16 %v1248
        %v5154 = vunpack.c.l.b16 %v1249
        %v5155 = vunpack.c.h.b16 %v1249
        %v5156 = vunpack.c.l.b16 %v1250
        %v5157 = vunpack.c.h.b16 %v1250
        %v5158 = vunpack.c.l.b16 %v1251
        %v5159 = vunpack.c.h.b16 %v1251
        %v5160 = vunpack.c.l.b16 %v1252
        %v5161 = vunpack.c.h.b16 %v1252
        %v5162 = vunpack.c.l.b16 %v1253
        %v5163 = vunpack.c.h.b16 %v1253
        %v5164 = vunpack.c.l.b16 %v1254
        %v5165 = vunpack.c.h.b16 %v1254
        %v5166 = vunpack.c.l.b16 %v1255
        %v5167 = vunpack.c.h.b16 %v1255
        %v5168 = vunpack.c.l.b16 %v1256
        %v5169 = vunpack.c.h.b16 %v1256
        %v5170 = vunpack.c.l.b16 %v1257
        %v5171 = vunpack.c.h.b16 %v1257
        %v5172 = vunpack.c.l.b16 %v1258
        %v5173 = vunpack.c.h.b16 %v1258
        %v5174 = vunpack.c.l.b16 %v1259
        %v5175 = vunpack.c.h.b16 %v1259
        %v5176 = vunpack.c.l.b16 %v1260
        %v5177 = vunpack.c.h.b16 %v1260
        %v5178 = vunpack.c.l.b16 %v1261
        %v5179 = vunpack.c.h.b16 %v1261
        %v5180 = vunpack.c.l.b16 %v1262
        %v5181 = vunpack.c.h.b16 %v1262
        %v5182 = vunpack.c.l.b16 %v1263
        %v5183 = vunpack.c.h.b16 %v1263
        %v5184 = vunpack.c.l.b16 %v1264
        %v5185 = vunpack.c.h.b16 %v1264
        %v5186 = vunpack.c.l.b16 %v1265
        %v5187 = vunpack.c.h.b16 %v1265
        %v5188 = vunpack.c.l.b16 %v1266
        %v5189 = vunpack.c.h.b16 %v1266
        %v5190 = vunpack.c.l.b16 %v1267
        %v5191 = vunpack.c.h.b16 %v1267
        %v5192 = vunpack.c.l.b16 %v1268
        %v5193 = vunpack.c.h.b16 %v1268
        %v5194 = vunpack.c.l.b16 %v1269
        %v5195 = vunpack.c.h.b16 %v1269
        %v5196 = vunpack.c.l.b16 %v1270
        %v5197 = vunpack.c.h.b16 %v1270
        %v5198 = vunpack.c.l.b16 %v1271
        %v5199 = vunpack.c.h.b16 %v1271
        %v5200 = vunpack.c.l.b16 %v1272
        %v5201 = vunpack.c.h.b16 %v1272
        %v5202 = vunpack.c.l.b16 %v1273
        %v5203 = vunpack.c.h.b16 %v1273
        %v5204 = vunpack.c.l.b16 %v1274
        %v5205 = vunpack.c.h.b16 %v1274
        %v5206 = vunpack.c.l.b16 %v1275
        %v5207 = vunpack.c.h.b16 %v1275
        %v5208 = vunpack.c.l.b16 %v1276
        %v5209 = vunpack.c.h.b16 %v1276
        %v5210 = vunpack.c.l.b16 %v1277
        %v5211 = vunpack.c.h.b16 %v1277
        %v5212 = vunpack.c.l.b16 %v1278
        %v5213 = vunpack.c.h.b16 %v1278
        %v5214 = vunpack.c.l.b16 %v1279
        %v5215 = vunpack.c.h.b16 %v1279
        %v5216 = vunpack.c.l.b16 %v1280
        %v5217 = vunpack.c.h.b16 %v1280
        %v5218 = vunpack.c.l.b16 %v1281
        %v5219 = vunpack.c.h.b16 %v1281
        %v5220 = vunpack.c.l.b16 %v1282
        %v5221 = vunpack.c.h.b16 %v1282
        %v5222 = vunpack.c.l.b16 %v1283
        %v5223 = vunpack.c.h.b16 %v1283
        %v5224 = vunpack.c.l.b16 %v1284
        %v5225 = vunpack.c.h.b16 %v1284
        %v5226 = vunpack.c.l.b16 %v1285
        %v5227 = vunpack.c.h.b16 %v1285
        %v5228 = vunpack.c.l.b16 %v1286
        %v5229 = vunpack.c.h.b16 %v1286
        %v5230 = vunpack.c.l.b16 %v1287
        %v5231 = vunpack.c.h.b16 %v1287
        %v5232 = vunpack.c.l.b16 %v1288
        %v5233 = vunpack.c.h.b16 %v1288
        %v5234 = vunpack.c.l.b16 %v1289
        %v5235 = vunpack.c.h.b16 %v1289
        %v5236 = vunpack.c.l.b16 %v1290
        %v5237 = vunpack.c.h.b16 %v1290
        %v5238 = vunpack.c.l.b16 %v1291
        %v5239 = vunpack.c.h.b16 %v1291
        %v5240 = vunpack.c.l.b16 %v1292
        %v5241 = vunpack.c.h.b16 %v1292
        %v5242 = vunpack.c.l.b16 %v1293
        %v5243 = vunpack.c.h.b16 %v1293
        %v5244 = vunpack.c.l.b16 %v1294
        %v5245 = vunpack.c.h.b16 %v1294
        %v5246 = vunpack.c.l.b16 %v1295
        %v5247 = vunpack.c.h.b16 %v1295
        %v5248 = vunpack.c.l.b16 %v1296
        %v5249 = vunpack.c.h.b16 %v1296
        %v5250 = vunpack.c.l.b16 %v1297
        %v5251 = vunpack.c.h.b16 %v1297
        %v5252 = vunpack.c.l.b16 %v1298
        %v5253 = vunpack.c.h.b16 %v1298
        %v5254 = vunpack.c.l.b16 %v1299
        %v5255 = vunpack.c.h.b16 %v1299
        %v5256 = vunpack.c.l.b16 %v1300
        %v5257 = vunpack.c.h.b16 %v1300
        %v5258 = vunpack.c.l.b16 %v1301
        %v5259 = vunpack.c.h.b16 %v1301
        %v5260 = vunpack.c.l.b16 %v1302
        %v5261 = vunpack.c.h.b16 %v1302
        %v5262 = vunpack.c.l.b16 %v1303
        %v5263 = vunpack.c.h.b16 %v1303
        %v5264 = vunpack.c.l.b16 %v1304
        %v5265 = vunpack.c.h.b16 %v1304
        %v5266 = vunpack.c.l.b16 %v1305
        %v5267 = vunpack.c.h.b16 %v1305
        %v5268 = vunpack.c.l.b16 %v1306
        %v5269 = vunpack.c.h.b16 %v1306
        %v5270 = vunpack.c.l.b16 %v1307
        %v5271 = vunpack.c.h.b16 %v1307
        %v5272 = vunpack.c.l.b16 %v1308
        %v5273 = vunpack.c.h.b16 %v1308
        %v5274 = vunpack.c.l.b16 %v1309
        %v5275 = vunpack.c.h.b16 %v1309
        %v5276 = vunpack.c.l.b16 %v1310
        %v5277 = vunpack.c.h.b16 %v1310
        %v5278 = vunpack.c.l.b16 %v1311
        %v5279 = vunpack.c.h.b16 %v1311
        %v5280 = vunpack.c.l.b16 %v1312
        %v5281 = vunpack.c.h.b16 %v1312
        %v5282 = vunpack.c.l.b16 %v1313
        %v5283 = vunpack.c.h.b16 %v1313
        %v5284 = vunpack.c.l.b16 %v1314
        %v5285 = vunpack.c.h.b16 %v1314
        %v5286 = vunpack.c.l.b16 %v1315
        %v5287 = vunpack.c.h.b16 %v1315
        %v5288 = vunpack.c.l.b16 %v1316
        %v5289 = vunpack.c.h.b16 %v1316
        %v5290 = vunpack.c.l.b16 %v1317
        %v5291 = vunpack.c.h.b16 %v1317
        %v5292 = vunpack.c.l.b16 %v1318
        %v5293 = vunpack.c.h.b16 %v1318
        %v5294 = vunpack.c.l.b16 %v1319
        %v5295 = vunpack.c.h.b16 %v1319
        %v5296 = vunpack.c.l.b16 %v1320
        %v5297 = vunpack.c.h.b16 %v1320
        %v5298 = vunpack.c.l.b16 %v1321
        %v5299 = vunpack.c.h.b16 %v1321
        %v5300 = vunpack.c.l.b16 %v1322
        %v5301 = vunpack.c.h.b16 %v1322
        %v5302 = vunpack.c.l.b16 %v1323
        %v5303 = vunpack.c.h.b16 %v1323
        %v5304 = vunpack.c.l.b16 %v1324
        %v5305 = vunpack.c.h.b16 %v1324
        %v5306 = vunpack.c.l.b16 %v1325
        %v5307 = vunpack.c.h.b16 %v1325
        %v5308 = vunpack.c.l.b16 %v1326
        %v5309 = vunpack.c.h.b16 %v1326
        %v5310 = vunpack.c.l.b16 %v1327
        %v5311 = vunpack.c.h.b16 %v1327
        %v5312 = vunpack.c.l.b16 %v1328
        %v5313 = vunpack.c.h.b16 %v1328
        %v5314 = vunpack.c.l.b16 %v1329
        %v5315 = vunpack.c.h.b16 %v1329
        %v5316 = vunpack.c.l.b16 %v1330
        %v5317 = vunpack.c.h.b16 %v1330
        %v5318 = vunpack.c.l.b16 %v1331
        %v5319 = vunpack.c.h.b16 %v1331
        %v5320 = vunpack.c.l.b16 %v1332
        %v5321 = vunpack.c.h.b16 %v1332
        %v5322 = vunpack.c.l.b16 %v1333
        %v5323 = vunpack.c.h.b16 %v1333
        %v5324 = vunpack.c.l.b16 %v1334
        %v5325 = vunpack.c.h.b16 %v1334
        %v5326 = vunpack.c.l.b16 %v1335
        %v5327 = vunpack.c.h.b16 %v1335
        %v5328 = vunpack.c.l.b16 %v1336
        %v5329 = vunpack.c.h.b16 %v1336
        %v5330 = vunpack.c.l.b16 %v1337
        %v5331 = vunpack.c.h.b16 %v1337
        %v5332 = vunpack.c.l.b16 %v1338
        %v5333 = vunpack.c.h.b16 %v1338
        %v5334 = vunpack.c.l.b16 %v1339
        %v5335 = vunpack.c.h.b16 %v1339
        %v5336 = vunpack.c.l.b16 %v1340
        %v5337 = vunpack.c.h.b16 %v1340
        %v5338 = vunpack.c.l.b16 %v1341
        %v5339 = vunpack.c.h.b16 %v1341
        %v5340 = vunpack.c.l.b16 %v1342
        %v5341 = vunpack.c.h.b16 %v1342
        %v5342 = vunpack.c.l.b16 %v1343
        %v5343 = vunpack.c.h.b16 %v1343
        %v5344 = vunpack.c.l.b16 %v1344
        %v5345 = vunpack.c.h.b16 %v1344
        %v5346 = vunpack.c.l.b16 %v1345
        %v5347 = vunpack.c.h.b16 %v1345
        %v5348 = vunpack.c.l.b16 %v1346
        %v5349 = vunpack.c.h.b16 %v1346
        %v5350 = vunpack.c.l.b16 %v1347
        %v5351 = vunpack.c.h.b16 %v1347
        %v5352 = vunpack.c.l.b16 %v1348
        %v5353 = vunpack.c.h.b16 %v1348
        %v5354 = vunpack.c.l.b16 %v1349
        %v5355 = vunpack.c.h.b16 %v1349
        %v5356 = vunpack.c.l.b16 %v1350
        %v5357 = vunpack.c.h.b16 %v1350
        %v5358 = vunpack.c.l.b16 %v1351
        %v5359 = vunpack.c.h.b16 %v1351
        %v5360 = vunpack.c.l.b16 %v1352
        %v5361 = vunpack.c.h.b16 %v1352
        %v5362 = vunpack.c.l.b16 %v1353
        %v5363 = vunpack.c.h.b16 %v1353
        %v5364 = vunpack.c.l.b16 %v1354
        %v5365 = vunpack.c.h.b16 %v1354
        %v5366 = vunpack.c.l.b16 %v1355
        %v5367 = vunpack.c.h.b16 %v1355
        %v5368 = vunpack.c.l.b16 %v1356
        %v5369 = vunpack.c.h.b16 %v1356
        %v5370 = vunpack.c.l.b16 %v1357
        %v5371 = vunpack.c.h.b16 %v1357
        %v5372 = vunpack.c.l.b16 %v1358
        %v5373 = vunpack.c.h.b16 %v1358
        %v5374 = vunpack.c.l.b16 %v1359
        %v5375 = vunpack.c.h.b16 %v1359
        %v5376 = vunpack.c.l.b16 %v1360
        %v5377 = vunpack.c.h.b16 %v1360
        %v5378 = vunpack.c.l.b16 %v1361
        %v5379 = vunpack.c.h.b16 %v1361
        %v5380 = vunpack.c.l.b16 %v1362
        %v5381 = vunpack.c.h.b16 %v1362
        %v5382 = vunpack.c.l.b16 %v1363
        %v5383 = vunpack.c.h.b16 %v1363
        %v5384 = vunpack.c.l.b16 %v1364
        %v5385 = vunpack.c.h.b16 %v1364
        %v5386 = vunpack.c.l.b16 %v1365
        %v5387 = vunpack.c.h.b16 %v1365
        %v5388 = vunpack.c.l.b16 %v1366
        %v5389 = vunpack.c.h.b16 %v1366
        %v5390 = vunpack.c.l.b16 %v1367
        %v5391 = vunpack.c.h.b16 %v1367
        %v5392 = vunpack.c.l.b16 %v1368
        %v5393 = vunpack.c.h.b16 %v1368
        %v5394 = vunpack.c.l.b16 %v1369
        %v5395 = vunpack.c.h.b16 %v1369
        %v5396 = vunpack.c.l.b16 %v1370
        %v5397 = vunpack.c.h.b16 %v1370
        %v5398 = vunpack.c.l.b16 %v1371
        %v5399 = vunpack.c.h.b16 %v1371
        %v5400 = vunpack.c.l.b16 %v1372
        %v5401 = vunpack.c.h.b16 %v1372
        %v5402 = vunpack.c.l.b16 %v1373
        %v5403 = vunpack.c.h.b16 %v1373
        %v5404 = vunpack.c.l.b16 %v1374
        %v5405 = vunpack.c.h.b16 %v1374
        %v5406 = vunpack.c.l.b16 %v1375
        %v5407 = vunpack.c.h.b16 %v1375
        %v5408 = vunpack.c.l.b16 %v1376
        %v5409 = vunpack.c.h.b16 %v1376
        %v5410 = vunpack.c.l.b16 %v1377
        %v5411 = vunpack.c.h.b16 %v1377
        %v5412 = vunpack.c.l.b16 %v1378
        %v5413 = vunpack.c.h.b16 %v1378
        %v5414 = vunpack.c.l.b16 %v1379
        %v5415 = vunpack.c.h.b16 %v1379
        %v5416 = vunpack.c.l.b16 %v1380
        %v5417 = vunpack.c.h.b16 %v1380
        %v5418 = vunpack.c.l.b16 %v1381
        %v5419 = vunpack.c.h.b16 %v1381
        %v5420 = vunpack.c.l.b16 %v1382
        %v5421 = vunpack.c.h.b16 %v1382
        %v5422 = vunpack.c.l.b16 %v1383
        %v5423 = vunpack.c.h.b16 %v1383
        %v5424 = vunpack.c.l.b16 %v1384
        %v5425 = vunpack.c.h.b16 %v1384
        %v5426 = vunpack.c.l.b16 %v1385
        %v5427 = vunpack.c.h.b16 %v1385
        %v5428 = vunpack.c.l.b16 %v1386
        %v5429 = vunpack.c.h.b16 %v1386
        %v5430 = vunpack.c.l.b16 %v1387
        %v5431 = vunpack.c.h.b16 %v1387
        %v5432 = vunpack.c.l.b16 %v1388
        %v5433 = vunpack.c.h.b16 %v1388
        %v5434 = vunpack.c.l.b16 %v1389
        %v5435 = vunpack.c.h.b16 %v1389
        %v5436 = vunpack.c.l.b16 %v1390
        %v5437 = vunpack.c.h.b16 %v1390
        %v5438 = vunpack.c.l.b16 %v1391
        %v5439 = vunpack.c.h.b16 %v1391
        %v5440 = vunpack.c.l.b16 %v1392
        %v5441 = vunpack.c.h.b16 %v1392
        %v5442 = vunpack.c.l.b16 %v1393
        %v5443 = vunpack.c.h.b16 %v1393
        %v5444 = vunpack.c.l.b16 %v1394
        %v5445 = vunpack.c.h.b16 %v1394
        %v5446 = vunpack.c.l.b16 %v1395
        %v5447 = vunpack.c.h.b16 %v1395
        %v5448 = vunpack.c.l.b16 %v1396
        %v5449 = vunpack.c.h.b16 %v1396
        %v5450 = vunpack.c.l.b16 %v1397
        %v5451 = vunpack.c.h.b16 %v1397
        %v5452 = vunpack.c.l.b16 %v1398
        %v5453 = vunpack.c.h.b16 %v1398
        %v5454 = vunpack.c.l.b16 %v1399
        %v5455 = vunpack.c.h.b16 %v1399
        %v5456 = vunpack.c.l.b16 %v1400
        %v5457 = vunpack.c.h.b16 %v1400
        %v5458 = vunpack.c.l.b16 %v1401
        %v5459 = vunpack.c.h.b16 %v1401
        %v5460 = vunpack.c.l.b16 %v1402
        %v5461 = vunpack.c.h.b16 %v1402
        %v5462 = vunpack.c.l.b16 %v1403
        %v5463 = vunpack.c.h.b16 %v1403
        %v5464 = vunpack.c.l.b16 %v1404
        %v5465 = vunpack.c.h.b16 %v1404
        %v5466 = vunpack.c.l.b16 %v1405
        %v5467 = vunpack.c.h.b16 %v1405
        %v5468 = vunpack.c.l.b16 %v1406
        %v5469 = vunpack.c.h.b16 %v1406
        %v5470 = vunpack.c.l.b16 %v1407
        %v5471 = vunpack.c.h.b16 %v1407
        %v5472 = vunpack.c.l.b16 %v1408
        %v5473 = vunpack.c.h.b16 %v1408
        %v5474 = vunpack.c.l.b16 %v1409
        %v5475 = vunpack.c.h.b16 %v1409
        %v5476 = vunpack.c.l.b16 %v1410
        %v5477 = vunpack.c.h.b16 %v1410
        %v5478 = vunpack.c.l.b16 %v1411
        %v5479 = vunpack.c.h.b16 %v1411
        %v5480 = vunpack.c.l.b16 %v1412
        %v5481 = vunpack.c.h.b16 %v1412
        %v5482 = vunpack.c.l.b16 %v1413
        %v5483 = vunpack.c.h.b16 %v1413
        %v5484 = vunpack.c.l.b16 %v1414
        %v5485 = vunpack.c.h.b16 %v1414
        %v5486 = vunpack.c.l.b16 %v1415
        %v5487 = vunpack.c.h.b16 %v1415
        %v5488 = vunpack.c.l.b16 %v1416
        %v5489 = vunpack.c.h.b16 %v1416
        %v5490 = vunpack.c.l.b16 %v1417
        %v5491 = vunpack.c.h.b16 %v1417
        %v5492 = vunpack.c.l.b16 %v1418
        %v5493 = vunpack.c.h.b16 %v1418
        %v5494 = vunpack.c.l.b16 %v1419
        %v5495 = vunpack.c.h.b16 %v1419
        %v5496 = vunpack.c.l.b16 %v1420
        %v5497 = vunpack.c.h.b16 %v1420
        %v5498 = vunpack.c.l.b16 %v1421
        %v5499 = vunpack.c.h.b16 %v1421
        %v5500 = vunpack.c.l.b16 %v1422
        %v5501 = vunpack.c.h.b16 %v1422
        %v5502 = vunpack.c.l.b16 %v1423
        %v5503 = vunpack.c.h.b16 %v1423
        %v5504 = vunpack.c.l.b16 %v1424
        %v5505 = vunpack.c.h.b16 %v1424
        %v5506 = vunpack.c.l.b16 %v1425
        %v5507 = vunpack.c.h.b16 %v1425
        %v5508 = vunpack.c.l.b16 %v1426
        %v5509 = vunpack.c.h.b16 %v1426
        %v5510 = vunpack.c.l.b16 %v1427
        %v5511 = vunpack.c.h.b16 %v1427
        %v5512 = vunpack.c.l.b16 %v1428
        %v5513 = vunpack.c.h.b16 %v1428
        %v5514 = vunpack.c.l.b16 %v1429
        %v5515 = vunpack.c.h.b16 %v1429
        %v5516 = vunpack.c.l.b16 %v1430
        %v5517 = vunpack.c.h.b16 %v1430
        %v5518 = vunpack.c.l.b16 %v1431
        %v5519 = vunpack.c.h.b16 %v1431
        %v5520 = vunpack.c.l.b16 %v1432
        %v5521 = vunpack.c.h.b16 %v1432
        %v5522 = vunpack.c.l.b16 %v1433
        %v5523 = vunpack.c.h.b16 %v1433
        %v5524 = vunpack.c.l.b16 %v1434
        %v5525 = vunpack.c.h.b16 %v1434
        %v5526 = vunpack.c.l.b16 %v1435
        %v5527 = vunpack.c.h.b16 %v1435
        %v5528 = vunpack.c.l.b16 %v1436
        %v5529 = vunpack.c.h.b16 %v1436
        %v5530 = vunpack.c.l.b16 %v1437
        %v5531 = vunpack.c.h.b16 %v1437
        %v5532 = vunpack.c.l.b16 %v1438
        %v5533 = vunpack.c.h.b16 %v1438
        %v5534 = vunpack.c.l.b16 %v1439
        %v5535 = vunpack.c.h.b16 %v1439
        %v5536 = vunpack.c.l.b16 %v1440
        %v5537 = vunpack.c.h.b16 %v1440
        %v5538 = vunpack.c.l.b16 %v1441
        %v5539 = vunpack.c.h.b16 %v1441
        %v5540 = vunpack.c.l.b16 %v1442
        %v5541 = vunpack.c.h.b16 %v1442
        %v5542 = vunpack.c.l.b16 %v1443
        %v5543 = vunpack.c.h.b16 %v1443
        %v5544 = vunpack.c.l.b16 %v1444
        %v5545 = vunpack.c.h.b16 %v1444
        %v5546 = vunpack.c.l.b16 %v1445
        %v5547 = vunpack.c.h.b16 %v1445
        %v5548 = vunpack.c.l.b16 %v1446
        %v5549 = vunpack.c.h.b16 %v1446
        %v5550 = vunpack.c.l.b16 %v1447
        %v5551 = vunpack.c.h.b16 %v1447
        %v5552 = vunpack.c.l.b16 %v1448
        %v5553 = vunpack.c.h.b16 %v1448
        %v5554 = vunpack.c.l.b16 %v1449
        %v5555 = vunpack.c.h.b16 %v1449
        %v5556 = vunpack.c.l.b16 %v1450
        %v5557 = vunpack.c.h.b16 %v1450
        %v5558 = vunpack.c.l.b16 %v1451
        %v5559 = vunpack.c.h.b16 %v1451
        %v5560 = vunpack.c.l.b16 %v1452
        %v5561 = vunpack.c.h.b16 %v1452
        %v5562 = vunpack.c.l.b16 %v1453
        %v5563 = vunpack.c.h.b16 %v1453
        %v5564 = vunpack.c.l.b16 %v1454
        %v5565 = vunpack.c.h.b16 %v1454
        %v5566 = vunpack.c.l.b16 %v1455
        %v5567 = vunpack.c.h.b16 %v1455
        %v5568 = vunpack.c.l.b16 %v1456
        %v5569 = vunpack.c.h.b16 %v1456
        %v5570 = vunpack.c.l.b16 %v1457
        %v5571 = vunpack.c.h.b16 %v1457
        %v5572 = vunpack.c.l.b16 %v1458
        %v5573 = vunpack.c.h.b16 %v1458
        %v5574 = vunpack.c.l.b16 %v1459
        %v5575 = vunpack.c.h.b16 %v1459
        %v5576 = vunpack.c.l.b16 %v1460
        %v5577 = vunpack.c.h.b16 %v1460
        %v5578 = vunpack.c.l.b16 %v1461
        %v5579 = vunpack.c.h.b16 %v1461
        %v5580 = vunpack.c.l.b16 %v1462
        %v5581 = vunpack.c.h.b16 %v1462
        %v5582 = vunpack.c.l.b16 %v1463
        %v5583 = vunpack.c.h.b16 %v1463
        %v5584 = vunpack.c.l.b16 %v1464
        %v5585 = vunpack.c.h.b16 %v1464
        %v5586 = vunpack.c.l.b16 %v1465
        %v5587 = vunpack.c.h.b16 %v1465
        %v5588 = vunpack.c.l.b16 %v1466
        %v5589 = vunpack.c.h.b16 %v1466
        %v5590 = vunpack.c.l.b16 %v1467
        %v5591 = vunpack.c.h.b16 %v1467
        %v5592 = vunpack.c.l.b16 %v1468
        %v5593 = vunpack.c.h.b16 %v1468
        %v5594 = vunpack.c.l.b16 %v1469
        %v5595 = vunpack.c.h.b16 %v1469
        %v5596 = vunpack.c.l.b16 %v1470
        %v5597 = vunpack.c.h.b16 %v1470
        %v5598 = vunpack.c.l.b16 %v1471
        %v5599 = vunpack.c.h.b16 %v1471
        %v5600 = vunpack.c.l.b16 %v1472
        %v5601 = vunpack.c.h.b16 %v1472
        %v5602 = vunpack.c.l.b16 %v1473
        %v5603 = vunpack.c.h.b16 %v1473
        %v5604 = vunpack.c.l.b16 %v1474
        %v5605 = vunpack.c.h.b16 %v1474
        %v5606 = vunpack.c.l.b16 %v1475
        %v5607 = vunpack.c.h.b16 %v1475
        %v5608 = vunpack.c.l.b16 %v1476
        %v5609 = vunpack.c.h.b16 %v1476
        %v5610 = vunpack.c.l.b16 %v1477
        %v5611 = vunpack.c.h.b16 %v1477
        %v5612 = vunpack.c.l.b16 %v1478
        %v5613 = vunpack.c.h.b16 %v1478
        %v5614 = vunpack.c.l.b16 %v1479
        %v5615 = vunpack.c.h.b16 %v1479
        %v5616 = vunpack.c.l.b16 %v1480
        %v5617 = vunpack.c.h.b16 %v1480
        %v5618 = vunpack.c.l.b16 %v1481
        %v5619 = vunpack.c.h.b16 %v1481
        %v5620 = vunpack.c.l.b16 %v1482
        %v5621 = vunpack.c.h.b16 %v1482
        %v5622 = vunpack.c.l.b16 %v1483
        %v5623 = vunpack.c.h.b16 %v1483
        %v5624 = vunpack.c.l.b16 %v1484
        %v5625 = vunpack.c.h.b16 %v1484
        %v5626 = vunpack.c.l.b16 %v1485
        %v5627 = vunpack.c.h.b16 %v1485
        %v5628 = vunpack.c.l.b16 %v1486
        %v5629 = vunpack.c.h.b16 %v1486
        %v5630 = vunpack.c.l.b16 %v1487
        %v5631 = vunpack.c.h.b16 %v1487
        %v5632 = vunpack.c.l.b16 %v1488
        %v5633 = vunpack.c.h.b16 %v1488
        %v5634 = vunpack.c.l.b16 %v1489
        %v5635 = vunpack.c.h.b16 %v1489
        %v5636 = vunpack.c.l.b16 %v1490
        %v5637 = vunpack.c.h.b16 %v1490
        %v5638 = vunpack.c.l.b16 %v1491
        %v5639 = vunpack.c.h.b16 %v1491
        %v5640 = vunpack.c.l.b16 %v1492
        %v5641 = vunpack.c.h.b16 %v1492
        %v5642 = vunpack.c.l.b16 %v1493
        %v5643 = vunpack.c.h.b16 %v1493
        %v5644 = vunpack.c.l.b16 %v1494
        %v5645 = vunpack.c.h.b16 %v1494
        %v5646 = vunpack.c.l.b16 %v1495
        %v5647 = vunpack.c.h.b16 %v1495
        %v5648 = vunpack.c.l.b16 %v1496
        %v5649 = vunpack.c.h.b16 %v1496
        %v5650 = vunpack.c.l.b16 %v1497
        %v5651 = vunpack.c.h.b16 %v1497
        %v5652 = vunpack.c.l.b16 %v1498
        %v5653 = vunpack.c.h.b16 %v1498
        %v5654 = vunpack.c.l.b16 %v1499
        %v5655 = vunpack.c.h.b16 %v1499
        %v5656 = vunpack.c.l.b16 %v1500
        %v5657 = vunpack.c.h.b16 %v1500
        %v5658 = vunpack.c.l.b16 %v1501
        %v5659 = vunpack.c.h.b16 %v1501
        %v5660 = vunpack.c.l.b16 %v1502
        %v5661 = vunpack.c.h.b16 %v1502
        %v5662 = vunpack.c.l.b16 %v1503
        %v5663 = vunpack.c.h.b16 %v1503
        %v5664 = vunpack.c.l.b16 %v1504
        %v5665 = vunpack.c.h.b16 %v1504
        %v5666 = vunpack.c.l.b16 %v1505
        %v5667 = vunpack.c.h.b16 %v1505
        %v5668 = vunpack.c.l.b16 %v1506
        %v5669 = vunpack.c.h.b16 %v1506
        %v5670 = vunpack.c.l.b16 %v1507
        %v5671 = vunpack.c.h.b16 %v1507
        %v5672 = vunpack.c.l.b16 %v1508
        %v5673 = vunpack.c.h.b16 %v1508
        %v5674 = vunpack.c.l.b16 %v1509
        %v5675 = vunpack.c.h.b16 %v1509
        %v5676 = vunpack.c.l.b16 %v1510
        %v5677 = vunpack.c.h.b16 %v1510
        %v5678 = vunpack.c.l.b16 %v1511
        %v5679 = vunpack.c.h.b16 %v1511
        %v5680 = vunpack.c.l.b16 %v1512
        %v5681 = vunpack.c.h.b16 %v1512
        %v5682 = vunpack.c.l.b16 %v1513
        %v5683 = vunpack.c.h.b16 %v1513
        %v5684 = vunpack.c.l.b16 %v1514
        %v5685 = vunpack.c.h.b16 %v1514
        %v5686 = vunpack.c.l.b16 %v1515
        %v5687 = vunpack.c.h.b16 %v1515
        %v5688 = vunpack.c.l.b16 %v1516
        %v5689 = vunpack.c.h.b16 %v1516
        %v5690 = vunpack.c.l.b16 %v1517
        %v5691 = vunpack.c.h.b16 %v1517
        %v5692 = vunpack.c.l.b16 %v1518
        %v5693 = vunpack.c.h.b16 %v1518
        %v5694 = vunpack.c.l.b16 %v1519
        %v5695 = vunpack.c.h.b16 %v1519
        %v5696 = vunpack.c.l.b16 %v1520
        %v5697 = vunpack.c.h.b16 %v1520
        %v5698 = vunpack.c.l.b16 %v1521
        %v5699 = vunpack.c.h.b16 %v1521
        %v5700 = vunpack.c.l.b16 %v1522
        %v5701 = vunpack.c.h.b16 %v1522
        %v5702 = vunpack.c.l.b16 %v1523
        %v5703 = vunpack.c.h.b16 %v1523
        %v5704 = vunpack.c.l.b16 %v1524
        %v5705 = vunpack.c.h.b16 %v1524
        %v5706 = vunpack.c.l.b16 %v1525
        %v5707 = vunpack.c.h.b16 %v1525
        %v5708 = vunpack.c.l.b16 %v1526
        %v5709 = vunpack.c.h.b16 %v1526
        %v5710 = vunpack.c.l.b16 %v1527
        %v5711 = vunpack.c.h.b16 %v1527
        %v5712 = vunpack.c.l.b16 %v1528
        %v5713 = vunpack.c.h.b16 %v1528
        %v5714 = vunpack.c.l.b16 %v1529
        %v5715 = vunpack.c.h.b16 %v1529
        %v5716 = vunpack.c.l.b16 %v1530
        %v5717 = vunpack.c.h.b16 %v1530
        %v5718 = vunpack.c.l.b16 %v1531
        %v5719 = vunpack.c.h.b16 %v1531
        %v5720 = vunpack.c.l.b16 %v1532
        %v5721 = vunpack.c.h.b16 %v1532
        %v5722 = vunpack.c.l.b16 %v1533
        %v5723 = vunpack.c.h.b16 %v1533
        %v5724 = vunpack.c.l.b16 %v1534
        %v5725 = vunpack.c.h.b16 %v1534
        %v5726 = vunpack.c.l.b16 %v1535
        %v5727 = vunpack.c.h.b16 %v1535
        %v5728 = vunpack.c.l.b16 %v1536
        %v5729 = vunpack.c.h.b16 %v1536
        %v5730 = vunpack.c.l.b16 %v1537
        %v5731 = vunpack.c.h.b16 %v1537
        %v5732 = vunpack.c.l.b16 %v1538
        %v5733 = vunpack.c.h.b16 %v1538
        %v5734 = vunpack.c.l.b16 %v1539
        %v5735 = vunpack.c.h.b16 %v1539
        %v5736 = vunpack.c.l.b16 %v1540
        %v5737 = vunpack.c.h.b16 %v1540
        %v5738 = vunpack.c.l.b16 %v1541
        %v5739 = vunpack.c.h.b16 %v1541
        %v5740 = vunpack.c.l.b16 %v1542
        %v5741 = vunpack.c.h.b16 %v1542
        %v5742 = vunpack.c.l.b16 %v1543
        %v5743 = vunpack.c.h.b16 %v1543
        %v5744 = vunpack.c.l.b16 %v1544
        %v5745 = vunpack.c.h.b16 %v1544
        %v5746 = vunpack.c.l.b16 %v1545
        %v5747 = vunpack.c.h.b16 %v1545
        %v5748 = vunpack.c.l.b16 %v1546
        %v5749 = vunpack.c.h.b16 %v1546
        %v5750 = vunpack.c.l.b16 %v1547
        %v5751 = vunpack.c.h.b16 %v1547
        %v5752 = vunpack.c.l.b16 %v1548
        %v5753 = vunpack.c.h.b16 %v1548
        %v5754 = vunpack.c.l.b16 %v1549
        %v5755 = vunpack.c.h.b16 %v1549
        %v5756 = vunpack.c.l.b16 %v1550
        %v5757 = vunpack.c.h.b16 %v1550
        %v5758 = vunpack.c.l.b16 %v1551
        %v5759 = vunpack.c.h.b16 %v1551
        %v5760 = vunpack.c.l.b16 %v1552
        %v5761 = vunpack.c.h.b16 %v1552
        %v5762 = vunpack.c.l.b16 %v1553
        %v5763 = vunpack.c.h.b16 %v1553
        %v5764 = vunpack.c.l.b16 %v1554
        %v5765 = vunpack.c.h.b16 %v1554
        %v5766 = vunpack.c.l.b16 %v1555
        %v5767 = vunpack.c.h.b16 %v1555
        %v5768 = vunpack.c.l.b16 %v1556
        %v5769 = vunpack.c.h.b16 %v1556
        %v5770 = vunpack.c.l.b16 %v1557
        %v5771 = vunpack.c.h.b16 %v1557
        %v5772 = vunpack.c.l.b16 %v1558
        %v5773 = vunpack.c.h.b16 %v1558
        %v5774 = vunpack.c.l.b16 %v1559
        %v5775 = vunpack.c.h.b16 %v1559
        %v5776 = vunpack.c.l.b16 %v1560
        %v5777 = vunpack.c.h.b16 %v1560
        %v5778 = vunpack.c.l.b16 %v1561
        %v5779 = vunpack.c.h.b16 %v1561
        %v5780 = vunpack.c.l.b16 %v1562
        %v5781 = vunpack.c.h.b16 %v1562
        %v5782 = vunpack.c.l.b16 %v1563
        %v5783 = vunpack.c.h.b16 %v1563
        %v5784 = vunpack.c.l.b16 %v1564
        %v5785 = vunpack.c.h.b16 %v1564
        %v5786 = vunpack.c.l.b16 %v1565
        %v5787 = vunpack.c.h.b16 %v1565
        %v5788 = vunpack.c.l.b16 %v1566
        %v5789 = vunpack.c.h.b16 %v1566
        %v5790 = vunpack.c.l.b16 %v1567
        %v5791 = vunpack.c.h.b16 %v1567
        %v5792 = vunpack.c.l.b16 %v1568
        %v5793 = vunpack.c.h.b16 %v1568
        %v5794 = vunpack.c.l.b16 %v1569
        %v5795 = vunpack.c.h.b16 %v1569
        %v5796 = vunpack.c.l.b16 %v1570
        %v5797 = vunpack.c.h.b16 %v1570
        %v5798 = vunpack.c.l.b16 %v1571
        %v5799 = vunpack.c.h.b16 %v1571
        %v5800 = vunpack.c.l.b16 %v1572
        %v5801 = vunpack.c.h.b16 %v1572
        %v5802 = vunpack.c.l.b16 %v1573
        %v5803 = vunpack.c.h.b16 %v1573
        %v5804 = vunpack.c.l.b16 %v1574
        %v5805 = vunpack.c.h.b16 %v1574
        %v5806 = vunpack.c.l.b16 %v1575
        %v5807 = vunpack.c.h.b16 %v1575
        %v5808 = vunpack.c.l.b16 %v1576
        %v5809 = vunpack.c.h.b16 %v1576
        %v5810 = vunpack.c.l.b16 %v1577
        %v5811 = vunpack.c.h.b16 %v1577
        %v5812 = vunpack.c.l.b16 %v1578
        %v5813 = vunpack.c.h.b16 %v1578
        %v5814 = vunpack.c.l.b16 %v1579
        %v5815 = vunpack.c.h.b16 %v1579
        %v5816 = vunpack.c.l.b16 %v1580
        %v5817 = vunpack.c.h.b16 %v1580
        %v5818 = vunpack.c.l.b16 %v1581
        %v5819 = vunpack.c.h.b16 %v1581
        %v5820 = vunpack.c.l.b16 %v1582
        %v5821 = vunpack.c.h.b16 %v1582
        %v5822 = vunpack.c.l.b16 %v1583
        %v5823 = vunpack.c.h.b16 %v1583
        %v5824 = vunpack.c.l.b16 %v1584
        %v5825 = vunpack.c.h.b16 %v1584
        %v5826 = vunpack.c.l.b16 %v1585
        %v5827 = vunpack.c.h.b16 %v1585
        %v5828 = vunpack.c.l.b16 %v1586
        %v5829 = vunpack.c.h.b16 %v1586
        %v5830 = vunpack.c.l.b16 %v1587
        %v5831 = vunpack.c.h.b16 %v1587
        %v5832 = vunpack.c.l.b16 %v1588
        %v5833 = vunpack.c.h.b16 %v1588
        %v5834 = vunpack.c.l.b16 %v1589
        %v5835 = vunpack.c.h.b16 %v1589
        %v5836 = vunpack.c.l.b16 %v1590
        %v5837 = vunpack.c.h.b16 %v1590
        %v5838 = vunpack.c.l.b16 %v1591
        %v5839 = vunpack.c.h.b16 %v1591
        %v5840 = vunpack.c.l.b16 %v1592
        %v5841 = vunpack.c.h.b16 %v1592
        %v5842 = vunpack.c.l.b16 %v1593
        %v5843 = vunpack.c.h.b16 %v1593
        %v5844 = vunpack.c.l.b16 %v1594
        %v5845 = vunpack.c.h.b16 %v1594
        %v5846 = vunpack.c.l.b16 %v1595
        %v5847 = vunpack.c.h.b16 %v1595
        %v5848 = vunpack.c.l.b16 %v1596
        %v5849 = vunpack.c.h.b16 %v1596
        %v5850 = vunpack.c.l.b16 %v1597
        %v5851 = vunpack.c.h.b16 %v1597
        %v5852 = vunpack.c.l.b16 %v1598
        %v5853 = vunpack.c.h.b16 %v1598
        %v5854 = vunpack.c.l.b16 %v1599
        %v5855 = vunpack.c.h.b16 %v1599
        %v5856 = vunpack.c.l.b16 %v1600
        %v5857 = vunpack.c.h.b16 %v1600
        %v5858 = vunpack.c.l.b16 %v1601
        %v5859 = vunpack.c.h.b16 %v1601
        %v5860 = vunpack.c.l.b16 %v1602
        %v5861 = vunpack.c.h.b16 %v1602
        %v5862 = vunpack.c.l.b16 %v1603
        %v5863 = vunpack.c.h.b16 %v1603
        %v5864 = vunpack.c.l.b16 %v1604
        %v5865 = vunpack.c.h.b16 %v1604
        %v5866 = vunpack.c.l.b16 %v1605
        %v5867 = vunpack.c.h.b16 %v1605
        %v5868 = vunpack.c.l.b16 %v1606
        %v5869 = vunpack.c.h.b16 %v1606
        %v5870 = vunpack.c.l.b16 %v1607
        %v5871 = vunpack.c.h.b16 %v1607
        %v5872 = vunpack.c.l.b16 %v1608
        %v5873 = vunpack.c.h.b16 %v1608
        %v5874 = vunpack.c.l.b16 %v1609
        %v5875 = vunpack.c.h.b16 %v1609
        %v5876 = vunpack.c.l.b16 %v1610
        %v5877 = vunpack.c.h.b16 %v1610
        %v5878 = vunpack.c.l.b16 %v1611
        %v5879 = vunpack.c.h.b16 %v1611
        %v5880 = vunpack.c.l.b16 %v1612
        %v5881 = vunpack.c.h.b16 %v1612
        %v5882 = vunpack.c.l.b16 %v1613
        %v5883 = vunpack.c.h.b16 %v1613
        %v5884 = vunpack.c.l.b16 %v1614
        %v5885 = vunpack.c.h.b16 %v1614
        %v5886 = vunpack.c.l.b16 %v1615
        %v5887 = vunpack.c.h.b16 %v1615
        %v5888 = vunpack.c.l.b16 %v1616
        %v5889 = vunpack.c.h.b16 %v1616
        %v5890 = vunpack.c.l.b16 %v1617
        %v5891 = vunpack.c.h.b16 %v1617
        %v5892 = vunpack.c.l.b16 %v1618
        %v5893 = vunpack.c.h.b16 %v1618
        %v5894 = vunpack.c.l.b16 %v1619
        %v5895 = vunpack.c.h.b16 %v1619
        %v5896 = vunpack.c.l.b16 %v1620
        %v5897 = vunpack.c.h.b16 %v1620
        %v5898 = vunpack.c.l.b16 %v1621
        %v5899 = vunpack.c.h.b16 %v1621
        %v5900 = vunpack.c.l.b16 %v1622
        %v5901 = vunpack.c.h.b16 %v1622
        %v5902 = vunpack.c.l.b16 %v1623
        %v5903 = vunpack.c.h.b16 %v1623
        %v5904 = vunpack.c.l.b16 %v1624
        %v5905 = vunpack.c.h.b16 %v1624
        %v5906 = vunpack.c.l.b16 %v1625
        %v5907 = vunpack.c.h.b16 %v1625
        %v5908 = vunpack.c.l.b16 %v1626
        %v5909 = vunpack.c.h.b16 %v1626
        %v5910 = vunpack.c.l.b16 %v1627
        %v5911 = vunpack.c.h.b16 %v1627
        %v5912 = vunpack.c.l.b16 %v1628
        %v5913 = vunpack.c.h.b16 %v1628
        %v5914 = vunpack.c.l.b16 %v1629
        %v5915 = vunpack.c.h.b16 %v1629
        %v5916 = vunpack.c.l.b16 %v1630
        %v5917 = vunpack.c.h.b16 %v1630
        %v5918 = vunpack.c.l.b16 %v1631
        %v5919 = vunpack.c.h.b16 %v1631
        %v5920 = vunpack.c.l.b16 %v1632
        %v5921 = vunpack.c.h.b16 %v1632
        %v5922 = vunpack.c.l.b16 %v1633
        %v5923 = vunpack.c.h.b16 %v1633
        %v5924 = vunpack.c.l.b16 %v1634
        %v5925 = vunpack.c.h.b16 %v1634
        %v5926 = vunpack.c.l.b16 %v1635
        %v5927 = vunpack.c.h.b16 %v1635
        %v5928 = vunpack.c.l.b16 %v1636
        %v5929 = vunpack.c.h.b16 %v1636
        %v5930 = vunpack.c.l.b16 %v1637
        %v5931 = vunpack.c.h.b16 %v1637
        %v5932 = vunpack.c.l.b16 %v1638
        %v5933 = vunpack.c.h.b16 %v1638
        %v5934 = vunpack.c.l.b16 %v1639
        %v5935 = vunpack.c.h.b16 %v1639
        %v5936 = vunpack.c.l.b16 %v1640
        %v5937 = vunpack.c.h.b16 %v1640
        %v5938 = vunpack.c.l.b16 %v1641
        %v5939 = vunpack.c.h.b16 %v1641
        %v5940 = vunpack.c.l.b16 %v1642
        %v5941 = vunpack.c.h.b16 %v1642
        %v5942 = vunpack.c.l.b16 %v1643
        %v5943 = vunpack.c.h.b16 %v1643
        %v5944 = vunpack.c.l.b16 %v1644
        %v5945 = vunpack.c.h.b16 %v1644
        %v5946 = vunpack.c.l.b16 %v1645
        %v5947 = vunpack.c.h.b16 %v1645
        %v5948 = vunpack.c.l.b16 %v1646
        %v5949 = vunpack.c.h.b16 %v1646
        %v5950 = vunpack.c.l.b16 %v1647
        %v5951 = vunpack.c.h.b16 %v1647
        %v5952 = vunpack.c.l.b16 %v1648
        %v5953 = vunpack.c.h.b16 %v1648
        %v5954 = vunpack.c.l.b16 %v1649
        %v5955 = vunpack.c.h.b16 %v1649
        %v5956 = vunpack.c.l.b16 %v1650
        %v5957 = vunpack.c.h.b16 %v1650
        %v5958 = vunpack.c.l.b16 %v1651
        %v5959 = vunpack.c.h.b16 %v1651
        %v5960 = vunpack.c.l.b16 %v1652
        %v5961 = vunpack.c.h.b16 %v1652
        %v5962 = vunpack.c.l.b16 %v1653
        %v5963 = vunpack.c.h.b16 %v1653
        %v5964 = vunpack.c.l.b16 %v1654
        %v5965 = vunpack.c.h.b16 %v1654
        %v5966 = vunpack.c.l.b16 %v1655
        %v5967 = vunpack.c.h.b16 %v1655
        %v5968 = vunpack.c.l.b16 %v1656
        %v5969 = vunpack.c.h.b16 %v1656
        %v5970 = vunpack.c.l.b16 %v1657
        %v5971 = vunpack.c.h.b16 %v1657
        %v5972 = vunpack.c.l.b16 %v1658
        %v5973 = vunpack.c.h.b16 %v1658
        %v5974 = vunpack.c.l.b16 %v1659
        %v5975 = vunpack.c.h.b16 %v1659
        %v5976 = vunpack.c.l.b16 %v1660
        %v5977 = vunpack.c.h.b16 %v1660
        %v5978 = vunpack.c.l.b16 %v1661
        %v5979 = vunpack.c.h.b16 %v1661
        %v5980 = vunpack.c.l.b16 %v1662
        %v5981 = vunpack.c.h.b16 %v1662
        %v5982 = vunpack.c.l.b16 %v1663
        %v5983 = vunpack.c.h.b16 %v1663
        %v5984 = vunpack.c.l.b16 %v1664
        %v5985 = vunpack.c.h.b16 %v1664
        %v5986 = vunpack.c.l.b16 %v1665
        %v5987 = vunpack.c.h.b16 %v1665
        %v5988 = vunpack.c.l.b16 %v1666
        %v5989 = vunpack.c.h.b16 %v1666
        %v5990 = vunpack.c.l.b16 %v1667
        %v5991 = vunpack.c.h.b16 %v1667
        %v5992 = vunpack.c.l.b16 %v1668
        %v5993 = vunpack.c.h.b16 %v1668
        %v5994 = vunpack.c.l.b16 %v1669
        %v5995 = vunpack.c.h.b16 %v1669
        %v5996 = vunpack.c.l.b16 %v1670
        %v5997 = vunpack.c.h.b16 %v1670
        %v5998 = vunpack.c.l.b16 %v1671
        %v5999 = vunpack.c.h.b16 %v1671
        %v6000 = vunpack.c.l.b16 %v1672
        %v6001 = vunpack.c.h.b16 %v1672
        %v6002 = vunpack.c.l.b16 %v1673
        %v6003 = vunpack.c.h.b16 %v1673
        %v6004 = vunpack.c.l.b16 %v1674
        %v6005 = vunpack.c.h.b16 %v1674
        %v6006 = vunpack.c.l.b16 %v1675
        %v6007 = vunpack.c.h.b16 %v1675
        %v6008 = vunpack.c.l.b16 %v1676
        %v6009 = vunpack.c.h.b16 %v1676
        %v6010 = vunpack.c.l.b16 %v1677
        %v6011 = vunpack.c.h.b16 %v1677
        %v6012 = vunpack.c.l.b16 %v1678
        %v6013 = vunpack.c.h.b16 %v1678
        %v6014 = vunpack.c.l.b16 %v1679
        %v6015 = vunpack.c.h.b16 %v1679
        %v6016 = vunpack.c.l.b16 %v1680
        %v6017 = vunpack.c.h.b16 %v1680
        %v6018 = vunpack.c.l.b16 %v1681
        %v6019 = vunpack.c.h.b16 %v1681
        %v6020 = vunpack.c.l.b16 %v1682
        %v6021 = vunpack.c.h.b16 %v1682
        %v6022 = vunpack.c.l.b16 %v1683
        %v6023 = vunpack.c.h.b16 %v1683
        %v6024 = vunpack.c.l.b16 %v1684
        %v6025 = vunpack.c.h.b16 %v1684
        %v6026 = vunpack.c.l.b16 %v1685
        %v6027 = vunpack.c.h.b16 %v1685
        %v6028 = vunpack.c.l.b16 %v1686
        %v6029 = vunpack.c.h.b16 %v1686
        %v6030 = vunpack.c.l.b16 %v1687
        %v6031 = vunpack.c.h.b16 %v1687
        %v6032 = vunpack.c.l.b16 %v1688
        %v6033 = vunpack.c.h.b16 %v1688
        %v6034 = vunpack.c.l.b16 %v1689
        %v6035 = vunpack.c.h.b16 %v1689
        %v6036 = vunpack.c.l.b16 %v1690
        %v6037 = vunpack.c.h.b16 %v1690
        %v6038 = vunpack.c.l.b16 %v1691
        %v6039 = vunpack.c.h.b16 %v1691
        %v6040 = vunpack.c.l.b16 %v1692
        %v6041 = vunpack.c.h.b16 %v1692
        %v6042 = vunpack.c.l.b16 %v1693
        %v6043 = vunpack.c.h.b16 %v1693
        %v6044 = vunpack.c.l.b16 %v1694
        %v6045 = vunpack.c.h.b16 %v1694
        %v6046 = vunpack.c.l.b16 %v1695
        %v6047 = vunpack.c.h.b16 %v1695
        %v6048 = vunpack.c.l.b16 %v1696
        %v6049 = vunpack.c.h.b16 %v1696
        %v6050 = vunpack.c.l.b16 %v1697
        %v6051 = vunpack.c.h.b16 %v1697
        %v6052 = vunpack.c.l.b16 %v1698
        %v6053 = vunpack.c.h.b16 %v1698
        %v6054 = vunpack.c.l.b16 %v1699
        %v6055 = vunpack.c.h.b16 %v1699
        %v6056 = vunpack.c.l.b16 %v1700
        %v6057 = vunpack.c.h.b16 %v1700
        %v6058 = vunpack.c.l.b16 %v1701
        %v6059 = vunpack.c.h.b16 %v1701
        %v6060 = vunpack.c.l.b16 %v1702
        %v6061 = vunpack.c.h.b16 %v1702
        %v6062 = vunpack.c.l.b16 %v1703
        %v6063 = vunpack.c.h.b16 %v1703
        %v6064 = vunpack.c.l.b16 %v1704
        %v6065 = vunpack.c.h.b16 %v1704
        %v6066 = vunpack.c.l.b16 %v1705
        %v6067 = vunpack.c.h.b16 %v1705
        %v6068 = vunpack.c.l.b16 %v1706
        %v6069 = vunpack.c.h.b16 %v1706
        %v6070 = vunpack.c.l.b16 %v1707
        %v6071 = vunpack.c.h.b16 %v1707
        %v6072 = vunpack.c.l.b16 %v1708
        %v6073 = vunpack.c.h.b16 %v1708
        %v6074 = vunpack.c.l.b16 %v1709
        %v6075 = vunpack.c.h.b16 %v1709
        %v6076 = vunpack.c.l.b16 %v1710
        %v6077 = vunpack.c.h.b16 %v1710
        %v6078 = vunpack.c.l.b16 %v1711
        %v6079 = vunpack.c.h.b16 %v1711
        %v6080 = vunpack.c.l.b16 %v1712
        %v6081 = vunpack.c.h.b16 %v1712
        %v6082 = vunpack.c.l.b16 %v1713
        %v6083 = vunpack.c.h.b16 %v1713
        %v6084 = vunpack.c.l.b16 %v1714
        %v6085 = vunpack.c.h.b16 %v1714
        %v6086 = vunpack.c.l.b16 %v1715
        %v6087 = vunpack.c.h.b16 %v1715
        %v6088 = vunpack.c.l.b16 %v1716
        %v6089 = vunpack.c.h.b16 %v1716
        %v6090 = vunpack.c.l.b16 %v1717
        %v6091 = vunpack.c.h.b16 %v1717
        %v6092 = vunpack.c.l.b16 %v1718
        %v6093 = vunpack.c.h.b16 %v1718
        %v6094 = vunpack.c.l.b16 %v1719
        %v6095 = vunpack.c.h.b16 %v1719
        %v6096 = vunpack.c.l.b16 %v1720
        %v6097 = vunpack.c.h.b16 %v1720
        %v6098 = vunpack.c.l.b16 %v1721
        %v6099 = vunpack.c.h.b16 %v1721
        %v6100 = vunpack.c.l.b16 %v1722
        %v6101 = vunpack.c.h.b16 %v1722
        %v6102 = vunpack.c.l.b16 %v1723
        %v6103 = vunpack.c.h.b16 %v1723
        %v6104 = vunpack.c.l.b16 %v1724
        %v6105 = vunpack.c.h.b16 %v1724
        %v6106 = vunpack.c.l.b16 %v1725
        %v6107 = vunpack.c.h.b16 %v1725
        %v6108 = vunpack.c.l.b16 %v1726
        %v6109 = vunpack.c.h.b16 %v1726
        %v6110 = vunpack.c.l.b16 %v1727
        %v6111 = vunpack.c.h.b16 %v1727
        %v6112 = vunpack.c.l.b16 %v1728
        %v6113 = vunpack.c.h.b16 %v1728
        %v6114 = vunpack.c.l.b16 %v1729
        %v6115 = vunpack.c.h.b16 %v1729
        %v6116 = vunpack.c.l.b16 %v1730
        %v6117 = vunpack.c.h.b16 %v1730
        %v6118 = vunpack.c.l.b16 %v1731
        %v6119 = vunpack.c.h.b16 %v1731
        %v6120 = vunpack.c.l.b16 %v1732
        %v6121 = vunpack.c.h.b16 %v1732
        %v6122 = vunpack.c.l.b16 %v1733
        %v6123 = vunpack.c.h.b16 %v1733
        %v6124 = vunpack.c.l.b16 %v1734
        %v6125 = vunpack.c.h.b16 %v1734
        %v6126 = vunpack.c.l.b16 %v1735
        %v6127 = vunpack.c.h.b16 %v1735
        %v6128 = vunpack.c.l.b16 %v1736
        %v6129 = vunpack.c.h.b16 %v1736
        %v6130 = vunpack.c.l.b16 %v1737
        %v6131 = vunpack.c.h.b16 %v1737
        %v6132 = vunpack.c.l.b16 %v1738
        %v6133 = vunpack.c.h.b16 %v1738
        %v6134 = vunpack.c.l.b16 %v1739
        %v6135 = vunpack.c.h.b16 %v1739
        %v6136 = vunpack.c.l.b16 %v1740
        %v6137 = vunpack.c.h.b16 %v1740
        %v6138 = vunpack.c.l.b16 %v1741
        %v6139 = vunpack.c.h.b16 %v1741
        %v6140 = vunpack.c.l.b16 %v1742
        %v6141 = vunpack.c.h.b16 %v1742
        %v6142 = vunpack.c.l.b16 %v1743
        %v6143 = vunpack.c.h.b16 %v1743
        %v6144 = vunpack.c.l.b16 %v1744
        %v6145 = vunpack.c.h.b16 %v1744
        %v6146 = vunpack.c.l.b16 %v1745
        %v6147 = vunpack.c.h.b16 %v1745
        %v6148 = vunpack.c.l.b16 %v1746
        %v6149 = vunpack.c.h.b16 %v1746
        %v6150 = vunpack.c.l.b16 %v1747
        %v6151 = vunpack.c.h.b16 %v1747
        %v6152 = vunpack.c.l.b16 %v1748
        %v6153 = vunpack.c.h.b16 %v1748
        %v6154 = vunpack.c.l.b16 %v1749
        %v6155 = vunpack.c.h.b16 %v1749
        %v6156 = vunpack.c.l.b16 %v1750
        %v6157 = vunpack.c.h.b16 %v1750
        %v6158 = vunpack.c.l.b16 %v1751
        %v6159 = vunpack.c.h.b16 %v1751
        %v6160 = vunpack.c.l.b16 %v1752
        %v6161 = vunpack.c.h.b16 %v1752
        %v6162 = vunpack.c.l.b16 %v1753
        %v6163 = vunpack.c.h.b16 %v1753
        %v6164 = vunpack.c.l.b16 %v1754
        %v6165 = vunpack.c.h.b16 %v1754
        %v6166 = vunpack.c.l.b16 %v1755
        %v6167 = vunpack.c.h.b16 %v1755
        %v6168 = vunpack.c.l.b16 %v1756
        %v6169 = vunpack.c.h.b16 %v1756
        %v6170 = vunpack.c.l.b16 %v1757
        %v6171 = vunpack.c.h.b16 %v1757
        %v6172 = vunpack.c.l.b16 %v1758
        %v6173 = vunpack.c.h.b16 %v1758
        %v6174 = vunpack.c.l.b16 %v1759
        %v6175 = vunpack.c.h.b16 %v1759
        %v6176 = vunpack.c.l.b16 %v1760
        %v6177 = vunpack.c.h.b16 %v1760
        %v6178 = vunpack.c.l.b16 %v1761
        %v6179 = vunpack.c.h.b16 %v1761
        %v6180 = vunpack.c.l.b16 %v1762
        %v6181 = vunpack.c.h.b16 %v1762
        %v6182 = vunpack.c.l.b16 %v1763
        %v6183 = vunpack.c.h.b16 %v1763
        %v6184 = vunpack.c.l.b16 %v1764
        %v6185 = vunpack.c.h.b16 %v1764
        %v6186 = vunpack.c.l.b16 %v1765
        %v6187 = vunpack.c.h.b16 %v1765
        %v6188 = vunpack.c.l.b16 %v1766
        %v6189 = vunpack.c.h.b16 %v1766
        %v6190 = vunpack.c.l.b16 %v1767
        %v6191 = vunpack.c.h.b16 %v1767
        %v6192 = vunpack.c.l.b16 %v1768
        %v6193 = vunpack.c.h.b16 %v1768
        %v6194 = vunpack.c.l.b16 %v1769
        %v6195 = vunpack.c.h.b16 %v1769
        %v6196 = vunpack.c.l.b16 %v1770
        %v6197 = vunpack.c.h.b16 %v1770
        %v6198 = vunpack.c.l.b16 %v1771
        %v6199 = vunpack.c.h.b16 %v1771
        %v6200 = vunpack.c.l.b16 %v1772
        %v6201 = vunpack.c.h.b16 %v1772
        %v6202 = vunpack.c.l.b16 %v1773
        %v6203 = vunpack.c.h.b16 %v1773
        %v6204 = vunpack.c.l.b16 %v1774
        %v6205 = vunpack.c.h.b16 %v1774
        %v6206 = vunpack.c.l.b16 %v1775
        %v6207 = vunpack.c.h.b16 %v1775
        %v6208 = vunpack.c.l.b16 %v1776
        %v6209 = vunpack.c.h.b16 %v1776
        %v6210 = vunpack.c.l.b16 %v1777
        %v6211 = vunpack.c.h.b16 %v1777
        %v6212 = vunpack.c.l.b16 %v1778
        %v6213 = vunpack.c.h.b16 %v1778
        %v6214 = vunpack.c.l.b16 %v1779
        %v6215 = vunpack.c.h.b16 %v1779
        %v6216 = vunpack.c.l.b16 %v1780
        %v6217 = vunpack.c.h.b16 %v1780
        %v6218 = vunpack.c.l.b16 %v1781
        %v6219 = vunpack.c.h.b16 %v1781
        %v6220 = vunpack.c.l.b16 %v1782
        %v6221 = vunpack.c.h.b16 %v1782
        %v6222 = vunpack.c.l.b16 %v1783
        %v6223 = vunpack.c.h.b16 %v1783
        %v6224 = vunpack.c.l.b16 %v1784
        %v6225 = vunpack.c.h.b16 %v1784
        %v6226 = vunpack.c.l.b16 %v1785
        %v6227 = vunpack.c.h.b16 %v1785
        %v6228 = vunpack.c.l.b16 %v1786
        %v6229 = vunpack.c.h.b16 %v1786
        %v6230 = vunpack.c.l.b16 %v1787
        %v6231 = vunpack.c.h.b16 %v1787
        %v6232 = vunpack.c.l.b16 %v1788
        %v6233 = vunpack.c.h.b16 %v1788
        %v6234 = vunpack.c.l.b16 %v1789
        %v6235 = vunpack.c.h.b16 %v1789
        %v6236 = vunpack.c.l.b16 %v1790
        %v6237 = vunpack.c.h.b16 %v1790
        %v6238 = vunpack.c.l.b16 %v1791
        %v6239 = vunpack.c.h.b16 %v1791
        %v6240 = vunpack.c.l.b16 %v1792
        %v6241 = vunpack.c.h.b16 %v1792
        %v6242 = vunpack.c.l.b16 %v1793
        %v6243 = vunpack.c.h.b16 %v1793
        %v6244 = vunpack.c.l.b16 %v1794
        %v6245 = vunpack.c.h.b16 %v1794
        %v6246 = vunpack.c.l.b16 %v1795
        %v6247 = vunpack.c.h.b16 %v1795
        %v6248 = vunpack.c.l.b16 %v1796
        %v6249 = vunpack.c.h.b16 %v1796
        %v6250 = vunpack.c.l.b16 %v1797
        %v6251 = vunpack.c.h.b16 %v1797
        %v6252 = vunpack.c.l.b16 %v1798
        %v6253 = vunpack.c.h.b16 %v1798
        %v6254 = vunpack.c.l.b16 %v1799
        %v6255 = vunpack.c.h.b16 %v1799
        %v6256 = vunpack.c.l.b16 %v1800
        %v6257 = vunpack.c.h.b16 %v1800
        %v6258 = vunpack.c.l.b16 %v1801
        %v6259 = vunpack.c.h.b16 %v1801
        %v6260 = vunpack.c.l.b16 %v1802
        %v6261 = vunpack.c.h.b16 %v1802
        %v6262 = vunpack.c.l.b16 %v1803
        %v6263 = vunpack.c.h.b16 %v1803
        %v6264 = vunpack.c.l.b16 %v1804
        %v6265 = vunpack.c.h.b16 %v1804
        %v6266 = vunpack.c.l.b16 %v1805
        %v6267 = vunpack.c.h.b16 %v1805
        %v6268 = vunpack.c.l.b16 %v1806
        %v6269 = vunpack.c.h.b16 %v1806
        %v6270 = vunpack.c.l.b16 %v1807
        %v6271 = vunpack.c.h.b16 %v1807
        %v6272 = vunpack.c.l.b16 %v1808
        %v6273 = vunpack.c.h.b16 %v1808
        %v6274 = vunpack.c.l.b16 %v1809
        %v6275 = vunpack.c.h.b16 %v1809
        %v6276 = vunpack.c.l.b16 %v1810
        %v6277 = vunpack.c.h.b16 %v1810
        %v6278 = vunpack.c.l.b16 %v1811
        %v6279 = vunpack.c.h.b16 %v1811
        %v6280 = vunpack.c.l.b16 %v1812
        %v6281 = vunpack.c.h.b16 %v1812
        %v6282 = vunpack.c.l.b16 %v1813
        %v6283 = vunpack.c.h.b16 %v1813
        %v6284 = vunpack.c.l.b16 %v1814
        %v6285 = vunpack.c.h.b16 %v1814
        %v6286 = vunpack.c.l.b16 %v1815
        %v6287 = vunpack.c.h.b16 %v1815
        %v6288 = vunpack.c.l.b16 %v1816
        %v6289 = vunpack.c.h.b16 %v1816
        %v6290 = vunpack.c.l.b16 %v1817
        %v6291 = vunpack.c.h.b16 %v1817
        %v6292 = vunpack.c.l.b16 %v1818
        %v6293 = vunpack.c.h.b16 %v1818
        %v6294 = vunpack.c.l.b16 %v1819
        %v6295 = vunpack.c.h.b16 %v1819
        %v6296 = vunpack.c.l.b16 %v1820
        %v6297 = vunpack.c.h.b16 %v1820
        %v6298 = vunpack.c.l.b16 %v1821
        %v6299 = vunpack.c.h.b16 %v1821
        %v6300 = vunpack.c.l.b16 %v1822
        %v6301 = vunpack.c.h.b16 %v1822
        %v6302 = vunpack.c.l.b16 %v1823
        %v6303 = vunpack.c.h.b16 %v1823
        %v6304 = vunpack.c.l.b16 %v1824
        %v6305 = vunpack.c.h.b16 %v1824
        %v6306 = vunpack.c.l.b16 %v1825
        %v6307 = vunpack.c.h.b16 %v1825
        %v6308 = vunpack.c.l.b16 %v1826
        %v6309 = vunpack.c.h.b16 %v1826
        %v6310 = vunpack.c.l.b16 %v1827
        %v6311 = vunpack.c.h.b16 %v1827
        %v6312 = vunpack.c.l.b16 %v1828
        %v6313 = vunpack.c.h.b16 %v1828
        %v6314 = vunpack.c.l.b16 %v1829
        %v6315 = vunpack.c.h.b16 %v1829
        %v6316 = vunpack.c.l.b16 %v1830
        %v6317 = vunpack.c.h.b16 %v1830
        %v6318 = vunpack.c.l.b16 %v1831
        %v6319 = vunpack.c.h.b16 %v1831
        %v6320 = vunpack.c.l.b16 %v1832
        %v6321 = vunpack.c.h.b16 %v1832
        %v6322 = vunpack.c.l.b16 %v1833
        %v6323 = vunpack.c.h.b16 %v1833
        %v6324 = vunpack.c.l.b16 %v1834
        %v6325 = vunpack.c.h.b16 %v1834
        %v6326 = vunpack.c.l.b16 %v1835
        %v6327 = vunpack.c.h.b16 %v1835
        %v6328 = vunpack.c.l.b16 %v1836
        %v6329 = vunpack.c.h.b16 %v1836
        %v6330 = vunpack.c.l.b16 %v1837
        %v6331 = vunpack.c.h.b16 %v1837
        %v6332 = vunpack.c.l.b16 %v1838
        %v6333 = vunpack.c.h.b16 %v1838
        %v6334 = vunpack.c.l.b16 %v1839
        %v6335 = vunpack.c.h.b16 %v1839
        %v6336 = vunpack.c.l.b16 %v1840
        %v6337 = vunpack.c.h.b16 %v1840
        %v6338 = vunpack.c.l.b16 %v1841
        %v6339 = vunpack.c.h.b16 %v1841
        %v6340 = vunpack.c.l.b16 %v1842
        %v6341 = vunpack.c.h.b16 %v1842
        %v6342 = vunpack.c.l.b16 %v1843
        %v6343 = vunpack.c.h.b16 %v1843
        %v6344 = vunpack.c.l.b16 %v1844
        %v6345 = vunpack.c.h.b16 %v1844
        %v6346 = vunpack.c.l.b16 %v1845
        %v6347 = vunpack.c.h.b16 %v1845
        %v6348 = vunpack.c.l.b16 %v1846
        %v6349 = vunpack.c.h.b16 %v1846
        %v6350 = vunpack.c.l.b16 %v1847
        %v6351 = vunpack.c.h.b16 %v1847
        %v6352 = vunpack.c.l.b16 %v1848
        %v6353 = vunpack.c.h.b16 %v1848
        %v6354 = vunpack.c.l.b16 %v1849
        %v6355 = vunpack.c.h.b16 %v1849
        %v6356 = vunpack.c.l.b16 %v1850
        %v6357 = vunpack.c.h.b16 %v1850
        %v6358 = vunpack.c.l.b16 %v1851
        %v6359 = vunpack.c.h.b16 %v1851
        %v6360 = vunpack.c.l.b16 %v1852
        %v6361 = vunpack.c.h.b16 %v1852
        %v6362 = vunpack.c.l.b16 %v1853
        %v6363 = vunpack.c.h.b16 %v1853
        %v6364 = vunpack.c.l.b16 %v1854
        %v6365 = vunpack.c.h.b16 %v1854
        %v6366 = vunpack.c.l.b16 %v1855
        %v6367 = vunpack.c.h.b16 %v1855
        %v6368 = vunpack.c.l.b16 %v1856
        %v6369 = vunpack.c.h.b16 %v1856
        %v6370 = vunpack.c.l.b16 %v1857
        %v6371 = vunpack.c.h.b16 %v1857
        %v6372 = vunpack.c.l.b16 %v1858
        %v6373 = vunpack.c.h.b16 %v1858
        %v6374 = vunpack.c.l.b16 %v1859
        %v6375 = vunpack.c.h.b16 %v1859
        %v6376 = vunpack.c.l.b16 %v1860
        %v6377 = vunpack.c.h.b16 %v1860
        %v6378 = vunpack.c.l.b16 %v1861
        %v6379 = vunpack.c.h.b16 %v1861
        %v6380 = vunpack.c.l.b16 %v1862
        %v6381 = vunpack.c.h.b16 %v1862
        %v6382 = vunpack.c.l.b16 %v1863
        %v6383 = vunpack.c.h.b16 %v1863
        %v6384 = vunpack.c.l.b16 %v1864
        %v6385 = vunpack.c.h.b16 %v1864
        %v6386 = vunpack.c.l.b16 %v1865
        %v6387 = vunpack.c.h.b16 %v1865
        %v6388 = vunpack.c.l.b16 %v1866
        %v6389 = vunpack.c.h.b16 %v1866
        %v6390 = vunpack.c.l.b16 %v1867
        %v6391 = vunpack.c.h.b16 %v1867
        %v6392 = vunpack.c.l.b16 %v1868
        %v6393 = vunpack.c.h.b16 %v1868
        %v6394 = vunpack.c.l.b16 %v1869
        %v6395 = vunpack.c.h.b16 %v1869
        %v6396 = vunpack.c.l.b16 %v1870
        %v6397 = vunpack.c.h.b16 %v1870
        %v6398 = vunpack.c.l.b16 %v1871
        %v6399 = vunpack.c.h.b16 %v1871
        %v6400 = vunpack.c.l.b16 %v1872
        %v6401 = vunpack.c.h.b16 %v1872
        %v6402 = vunpack.c.l.b16 %v1873
        %v6403 = vunpack.c.h.b16 %v1873
        %v6404 = vunpack.c.l.b16 %v1874
        %v6405 = vunpack.c.h.b16 %v1874
        %v6406 = vunpack.c.l.b16 %v1875
        %v6407 = vunpack.c.h.b16 %v1875
        %v6408 = vunpack.c.l.b16 %v1876
        %v6409 = vunpack.c.h.b16 %v1876
        %v6410 = vunpack.c.l.b16 %v1877
        %v6411 = vunpack.c.h.b16 %v1877
        %v6412 = vunpack.c.l.b16 %v1878
        %v6413 = vunpack.c.h.b16 %v1878
        %v6414 = vunpack.c.l.b16 %v1879
        %v6415 = vunpack.c.h.b16 %v1879
        %v6416 = vunpack.c.l.b16 %v1880
        %v6417 = vunpack.c.h.b16 %v1880
        %v6418 = vunpack.c.l.b16 %v1881
        %v6419 = vunpack.c.h.b16 %v1881
        %v6420 = vunpack.c.l.b16 %v1882
        %v6421 = vunpack.c.h.b16 %v1882
        %v6422 = vunpack.c.l.b16 %v1883
        %v6423 = vunpack.c.h.b16 %v1883
        %v6424 = vunpack.c.l.b16 %v1884
        %v6425 = vunpack.c.h.b16 %v1884
        %v6426 = vunpack.c.l.b16 %v1885
        %v6427 = vunpack.c.h.b16 %v1885
        %v6428 = vunpack.c.l.b16 %v1886
        %v6429 = vunpack.c.h.b16 %v1886
        %v6430 = vunpack.c.l.b16 %v1887
        %v6431 = vunpack.c.h.b16 %v1887
        %v6432 = vunpack.c.l.b16 %v1888
        %v6433 = vunpack.c.h.b16 %v1888
        %v6434 = vunpack.c.l.b16 %v1889
        %v6435 = vunpack.c.h.b16 %v1889
        %v6436 = vunpack.c.l.b16 %v1890
        %v6437 = vunpack.c.h.b16 %v1890
        %v6438 = vunpack.c.l.b16 %v1891
        %v6439 = vunpack.c.h.b16 %v1891
        %v6440 = vunpack.c.l.b16 %v1892
        %v6441 = vunpack.c.h.b16 %v1892
        %v6442 = vunpack.c.l.b16 %v1893
        %v6443 = vunpack.c.h.b16 %v1893
        %v6444 = vunpack.c.l.b16 %v1894
        %v6445 = vunpack.c.h.b16 %v1894
        %v6446 = vunpack.c.l.b16 %v1895
        %v6447 = vunpack.c.h.b16 %v1895
        %v6448 = vunpack.c.l.b16 %v1896
        %v6449 = vunpack.c.h.b16 %v1896
        %v6450 = vunpack.c.l.b16 %v1897
        %v6451 = vunpack.c.h.b16 %v1897
        %v6452 = vunpack.c.l.b16 %v1898
        %v6453 = vunpack.c.h.b16 %v1898
        %v6454 = vunpack.c.l.b16 %v1899
        %v6455 = vunpack.c.h.b16 %v1899
        %v6456 = vunpack.c.l.b16 %v1900
        %v6457 = vunpack.c.h.b16 %v1900
        %v6458 = vunpack.c.l.b16 %v1901
        %v6459 = vunpack.c.h.b16 %v1901
        %v6460 = vunpack.c.l.b16 %v1902
        %v6461 = vunpack.c.h.b16 %v1902
        %v6462 = vunpack.c.l.b16 %v1903
        %v6463 = vunpack.c.h.b16 %v1903
        %v6464 = vunpack.c.l.b16 %v1904
        %v6465 = vunpack.c.h.b16 %v1904
        %v6466 = vunpack.c.l.b16 %v1905
        %v6467 = vunpack.c.h.b16 %v1905
        %v6468 = vunpack.c.l.b16 %v1906
        %v6469 = vunpack.c.h.b16 %v1906
        %v6470 = vunpack.c.l.b16 %v1907
        %v6471 = vunpack.c.h.b16 %v1907
        %v6472 = vunpack.c.l.b16 %v1908
        %v6473 = vunpack.c.h.b16 %v1908
        %v6474 = vunpack.c.l.b16 %v1909
        %v6475 = vunpack.c.h.b16 %v1909
        %v6476 = vunpack.c.l.b16 %v1910
        %v6477 = vunpack.c.h.b16 %v1910
        %v6478 = vunpack.c.l.b16 %v1911
        %v6479 = vunpack.c.h.b16 %v1911
        %v6480 = vunpack.c.l.b16 %v1912
        %v6481 = vunpack.c.h.b16 %v1912
        %v6482 = vunpack.c.l.b16 %v1913
        %v6483 = vunpack.c.h.b16 %v1913
        %v6484 = vunpack.c.l.b16 %v1914
        %v6485 = vunpack.c.h.b16 %v1914
        %v6486 = vunpack.c.l.b16 %v1915
        %v6487 = vunpack.c.h.b16 %v1915
        %v6488 = vunpack.c.l.b16 %v1916
        %v6489 = vunpack.c.h.b16 %v1916
        %v6490 = vunpack.c.l.b16 %v1917
        %v6491 = vunpack.c.h.b16 %v1917
        %v6492 = vunpack.c.l.b16 %v1918
        %v6493 = vunpack.c.h.b16 %v1918
        %v6494 = vunpack.c.l.b16 %v1919
        %v6495 = vunpack.c.h.b16 %v1919
        %v6496 = vunpack.c.l.b16 %v1920
        %v6497 = vunpack.c.h.b16 %v1920
        %v6498 = vunpack.c.l.b16 %v1921
        %v6499 = vunpack.c.h.b16 %v1921
        %v6500 = vunpack.c.l.b16 %v1922
        %v6501 = vunpack.c.h.b16 %v1922
        %v6502 = vunpack.c.l.b16 %v1923
        %v6503 = vunpack.c.h.b16 %v1923
        %v6504 = vunpack.c.l.b16 %v1924
        %v6505 = vunpack.c.h.b16 %v1924
        %v6506 = vunpack.c.l.b16 %v1925
        %v6507 = vunpack.c.h.b16 %v1925
        %v6508 = vunpack.c.l.b16 %v1926
        %v6509 = vunpack.c.h.b16 %v1926
        %v6510 = vunpack.c.l.b16 %v1927
        %v6511 = vunpack.c.h.b16 %v1927
        %v6512 = vunpack.c.l.b16 %v1928
        %v6513 = vunpack.c.h.b16 %v1928
        %v6514 = vunpack.c.l.b16 %v1929
        %v6515 = vunpack.c.h.b16 %v1929
        %v6516 = vunpack.c.l.b16 %v1930
        %v6517 = vunpack.c.h.b16 %v1930
        %v6518 = vunpack.c.l.b16 %v1931
        %v6519 = vunpack.c.h.b16 %v1931
        %v6520 = vunpack.c.l.b16 %v1932
        %v6521 = vunpack.c.h.b16 %v1932
        %v6522 = vunpack.c.l.b16 %v1933
        %v6523 = vunpack.c.h.b16 %v1933
        %v6524 = vunpack.c.l.b16 %v1934
        %v6525 = vunpack.c.h.b16 %v1934
        %v6526 = vunpack.c.l.b16 %v1935
        %v6527 = vunpack.c.h.b16 %v1935
        %v6528 = vunpack.c.l.b16 %v1936
        %v6529 = vunpack.c.h.b16 %v1936
        %v6530 = vunpack.c.l.b16 %v1937
        %v6531 = vunpack.c.h.b16 %v1937
        %v6532 = vunpack.c.l.b16 %v1938
        %v6533 = vunpack.c.h.b16 %v1938
        %v6534 = vunpack.c.l.b16 %v1939
        %v6535 = vunpack.c.h.b16 %v1939
        %v6536 = vunpack.c.l.b16 %v1940
        %v6537 = vunpack.c.h.b16 %v1940
        %v6538 = vunpack.c.l.b16 %v1941
        %v6539 = vunpack.c.h.b16 %v1941
        %v6540 = vunpack.c.l.b16 %v1942
        %v6541 = vunpack.c.h.b16 %v1942
        %v6542 = vunpack.c.l.b16 %v1943
        %v6543 = vunpack.c.h.b16 %v1943
        %v6544 = vunpack.c.l.b16 %v1944
        %v6545 = vunpack.c.h.b16 %v1944
        %v6546 = vunpack.c.l.b16 %v1945
        %v6547 = vunpack.c.h.b16 %v1945
        %v6548 = vunpack.c.l.b16 %v1946
        %v6549 = vunpack.c.h.b16 %v1946
        %v6550 = vunpack.c.l.b16 %v1947
        %v6551 = vunpack.c.h.b16 %v1947
        %v6552 = vunpack.c.l.b16 %v1948
        %v6553 = vunpack.c.h.b16 %v1948
        %v6554 = vunpack.c.l.b16 %v1949
        %v6555 = vunpack.c.h.b16 %v1949
        %v6556 = vunpack.c.l.b16 %v1950
        %v6557 = vunpack.c.h.b16 %v1950
        %v6558 = vunpack.c.l.b16 %v1951
        %v6559 = vunpack.c.h.b16 %v1951
        %v6560 = vpack.c.b16 %v3500, %v3488
        %v6561 = vpack.c.b16 %v3501, %v3489
        %v6562 = vpack.c.b16 %v3502, %v3490
        %v6563 = vpack.c.b16 %v3503, %v3491
        %v6564 = vpack.c.b16 %v3504, %v3492
        %v6565 = vpack.c.b16 %v3505, %v3493
        %v6566 = vpack.c.b16 %v3506, %v3494
        %v6567 = vpack.c.b16 %v3507, %v3495
        %v6568 = vpack.c.b16 %v3508, %v3496
        %v6569 = vpack.c.b16 %v3509, %v3497
        %v6570 = vpack.c.b16 %v3510, %v3498
        %v6571 = vpack.c.b16 %v3511, %v3499
        %v6572 = vpack.c.b16 %v3524, %v3512
        %v6573 = vpack.c.b16 %v3525, %v3513
        %v6574 = vpack.c.b16 %v3526, %v3514
        %v6575 = vpack.c.b16 %v3527, %v3515
        %v6576 = vpack.c.b16 %v3528, %v3516
        %v6577 = vpack.c.b16 %v3529, %v3517
        %v6578 = vpack.c.b16 %v3530, %v3518
        %v6579 = vpack.c.b16 %v3531, %v3519
        %v6580 = vpack.c.b16 %v3532, %v3520
        %v6581 = vpack.c.b16 %v3533, %v3521
        %v6582 = vpack.c.b16 %v3534, %v3522
        %v6583 = vpack.c.b16 %v3535, %v3523
        %v6584 = vpack.c.b16 %v3548, %v3536
        %v6585 = vpack.c.b16 %v3549, %v3537
        %v6586 = vpack.c.b16 %v3550, %v3538
        %v6587 = vpack.c.b16 %v3551, %v3539
        %v6588 = vpack.c.b16 %v3552, %v3540
        %v6589 = vpack.c.b16 %v3553, %v3541
        %v6590 = vpack.c.b16 %v3554, %v3542
        %v6591 = vpack.c.b16 %v3555, %v3543
        %v6592 = vpack.c.b16 %v3556, %v3544
        %v6593 = vpack.c.b16 %v3557, %v3545
        %v6594 = vpack.c.b16 %v3558, %v3546
        %v6595 = vpack.c.b16 %v3559, %v3547
        %v6596 = vpack.c.b16 %v3572, %v3560
        %v6597 = vpack.c.b16 %v3573, %v3561
        %v6598 = vpack.c.b16 %v3574, %v3562
        %v6599 = vpack.c.b16 %v3575, %v3563
        %v6600 = vpack.c.b16 %v3576, %v3564
        %v6601 = vpack.c.b16 %v3577, %v3565
        %v6602 = vpack.c.b16 %v3578, %v3566
        %v6603 = vpack.c.b16 %v3579, %v3567
        %v6604 = vpack.c.b16 %v3580, %v3568
        %v6605 = vpack.c.b16 %v3581, %v3569
        %v6606 = vpack.c.b16 %v3582, %v3570
        %v6607 = vpack.c.b16 %v3583, %v3571
        %v6608 = vpack.c.b16 %v3596, %v3584
        %v6609 = vpack.c.b16 %v3597, %v3585
        %v6610 = vpack.c.b16 %v3598, %v3586
        %v6611 = vpack.c.b16 %v3599, %v3587
        %v6612 = vpack.c.b16 %v3600, %v3588
        %v6613 = vpack.c.b16 %v3601, %v3589
        %v6614 = vpack.c.b16 %v3602, %v3590
        %v6615 = vpack.c.b16 %v3603, %v3591
        %v6616 = vpack.c.b16 %v3604, %v3592
        %v6617 = vpack.c.b16 %v3605, %v3593
        %v6618 = vpack.c.b16 %v3606, %v3594
        %v6619 = vpack.c.b16 %v3607, %v3595
        %v6620 = vpack.c.b16 %v3620, %v3608
        %v6621 = vpack.c.b16 %v3621, %v3609
        %v6622 = vpack.c.b16 %v3622, %v3610
        %v6623 = vpack.c.b16 %v3623, %v3611
        %v6624 = vpack.c.b16 %v3624, %v3612
        %v6625 = vpack.c.b16 %v3625, %v3613
        %v6626 = vpack.c.b16 %v3626, %v3614
        %v6627 = vpack.c.b16 %v3627, %v3615
        %v6628 = vpack.c.b16 %v3628, %v3616
        %v6629 = vpack.c.b16 %v3629, %v3617
        %v6630 = vpack.c.b16 %v3630, %v3618
        %v6631 = vpack.c.b16 %v3631, %v3619
        %v6632 = vpack.c.b16 %v3644, %v3632
        %v6633 = vpack.c.b16 %v3645, %v3633
        %v6634 = vpack.c.b16 %v3646, %v3634
        %v6635 = vpack.c.b16 %v3647, %v3635
        %v6636 = vpack.c.b16 %v3648, %v3636
        %v6637 = vpack.c.b16 %v3649, %v3637
        %v6638 = vpack.c.b16 %v3650, %v3638
        %v6639 = vpack.c.b16 %v3651, %v3639
        %v6640 = vpack.c.b16 %v3652, %v3640
        %v6641 = vpack.c.b16 %v3653, %v3641
        %v6642 = vpack.c.b16 %v3654, %v3642
        %v6643 = vpack.c.b16 %v3655, %v3643
        %v6644 = vpack.c.b16 %v3668, %v3656
        %v6645 = vpack.c.b16 %v3669, %v3657
        %v6646 = vpack.c.b16 %v3670, %v3658
        %v6647 = vpack.c.b16 %v3671, %v3659
        %v6648 = vpack.c.b16 %v3672, %v3660
        %v6649 = vpack.c.b16 %v3673, %v3661
        %v6650 = vpack.c.b16 %v3674, %v3662
        %v6651 = vpack.c.b16 %v3675, %v3663
        %v6652 = vpack.c.b16 %v3676, %v3664
        %v6653 = vpack.c.b16 %v3677, %v3665
        %v6654 = vpack.c.b16 %v3678, %v3666
        %v6655 = vpack.c.b16 %v3679, %v3667
        %v6656 = vpack.c.b16 %v3692, %v3680
        %v6657 = vpack.c.b16 %v3693, %v3681
        %v6658 = vpack.c.b16 %v3694, %v3682
        %v6659 = vpack.c.b16 %v3695, %v3683
        %v6660 = vpack.c.b16 %v3696, %v3684
        %v6661 = vpack.c.b16 %v3697, %v3685
        %v6662 = vpack.c.b16 %v3698, %v3686
        %v6663 = vpack.c.b16 %v3699, %v3687
        %v6664 = vpack.c.b16 %v3700, %v3688
        %v6665 = vpack.c.b16 %v3701, %v3689
        %v6666 = vpack.c.b16 %v3702, %v3690
        %v6667 = vpack.c.b16 %v3703, %v3691
        %v6668 = vpack.c.b16 %v3716, %v3704
        %v6669 = vpack.c.b16 %v3717, %v3705
        %v6670 = vpack.c.b16 %v3718, %v3706
        %v6671 = vpack.c.b16 %v3719, %v3707
        %v6672 = vpack.c.b16 %v3720, %v3708
        %v6673 = vpack.c.b16 %v3721, %v3709
        %v6674 = vpack.c.b16 %v3722, %v3710
        %v6675 = vpack.c.b16 %v3723, %v3711
        %v6676 = vpack.c.b16 %v3724, %v3712
        %v6677 = vpack.c.b16 %v3725, %v3713
        %v6678 = vpack.c.b16 %v3726, %v3714
        %v6679 = vpack.c.b16 %v3727, %v3715
        %v6680 = vpack.c.b16 %v3740, %v3728
        %v6681 = vpack.c.b16 %v3741, %v3729
        %v6682 = vpack.c.b16 %v3742, %v3730
        %v6683 = vpack.c.b16 %v3743, %v3731
        %v6684 = vpack.c.b16 %v3744, %v3732
        %v6685 = vpack.c.b16 %v3745, %v3733
        %v6686 = vpack.c.b16 %v3746, %v3734
        %v6687 = vpack.c.b16 %v3747, %v3735
        %v6688 = vpack.c.b16 %v3748, %v3736
        %v6689 = vpack.c.b16 %v3749, %v3737
        %v6690 = vpack.c.b16 %v3750, %v3738
        %v6691 = vpack.c.b16 %v3751, %v3739
        %v6692 = vpack.c.b16 %v3764, %v3752
        %v6693 = vpack.c.b16 %v3765, %v3753
        %v6694 = vpack.c.b16 %v3766, %v3754
        %v6695 = vpack.c.b16 %v3767, %v3755
        %v6696 = vpack.c.b16 %v3768, %v3756
        %v6697 = vpack.c.b16 %v3769, %v3757
        %v6698 = vpack.c.b16 %v3770, %v3758
        %v6699 = vpack.c.b16 %v3771, %v3759
        %v6700 = vpack.c.b16 %v3772, %v3760
        %v6701 = vpack.c.b16 %v3773, %v3761
        %v6702 = vpack.c.b16 %v3774, %v3762
        %v6703 = vpack.c.b16 %v3775, %v3763
        %v6704 = vpack.c.b16 %v3788, %v3776
        %v6705 = vpack.c.b16 %v3789, %v3777
        %v6706 = vpack.c.b16 %v3790, %v3778
        %v6707 = vpack.c.b16 %v3791, %v3779
        %v6708 = vpack.c.b16 %v3792, %v3780
        %v6709 = vpack.c.b16 %v3793, %v3781
        %v6710 = vpack.c.b16 %v3794, %v3782
        %v6711 = vpack.c.b16 %v3795, %v3783
        %v6712 = vpack.c.b16 %v3796, %v3784
        %v6713 = vpack.c.b16 %v3797, %v3785
        %v6714 = vpack.c.b16 %v3798, %v3786
        %v6715 = vpack.c.b16 %v3799, %v3787
        %v6716 = vpack.c.b16 %v3812, %v3800
        %v6717 = vpack.c.b16 %v3813, %v3801
        %v6718 = vpack.c.b16 %v3814, %v3802
        %v6719 = vpack.c.b16 %v3815, %v3803
        %v6720 = vpack.c.b16 %v3816, %v3804
        %v6721 = vpack.c.b16 %v3817, %v3805
        %v6722 = vpack.c.b16 %v3818, %v3806
        %v6723 = vpack.c.b16 %v3819, %v3807
        %v6724 = vpack.c.b16 %v3820, %v3808
        %v6725 = vpack.c.b16 %v3821, %v3809
        %v6726 = vpack.c.b16 %v3822, %v3810
        %v6727 = vpack.c.b16 %v3823, %v3811
        %v6728 = vpack.c.b16 %v3836, %v3824
        %v6729 = vpack.c.b16 %v3837, %v3825
        %v6730 = vpack.c.b16 %v3838, %v3826
        %v6731 = vpack.c.b16 %v3839, %v3827
        %v6732 = vpack.c.b16 %v3840, %v3828
        %v6733 = vpack.c.b16 %v3841, %v3829
        %v6734 = vpack.c.b16 %v3842, %v3830
        %v6735 = vpack.c.b16 %v3843, %v3831
        %v6736 = vpack.c.b16 %v3844, %v3832
        %v6737 = vpack.c.b16 %v3845, %v3833
        %v6738 = vpack.c.b16 %v3846, %v3834
        %v6739 = vpack.c.b16 %v3847, %v3835
        %v6740 = vpack.c.b16 %v3860, %v3848
        %v6741 = vpack.c.b16 %v3861, %v3849
        %v6742 = vpack.c.b16 %v3862, %v3850
        %v6743 = vpack.c.b16 %v3863, %v3851
        %v6744 = vpack.c.b16 %v3864, %v3852
        %v6745 = vpack.c.b16 %v3865, %v3853
        %v6746 = vpack.c.b16 %v3866, %v3854
        %v6747 = vpack.c.b16 %v3867, %v3855
        %v6748 = vpack.c.b16 %v3868, %v3856
        %v6749 = vpack.c.b16 %v3869, %v3857
        %v6750 = vpack.c.b16 %v3870, %v3858
        %v6751 = vpack.c.b16 %v3871, %v3859
        %v6752 = vpack.c.b16 %v3884, %v3872
        %v6753 = vpack.c.b16 %v3885, %v3873
        %v6754 = vpack.c.b16 %v3886, %v3874
        %v6755 = vpack.c.b16 %v3887, %v3875
        %v6756 = vpack.c.b16 %v3888, %v3876
        %v6757 = vpack.c.b16 %v3889, %v3877
        %v6758 = vpack.c.b16 %v3890, %v3878
        %v6759 = vpack.c.b16 %v3891, %v3879
        %v6760 = vpack.c.b16 %v3892, %v3880
        %v6761 = vpack.c.b16 %v3893, %v3881
        %v6762 = vpack.c.b16 %v3894, %v3882
        %v6763 = vpack.c.b16 %v3895, %v3883
        %v6764 = vpack.c.b16 %v3908, %v3896
        %v6765 = vpack.c.b16 %v3909, %v3897
        %v6766 = vpack.c.b16 %v3910, %v3898
        %v6767 = vpack.c.b16 %v3911, %v3899
        %v6768 = vpack.c.b16 %v3912, %v3900
        %v6769 = vpack.c.b16 %v3913, %v3901
        %v6770 = vpack.c.b16 %v3914, %v3902
        %v6771 = vpack.c.b16 %v3915, %v3903
        %v6772 = vpack.c.b16 %v3916, %v3904
        %v6773 = vpack.c.b16 %v3917, %v3905
        %v6774 = vpack.c.b16 %v3918, %v3906
        %v6775 = vpack.c.b16 %v3919, %v3907
        %v6776 = vpack.c.b16 %v3932, %v3920
        %v6777 = vpack.c.b16 %v3933, %v3921
        %v6778 = vpack.c.b16 %v3934, %v3922
        %v6779 = vpack.c.b16 %v3935, %v3923
        %v6780 = vpack.c.b16 %v3936, %v3924
        %v6781 = vpack.c.b16 %v3937, %v3925
        %v6782 = vpack.c.b16 %v3938, %v3926
        %v6783 = vpack.c.b16 %v3939, %v3927
        %v6784 = vpack.c.b16 %v3940, %v3928
        %v6785 = vpack.c.b16 %v3941, %v3929
        %v6786 = vpack.c.b16 %v3942, %v3930
        %v6787 = vpack.c.b16 %v3943, %v3931
        %v6788 = vpack.c.b16 %v3956, %v3944
        %v6789 = vpack.c.b16 %v3957, %v3945
        %v6790 = vpack.c.b16 %v3958, %v3946
        %v6791 = vpack.c.b16 %v3959, %v3947
        %v6792 = vpack.c.b16 %v3960, %v3948
        %v6793 = vpack.c.b16 %v3961, %v3949
        %v6794 = vpack.c.b16 %v3962, %v3950
        %v6795 = vpack.c.b16 %v3963, %v3951
        %v6796 = vpack.c.b16 %v3964, %v3952
        %v6797 = vpack.c.b16 %v3965, %v3953
        %v6798 = vpack.c.b16 %v3966, %v3954
        %v6799 = vpack.c.b16 %v3967, %v3955
        %v6800 = vpack.c.b16 %v3980, %v3968
        %v6801 = vpack.c.b16 %v3981, %v3969
        %v6802 = vpack.c.b16 %v3982, %v3970
        %v6803 = vpack.c.b16 %v3983, %v3971
        %v6804 = vpack.c.b16 %v3984, %v3972
        %v6805 = vpack.c.b16 %v3985, %v3973
        %v6806 = vpack.c.b16 %v3986, %v3974
        %v6807 = vpack.c.b16 %v3987, %v3975
        %v6808 = vpack.c.b16 %v3988, %v3976
        %v6809 = vpack.c.b16 %v3989, %v3977
        %v6810 = vpack.c.b16 %v3990, %v3978
        %v6811 = vpack.c.b16 %v3991, %v3979
        %v6812 = vpack.c.b16 %v4004, %v3992
        %v6813 = vpack.c.b16 %v4005, %v3993
        %v6814 = vpack.c.b16 %v4006, %v3994
        %v6815 = vpack.c.b16 %v4007, %v3995
        %v6816 = vpack.c.b16 %v4008, %v3996
        %v6817 = vpack.c.b16 %v4009, %v3997
        %v6818 = vpack.c.b16 %v4010, %v3998
        %v6819 = vpack.c.b16 %v4011, %v3999
        %v6820 = vpack.c.b16 %v4012, %v4000
        %v6821 = vpack.c.b16 %v4013, %v4001
        %v6822 = vpack.c.b16 %v4014, %v4002
        %v6823 = vpack.c.b16 %v4015, %v4003
        %v6824 = vpack.c.b16 %v4028, %v4016
        %v6825 = vpack.c.b16 %v4029, %v4017
        %v6826 = vpack.c.b16 %v4030, %v4018
        %v6827 = vpack.c.b16 %v4031, %v4019
        %v6828 = vpack.c.b16 %v4032, %v4020
        %v6829 = vpack.c.b16 %v4033, %v4021
        %v6830 = vpack.c.b16 %v4034, %v4022
        %v6831 = vpack.c.b16 %v4035, %v4023
        %v6832 = vpack.c.b16 %v4036, %v4024
        %v6833 = vpack.c.b16 %v4037, %v4025
        %v6834 = vpack.c.b16 %v4038, %v4026
        %v6835 = vpack.c.b16 %v4039, %v4027
        %v6836 = vpack.c.b16 %v4052, %v4040
        %v6837 = vpack.c.b16 %v4053, %v4041
        %v6838 = vpack.c.b16 %v4054, %v4042
        %v6839 = vpack.c.b16 %v4055, %v4043
        %v6840 = vpack.c.b16 %v4056, %v4044
        %v6841 = vpack.c.b16 %v4057, %v4045
        %v6842 = vpack.c.b16 %v4058, %v4046
        %v6843 = vpack.c.b16 %v4059, %v4047
        %v6844 = vpack.c.b16 %v4060, %v4048
        %v6845 = vpack.c.b16 %v4061, %v4049
        %v6846 = vpack.c.b16 %v4062, %v4050
        %v6847 = vpack.c.b16 %v4063, %v4051
        %v6848 = vpack.c.b16 %v4076, %v4064
        %v6849 = vpack.c.b16 %v4077, %v4065
        %v6850 = vpack.c.b16 %v4078, %v4066
        %v6851 = vpack.c.b16 %v4079, %v4067
        %v6852 = vpack.c.b16 %v4080, %v4068
        %v6853 = vpack.c.b16 %v4081, %v4069
        %v6854 = vpack.c.b16 %v4082, %v4070
        %v6855 = vpack.c.b16 %v4083, %v4071
        %v6856 = vpack.c.b16 %v4084, %v4072
        %v6857 = vpack.c.b16 %v4085, %v4073
        %v6858 = vpack.c.b16 %v4086, %v4074
        %v6859 = vpack.c.b16 %v4087, %v4075
        %v6860 = vpack.c.b16 %v4100, %v4088
        %v6861 = vpack.c.b16 %v4101, %v4089
        %v6862 = vpack.c.b16 %v4102, %v4090
        %v6863 = vpack.c.b16 %v4103, %v4091
        %v6864 = vpack.c.b16 %v4104, %v4092
        %v6865 = vpack.c.b16 %v4105, %v4093
        %v6866 = vpack.c.b16 %v4106, %v4094
        %v6867 = vpack.c.b16 %v4107, %v4095
        %v6868 = vpack.c.b16 %v4108, %v4096
        %v6869 = vpack.c.b16 %v4109, %v4097
        %v6870 = vpack.c.b16 %v4110, %v4098
        %v6871 = vpack.c.b16 %v4111, %v4099
        %v6872 = vpack.c.b16 %v4124, %v4112
        %v6873 = vpack.c.b16 %v4125, %v4113
        %v6874 = vpack.c.b16 %v4126, %v4114
        %v6875 = vpack.c.b16 %v4127, %v4115
        %v6876 = vpack.c.b16 %v4128, %v4116
        %v6877 = vpack.c.b16 %v4129, %v4117
        %v6878 = vpack.c.b16 %v4130, %v4118
        %v6879 = vpack.c.b16 %v4131, %v4119
        %v6880 = vpack.c.b16 %v4132, %v4120
        %v6881 = vpack.c.b16 %v4133, %v4121
        %v6882 = vpack.c.b16 %v4134, %v4122
        %v6883 = vpack.c.b16 %v4135, %v4123
        %v6884 = vpack.c.b16 %v4148, %v4136
        %v6885 = vpack.c.b16 %v4149, %v4137
        %v6886 = vpack.c.b16 %v4150, %v4138
        %v6887 = vpack.c.b16 %v4151, %v4139
        %v6888 = vpack.c.b16 %v4152, %v4140
        %v6889 = vpack.c.b16 %v4153, %v4141
        %v6890 = vpack.c.b16 %v4154, %v4142
        %v6891 = vpack.c.b16 %v4155, %v4143
        %v6892 = vpack.c.b16 %v4156, %v4144
        %v6893 = vpack.c.b16 %v4157, %v4145
        %v6894 = vpack.c.b16 %v4158, %v4146
        %v6895 = vpack.c.b16 %v4159, %v4147
        %v6896 = vpack.c.b16 %v4172, %v4160
        %v6897 = vpack.c.b16 %v4173, %v4161
        %v6898 = vpack.c.b16 %v4174, %v4162
        %v6899 = vpack.c.b16 %v4175, %v4163
        %v6900 = vpack.c.b16 %v4176, %v4164
        %v6901 = vpack.c.b16 %v4177, %v4165
        %v6902 = vpack.c.b16 %v4178, %v4166
        %v6903 = vpack.c.b16 %v4179, %v4167
        %v6904 = vpack.c.b16 %v4180, %v4168
        %v6905 = vpack.c.b16 %v4181, %v4169
        %v6906 = vpack.c.b16 %v4182, %v4170
        %v6907 = vpack.c.b16 %v4183, %v4171
        %v6908 = vpack.c.b16 %v4196, %v4184
        %v6909 = vpack.c.b16 %v4197, %v4185
        %v6910 = vpack.c.b16 %v4198, %v4186
        %v6911 = vpack.c.b16 %v4199, %v4187
        %v6912 = vpack.c.b16 %v4200, %v4188
        %v6913 = vpack.c.b16 %v4201, %v4189
        %v6914 = vpack.c.b16 %v4202, %v4190
        %v6915 = vpack.c.b16 %v4203, %v4191
        %v6916 = vpack.c.b16 %v4204, %v4192
        %v6917 = vpack.c.b16 %v4205, %v4193
        %v6918 = vpack.c.b16 %v4206, %v4194
        %v6919 = vpack.c.b16 %v4207, %v4195
        %v6920 = vpack.c.b16 %v4220, %v4208
        %v6921 = vpack.c.b16 %v4221, %v4209
        %v6922 = vpack.c.b16 %v4222, %v4210
        %v6923 = vpack.c.b16 %v4223, %v4211
        %v6924 = vpack.c.b16 %v4224, %v4212
        %v6925 = vpack.c.b16 %v4225, %v4213
        %v6926 = vpack.c.b16 %v4226, %v4214
        %v6927 = vpack.c.b16 %v4227, %v4215
        %v6928 = vpack.c.b16 %v4228, %v4216
        %v6929 = vpack.c.b16 %v4229, %v4217
        %v6930 = vpack.c.b16 %v4230, %v4218
        %v6931 = vpack.c.b16 %v4231, %v4219
        %v6932 = vpack.c.b16 %v4244, %v4232
        %v6933 = vpack.c.b16 %v4245, %v4233
        %v6934 = vpack.c.b16 %v4246, %v4234
        %v6935 = vpack.c.b16 %v4247, %v4235
        %v6936 = vpack.c.b16 %v4248, %v4236
        %v6937 = vpack.c.b16 %v4249, %v4237
        %v6938 = vpack.c.b16 %v4250, %v4238
        %v6939 = vpack.c.b16 %v4251, %v4239
        %v6940 = vpack.c.b16 %v4252, %v4240
        %v6941 = vpack.c.b16 %v4253, %v4241
        %v6942 = vpack.c.b16 %v4254, %v4242
        %v6943 = vpack.c.b16 %v4255, %v4243
        %v6944 = vpack.c.b16 %v4268, %v4256
        %v6945 = vpack.c.b16 %v4269, %v4257
        %v6946 = vpack.c.b16 %v4270, %v4258
        %v6947 = vpack.c.b16 %v4271, %v4259
        %v6948 = vpack.c.b16 %v4272, %v4260
        %v6949 = vpack.c.b16 %v4273, %v4261
        %v6950 = vpack.c.b16 %v4274, %v4262
        %v6951 = vpack.c.b16 %v4275, %v4263
        %v6952 = vpack.c.b16 %v4276, %v4264
        %v6953 = vpack.c.b16 %v4277, %v4265
        %v6954 = vpack.c.b16 %v4278, %v4266
        %v6955 = vpack.c.b16 %v4279, %v4267
        %v6956 = vpack.c.b16 %v4292, %v4280
        %v6957 = vpack.c.b16 %v4293, %v4281
        %v6958 = vpack.c.b16 %v4294, %v4282
        %v6959 = vpack.c.b16 %v4295, %v4283
        %v6960 = vpack.c.b16 %v4296, %v4284
        %v6961 = vpack.c.b16 %v4297, %v4285
        %v6962 = vpack.c.b16 %v4298, %v4286
        %v6963 = vpack.c.b16 %v4299, %v4287
        %v6964 = vpack.c.b16 %v4300, %v4288
        %v6965 = vpack.c.b16 %v4301, %v4289
        %v6966 = vpack.c.b16 %v4302, %v4290
        %v6967 = vpack.c.b16 %v4303, %v4291
        %v6968 = vpack.c.b16 %v4316, %v4304
        %v6969 = vpack.c.b16 %v4317, %v4305
        %v6970 = vpack.c.b16 %v4318, %v4306
        %v6971 = vpack.c.b16 %v4319, %v4307
        %v6972 = vpack.c.b16 %v4320, %v4308
        %v6973 = vpack.c.b16 %v4321, %v4309
        %v6974 = vpack.c.b16 %v4322, %v4310
        %v6975 = vpack.c.b16 %v4323, %v4311
        %v6976 = vpack.c.b16 %v4324, %v4312
        %v6977 = vpack.c.b16 %v4325, %v4313
        %v6978 = vpack.c.b16 %v4326, %v4314
        %v6979 = vpack.c.b16 %v4327, %v4315
        %v6980 = vpack.c.b16 %v4340, %v4328
        %v6981 = vpack.c.b16 %v4341, %v4329
        %v6982 = vpack.c.b16 %v4342, %v4330
        %v6983 = vpack.c.b16 %v4343, %v4331
        %v6984 = vpack.c.b16 %v4344, %v4332
        %v6985 = vpack.c.b16 %v4345, %v4333
        %v6986 = vpack.c.b16 %v4346, %v4334
        %v6987 = vpack.c.b16 %v4347, %v4335
        %v6988 = vpack.c.b16 %v4348, %v4336
        %v6989 = vpack.c.b16 %v4349, %v4337
        %v6990 = vpack.c.b16 %v4350, %v4338
        %v6991 = vpack.c.b16 %v4351, %v4339
        %v6992 = vpack.c.b16 %v4364, %v4352
        %v6993 = vpack.c.b16 %v4365, %v4353
        %v6994 = vpack.c.b16 %v4366, %v4354
        %v6995 = vpack.c.b16 %v4367, %v4355
        %v6996 = vpack.c.b16 %v4368, %v4356
        %v6997 = vpack.c.b16 %v4369, %v4357
        %v6998 = vpack.c.b16 %v4370, %v4358
        %v6999 = vpack.c.b16 %v4371, %v4359
        %v7000 = vpack.c.b16 %v4372, %v4360
        %v7001 = vpack.c.b16 %v4373, %v4361
        %v7002 = vpack.c.b16 %v4374, %v4362
        %v7003 = vpack.c.b16 %v4375, %v4363
        %v7004 = vpack.c.b16 %v4388, %v4376
        %v7005 = vpack.c.b16 %v4389, %v4377
        %v7006 = vpack.c.b16 %v4390, %v4378
        %v7007 = vpack.c.b16 %v4391, %v4379
        %v7008 = vpack.c.b16 %v4392, %v4380
        %v7009 = vpack.c.b16 %v4393, %v4381
        %v7010 = vpack.c.b16 %v4394, %v4382
        %v7011 = vpack.c.b16 %v4395, %v4383
        %v7012 = vpack.c.b16 %v4396, %v4384
        %v7013 = vpack.c.b16 %v4397, %v4385
        %v7014 = vpack.c.b16 %v4398, %v4386
        %v7015 = vpack.c.b16 %v4399, %v4387
        %v7016 = vpack.c.b16 %v4412, %v4400
        %v7017 = vpack.c.b16 %v4413, %v4401
        %v7018 = vpack.c.b16 %v4414, %v4402
        %v7019 = vpack.c.b16 %v4415, %v4403
        %v7020 = vpack.c.b16 %v4416, %v4404
        %v7021 = vpack.c.b16 %v4417, %v4405
        %v7022 = vpack.c.b16 %v4418, %v4406
        %v7023 = vpack.c.b16 %v4419, %v4407
        %v7024 = vpack.c.b16 %v4420, %v4408
        %v7025 = vpack.c.b16 %v4421, %v4409
        %v7026 = vpack.c.b16 %v4422, %v4410
        %v7027 = vpack.c.b16 %v4423, %v4411
        %v7028 = vpack.c.b16 %v4436, %v4424
        %v7029 = vpack.c.b16 %v4437, %v4425
        %v7030 = vpack.c.b16 %v4438, %v4426
        %v7031 = vpack.c.b16 %v4439, %v4427
        %v7032 = vpack.c.b16 %v4440, %v4428
        %v7033 = vpack.c.b16 %v4441, %v4429
        %v7034 = vpack.c.b16 %v4442, %v4430
        %v7035 = vpack.c.b16 %v4443, %v4431
        %v7036 = vpack.c.b16 %v4444, %v4432
        %v7037 = vpack.c.b16 %v4445, %v4433
        %v7038 = vpack.c.b16 %v4446, %v4434
        %v7039 = vpack.c.b16 %v4447, %v4435
        %v7040 = vpack.c.b16 %v4460, %v4448
        %v7041 = vpack.c.b16 %v4461, %v4449
        %v7042 = vpack.c.b16 %v4462, %v4450
        %v7043 = vpack.c.b16 %v4463, %v4451
        %v7044 = vpack.c.b16 %v4464, %v4452
        %v7045 = vpack.c.b16 %v4465, %v4453
        %v7046 = vpack.c.b16 %v4466, %v4454
        %v7047 = vpack.c.b16 %v4467, %v4455
        %v7048 = vpack.c.b16 %v4468, %v4456
        %v7049 = vpack.c.b16 %v4469, %v4457
        %v7050 = vpack.c.b16 %v4470, %v4458
        %v7051 = vpack.c.b16 %v4471, %v4459
        %v7052 = vpack.c.b16 %v4484, %v4472
        %v7053 = vpack.c.b16 %v4485, %v4473
        %v7054 = vpack.c.b16 %v4486, %v4474
        %v7055 = vpack.c.b16 %v4487, %v4475
        %v7056 = vpack.c.b16 %v4488, %v4476
        %v7057 = vpack.c.b16 %v4489, %v4477
        %v7058 = vpack.c.b16 %v4490, %v4478
        %v7059 = vpack.c.b16 %v4491, %v4479
        %v7060 = vpack.c.b16 %v4492, %v4480
        %v7061 = vpack.c.b16 %v4493, %v4481
        %v7062 = vpack.c.b16 %v4494, %v4482
        %v7063 = vpack.c.b16 %v4495, %v4483
        %v7064 = vpack.c.b16 %v4508, %v4496
        %v7065 = vpack.c.b16 %v4509, %v4497
        %v7066 = vpack.c.b16 %v4510, %v4498
        %v7067 = vpack.c.b16 %v4511, %v4499
        %v7068 = vpack.c.b16 %v4512, %v4500
        %v7069 = vpack.c.b16 %v4513, %v4501
        %v7070 = vpack.c.b16 %v4514, %v4502
        %v7071 = vpack.c.b16 %v4515, %v4503
        %v7072 = vpack.c.b16 %v4516, %v4504
        %v7073 = vpack.c.b16 %v4517, %v4505
        %v7074 = vpack.c.b16 %v4518, %v4506
        %v7075 = vpack.c.b16 %v4519, %v4507
        %v7076 = vpack.c.b16 %v4532, %v4520
        %v7077 = vpack.c.b16 %v4533, %v4521
        %v7078 = vpack.c.b16 %v4534, %v4522
        %v7079 = vpack.c.b16 %v4535, %v4523
        %v7080 = vpack.c.b16 %v4536, %v4524
        %v7081 = vpack.c.b16 %v4537, %v4525
        %v7082 = vpack.c.b16 %v4538, %v4526
        %v7083 = vpack.c.b16 %v4539, %v4527
        %v7084 = vpack.c.b16 %v4540, %v4528
        %v7085 = vpack.c.b16 %v4541, %v4529
        %v7086 = vpack.c.b16 %v4542, %v4530
        %v7087 = vpack.c.b16 %v4543, %v4531
        %v7088 = vpack.c.b16 %v4556, %v4544
        %v7089 = vpack.c.b16 %v4557, %v4545
        %v7090 = vpack.c.b16 %v4558, %v4546
        %v7091 = vpack.c.b16 %v4559, %v4547
        %v7092 = vpack.c.b16 %v4560, %v4548
        %v7093 = vpack.c.b16 %v4561, %v4549
        %v7094 = vpack.c.b16 %v4562, %v4550
        %v7095 = vpack.c.b16 %v4563, %v4551
        %v7096 = vpack.c.b16 %v4564, %v4552
        %v7097 = vpack.c.b16 %v4565, %v4553
        %v7098 = vpack.c.b16 %v4566, %v4554
        %v7099 = vpack.c.b16 %v4567, %v4555
        %v7100 = vpack.c.b16 %v4580, %v4568
        %v7101 = vpack.c.b16 %v4581, %v4569
        %v7102 = vpack.c.b16 %v4582, %v4570
        %v7103 = vpack.c.b16 %v4583, %v4571
        %v7104 = vpack.c.b16 %v4584, %v4572
        %v7105 = vpack.c.b16 %v4585, %v4573
        %v7106 = vpack.c.b16 %v4586, %v4574
        %v7107 = vpack.c.b16 %v4587, %v4575
        %v7108 = vpack.c.b16 %v4588, %v4576
        %v7109 = vpack.c.b16 %v4589, %v4577
        %v7110 = vpack.c.b16 %v4590, %v4578
        %v7111 = vpack.c.b16 %v4591, %v4579
        %v7112 = vpack.c.b16 %v4604, %v4592
        %v7113 = vpack.c.b16 %v4605, %v4593
        %v7114 = vpack.c.b16 %v4606, %v4594
        %v7115 = vpack.c.b16 %v4607, %v4595
        %v7116 = vpack.c.b16 %v4608, %v4596
        %v7117 = vpack.c.b16 %v4609, %v4597
        %v7118 = vpack.c.b16 %v4610, %v4598
        %v7119 = vpack.c.b16 %v4611, %v4599
        %v7120 = vpack.c.b16 %v4612, %v4600
        %v7121 = vpack.c.b16 %v4613, %v4601
        %v7122 = vpack.c.b16 %v4614, %v4602
        %v7123 = vpack.c.b16 %v4615, %v4603
        %v7124 = vpack.c.b16 %v4628, %v4616
        %v7125 = vpack.c.b16 %v4629, %v4617
        %v7126 = vpack.c.b16 %v4630, %v4618
        %v7127 = vpack.c.b16 %v4631, %v4619
        %v7128 = vpack.c.b16 %v4632, %v4620
        %v7129 = vpack.c.b16 %v4633, %v4621
        %v7130 = vpack.c.b16 %v4634, %v4622
        %v7131 = vpack.c.b16 %v4635, %v4623
        %v7132 = vpack.c.b16 %v4636, %v4624
        %v7133 = vpack.c.b16 %v4637, %v4625
        %v7134 = vpack.c.b16 %v4638, %v4626
        %v7135 = vpack.c.b16 %v4639, %v4627
        %v7136 = vpack.c.b16 %v4652, %v4640
        %v7137 = vpack.c.b16 %v4653, %v4641
        %v7138 = vpack.c.b16 %v4654, %v4642
        %v7139 = vpack.c.b16 %v4655, %v4643
        %v7140 = vpack.c.b16 %v4656, %v4644
        %v7141 = vpack.c.b16 %v4657, %v4645
        %v7142 = vpack.c.b16 %v4658, %v4646
        %v7143 = vpack.c.b16 %v4659, %v4647
        %v7144 = vpack.c.b16 %v4660, %v4648
        %v7145 = vpack.c.b16 %v4661, %v4649
        %v7146 = vpack.c.b16 %v4662, %v4650
        %v7147 = vpack.c.b16 %v4663, %v4651
        %v7148 = vpack.c.b16 %v4676, %v4664
        %v7149 = vpack.c.b16 %v4677, %v4665
        %v7150 = vpack.c.b16 %v4678, %v4666
        %v7151 = vpack.c.b16 %v4679, %v4667
        %v7152 = vpack.c.b16 %v4680, %v4668
        %v7153 = vpack.c.b16 %v4681, %v4669
        %v7154 = vpack.c.b16 %v4682, %v4670
        %v7155 = vpack.c.b16 %v4683, %v4671
        %v7156 = vpack.c.b16 %v4684, %v4672
        %v7157 = vpack.c.b16 %v4685, %v4673
        %v7158 = vpack.c.b16 %v4686, %v4674
        %v7159 = vpack.c.b16 %v4687, %v4675
        %v7160 = vpack.c.b16 %v4700, %v4688
        %v7161 = vpack.c.b16 %v4701, %v4689
        %v7162 = vpack.c.b16 %v4702, %v4690
        %v7163 = vpack.c.b16 %v4703, %v4691
        %v7164 = vpack.c.b16 %v4704, %v4692
        %v7165 = vpack.c.b16 %v4705, %v4693
        %v7166 = vpack.c.b16 %v4706, %v4694
        %v7167 = vpack.c.b16 %v4707, %v4695
        %v7168 = vpack.c.b16 %v4708, %v4696
        %v7169 = vpack.c.b16 %v4709, %v4697
        %v7170 = vpack.c.b16 %v4710, %v4698
        %v7171 = vpack.c.b16 %v4711, %v4699
        %v7172 = vpack.c.b16 %v4724, %v4712
        %v7173 = vpack.c.b16 %v4725, %v4713
        %v7174 = vpack.c.b16 %v4726, %v4714
        %v7175 = vpack.c.b16 %v4727, %v4715
        %v7176 = vpack.c.b16 %v4728, %v4716
        %v7177 = vpack.c.b16 %v4729, %v4717
        %v7178 = vpack.c.b16 %v4730, %v4718
        %v7179 = vpack.c.b16 %v4731, %v4719
        %v7180 = vpack.c.b16 %v4732, %v4720
        %v7181 = vpack.c.b16 %v4733, %v4721
        %v7182 = vpack.c.b16 %v4734, %v4722
        %v7183 = vpack.c.b16 %v4735, %v4723
        %v7184 = vpack.c.b16 %v4748, %v4736
        %v7185 = vpack.c.b16 %v4749, %v4737
        %v7186 = vpack.c.b16 %v4750, %v4738
        %v7187 = vpack.c.b16 %v4751, %v4739
        %v7188 = vpack.c.b16 %v4752, %v4740
        %v7189 = vpack.c.b16 %v4753, %v4741
        %v7190 = vpack.c.b16 %v4754, %v4742
        %v7191 = vpack.c.b16 %v4755, %v4743
        %v7192 = vpack.c.b16 %v4756, %v4744
        %v7193 = vpack.c.b16 %v4757, %v4745
        %v7194 = vpack.c.b16 %v4758, %v4746
        %v7195 = vpack.c.b16 %v4759, %v4747
        %v7196 = vpack.c.b16 %v4772, %v4760
        %v7197 = vpack.c.b16 %v4773, %v4761
        %v7198 = vpack.c.b16 %v4774, %v4762
        %v7199 = vpack.c.b16 %v4775, %v4763
        %v7200 = vpack.c.b16 %v4776, %v4764
        %v7201 = vpack.c.b16 %v4777, %v4765
        %v7202 = vpack.c.b16 %v4778, %v4766
        %v7203 = vpack.c.b16 %v4779, %v4767
        %v7204 = vpack.c.b16 %v4780, %v4768
        %v7205 = vpack.c.b16 %v4781, %v4769
        %v7206 = vpack.c.b16 %v4782, %v4770
        %v7207 = vpack.c.b16 %v4783, %v4771
        %v7208 = vpack.c.b16 %v4796, %v4784
        %v7209 = vpack.c.b16 %v4797, %v4785
        %v7210 = vpack.c.b16 %v4798, %v4786
        %v7211 = vpack.c.b16 %v4799, %v4787
        %v7212 = vpack.c.b16 %v4800, %v4788
        %v7213 = vpack.c.b16 %v4801, %v4789
        %v7214 = vpack.c.b16 %v4802, %v4790
        %v7215 = vpack.c.b16 %v4803, %v4791
        %v7216 = vpack.c.b16 %v4804, %v4792
        %v7217 = vpack.c.b16 %v4805, %v4793
        %v7218 = vpack.c.b16 %v4806, %v4794
        %v7219 = vpack.c.b16 %v4807, %v4795
        %v7220 = vpack.c.b16 %v4820, %v4808
        %v7221 = vpack.c.b16 %v4821, %v4809
        %v7222 = vpack.c.b16 %v4822, %v4810
        %v7223 = vpack.c.b16 %v4823, %v4811
        %v7224 = vpack.c.b16 %v4824, %v4812
        %v7225 = vpack.c.b16 %v4825, %v4813
        %v7226 = vpack.c.b16 %v4826, %v4814
        %v7227 = vpack.c.b16 %v4827, %v4815
        %v7228 = vpack.c.b16 %v4828, %v4816
        %v7229 = vpack.c.b16 %v4829, %v4817
        %v7230 = vpack.c.b16 %v4830, %v4818
        %v7231 = vpack.c.b16 %v4831, %v4819
        %v7232 = vpack.c.b16 %v4844, %v4832
        %v7233 = vpack.c.b16 %v4845, %v4833
        %v7234 = vpack.c.b16 %v4846, %v4834
        %v7235 = vpack.c.b16 %v4847, %v4835
        %v7236 = vpack.c.b16 %v4848, %v4836
        %v7237 = vpack.c.b16 %v4849, %v4837
        %v7238 = vpack.c.b16 %v4850, %v4838
        %v7239 = vpack.c.b16 %v4851, %v4839
        %v7240 = vpack.c.b16 %v4852, %v4840
        %v7241 = vpack.c.b16 %v4853, %v4841
        %v7242 = vpack.c.b16 %v4854, %v4842
        %v7243 = vpack.c.b16 %v4855, %v4843
        %v7244 = vpack.c.b16 %v4868, %v4856
        %v7245 = vpack.c.b16 %v4869, %v4857
        %v7246 = vpack.c.b16 %v4870, %v4858
        %v7247 = vpack.c.b16 %v4871, %v4859
        %v7248 = vpack.c.b16 %v4872, %v4860
        %v7249 = vpack.c.b16 %v4873, %v4861
        %v7250 = vpack.c.b16 %v4874, %v4862
        %v7251 = vpack.c.b16 %v4875, %v4863
        %v7252 = vpack.c.b16 %v4876, %v4864
        %v7253 = vpack.c.b16 %v4877, %v4865
        %v7254 = vpack.c.b16 %v4878, %v4866
        %v7255 = vpack.c.b16 %v4879, %v4867
        %v7256 = vpack.c.b16 %v4892, %v4880
        %v7257 = vpack.c.b16 %v4893, %v4881
        %v7258 = vpack.c.b16 %v4894, %v4882
        %v7259 = vpack.c.b16 %v4895, %v4883
        %v7260 = vpack.c.b16 %v4896, %v4884
        %v7261 = vpack.c.b16 %v4897, %v4885
        %v7262 = vpack.c.b16 %v4898, %v4886
        %v7263 = vpack.c.b16 %v4899, %v4887
        %v7264 = vpack.c.b16 %v4900, %v4888
        %v7265 = vpack.c.b16 %v4901, %v4889
        %v7266 = vpack.c.b16 %v4902, %v4890
        %v7267 = vpack.c.b16 %v4903, %v4891
        %v7268 = vpack.c.b16 %v4916, %v4904
        %v7269 = vpack.c.b16 %v4917, %v4905
        %v7270 = vpack.c.b16 %v4918, %v4906
        %v7271 = vpack.c.b16 %v4919, %v4907
        %v7272 = vpack.c.b16 %v4920, %v4908
        %v7273 = vpack.c.b16 %v4921, %v4909
        %v7274 = vpack.c.b16 %v4922, %v4910
        %v7275 = vpack.c.b16 %v4923, %v4911
        %v7276 = vpack.c.b16 %v4924, %v4912
        %v7277 = vpack.c.b16 %v4925, %v4913
        %v7278 = vpack.c.b16 %v4926, %v4914
        %v7279 = vpack.c.b16 %v4927, %v4915
        %v7280 = vpack.c.b16 %v4940, %v4928
        %v7281 = vpack.c.b16 %v4941, %v4929
        %v7282 = vpack.c.b16 %v4942, %v4930
        %v7283 = vpack.c.b16 %v4943, %v4931
        %v7284 = vpack.c.b16 %v4944, %v4932
        %v7285 = vpack.c.b16 %v4945, %v4933
        %v7286 = vpack.c.b16 %v4946, %v4934
        %v7287 = vpack.c.b16 %v4947, %v4935
        %v7288 = vpack.c.b16 %v4948, %v4936
        %v7289 = vpack.c.b16 %v4949, %v4937
        %v7290 = vpack.c.b16 %v4950, %v4938
        %v7291 = vpack.c.b16 %v4951, %v4939
        %v7292 = vpack.c.b16 %v4964, %v4952
        %v7293 = vpack.c.b16 %v4965, %v4953
        %v7294 = vpack.c.b16 %v4966, %v4954
        %v7295 = vpack.c.b16 %v4967, %v4955
        %v7296 = vpack.c.b16 %v4968, %v4956
        %v7297 = vpack.c.b16 %v4969, %v4957
        %v7298 = vpack.c.b16 %v4970, %v4958
        %v7299 = vpack.c.b16 %v4971, %v4959
        %v7300 = vpack.c.b16 %v4972, %v4960
        %v7301 = vpack.c.b16 %v4973, %v4961
        %v7302 = vpack.c.b16 %v4974, %v4962
        %v7303 = vpack.c.b16 %v4975, %v4963
        %v7304 = vpack.c.b16 %v4988, %v4976
        %v7305 = vpack.c.b16 %v4989, %v4977
        %v7306 = vpack.c.b16 %v4990, %v4978
        %v7307 = vpack.c.b16 %v4991, %v4979
        %v7308 = vpack.c.b16 %v4992, %v4980
        %v7309 = vpack.c.b16 %v4993, %v4981
        %v7310 = vpack.c.b16 %v4994, %v4982
        %v7311 = vpack.c.b16 %v4995, %v4983
        %v7312 = vpack.c.b16 %v4996, %v4984
        %v7313 = vpack.c.b16 %v4997, %v4985
        %v7314 = vpack.c.b16 %v4998, %v4986
        %v7315 = vpack.c.b16 %v4999, %v4987
        %v7316 = vpack.c.b16 %v5012, %v5000
        %v7317 = vpack.c.b16 %v5013, %v5001
        %v7318 = vpack.c.b16 %v5014, %v5002
        %v7319 = vpack.c.b16 %v5015, %v5003
        %v7320 = vpack.c.b16 %v5016, %v5004
        %v7321 = vpack.c.b16 %v5017, %v5005
        %v7322 = vpack.c.b16 %v5018, %v5006
        %v7323 = vpack.c.b16 %v5019, %v5007
        %v7324 = vpack.c.b16 %v5020, %v5008
        %v7325 = vpack.c.b16 %v5021, %v5009
        %v7326 = vpack.c.b16 %v5022, %v5010
        %v7327 = vpack.c.b16 %v5023, %v5011
        %v7328 = vpack.c.b16 %v5036, %v5024
        %v7329 = vpack.c.b16 %v5037, %v5025
        %v7330 = vpack.c.b16 %v5038, %v5026
        %v7331 = vpack.c.b16 %v5039, %v5027
        %v7332 = vpack.c.b16 %v5040, %v5028
        %v7333 = vpack.c.b16 %v5041, %v5029
        %v7334 = vpack.c.b16 %v5042, %v5030
        %v7335 = vpack.c.b16 %v5043, %v5031
        %v7336 = vpack.c.b16 %v5044, %v5032
        %v7337 = vpack.c.b16 %v5045, %v5033
        %v7338 = vpack.c.b16 %v5046, %v5034
        %v7339 = vpack.c.b16 %v5047, %v5035
        %v7340 = vpack.c.b16 %v5060, %v5048
        %v7341 = vpack.c.b16 %v5061, %v5049
        %v7342 = vpack.c.b16 %v5062, %v5050
        %v7343 = vpack.c.b16 %v5063, %v5051
        %v7344 = vpack.c.b16 %v5064, %v5052
        %v7345 = vpack.c.b16 %v5065, %v5053
        %v7346 = vpack.c.b16 %v5066, %v5054
        %v7347 = vpack.c.b16 %v5067, %v5055
        %v7348 = vpack.c.b16 %v5068, %v5056
        %v7349 = vpack.c.b16 %v5069, %v5057
        %v7350 = vpack.c.b16 %v5070, %v5058
        %v7351 = vpack.c.b16 %v5071, %v5059
        %v7352 = vpack.c.b16 %v5084, %v5072
        %v7353 = vpack.c.b16 %v5085, %v5073
        %v7354 = vpack.c.b16 %v5086, %v5074
        %v7355 = vpack.c.b16 %v5087, %v5075
        %v7356 = vpack.c.b16 %v5088, %v5076
        %v7357 = vpack.c.b16 %v5089, %v5077
        %v7358 = vpack.c.b16 %v5090, %v5078
        %v7359 = vpack.c.b16 %v5091, %v5079
        %v7360 = vpack.c.b16 %v5092, %v5080
        %v7361 = vpack.c.b16 %v5093, %v5081
        %v7362 = vpack.c.b16 %v5094, %v5082
        %v7363 = vpack.c.b16 %v5095, %v5083
        %v7364 = vpack.c.b16 %v5108, %v5096
        %v7365 = vpack.c.b16 %v5109, %v5097
        %v7366 = vpack.c.b16 %v5110, %v5098
        %v7367 = vpack.c.b16 %v5111, %v5099
        %v7368 = vpack.c.b16 %v5112, %v5100
        %v7369 = vpack.c.b16 %v5113, %v5101
        %v7370 = vpack.c.b16 %v5114, %v5102
        %v7371 = vpack.c.b16 %v5115, %v5103
        %v7372 = vpack.c.b16 %v5116, %v5104
        %v7373 = vpack.c.b16 %v5117, %v5105
        %v7374 = vpack.c.b16 %v5118, %v5106
        %v7375 = vpack.c.b16 %v5119, %v5107
        %v7376 = vpack.c.b16 %v5132, %v5120
        %v7377 = vpack.c.b16 %v5133, %v5121
        %v7378 = vpack.c.b16 %v5134, %v5122
        %v7379 = vpack.c.b16 %v5135, %v5123
        %v7380 = vpack.c.b16 %v5136, %v5124
        %v7381 = vpack.c.b16 %v5137, %v5125
        %v7382 = vpack.c.b16 %v5138, %v5126
        %v7383 = vpack.c.b16 %v5139, %v5127
        %v7384 = vpack.c.b16 %v5140, %v5128
        %v7385 = vpack.c.b16 %v5141, %v5129
        %v7386 = vpack.c.b16 %v5142, %v5130
        %v7387 = vpack.c.b16 %v5143, %v5131
        %v7388 = vpack.c.b16 %v5156, %v5144
        %v7389 = vpack.c.b16 %v5157, %v5145
        %v7390 = vpack.c.b16 %v5158, %v5146
        %v7391 = vpack.c.b16 %v5159, %v5147
        %v7392 = vpack.c.b16 %v5160, %v5148
        %v7393 = vpack.c.b16 %v5161, %v5149
        %v7394 = vpack.c.b16 %v5162, %v5150
        %v7395 = vpack.c.b16 %v5163, %v5151
        %v7396 = vpack.c.b16 %v5164, %v5152
        %v7397 = vpack.c.b16 %v5165, %v5153
        %v7398 = vpack.c.b16 %v5166, %v5154
        %v7399 = vpack.c.b16 %v5167, %v5155
        %v7400 = vpack.c.b16 %v5180, %v5168
        %v7401 = vpack.c.b16 %v5181, %v5169
        %v7402 = vpack.c.b16 %v5182, %v5170
        %v7403 = vpack.c.b16 %v5183, %v5171
        %v7404 = vpack.c.b16 %v5184, %v5172
        %v7405 = vpack.c.b16 %v5185, %v5173
        %v7406 = vpack.c.b16 %v5186, %v5174
        %v7407 = vpack.c.b16 %v5187, %v5175
        %v7408 = vpack.c.b16 %v5188, %v5176
        %v7409 = vpack.c.b16 %v5189, %v5177
        %v7410 = vpack.c.b16 %v5190, %v5178
        %v7411 = vpack.c.b16 %v5191, %v5179
        %v7412 = vpack.c.b16 %v5204, %v5192
        %v7413 = vpack.c.b16 %v5205, %v5193
        %v7414 = vpack.c.b16 %v5206, %v5194
        %v7415 = vpack.c.b16 %v5207, %v5195
        %v7416 = vpack.c.b16 %v5208, %v5196
        %v7417 = vpack.c.b16 %v5209, %v5197
        %v7418 = vpack.c.b16 %v5210, %v5198
        %v7419 = vpack.c.b16 %v5211, %v5199
        %v7420 = vpack.c.b16 %v5212, %v5200
        %v7421 = vpack.c.b16 %v5213, %v5201
        %v7422 = vpack.c.b16 %v5214, %v5202
        %v7423 = vpack.c.b16 %v5215, %v5203
        %v7424 = vpack.c.b16 %v5228, %v5216
        %v7425 = vpack.c.b16 %v5229, %v5217
        %v7426 = vpack.c.b16 %v5230, %v5218
        %v7427 = vpack.c.b16 %v5231, %v5219
        %v7428 = vpack.c.b16 %v5232, %v5220
        %v7429 = vpack.c.b16 %v5233, %v5221
        %v7430 = vpack.c.b16 %v5234, %v5222
        %v7431 = vpack.c.b16 %v5235, %v5223
        %v7432 = vpack.c.b16 %v5236, %v5224
        %v7433 = vpack.c.b16 %v5237, %v5225
        %v7434 = vpack.c.b16 %v5238, %v5226
        %v7435 = vpack.c.b16 %v5239, %v5227
        %v7436 = vpack.c.b16 %v5252, %v5240
        %v7437 = vpack.c.b16 %v5253, %v5241
        %v7438 = vpack.c.b16 %v5254, %v5242
        %v7439 = vpack.c.b16 %v5255, %v5243
        %v7440 = vpack.c.b16 %v5256, %v5244
        %v7441 = vpack.c.b16 %v5257, %v5245
        %v7442 = vpack.c.b16 %v5258, %v5246
        %v7443 = vpack.c.b16 %v5259, %v5247
        %v7444 = vpack.c.b16 %v5260, %v5248
        %v7445 = vpack.c.b16 %v5261, %v5249
        %v7446 = vpack.c.b16 %v5262, %v5250
        %v7447 = vpack.c.b16 %v5263, %v5251
        %v7448 = vpack.c.b16 %v5276, %v5264
        %v7449 = vpack.c.b16 %v5277, %v5265
        %v7450 = vpack.c.b16 %v5278, %v5266
        %v7451 = vpack.c.b16 %v5279, %v5267
        %v7452 = vpack.c.b16 %v5280, %v5268
        %v7453 = vpack.c.b16 %v5281, %v5269
        %v7454 = vpack.c.b16 %v5282, %v5270
        %v7455 = vpack.c.b16 %v5283, %v5271
        %v7456 = vpack.c.b16 %v5284, %v5272
        %v7457 = vpack.c.b16 %v5285, %v5273
        %v7458 = vpack.c.b16 %v5286, %v5274
        %v7459 = vpack.c.b16 %v5287, %v5275
        %v7460 = vpack.c.b16 %v5300, %v5288
        %v7461 = vpack.c.b16 %v5301, %v5289
        %v7462 = vpack.c.b16 %v5302, %v5290
        %v7463 = vpack.c.b16 %v5303, %v5291
        %v7464 = vpack.c.b16 %v5304, %v5292
        %v7465 = vpack.c.b16 %v5305, %v5293
        %v7466 = vpack.c.b16 %v5306, %v5294
        %v7467 = vpack.c.b16 %v5307, %v5295
        %v7468 = vpack.c.b16 %v5308, %v5296
        %v7469 = vpack.c.b16 %v5309, %v5297
        %v7470 = vpack.c.b16 %v5310, %v5298
        %v7471 = vpack.c.b16 %v5311, %v5299
        %v7472 = vpack.c.b16 %v5324, %v5312
        %v7473 = vpack.c.b16 %v5325, %v5313
        %v7474 = vpack.c.b16 %v5326, %v5314
        %v7475 = vpack.c.b16 %v5327, %v5315
        %v7476 = vpack.c.b16 %v5328, %v5316
        %v7477 = vpack.c.b16 %v5329, %v5317
        %v7478 = vpack.c.b16 %v5330, %v5318
        %v7479 = vpack.c.b16 %v5331, %v5319
        %v7480 = vpack.c.b16 %v5332, %v5320
        %v7481 = vpack.c.b16 %v5333, %v5321
        %v7482 = vpack.c.b16 %v5334, %v5322
        %v7483 = vpack.c.b16 %v5335, %v5323
        %v7484 = vpack.c.b16 %v5348, %v5336
        %v7485 = vpack.c.b16 %v5349, %v5337
        %v7486 = vpack.c.b16 %v5350, %v5338
        %v7487 = vpack.c.b16 %v5351, %v5339
        %v7488 = vpack.c.b16 %v5352, %v5340
        %v7489 = vpack.c.b16 %v5353, %v5341
        %v7490 = vpack.c.b16 %v5354, %v5342
        %v7491 = vpack.c.b16 %v5355, %v5343
        %v7492 = vpack.c.b16 %v5356, %v5344
        %v7493 = vpack.c.b16 %v5357, %v5345
        %v7494 = vpack.c.b16 %v5358, %v5346
        %v7495 = vpack.c.b16 %v5359, %v5347
        %v7496 = vpack.c.b16 %v5372, %v5360
        %v7497 = vpack.c.b16 %v5373, %v5361
        %v7498 = vpack.c.b16 %v5374, %v5362
        %v7499 = vpack.c.b16 %v5375, %v5363
        %v7500 = vpack.c.b16 %v5376, %v5364
        %v7501 = vpack.c.b16 %v5377, %v5365
        %v7502 = vpack.c.b16 %v5378, %v5366
        %v7503 = vpack.c.b16 %v5379, %v5367
        %v7504 = vpack.c.b16 %v5380, %v5368
        %v7505 = vpack.c.b16 %v5381, %v5369
        %v7506 = vpack.c.b16 %v5382, %v5370
        %v7507 = vpack.c.b16 %v5383, %v5371
        %v7508 = vpack.c.b16 %v5396, %v5384
        %v7509 = vpack.c.b16 %v5397, %v5385
        %v7510 = vpack.c.b16 %v5398, %v5386
        %v7511 = vpack.c.b16 %v5399, %v5387
        %v7512 = vpack.c.b16 %v5400, %v5388
        %v7513 = vpack.c.b16 %v5401, %v5389
        %v7514 = vpack.c.b16 %v5402, %v5390
        %v7515 = vpack.c.b16 %v5403, %v5391
        %v7516 = vpack.c.b16 %v5404, %v5392
        %v7517 = vpack.c.b16 %v5405, %v5393
        %v7518 = vpack.c.b16 %v5406, %v5394
        %v7519 = vpack.c.b16 %v5407, %v5395
        %v7520 = vpack.c.b16 %v5420, %v5408
        %v7521 = vpack.c.b16 %v5421, %v5409
        %v7522 = vpack.c.b16 %v5422, %v5410
        %v7523 = vpack.c.b16 %v5423, %v5411
        %v7524 = vpack.c.b16 %v5424, %v5412
        %v7525 = vpack.c.b16 %v5425, %v5413
        %v7526 = vpack.c.b16 %v5426, %v5414
        %v7527 = vpack.c.b16 %v5427, %v5415
        %v7528 = vpack.c.b16 %v5428, %v5416
        %v7529 = vpack.c.b16 %v5429, %v5417
        %v7530 = vpack.c.b16 %v5430, %v5418
        %v7531 = vpack.c.b16 %v5431, %v5419
        %v7532 = vpack.c.b16 %v5444, %v5432
        %v7533 = vpack.c.b16 %v5445, %v5433
        %v7534 = vpack.c.b16 %v5446, %v5434
        %v7535 = vpack.c.b16 %v5447, %v5435
        %v7536 = vpack.c.b16 %v5448, %v5436
        %v7537 = vpack.c.b16 %v5449, %v5437
        %v7538 = vpack.c.b16 %v5450, %v5438
        %v7539 = vpack.c.b16 %v5451, %v5439
        %v7540 = vpack.c.b16 %v5452, %v5440
        %v7541 = vpack.c.b16 %v5453, %v5441
        %v7542 = vpack.c.b16 %v5454, %v5442
        %v7543 = vpack.c.b16 %v5455, %v5443
        %v7544 = vpack.c.b16 %v5468, %v5456
        %v7545 = vpack.c.b16 %v5469, %v5457
        %v7546 = vpack.c.b16 %v5470, %v5458
        %v7547 = vpack.c.b16 %v5471, %v5459
        %v7548 = vpack.c.b16 %v5472, %v5460
        %v7549 = vpack.c.b16 %v5473, %v5461
        %v7550 = vpack.c.b16 %v5474, %v5462
        %v7551 = vpack.c.b16 %v5475, %v5463
        %v7552 = vpack.c.b16 %v5476, %v5464
        %v7553 = vpack.c.b16 %v5477, %v5465
        %v7554 = vpack.c.b16 %v5478, %v5466
        %v7555 = vpack.c.b16 %v5479, %v5467
        %v7556 = vpack.c.b16 %v5492, %v5480
        %v7557 = vpack.c.b16 %v5493, %v5481
        %v7558 = vpack.c.b16 %v5494, %v5482
        %v7559 = vpack.c.b16 %v5495, %v5483
        %v7560 = vpack.c.b16 %v5496, %v5484
        %v7561 = vpack.c.b16 %v5497, %v5485
        %v7562 = vpack.c.b16 %v5498, %v5486
        %v7563 = vpack.c.b16 %v5499, %v5487
        %v7564 = vpack.c.b16 %v5500, %v5488
        %v7565 = vpack.c.b16 %v5501, %v5489
        %v7566 = vpack.c.b16 %v5502, %v5490
        %v7567 = vpack.c.b16 %v5503, %v5491
        %v7568 = vpack.c.b16 %v5516, %v5504
        %v7569 = vpack.c.b16 %v5517, %v5505
        %v7570 = vpack.c.b16 %v5518, %v5506
        %v7571 = vpack.c.b16 %v5519, %v5507
        %v7572 = vpack.c.b16 %v5520, %v5508
        %v7573 = vpack.c.b16 %v5521, %v5509
        %v7574 = vpack.c.b16 %v5522, %v5510
        %v7575 = vpack.c.b16 %v5523, %v5511
        %v7576 = vpack.c.b16 %v5524, %v5512
        %v7577 = vpack.c.b16 %v5525, %v5513
        %v7578 = vpack.c.b16 %v5526, %v5514
        %v7579 = vpack.c.b16 %v5527, %v5515
        %v7580 = vpack.c.b16 %v5540, %v5528
        %v7581 = vpack.c.b16 %v5541, %v5529
        %v7582 = vpack.c.b16 %v5542, %v5530
        %v7583 = vpack.c.b16 %v5543, %v5531
        %v7584 = vpack.c.b16 %v5544, %v5532
        %v7585 = vpack.c.b16 %v5545, %v5533
        %v7586 = vpack.c.b16 %v5546, %v5534
        %v7587 = vpack.c.b16 %v5547, %v5535
        %v7588 = vpack.c.b16 %v5548, %v5536
        %v7589 = vpack.c.b16 %v5549, %v5537
        %v7590 = vpack.c.b16 %v5550, %v5538
        %v7591 = vpack.c.b16 %v5551, %v5539
        %v7592 = vpack.c.b16 %v5564, %v5552
        %v7593 = vpack.c.b16 %v5565, %v5553
        %v7594 = vpack.c.b16 %v5566, %v5554
        %v7595 = vpack.c.b16 %v5567, %v5555
        %v7596 = vpack.c.b16 %v5568, %v5556
        %v7597 = vpack.c.b16 %v5569, %v5557
        %v7598 = vpack.c.b16 %v5570, %v5558
        %v7599 = vpack.c.b16 %v5571, %v5559
        %v7600 = vpack.c.b16 %v5572, %v5560
        %v7601 = vpack.c.b16 %v5573, %v5561
        %v7602 = vpack.c.b16 %v5574, %v5562
        %v7603 = vpack.c.b16 %v5575, %v5563
        %v7604 = vpack.c.b16 %v5588, %v5576
        %v7605 = vpack.c.b16 %v5589, %v5577
        %v7606 = vpack.c.b16 %v5590, %v5578
        %v7607 = vpack.c.b16 %v5591, %v5579
        %v7608 = vpack.c.b16 %v5592, %v5580
        %v7609 = vpack.c.b16 %v5593, %v5581
        %v7610 = vpack.c.b16 %v5594, %v5582
        %v7611 = vpack.c.b16 %v5595, %v5583
        %v7612 = vpack.c.b16 %v5596, %v5584
        %v7613 = vpack.c.b16 %v5597, %v5585
        %v7614 = vpack.c.b16 %v5598, %v5586
        %v7615 = vpack.c.b16 %v5599, %v5587
        %v7616 = vpack.c.b16 %v5612, %v5600
        %v7617 = vpack.c.b16 %v5613, %v5601
        %v7618 = vpack.c.b16 %v5614, %v5602
        %v7619 = vpack.c.b16 %v5615, %v5603
        %v7620 = vpack.c.b16 %v5616, %v5604
        %v7621 = vpack.c.b16 %v5617, %v5605
        %v7622 = vpack.c.b16 %v5618, %v5606
        %v7623 = vpack.c.b16 %v5619, %v5607
        %v7624 = vpack.c.b16 %v5620, %v5608
        %v7625 = vpack.c.b16 %v5621, %v5609
        %v7626 = vpack.c.b16 %v5622, %v5610
        %v7627 = vpack.c.b16 %v5623, %v5611
        %v7628 = vpack.c.b16 %v5636, %v5624
        %v7629 = vpack.c.b16 %v5637, %v5625
        %v7630 = vpack.c.b16 %v5638, %v5626
        %v7631 = vpack.c.b16 %v5639, %v5627
        %v7632 = vpack.c.b16 %v5640, %v5628
        %v7633 = vpack.c.b16 %v5641, %v5629
        %v7634 = vpack.c.b16 %v5642, %v5630
        %v7635 = vpack.c.b16 %v5643, %v5631
        %v7636 = vpack.c.b16 %v5644, %v5632
        %v7637 = vpack.c.b16 %v5645, %v5633
        %v7638 = vpack.c.b16 %v5646, %v5634
        %v7639 = vpack.c.b16 %v5647, %v5635
        %v7640 = vpack.c.b16 %v5660, %v5648
        %v7641 = vpack.c.b16 %v5661, %v5649
        %v7642 = vpack.c.b16 %v5662, %v5650
        %v7643 = vpack.c.b16 %v5663, %v5651
        %v7644 = vpack.c.b16 %v5664, %v5652
        %v7645 = vpack.c.b16 %v5665, %v5653
        %v7646 = vpack.c.b16 %v5666, %v5654
        %v7647 = vpack.c.b16 %v5667, %v5655
        %v7648 = vpack.c.b16 %v5668, %v5656
        %v7649 = vpack.c.b16 %v5669, %v5657
        %v7650 = vpack.c.b16 %v5670, %v5658
        %v7651 = vpack.c.b16 %v5671, %v5659
        %v7652 = vpack.c.b16 %v5684, %v5672
        %v7653 = vpack.c.b16 %v5685, %v5673
        %v7654 = vpack.c.b16 %v5686, %v5674
        %v7655 = vpack.c.b16 %v5687, %v5675
        %v7656 = vpack.c.b16 %v5688, %v5676
        %v7657 = vpack.c.b16 %v5689, %v5677
        %v7658 = vpack.c.b16 %v5690, %v5678
        %v7659 = vpack.c.b16 %v5691, %v5679
        %v7660 = vpack.c.b16 %v5692, %v5680
        %v7661 = vpack.c.b16 %v5693, %v5681
        %v7662 = vpack.c.b16 %v5694, %v5682
        %v7663 = vpack.c.b16 %v5695, %v5683
        %v7664 = vpack.c.b16 %v5708, %v5696
        %v7665 = vpack.c.b16 %v5709, %v5697
        %v7666 = vpack.c.b16 %v5710, %v5698
        %v7667 = vpack.c.b16 %v5711, %v5699
        %v7668 = vpack.c.b16 %v5712, %v5700
        %v7669 = vpack.c.b16 %v5713, %v5701
        %v7670 = vpack.c.b16 %v5714, %v5702
        %v7671 = vpack.c.b16 %v5715, %v5703
        %v7672 = vpack.c.b16 %v5716, %v5704
        %v7673 = vpack.c.b16 %v5717, %v5705
        %v7674 = vpack.c.b16 %v5718, %v5706
        %v7675 = vpack.c.b16 %v5719, %v5707
        %v7676 = vpack.c.b16 %v5732, %v5720
        %v7677 = vpack.c.b16 %v5733, %v5721
        %v7678 = vpack.c.b16 %v5734, %v5722
        %v7679 = vpack.c.b16 %v5735, %v5723
        %v7680 = vpack.c.b16 %v5736, %v5724
        %v7681 = vpack.c.b16 %v5737, %v5725
        %v7682 = vpack.c.b16 %v5738, %v5726
        %v7683 = vpack.c.b16 %v5739, %v5727
        %v7684 = vpack.c.b16 %v5740, %v5728
        %v7685 = vpack.c.b16 %v5741, %v5729
        %v7686 = vpack.c.b16 %v5742, %v5730
        %v7687 = vpack.c.b16 %v5743, %v5731
        %v7688 = vpack.c.b16 %v5756, %v5744
        %v7689 = vpack.c.b16 %v5757, %v5745
        %v7690 = vpack.c.b16 %v5758, %v5746
        %v7691 = vpack.c.b16 %v5759, %v5747
        %v7692 = vpack.c.b16 %v5760, %v5748
        %v7693 = vpack.c.b16 %v5761, %v5749
        %v7694 = vpack.c.b16 %v5762, %v5750
        %v7695 = vpack.c.b16 %v5763, %v5751
        %v7696 = vpack.c.b16 %v5764, %v5752
        %v7697 = vpack.c.b16 %v5765, %v5753
        %v7698 = vpack.c.b16 %v5766, %v5754
        %v7699 = vpack.c.b16 %v5767, %v5755
        %v7700 = vpack.c.b16 %v5780, %v5768
        %v7701 = vpack.c.b16 %v5781, %v5769
        %v7702 = vpack.c.b16 %v5782, %v5770
        %v7703 = vpack.c.b16 %v5783, %v5771
        %v7704 = vpack.c.b16 %v5784, %v5772
        %v7705 = vpack.c.b16 %v5785, %v5773
        %v7706 = vpack.c.b16 %v5786, %v5774
        %v7707 = vpack.c.b16 %v5787, %v5775
        %v7708 = vpack.c.b16 %v5788, %v5776
        %v7709 = vpack.c.b16 %v5789, %v5777
        %v7710 = vpack.c.b16 %v5790, %v5778
        %v7711 = vpack.c.b16 %v5791, %v5779
        %v7712 = vpack.c.b16 %v5804, %v5792
        %v7713 = vpack.c.b16 %v5805, %v5793
        %v7714 = vpack.c.b16 %v5806, %v5794
        %v7715 = vpack.c.b16 %v5807, %v5795
        %v7716 = vpack.c.b16 %v5808, %v5796
        %v7717 = vpack.c.b16 %v5809, %v5797
        %v7718 = vpack.c.b16 %v5810, %v5798
        %v7719 = vpack.c.b16 %v5811, %v5799
        %v7720 = vpack.c.b16 %v5812, %v5800
        %v7721 = vpack.c.b16 %v5813, %v5801
        %v7722 = vpack.c.b16 %v5814, %v5802
        %v7723 = vpack.c.b16 %v5815, %v5803
        %v7724 = vpack.c.b16 %v5828, %v5816
        %v7725 = vpack.c.b16 %v5829, %v5817
        %v7726 = vpack.c.b16 %v5830, %v5818
        %v7727 = vpack.c.b16 %v5831, %v5819
        %v7728 = vpack.c.b16 %v5832, %v5820
        %v7729 = vpack.c.b16 %v5833, %v5821
        %v7730 = vpack.c.b16 %v5834, %v5822
        %v7731 = vpack.c.b16 %v5835, %v5823
        %v7732 = vpack.c.b16 %v5836, %v5824
        %v7733 = vpack.c.b16 %v5837, %v5825
        %v7734 = vpack.c.b16 %v5838, %v5826
        %v7735 = vpack.c.b16 %v5839, %v5827
        %v7736 = vpack.c.b16 %v5852, %v5840
        %v7737 = vpack.c.b16 %v5853, %v5841
        %v7738 = vpack.c.b16 %v5854, %v5842
        %v7739 = vpack.c.b16 %v5855, %v5843
        %v7740 = vpack.c.b16 %v5856, %v5844
        %v7741 = vpack.c.b16 %v5857, %v5845
        %v7742 = vpack.c.b16 %v5858, %v5846
        %v7743 = vpack.c.b16 %v5859, %v5847
        %v7744 = vpack.c.b16 %v5860, %v5848
        %v7745 = vpack.c.b16 %v5861, %v5849
        %v7746 = vpack.c.b16 %v5862, %v5850
        %v7747 = vpack.c.b16 %v5863, %v5851
        %v7748 = vpack.c.b16 %v5876, %v5864
        %v7749 = vpack.c.b16 %v5877, %v5865
        %v7750 = vpack.c.b16 %v5878, %v5866
        %v7751 = vpack.c.b16 %v5879, %v5867
        %v7752 = vpack.c.b16 %v5880, %v5868
        %v7753 = vpack.c.b16 %v5881, %v5869
        %v7754 = vpack.c.b16 %v5882, %v5870
        %v7755 = vpack.c.b16 %v5883, %v5871
        %v7756 = vpack.c.b16 %v5884, %v5872
        %v7757 = vpack.c.b16 %v5885, %v5873
        %v7758 = vpack.c.b16 %v5886, %v5874
        %v7759 = vpack.c.b16 %v5887, %v5875
        %v7760 = vpack.c.b16 %v5900, %v5888
        %v7761 = vpack.c.b16 %v5901, %v5889
        %v7762 = vpack.c.b16 %v5902, %v5890
        %v7763 = vpack.c.b16 %v5903, %v5891
        %v7764 = vpack.c.b16 %v5904, %v5892
        %v7765 = vpack.c.b16 %v5905, %v5893
        %v7766 = vpack.c.b16 %v5906, %v5894
        %v7767 = vpack.c.b16 %v5907, %v5895
        %v7768 = vpack.c.b16 %v5908, %v5896
        %v7769 = vpack.c.b16 %v5909, %v5897
        %v7770 = vpack.c.b16 %v5910, %v5898
        %v7771 = vpack.c.b16 %v5911, %v5899
        %v7772 = vpack.c.b16 %v5924, %v5912
        %v7773 = vpack.c.b16 %v5925, %v5913
        %v7774 = vpack.c.b16 %v5926, %v5914
        %v7775 = vpack.c.b16 %v5927, %v5915
        %v7776 = vpack.c.b16 %v5928, %v5916
        %v7777 = vpack.c.b16 %v5929, %v5917
        %v7778 = vpack.c.b16 %v5930, %v5918
        %v7779 = vpack.c.b16 %v5931, %v5919
        %v7780 = vpack.c.b16 %v5932, %v5920
        %v7781 = vpack.c.b16 %v5933, %v5921
        %v7782 = vpack.c.b16 %v5934, %v5922
        %v7783 = vpack.c.b16 %v5935, %v5923
        %v7784 = vpack.c.b16 %v5948, %v5936
        %v7785 = vpack.c.b16 %v5949, %v5937
        %v7786 = vpack.c.b16 %v5950, %v5938
        %v7787 = vpack.c.b16 %v5951, %v5939
        %v7788 = vpack.c.b16 %v5952, %v5940
        %v7789 = vpack.c.b16 %v5953, %v5941
        %v7790 = vpack.c.b16 %v5954, %v5942
        %v7791 = vpack.c.b16 %v5955, %v5943
        %v7792 = vpack.c.b16 %v5956, %v5944
        %v7793 = vpack.c.b16 %v5957, %v5945
        %v7794 = vpack.c.b16 %v5958, %v5946
        %v7795 = vpack.c.b16 %v5959, %v5947
        %v7796 = vpack.c.b16 %v5972, %v5960
        %v7797 = vpack.c.b16 %v5973, %v5961
        %v7798 = vpack.c.b16 %v5974, %v5962
        %v7799 = vpack.c.b16 %v5975, %v5963
        %v7800 = vpack.c.b16 %v5976, %v5964
        %v7801 = vpack.c.b16 %v5977, %v5965
        %v7802 = vpack.c.b16 %v5978, %v5966
        %v7803 = vpack.c.b16 %v5979, %v5967
        %v7804 = vpack.c.b16 %v5980, %v5968
        %v7805 = vpack.c.b16 %v5981, %v5969
        %v7806 = vpack.c.b16 %v5982, %v5970
        %v7807 = vpack.c.b16 %v5983, %v5971
        %v7808 = vpack.c.b16 %v5996, %v5984
        %v7809 = vpack.c.b16 %v5997, %v5985
        %v7810 = vpack.c.b16 %v5998, %v5986
        %v7811 = vpack.c.b16 %v5999, %v5987
        %v7812 = vpack.c.b16 %v6000, %v5988
        %v7813 = vpack.c.b16 %v6001, %v5989
        %v7814 = vpack.c.b16 %v6002, %v5990
        %v7815 = vpack.c.b16 %v6003, %v5991
        %v7816 = vpack.c.b16 %v6004, %v5992
        %v7817 = vpack.c.b16 %v6005, %v5993
        %v7818 = vpack.c.b16 %v6006, %v5994
        %v7819 = vpack.c.b16 %v6007, %v5995
        %v7820 = vpack.c.b16 %v6020, %v6008
        %v7821 = vpack.c.b16 %v6021, %v6009
        %v7822 = vpack.c.b16 %v6022, %v6010
        %v7823 = vpack.c.b16 %v6023, %v6011
        %v7824 = vpack.c.b16 %v6024, %v6012
        %v7825 = vpack.c.b16 %v6025, %v6013
        %v7826 = vpack.c.b16 %v6026, %v6014
        %v7827 = vpack.c.b16 %v6027, %v6015
        %v7828 = vpack.c.b16 %v6028, %v6016
        %v7829 = vpack.c.b16 %v6029, %v6017
        %v7830 = vpack.c.b16 %v6030, %v6018
        %v7831 = vpack.c.b16 %v6031, %v6019
        %v7832 = vpack.c.b16 %v6044, %v6032
        %v7833 = vpack.c.b16 %v6045, %v6033
        %v7834 = vpack.c.b16 %v6046, %v6034
        %v7835 = vpack.c.b16 %v6047, %v6035
        %v7836 = vpack.c.b16 %v6048, %v6036
        %v7837 = vpack.c.b16 %v6049, %v6037
        %v7838 = vpack.c.b16 %v6050, %v6038
        %v7839 = vpack.c.b16 %v6051, %v6039
        %v7840 = vpack.c.b16 %v6052, %v6040
        %v7841 = vpack.c.b16 %v6053, %v6041
        %v7842 = vpack.c.b16 %v6054, %v6042
        %v7843 = vpack.c.b16 %v6055, %v6043
        %v7844 = vpack.c.b16 %v6068, %v6056
        %v7845 = vpack.c.b16 %v6069, %v6057
        %v7846 = vpack.c.b16 %v6070, %v6058
        %v7847 = vpack.c.b16 %v6071, %v6059
        %v7848 = vpack.c.b16 %v6072, %v6060
        %v7849 = vpack.c.b16 %v6073, %v6061
        %v7850 = vpack.c.b16 %v6074, %v6062
        %v7851 = vpack.c.b16 %v6075, %v6063
        %v7852 = vpack.c.b16 %v6076, %v6064
        %v7853 = vpack.c.b16 %v6077, %v6065
        %v7854 = vpack.c.b16 %v6078, %v6066
        %v7855 = vpack.c.b16 %v6079, %v6067
        %v7856 = vpack.c.b16 %v6092, %v6080
        %v7857 = vpack.c.b16 %v6093, %v6081
        %v7858 = vpack.c.b16 %v6094, %v6082
        %v7859 = vpack.c.b16 %v6095, %v6083
        %v7860 = vpack.c.b16 %v6096, %v6084
        %v7861 = vpack.c.b16 %v6097, %v6085
        %v7862 = vpack.c.b16 %v6098, %v6086
        %v7863 = vpack.c.b16 %v6099, %v6087
        %v7864 = vpack.c.b16 %v6100, %v6088
        %v7865 = vpack.c.b16 %v6101, %v6089
        %v7866 = vpack.c.b16 %v6102, %v6090
        %v7867 = vpack.c.b16 %v6103, %v6091
        %v7868 = vpack.c.b16 %v6116, %v6104
        %v7869 = vpack.c.b16 %v6117, %v6105
        %v7870 = vpack.c.b16 %v6118, %v6106
        %v7871 = vpack.c.b16 %v6119, %v6107
        %v7872 = vpack.c.b16 %v6120, %v6108
        %v7873 = vpack.c.b16 %v6121, %v6109
        %v7874 = vpack.c.b16 %v6122, %v6110
        %v7875 = vpack.c.b16 %v6123, %v6111
        %v7876 = vpack.c.b16 %v6124, %v6112
        %v7877 = vpack.c.b16 %v6125, %v6113
        %v7878 = vpack.c.b16 %v6126, %v6114
        %v7879 = vpack.c.b16 %v6127, %v6115
        %v7880 = vpack.c.b16 %v6140, %v6128
        %v7881 = vpack.c.b16 %v6141, %v6129
        %v7882 = vpack.c.b16 %v6142, %v6130
        %v7883 = vpack.c.b16 %v6143, %v6131
        %v7884 = vpack.c.b16 %v6144, %v6132
        %v7885 = vpack.c.b16 %v6145, %v6133
        %v7886 = vpack.c.b16 %v6146, %v6134
        %v7887 = vpack.c.b16 %v6147, %v6135
        %v7888 = vpack.c.b16 %v6148, %v6136
        %v7889 = vpack.c.b16 %v6149, %v6137
        %v7890 = vpack.c.b16 %v6150, %v6138
        %v7891 = vpack.c.b16 %v6151, %v6139
        %v7892 = vpack.c.b16 %v6164, %v6152
        %v7893 = vpack.c.b16 %v6165, %v6153
        %v7894 = vpack.c.b16 %v6166, %v6154
        %v7895 = vpack.c.b16 %v6167, %v6155
        %v7896 = vpack.c.b16 %v6168, %v6156
        %v7897 = vpack.c.b16 %v6169, %v6157
        %v7898 = vpack.c.b16 %v6170, %v6158
        %v7899 = vpack.c.b16 %v6171, %v6159
        %v7900 = vpack.c.b16 %v6172, %v6160
        %v7901 = vpack.c.b16 %v6173, %v6161
        %v7902 = vpack.c.b16 %v6174, %v6162
        %v7903 = vpack.c.b16 %v6175, %v6163
        %v7904 = vpack.c.b16 %v6188, %v6176
        %v7905 = vpack.c.b16 %v6189, %v6177
        %v7906 = vpack.c.b16 %v6190, %v6178
        %v7907 = vpack.c.b16 %v6191, %v6179
        %v7908 = vpack.c.b16 %v6192, %v6180
        %v7909 = vpack.c.b16 %v6193, %v6181
        %v7910 = vpack.c.b16 %v6194, %v6182
        %v7911 = vpack.c.b16 %v6195, %v6183
        %v7912 = vpack.c.b16 %v6196, %v6184
        %v7913 = vpack.c.b16 %v6197, %v6185
        %v7914 = vpack.c.b16 %v6198, %v6186
        %v7915 = vpack.c.b16 %v6199, %v6187
        %v7916 = vpack.c.b16 %v6212, %v6200
        %v7917 = vpack.c.b16 %v6213, %v6201
        %v7918 = vpack.c.b16 %v6214, %v6202
        %v7919 = vpack.c.b16 %v6215, %v6203
        %v7920 = vpack.c.b16 %v6216, %v6204
        %v7921 = vpack.c.b16 %v6217, %v6205
        %v7922 = vpack.c.b16 %v6218, %v6206
        %v7923 = vpack.c.b16 %v6219, %v6207
        %v7924 = vpack.c.b16 %v6220, %v6208
        %v7925 = vpack.c.b16 %v6221, %v6209
        %v7926 = vpack.c.b16 %v6222, %v6210
        %v7927 = vpack.c.b16 %v6223, %v6211
        %v7928 = vpack.c.b16 %v6236, %v6224
        %v7929 = vpack.c.b16 %v6237, %v6225
        %v7930 = vpack.c.b16 %v6238, %v6226
        %v7931 = vpack.c.b16 %v6239, %v6227
        %v7932 = vpack.c.b16 %v6240, %v6228
        %v7933 = vpack.c.b16 %v6241, %v6229
        %v7934 = vpack.c.b16 %v6242, %v6230
        %v7935 = vpack.c.b16 %v6243, %v6231
        %v7936 = vpack.c.b16 %v6244, %v6232
        %v7937 = vpack.c.b16 %v6245, %v6233
        %v7938 = vpack.c.b16 %v6246, %v6234
        %v7939 = vpack.c.b16 %v6247, %v6235
        %v7940 = vpack.c.b16 %v6260, %v6248
        %v7941 = vpack.c.b16 %v6261, %v6249
        %v7942 = vpack.c.b16 %v6262, %v6250
        %v7943 = vpack.c.b16 %v6263, %v6251
        %v7944 = vpack.c.b16 %v6264, %v6252
        %v7945 = vpack.c.b16 %v6265, %v6253
        %v7946 = vpack.c.b16 %v6266, %v6254
        %v7947 = vpack.c.b16 %v6267, %v6255
        %v7948 = vpack.c.b16 %v6268, %v6256
        %v7949 = vpack.c.b16 %v6269, %v6257
        %v7950 = vpack.c.b16 %v6270, %v6258
        %v7951 = vpack.c.b16 %v6271, %v6259
        %v7952 = vpack.c.b16 %v6284, %v6272
        %v7953 = vpack.c.b16 %v6285, %v6273
        %v7954 = vpack.c.b16 %v6286, %v6274
        %v7955 = vpack.c.b16 %v6287, %v6275
        %v7956 = vpack.c.b16 %v6288, %v6276
        %v7957 = vpack.c.b16 %v6289, %v6277
        %v7958 = vpack.c.b16 %v6290, %v6278
        %v7959 = vpack.c.b16 %v6291, %v6279
        %v7960 = vpack.c.b16 %v6292, %v6280
        %v7961 = vpack.c.b16 %v6293, %v6281
        %v7962 = vpack.c.b16 %v6294, %v6282
        %v7963 = vpack.c.b16 %v6295, %v6283
        %v7964 = vpack.c.b16 %v6308, %v6296
        %v7965 = vpack.c.b16 %v6309, %v6297
        %v7966 = vpack.c.b16 %v6310, %v6298
        %v7967 = vpack.c.b16 %v6311, %v6299
        %v7968 = vpack.c.b16 %v6312, %v6300
        %v7969 = vpack.c.b16 %v6313, %v6301
        %v7970 = vpack.c.b16 %v6314, %v6302
        %v7971 = vpack.c.b16 %v6315, %v6303
        %v7972 = vpack.c.b16 %v6316, %v6304
        %v7973 = vpack.c.b16 %v6317, %v6305
        %v7974 = vpack.c.b16 %v6318, %v6306
        %v7975 = vpack.c.b16 %v6319, %v6307
        %v7976 = vpack.c.b16 %v6332, %v6320
        %v7977 = vpack.c.b16 %v6333, %v6321
        %v7978 = vpack.c.b16 %v6334, %v6322
        %v7979 = vpack.c.b16 %v6335, %v6323
        %v7980 = vpack.c.b16 %v6336, %v6324
        %v7981 = vpack.c.b16 %v6337, %v6325
        %v7982 = vpack.c.b16 %v6338, %v6326
        %v7983 = vpack.c.b16 %v6339, %v6327
        %v7984 = vpack.c.b16 %v6340, %v6328
        %v7985 = vpack.c.b16 %v6341, %v6329
        %v7986 = vpack.c.b16 %v6342, %v6330
        %v7987 = vpack.c.b16 %v6343, %v6331
        %v7988 = vpack.c.b16 %v6356, %v6344
        %v7989 = vpack.c.b16 %v6357, %v6345
        %v7990 = vpack.c.b16 %v6358, %v6346
        %v7991 = vpack.c.b16 %v6359, %v6347
        %v7992 = vpack.c.b16 %v6360, %v6348
        %v7993 = vpack.c.b16 %v6361, %v6349
        %v7994 = vpack.c.b16 %v6362, %v6350
        %v7995 = vpack.c.b16 %v6363, %v6351
        %v7996 = vpack.c.b16 %v6364, %v6352
        %v7997 = vpack.c.b16 %v6365, %v6353
        %v7998 = vpack.c.b16 %v6366, %v6354
        %v7999 = vpack.c.b16 %v6367, %v6355
        %v8000 = vpack.c.b16 %v6380, %v6368
        %v8001 = vpack.c.b16 %v6381, %v6369
        %v8002 = vpack.c.b16 %v6382, %v6370
        %v8003 = vpack.c.b16 %v6383, %v6371
        %v8004 = vpack.c.b16 %v6384, %v6372
        %v8005 = vpack.c.b16 %v6385, %v6373
        %v8006 = vpack.c.b16 %v6386, %v6374
        %v8007 = vpack.c.b16 %v6387, %v6375
        %v8008 = vpack.c.b16 %v6388, %v6376
        %v8009 = vpack.c.b16 %v6389, %v6377
        %v8010 = vpack.c.b16 %v6390, %v6378
        %v8011 = vpack.c.b16 %v6391, %v6379
        %v8012 = vpack.c.b16 %v6404, %v6392
        %v8013 = vpack.c.b16 %v6405, %v6393
        %v8014 = vpack.c.b16 %v6406, %v6394
        %v8015 = vpack.c.b16 %v6407, %v6395
        %v8016 = vpack.c.b16 %v6408, %v6396
        %v8017 = vpack.c.b16 %v6409, %v6397
        %v8018 = vpack.c.b16 %v6410, %v6398
        %v8019 = vpack.c.b16 %v6411, %v6399
        %v8020 = vpack.c.b16 %v6412, %v6400
        %v8021 = vpack.c.b16 %v6413, %v6401
        %v8022 = vpack.c.b16 %v6414, %v6402
        %v8023 = vpack.c.b16 %v6415, %v6403
        %v8024 = vpack.c.b16 %v6428, %v6416
        %v8025 = vpack.c.b16 %v6429, %v6417
        %v8026 = vpack.c.b16 %v6430, %v6418
        %v8027 = vpack.c.b16 %v6431, %v6419
        %v8028 = vpack.c.b16 %v6432, %v6420
        %v8029 = vpack.c.b16 %v6433, %v6421
        %v8030 = vpack.c.b16 %v6434, %v6422
        %v8031 = vpack.c.b16 %v6435, %v6423
        %v8032 = vpack.c.b16 %v6436, %v6424
        %v8033 = vpack.c.b16 %v6437, %v6425
        %v8034 = vpack.c.b16 %v6438, %v6426
        %v8035 = vpack.c.b16 %v6439, %v6427
        %v8036 = vpack.c.b16 %v6452, %v6440
        %v8037 = vpack.c.b16 %v6453, %v6441
        %v8038 = vpack.c.b16 %v6454, %v6442
        %v8039 = vpack.c.b16 %v6455, %v6443
        %v8040 = vpack.c.b16 %v6456, %v6444
        %v8041 = vpack.c.b16 %v6457, %v6445
        %v8042 = vpack.c.b16 %v6458, %v6446
        %v8043 = vpack.c.b16 %v6459, %v6447
        %v8044 = vpack.c.b16 %v6460, %v6448
        %v8045 = vpack.c.b16 %v6461, %v6449
        %v8046 = vpack.c.b16 %v6462, %v6450
        %v8047 = vpack.c.b16 %v6463, %v6451
        %v8048 = vpack.c.b16 %v6476, %v6464
        %v8049 = vpack.c.b16 %v6477, %v6465
        %v8050 = vpack.c.b16 %v6478, %v6466
        %v8051 = vpack.c.b16 %v6479, %v6467
        %v8052 = vpack.c.b16 %v6480, %v6468
        %v8053 = vpack.c.b16 %v6481, %v6469
        %v8054 = vpack.c.b16 %v6482, %v6470
        %v8055 = vpack.c.b16 %v6483, %v6471
        %v8056 = vpack.c.b16 %v6484, %v6472
        %v8057 = vpack.c.b16 %v6485, %v6473
        %v8058 = vpack.c.b16 %v6486, %v6474
        %v8059 = vpack.c.b16 %v6487, %v6475
        %v8060 = vpack.c.b16 %v6500, %v6488
        %v8061 = vpack.c.b16 %v6501, %v6489
        %v8062 = vpack.c.b16 %v6502, %v6490
        %v8063 = vpack.c.b16 %v6503, %v6491
        %v8064 = vpack.c.b16 %v6504, %v6492
        %v8065 = vpack.c.b16 %v6505, %v6493
        %v8066 = vpack.c.b16 %v6506, %v6494
        %v8067 = vpack.c.b16 %v6507, %v6495
        %v8068 = vpack.c.b16 %v6508, %v6496
        %v8069 = vpack.c.b16 %v6509, %v6497
        %v8070 = vpack.c.b16 %v6510, %v6498
        %v8071 = vpack.c.b16 %v6511, %v6499
        %v8072 = vpack.c.b16 %v6524, %v6512
        %v8073 = vpack.c.b16 %v6525, %v6513
        %v8074 = vpack.c.b16 %v6526, %v6514
        %v8075 = vpack.c.b16 %v6527, %v6515
        %v8076 = vpack.c.b16 %v6528, %v6516
        %v8077 = vpack.c.b16 %v6529, %v6517
        %v8078 = vpack.c.b16 %v6530, %v6518
        %v8079 = vpack.c.b16 %v6531, %v6519
        %v8080 = vpack.c.b16 %v6532, %v6520
        %v8081 = vpack.c.b16 %v6533, %v6521
        %v8082 = vpack.c.b16 %v6534, %v6522
        %v8083 = vpack.c.b16 %v6535, %v6523
        %v8084 = vpack.c.b16 %v6548, %v6536
        %v8085 = vpack.c.b16 %v6549, %v6537
        %v8086 = vpack.c.b16 %v6550, %v6538
        %v8087 = vpack.c.b16 %v6551, %v6539
        %v8088 = vpack.c.b16 %v6552, %v6540
        %v8089 = vpack.c.b16 %v6553, %v6541
        %v8090 = vpack.c.b16 %v6554, %v6542
        %v8091 = vpack.c.b16 %v6555, %v6543
        %v8092 = vpack.c.b16 %v6556, %v6544
        %v8093 = vpack.c.b16 %v6557, %v6545
        %v8094 = vpack.c.b16 %v6558, %v6546
        %v8095 = vpack.c.b16 %v6559, %v6547
        %9632 = vmatpush.bf16.msra.mxu0 %v6644
        %9633 = vmatpush.bf16.msra.mxu0 %v6632
        %9634 = vmatpush.bf16.msra.mxu0 %v6620
        %9635 = vmatpush.bf16.msra.mxu0 %v6608
        %9636 = vmatpush.bf16.msra.mxu0 %v6596
        %9637 = vmatpush.bf16.msra.mxu0 %v6584
        %9638 = vmatpush.bf16.msra.mxu0 %v6572
        %9639 = vmatpush.bf16.msra.mxu0 %v6560
        %9640 = vmatmul.bf16.gmra.mxu0 %v400
        %v9641 = vpop.f32.mrf.mxu0
        %v9642 = vadd.f32 0.0, %v9641
        %v9643 = vpop.f32.mrf.mxu0
        %9644 = vdwg.mxu0
        %9645 = vmatpush.bf16.msra.mxu0 %v6740
        %9646 = vmatpush.bf16.msra.mxu0 %v6728
        %9647 = vmatpush.bf16.msra.mxu0 %v6716
        %9648 = vmatpush.bf16.msra.mxu0 %v6704
        %9649 = vmatpush.bf16.msra.mxu0 %v6692
        %9650 = vmatpush.bf16.msra.mxu0 %v6680
        %9651 = vmatpush.bf16.msra.mxu0 %v6668
        %9652 = vmatpush.bf16.msra.mxu0 %v6656
        %9653 = vmatmul.bf16.gmra.mxu0 %v401
        %v9654 = vpop.f32.mrf.mxu0
        %v9655 = vadd.f32 %v9642, %v9654
        %v9656 = vpop.f32.mrf.mxu0
        %9657 = vdwg.mxu0
        %9658 = vmatpush.bf16.msra.mxu0 %v6836
        %9659 = vmatpush.bf16.msra.mxu0 %v6824
        %9660 = vmatpush.bf16.msra.mxu0 %v6812
        %9661 = vmatpush.bf16.msra.mxu0 %v6800
        %9662 = vmatpush.bf16.msra.mxu0 %v6788
        %9663 = vmatpush.bf16.msra.mxu0 %v6776
        %9664 = vmatpush.bf16.msra.mxu0 %v6764
        %9665 = vmatpush.bf16.msra.mxu0 %v6752
        %9666 = vmatmul.bf16.gmra.mxu0 %v402
        %v9667 = vpop.f32.mrf.mxu0
        %v9668 = vadd.f32 %v9655, %v9667
        %v9669 = vpop.f32.mrf.mxu0
        %9670 = vdwg.mxu0
        %9671 = vmatpush.bf16.msra.mxu0 %v6932
        %9672 = vmatpush.bf16.msra.mxu0 %v6920
        %9673 = vmatpush.bf16.msra.mxu0 %v6908
        %9674 = vmatpush.bf16.msra.mxu0 %v6896
        %9675 = vmatpush.bf16.msra.mxu0 %v6884
        %9676 = vmatpush.bf16.msra.mxu0 %v6872
        %9677 = vmatpush.bf16.msra.mxu0 %v6860
        %9678 = vmatpush.bf16.msra.mxu0 %v6848
        %9679 = vmatmul.bf16.gmra.mxu0 %v403
        %v9680 = vpop.f32.mrf.mxu0
        %v9681 = vadd.f32 %v9668, %v9680
        %v9682 = vpop.f32.mrf.mxu0
        %9683 = vdwg.mxu0
        %9684 = vmatpush.bf16.msra.mxu0 %v7028
        %9685 = vmatpush.bf16.msra.mxu0 %v7016
        %9686 = vmatpush.bf16.msra.mxu0 %v7004
        %9687 = vmatpush.bf16.msra.mxu0 %v6992
        %9688 = vmatpush.bf16.msra.mxu0 %v6980
        %9689 = vmatpush.bf16.msra.mxu0 %v6968
        %9690 = vmatpush.bf16.msra.mxu0 %v6956
        %9691 = vmatpush.bf16.msra.mxu0 %v6944
        %9692 = vmatmul.bf16.gmra.mxu0 %v404
        %v9693 = vpop.f32.mrf.mxu0
        %v9694 = vadd.f32 %v9681, %v9693
        %v9695 = vpop.f32.mrf.mxu0
        %9696 = vdwg.mxu0
        %9697 = vmatpush.bf16.msra.mxu0 %v7124
        %9698 = vmatpush.bf16.msra.mxu0 %v7112
        %9699 = vmatpush.bf16.msra.mxu0 %v7100
        %9700 = vmatpush.bf16.msra.mxu0 %v7088
        %9701 = vmatpush.bf16.msra.mxu0 %v7076
        %9702 = vmatpush.bf16.msra.mxu0 %v7064
        %9703 = vmatpush.bf16.msra.mxu0 %v7052
        %9704 = vmatpush.bf16.msra.mxu0 %v7040
        %9705 = vmatmul.bf16.gmra.mxu0 %v405
        %v9706 = vpop.f32.mrf.mxu0
        %v9707 = vadd.f32 %v9694, %v9706
        %v9708 = vpop.f32.mrf.mxu0
        %9709 = vdwg.mxu0
        %9710 = vmatpush.bf16.msra.mxu0 %v7220
        %9711 = vmatpush.bf16.msra.mxu0 %v7208
        %9712 = vmatpush.bf16.msra.mxu0 %v7196
        %9713 = vmatpush.bf16.msra.mxu0 %v7184
        %9714 = vmatpush.bf16.msra.mxu0 %v7172
        %9715 = vmatpush.bf16.msra.mxu0 %v7160
        %9716 = vmatpush.bf16.msra.mxu0 %v7148
        %9717 = vmatpush.bf16.msra.mxu0 %v7136
        %9718 = vmatmul.bf16.gmra.mxu0 %v406
        %v9719 = vpop.f32.mrf.mxu0
        %v9720 = vadd.f32 %v9707, %v9719
        %v9721 = vpop.f32.mrf.mxu0
        %9722 = vdwg.mxu0
        %9723 = vmatpush.bf16.msra.mxu0 %v7316
        %9724 = vmatpush.bf16.msra.mxu0 %v7304
        %9725 = vmatpush.bf16.msra.mxu0 %v7292
        %9726 = vmatpush.bf16.msra.mxu0 %v7280
        %9727 = vmatpush.bf16.msra.mxu0 %v7268
        %9728 = vmatpush.bf16.msra.mxu0 %v7256
        %9729 = vmatpush.bf16.msra.mxu0 %v7244
        %9730 = vmatpush.bf16.msra.mxu0 %v7232
        %9731 = vmatmul.bf16.gmra.mxu0 %v407
        %v9732 = vpop.f32.mrf.mxu0
        %v9733 = vadd.f32 %v9720, %v9732
        %v9734 = vpop.f32.mrf.mxu0
        %9735 = vdwg.mxu0
        %9736 = vmatpush.bf16.msra.mxu0 %v7412
        %9737 = vmatpush.bf16.msra.mxu0 %v7400
        %9738 = vmatpush.bf16.msra.mxu0 %v7388
        %9739 = vmatpush.bf16.msra.mxu0 %v7376
        %9740 = vmatpush.bf16.msra.mxu0 %v7364
        %9741 = vmatpush.bf16.msra.mxu0 %v7352
        %9742 = vmatpush.bf16.msra.mxu0 %v7340
        %9743 = vmatpush.bf16.msra.mxu0 %v7328
        %9744 = vmatmul.bf16.gmra.mxu0 %v408
        %v9745 = vpop.f32.mrf.mxu0
        %v9746 = vadd.f32 %v9733, %v9745
        %v9747 = vpop.f32.mrf.mxu0
        %9748 = vdwg.mxu0
        %9749 = vmatpush.bf16.msra.mxu0 %v7508
        %9750 = vmatpush.bf16.msra.mxu0 %v7496
        %9751 = vmatpush.bf16.msra.mxu0 %v7484
        %9752 = vmatpush.bf16.msra.mxu0 %v7472
        %9753 = vmatpush.bf16.msra.mxu0 %v7460
        %9754 = vmatpush.bf16.msra.mxu0 %v7448
        %9755 = vmatpush.bf16.msra.mxu0 %v7436
        %9756 = vmatpush.bf16.msra.mxu0 %v7424
        %9757 = vmatmul.bf16.gmra.mxu0 %v409
        %v9758 = vpop.f32.mrf.mxu0
        %v9759 = vadd.f32 %v9746, %v9758
        %v9760 = vpop.f32.mrf.mxu0
        %9761 = vdwg.mxu0
        %9762 = vmatpush.bf16.msra.mxu0 %v7604
        %9763 = vmatpush.bf16.msra.mxu0 %v7592
        %9764 = vmatpush.bf16.msra.mxu0 %v7580
        %9765 = vmatpush.bf16.msra.mxu0 %v7568
        %9766 = vmatpush.bf16.msra.mxu0 %v7556
        %9767 = vmatpush.bf16.msra.mxu0 %v7544
        %9768 = vmatpush.bf16.msra.mxu0 %v7532
        %9769 = vmatpush.bf16.msra.mxu0 %v7520
        %9770 = vmatmul.bf16.gmra.mxu0 %v410
        %v9771 = vpop.f32.mrf.mxu0
        %v9772 = vadd.f32 %v9759, %v9771
        %v9773 = vpop.f32.mrf.mxu0
        %9774 = vdwg.mxu0
        %9775 = vmatpush.bf16.msra.mxu0 %v7700
        %9776 = vmatpush.bf16.msra.mxu0 %v7688
        %9777 = vmatpush.bf16.msra.mxu0 %v7676
        %9778 = vmatpush.bf16.msra.mxu0 %v7664
        %9779 = vmatpush.bf16.msra.mxu0 %v7652
        %9780 = vmatpush.bf16.msra.mxu0 %v7640
        %9781 = vmatpush.bf16.msra.mxu0 %v7628
        %9782 = vmatpush.bf16.msra.mxu0 %v7616
        %9783 = vmatmul.bf16.gmra.mxu0 %v411
        %v9784 = vpop.f32.mrf.mxu0
        %v9785 = vadd.f32 %v9772, %v9784
        %v9786 = vpop.f32.mrf.mxu0
        %9787 = vdwg.mxu0
        %9788 = vmatpush.bf16.msra.mxu0 %v7796
        %9789 = vmatpush.bf16.msra.mxu0 %v7784
        %9790 = vmatpush.bf16.msra.mxu0 %v7772
        %9791 = vmatpush.bf16.msra.mxu0 %v7760
        %9792 = vmatpush.bf16.msra.mxu0 %v7748
        %9793 = vmatpush.bf16.msra.mxu0 %v7736
        %9794 = vmatpush.bf16.msra.mxu0 %v7724
        %9795 = vmatpush.bf16.msra.mxu0 %v7712
        %9796 = vmatmul.bf16.gmra.mxu0 %v412
        %v9797 = vpop.f32.mrf.mxu0
        %v9798 = vadd.f32 %v9785, %v9797
        %v9799 = vpop.f32.mrf.mxu0
        %9800 = vdwg.mxu0
        %9801 = vmatpush.bf16.msra.mxu0 %v7892
        %9802 = vmatpush.bf16.msra.mxu0 %v7880
        %9803 = vmatpush.bf16.msra.mxu0 %v7868
        %9804 = vmatpush.bf16.msra.mxu0 %v7856
        %9805 = vmatpush.bf16.msra.mxu0 %v7844
        %9806 = vmatpush.bf16.msra.mxu0 %v7832
        %9807 = vmatpush.bf16.msra.mxu0 %v7820
        %9808 = vmatpush.bf16.msra.mxu0 %v7808
        %9809 = vmatmul.bf16.gmra.mxu0 %v413
        %v9810 = vpop.f32.mrf.mxu0
        %v9811 = vadd.f32 %v9798, %v9810
        %v9812 = vpop.f32.mrf.mxu0
        %9813 = vdwg.mxu0
        %9814 = vmatpush.bf16.msra.mxu0 %v7988
        %9815 = vmatpush.bf16.msra.mxu0 %v7976
        %9816 = vmatpush.bf16.msra.mxu0 %v7964
        %9817 = vmatpush.bf16.msra.mxu0 %v7952
        %9818 = vmatpush.bf16.msra.mxu0 %v7940
        %9819 = vmatpush.bf16.msra.mxu0 %v7928
        %9820 = vmatpush.bf16.msra.mxu0 %v7916
        %9821 = vmatpush.bf16.msra.mxu0 %v7904
        %9822 = vmatmul.bf16.gmra.mxu0 %v414
        %v9823 = vpop.f32.mrf.mxu0
        %v9824 = vadd.f32 %v9811, %v9823
        %v9825 = vpop.f32.mrf.mxu0
        %9826 = vdwg.mxu0
        %9827 = vmatpush.bf16.msra.mxu0 %v8084
        %9828 = vmatpush.bf16.msra.mxu0 %v8072
        %9829 = vmatpush.bf16.msra.mxu0 %v8060
        %9830 = vmatpush.bf16.msra.mxu0 %v8048
        %9831 = vmatpush.bf16.msra.mxu0 %v8036
        %9832 = vmatpush.bf16.msra.mxu0 %v8024
        %9833 = vmatpush.bf16.msra.mxu0 %v8012
        %9834 = vmatpush.bf16.msra.mxu0 %v8000
        %9835 = vmatmul.bf16.gmra.mxu0 %v415
        %v9836 = vpop.f32.mrf.mxu0
        %v9837 = vadd.f32 %v9824, %v9836
        %v9838 = vpop.f32.mrf.mxu0
        %9839 = vdwg.mxu0
        %9840 = vmatpush.bf16.msra.mxu0 %v6645
        %9841 = vmatpush.bf16.msra.mxu0 %v6633
        %9842 = vmatpush.bf16.msra.mxu0 %v6621
        %9843 = vmatpush.bf16.msra.mxu0 %v6609
        %9844 = vmatpush.bf16.msra.mxu0 %v6597
        %9845 = vmatpush.bf16.msra.mxu0 %v6585
        %9846 = vmatpush.bf16.msra.mxu0 %v6573
        %9847 = vmatpush.bf16.msra.mxu0 %v6561
        %9848 = vmatmul.bf16.gmra.mxu0 %v400
        %v9849 = vpop.f32.mrf.mxu0
        %v9850 = vadd.f32 0.0, %v9849
        %v9851 = vpop.f32.mrf.mxu0
        %9852 = vdwg.mxu0
        %9853 = vmatpush.bf16.msra.mxu0 %v6741
        %9854 = vmatpush.bf16.msra.mxu0 %v6729
        %9855 = vmatpush.bf16.msra.mxu0 %v6717
        %9856 = vmatpush.bf16.msra.mxu0 %v6705
        %9857 = vmatpush.bf16.msra.mxu0 %v6693
        %9858 = vmatpush.bf16.msra.mxu0 %v6681
        %9859 = vmatpush.bf16.msra.mxu0 %v6669
        %9860 = vmatpush.bf16.msra.mxu0 %v6657
        %9861 = vmatmul.bf16.gmra.mxu0 %v401
        %v9862 = vpop.f32.mrf.mxu0
        %v9863 = vadd.f32 %v9850, %v9862
        %v9864 = vpop.f32.mrf.mxu0
        %9865 = vdwg.mxu0
        %9866 = vmatpush.bf16.msra.mxu0 %v6837
        %9867 = vmatpush.bf16.msra.mxu0 %v6825
        %9868 = vmatpush.bf16.msra.mxu0 %v6813
        %9869 = vmatpush.bf16.msra.mxu0 %v6801
        %9870 = vmatpush.bf16.msra.mxu0 %v6789
        %9871 = vmatpush.bf16.msra.mxu0 %v6777
        %9872 = vmatpush.bf16.msra.mxu0 %v6765
        %9873 = vmatpush.bf16.msra.mxu0 %v6753
        %9874 = vmatmul.bf16.gmra.mxu0 %v402
        %v9875 = vpop.f32.mrf.mxu0
        %v9876 = vadd.f32 %v9863, %v9875
        %v9877 = vpop.f32.mrf.mxu0
        %9878 = vdwg.mxu0
        %9879 = vmatpush.bf16.msra.mxu0 %v6933
        %9880 = vmatpush.bf16.msra.mxu0 %v6921
        %9881 = vmatpush.bf16.msra.mxu0 %v6909
        %9882 = vmatpush.bf16.msra.mxu0 %v6897
        %9883 = vmatpush.bf16.msra.mxu0 %v6885
        %9884 = vmatpush.bf16.msra.mxu0 %v6873
        %9885 = vmatpush.bf16.msra.mxu0 %v6861
        %9886 = vmatpush.bf16.msra.mxu0 %v6849
        %9887 = vmatmul.bf16.gmra.mxu0 %v403
        %v9888 = vpop.f32.mrf.mxu0
        %v9889 = vadd.f32 %v9876, %v9888
        %v9890 = vpop.f32.mrf.mxu0
        %9891 = vdwg.mxu0
        %9892 = vmatpush.bf16.msra.mxu0 %v7029
        %9893 = vmatpush.bf16.msra.mxu0 %v7017
        %9894 = vmatpush.bf16.msra.mxu0 %v7005
        %9895 = vmatpush.bf16.msra.mxu0 %v6993
        %9896 = vmatpush.bf16.msra.mxu0 %v6981
        %9897 = vmatpush.bf16.msra.mxu0 %v6969
        %9898 = vmatpush.bf16.msra.mxu0 %v6957
        %9899 = vmatpush.bf16.msra.mxu0 %v6945
        %9900 = vmatmul.bf16.gmra.mxu0 %v404
        %v9901 = vpop.f32.mrf.mxu0
        %v9902 = vadd.f32 %v9889, %v9901
        %v9903 = vpop.f32.mrf.mxu0
        %9904 = vdwg.mxu0
        %9905 = vmatpush.bf16.msra.mxu0 %v7125
        %9906 = vmatpush.bf16.msra.mxu0 %v7113
        %9907 = vmatpush.bf16.msra.mxu0 %v7101
        %9908 = vmatpush.bf16.msra.mxu0 %v7089
        %9909 = vmatpush.bf16.msra.mxu0 %v7077
        %9910 = vmatpush.bf16.msra.mxu0 %v7065
        %9911 = vmatpush.bf16.msra.mxu0 %v7053
        %9912 = vmatpush.bf16.msra.mxu0 %v7041
        %9913 = vmatmul.bf16.gmra.mxu0 %v405
        %v9914 = vpop.f32.mrf.mxu0
        %v9915 = vadd.f32 %v9902, %v9914
        %v9916 = vpop.f32.mrf.mxu0
        %9917 = vdwg.mxu0
        %9918 = vmatpush.bf16.msra.mxu0 %v7221
        %9919 = vmatpush.bf16.msra.mxu0 %v7209
        %9920 = vmatpush.bf16.msra.mxu0 %v7197
        %9921 = vmatpush.bf16.msra.mxu0 %v7185
        %9922 = vmatpush.bf16.msra.mxu0 %v7173
        %9923 = vmatpush.bf16.msra.mxu0 %v7161
        %9924 = vmatpush.bf16.msra.mxu0 %v7149
        %9925 = vmatpush.bf16.msra.mxu0 %v7137
        %9926 = vmatmul.bf16.gmra.mxu0 %v406
        %v9927 = vpop.f32.mrf.mxu0
        %v9928 = vadd.f32 %v9915, %v9927
        %v9929 = vpop.f32.mrf.mxu0
        %9930 = vdwg.mxu0
        %9931 = vmatpush.bf16.msra.mxu0 %v7317
        %9932 = vmatpush.bf16.msra.mxu0 %v7305
        %9933 = vmatpush.bf16.msra.mxu0 %v7293
        %9934 = vmatpush.bf16.msra.mxu0 %v7281
        %9935 = vmatpush.bf16.msra.mxu0 %v7269
        %9936 = vmatpush.bf16.msra.mxu0 %v7257
        %9937 = vmatpush.bf16.msra.mxu0 %v7245
        %9938 = vmatpush.bf16.msra.mxu0 %v7233
        %9939 = vmatmul.bf16.gmra.mxu0 %v407
        %v9940 = vpop.f32.mrf.mxu0
        %v9941 = vadd.f32 %v9928, %v9940
        %v9942 = vpop.f32.mrf.mxu0
        %9943 = vdwg.mxu0
        %9944 = vmatpush.bf16.msra.mxu0 %v7413
        %9945 = vmatpush.bf16.msra.mxu0 %v7401
        %9946 = vmatpush.bf16.msra.mxu0 %v7389
        %9947 = vmatpush.bf16.msra.mxu0 %v7377
        %9948 = vmatpush.bf16.msra.mxu0 %v7365
        %9949 = vmatpush.bf16.msra.mxu0 %v7353
        %9950 = vmatpush.bf16.msra.mxu0 %v7341
        %9951 = vmatpush.bf16.msra.mxu0 %v7329
        %9952 = vmatmul.bf16.gmra.mxu0 %v408
        %v9953 = vpop.f32.mrf.mxu0
        %v9954 = vadd.f32 %v9941, %v9953
        %v9955 = vpop.f32.mrf.mxu0
        %9956 = vdwg.mxu0
        %9957 = vmatpush.bf16.msra.mxu0 %v7509
        %9958 = vmatpush.bf16.msra.mxu0 %v7497
        %9959 = vmatpush.bf16.msra.mxu0 %v7485
        %9960 = vmatpush.bf16.msra.mxu0 %v7473
        %9961 = vmatpush.bf16.msra.mxu0 %v7461
        %9962 = vmatpush.bf16.msra.mxu0 %v7449
        %9963 = vmatpush.bf16.msra.mxu0 %v7437
        %9964 = vmatpush.bf16.msra.mxu0 %v7425
        %9965 = vmatmul.bf16.gmra.mxu0 %v409
        %v9966 = vpop.f32.mrf.mxu0
        %v9967 = vadd.f32 %v9954, %v9966
        %v9968 = vpop.f32.mrf.mxu0
        %9969 = vdwg.mxu0
        %9970 = vmatpush.bf16.msra.mxu0 %v7605
        %9971 = vmatpush.bf16.msra.mxu0 %v7593
        %9972 = vmatpush.bf16.msra.mxu0 %v7581
        %9973 = vmatpush.bf16.msra.mxu0 %v7569
        %9974 = vmatpush.bf16.msra.mxu0 %v7557
        %9975 = vmatpush.bf16.msra.mxu0 %v7545
        %9976 = vmatpush.bf16.msra.mxu0 %v7533
        %9977 = vmatpush.bf16.msra.mxu0 %v7521
        %9978 = vmatmul.bf16.gmra.mxu0 %v410
        %v9979 = vpop.f32.mrf.mxu0
        %v9980 = vadd.f32 %v9967, %v9979
        %v9981 = vpop.f32.mrf.mxu0
        %9982 = vdwg.mxu0
        %9983 = vmatpush.bf16.msra.mxu0 %v7701
        %9984 = vmatpush.bf16.msra.mxu0 %v7689
        %9985 = vmatpush.bf16.msra.mxu0 %v7677
        %9986 = vmatpush.bf16.msra.mxu0 %v7665
        %9987 = vmatpush.bf16.msra.mxu0 %v7653
        %9988 = vmatpush.bf16.msra.mxu0 %v7641
        %9989 = vmatpush.bf16.msra.mxu0 %v7629
        %9990 = vmatpush.bf16.msra.mxu0 %v7617
        %9991 = vmatmul.bf16.gmra.mxu0 %v411
        %v9992 = vpop.f32.mrf.mxu0
        %v9993 = vadd.f32 %v9980, %v9992
        %v9994 = vpop.f32.mrf.mxu0
        %9995 = vdwg.mxu0
        %9996 = vmatpush.bf16.msra.mxu0 %v7797
        %9997 = vmatpush.bf16.msra.mxu0 %v7785
        %9998 = vmatpush.bf16.msra.mxu0 %v7773
        %9999 = vmatpush.bf16.msra.mxu0 %v7761
        %10000 = vmatpush.bf16.msra.mxu0 %v7749
        %10001 = vmatpush.bf16.msra.mxu0 %v7737
        %10002 = vmatpush.bf16.msra.mxu0 %v7725
        %10003 = vmatpush.bf16.msra.mxu0 %v7713
        %10004 = vmatmul.bf16.gmra.mxu0 %v412
        %v10005 = vpop.f32.mrf.mxu0
        %v10006 = vadd.f32 %v9993, %v10005
        %v10007 = vpop.f32.mrf.mxu0
        %10008 = vdwg.mxu0
        %10009 = vmatpush.bf16.msra.mxu0 %v7893
        %10010 = vmatpush.bf16.msra.mxu0 %v7881
        %10011 = vmatpush.bf16.msra.mxu0 %v7869
        %10012 = vmatpush.bf16.msra.mxu0 %v7857
        %10013 = vmatpush.bf16.msra.mxu0 %v7845
        %10014 = vmatpush.bf16.msra.mxu0 %v7833
        %10015 = vmatpush.bf16.msra.mxu0 %v7821
        %10016 = vmatpush.bf16.msra.mxu0 %v7809
        %10017 = vmatmul.bf16.gmra.mxu0 %v413
        %v10018 = vpop.f32.mrf.mxu0
        %v10019 = vadd.f32 %v10006, %v10018
        %v10020 = vpop.f32.mrf.mxu0
        %10021 = vdwg.mxu0
        %10022 = vmatpush.bf16.msra.mxu0 %v7989
        %10023 = vmatpush.bf16.msra.mxu0 %v7977
        %10024 = vmatpush.bf16.msra.mxu0 %v7965
        %10025 = vmatpush.bf16.msra.mxu0 %v7953
        %10026 = vmatpush.bf16.msra.mxu0 %v7941
        %10027 = vmatpush.bf16.msra.mxu0 %v7929
        %10028 = vmatpush.bf16.msra.mxu0 %v7917
        %10029 = vmatpush.bf16.msra.mxu0 %v7905
        %10030 = vmatmul.bf16.gmra.mxu0 %v414
        %v10031 = vpop.f32.mrf.mxu0
        %v10032 = vadd.f32 %v10019, %v10031
        %v10033 = vpop.f32.mrf.mxu0
        %10034 = vdwg.mxu0
        %10035 = vmatpush.bf16.msra.mxu0 %v8085
        %10036 = vmatpush.bf16.msra.mxu0 %v8073
        %10037 = vmatpush.bf16.msra.mxu0 %v8061
        %10038 = vmatpush.bf16.msra.mxu0 %v8049
        %10039 = vmatpush.bf16.msra.mxu0 %v8037
        %10040 = vmatpush.bf16.msra.mxu0 %v8025
        %10041 = vmatpush.bf16.msra.mxu0 %v8013
        %10042 = vmatpush.bf16.msra.mxu0 %v8001
        %10043 = vmatmul.bf16.gmra.mxu0 %v415
        %v10044 = vpop.f32.mrf.mxu0
        %v10045 = vadd.f32 %v10032, %v10044
        %v10046 = vpop.f32.mrf.mxu0
        %10047 = vdwg.mxu0
        %10048 = vmatpush.bf16.msra.mxu0 %v6646
        %10049 = vmatpush.bf16.msra.mxu0 %v6634
        %10050 = vmatpush.bf16.msra.mxu0 %v6622
        %10051 = vmatpush.bf16.msra.mxu0 %v6610
        %10052 = vmatpush.bf16.msra.mxu0 %v6598
        %10053 = vmatpush.bf16.msra.mxu0 %v6586
        %10054 = vmatpush.bf16.msra.mxu0 %v6574
        %10055 = vmatpush.bf16.msra.mxu0 %v6562
        %10056 = vmatmul.bf16.gmra.mxu0 %v400
        %v10057 = vpop.f32.mrf.mxu0
        %v10058 = vadd.f32 0.0, %v10057
        %v10059 = vpop.f32.mrf.mxu0
        %10060 = vdwg.mxu0
        %10061 = vmatpush.bf16.msra.mxu0 %v6742
        %10062 = vmatpush.bf16.msra.mxu0 %v6730
        %10063 = vmatpush.bf16.msra.mxu0 %v6718
        %10064 = vmatpush.bf16.msra.mxu0 %v6706
        %10065 = vmatpush.bf16.msra.mxu0 %v6694
        %10066 = vmatpush.bf16.msra.mxu0 %v6682
        %10067 = vmatpush.bf16.msra.mxu0 %v6670
        %10068 = vmatpush.bf16.msra.mxu0 %v6658
        %10069 = vmatmul.bf16.gmra.mxu0 %v401
        %v10070 = vpop.f32.mrf.mxu0
        %v10071 = vadd.f32 %v10058, %v10070
        %v10072 = vpop.f32.mrf.mxu0
        %10073 = vdwg.mxu0
        %10074 = vmatpush.bf16.msra.mxu0 %v6838
        %10075 = vmatpush.bf16.msra.mxu0 %v6826
        %10076 = vmatpush.bf16.msra.mxu0 %v6814
        %10077 = vmatpush.bf16.msra.mxu0 %v6802
        %10078 = vmatpush.bf16.msra.mxu0 %v6790
        %10079 = vmatpush.bf16.msra.mxu0 %v6778
        %10080 = vmatpush.bf16.msra.mxu0 %v6766
        %10081 = vmatpush.bf16.msra.mxu0 %v6754
        %10082 = vmatmul.bf16.gmra.mxu0 %v402
        %v10083 = vpop.f32.mrf.mxu0
        %v10084 = vadd.f32 %v10071, %v10083
        %v10085 = vpop.f32.mrf.mxu0
        %10086 = vdwg.mxu0
        %10087 = vmatpush.bf16.msra.mxu0 %v6934
        %10088 = vmatpush.bf16.msra.mxu0 %v6922
        %10089 = vmatpush.bf16.msra.mxu0 %v6910
        %10090 = vmatpush.bf16.msra.mxu0 %v6898
        %10091 = vmatpush.bf16.msra.mxu0 %v6886
        %10092 = vmatpush.bf16.msra.mxu0 %v6874
        %10093 = vmatpush.bf16.msra.mxu0 %v6862
        %10094 = vmatpush.bf16.msra.mxu0 %v6850
        %10095 = vmatmul.bf16.gmra.mxu0 %v403
        %v10096 = vpop.f32.mrf.mxu0
        %v10097 = vadd.f32 %v10084, %v10096
        %v10098 = vpop.f32.mrf.mxu0
        %10099 = vdwg.mxu0
        %10100 = vmatpush.bf16.msra.mxu0 %v7030
        %10101 = vmatpush.bf16.msra.mxu0 %v7018
        %10102 = vmatpush.bf16.msra.mxu0 %v7006
        %10103 = vmatpush.bf16.msra.mxu0 %v6994
        %10104 = vmatpush.bf16.msra.mxu0 %v6982
        %10105 = vmatpush.bf16.msra.mxu0 %v6970
        %10106 = vmatpush.bf16.msra.mxu0 %v6958
        %10107 = vmatpush.bf16.msra.mxu0 %v6946
        %10108 = vmatmul.bf16.gmra.mxu0 %v404
        %v10109 = vpop.f32.mrf.mxu0
        %v10110 = vadd.f32 %v10097, %v10109
        %v10111 = vpop.f32.mrf.mxu0
        %10112 = vdwg.mxu0
        %10113 = vmatpush.bf16.msra.mxu0 %v7126
        %10114 = vmatpush.bf16.msra.mxu0 %v7114
        %10115 = vmatpush.bf16.msra.mxu0 %v7102
        %10116 = vmatpush.bf16.msra.mxu0 %v7090
        %10117 = vmatpush.bf16.msra.mxu0 %v7078
        %10118 = vmatpush.bf16.msra.mxu0 %v7066
        %10119 = vmatpush.bf16.msra.mxu0 %v7054
        %10120 = vmatpush.bf16.msra.mxu0 %v7042
        %10121 = vmatmul.bf16.gmra.mxu0 %v405
        %v10122 = vpop.f32.mrf.mxu0
        %v10123 = vadd.f32 %v10110, %v10122
        %v10124 = vpop.f32.mrf.mxu0
        %10125 = vdwg.mxu0
        %10126 = vmatpush.bf16.msra.mxu0 %v7222
        %10127 = vmatpush.bf16.msra.mxu0 %v7210
        %10128 = vmatpush.bf16.msra.mxu0 %v7198
        %10129 = vmatpush.bf16.msra.mxu0 %v7186
        %10130 = vmatpush.bf16.msra.mxu0 %v7174
        %10131 = vmatpush.bf16.msra.mxu0 %v7162
        %10132 = vmatpush.bf16.msra.mxu0 %v7150
        %10133 = vmatpush.bf16.msra.mxu0 %v7138
        %10134 = vmatmul.bf16.gmra.mxu0 %v406
        %v10135 = vpop.f32.mrf.mxu0
        %v10136 = vadd.f32 %v10123, %v10135
        %v10137 = vpop.f32.mrf.mxu0
        %10138 = vdwg.mxu0
        %10139 = vmatpush.bf16.msra.mxu0 %v7318
        %10140 = vmatpush.bf16.msra.mxu0 %v7306
        %10141 = vmatpush.bf16.msra.mxu0 %v7294
        %10142 = vmatpush.bf16.msra.mxu0 %v7282
        %10143 = vmatpush.bf16.msra.mxu0 %v7270
        %10144 = vmatpush.bf16.msra.mxu0 %v7258
        %10145 = vmatpush.bf16.msra.mxu0 %v7246
        %10146 = vmatpush.bf16.msra.mxu0 %v7234
        %10147 = vmatmul.bf16.gmra.mxu0 %v407
        %v10148 = vpop.f32.mrf.mxu0
        %v10149 = vadd.f32 %v10136, %v10148
        %v10150 = vpop.f32.mrf.mxu0
        %10151 = vdwg.mxu0
        %10152 = vmatpush.bf16.msra.mxu0 %v7414
        %10153 = vmatpush.bf16.msra.mxu0 %v7402
        %10154 = vmatpush.bf16.msra.mxu0 %v7390
        %10155 = vmatpush.bf16.msra.mxu0 %v7378
        %10156 = vmatpush.bf16.msra.mxu0 %v7366
        %10157 = vmatpush.bf16.msra.mxu0 %v7354
        %10158 = vmatpush.bf16.msra.mxu0 %v7342
        %10159 = vmatpush.bf16.msra.mxu0 %v7330
        %10160 = vmatmul.bf16.gmra.mxu0 %v408
        %v10161 = vpop.f32.mrf.mxu0
        %v10162 = vadd.f32 %v10149, %v10161
        %v10163 = vpop.f32.mrf.mxu0
        %10164 = vdwg.mxu0
        %10165 = vmatpush.bf16.msra.mxu0 %v7510
        %10166 = vmatpush.bf16.msra.mxu0 %v7498
        %10167 = vmatpush.bf16.msra.mxu0 %v7486
        %10168 = vmatpush.bf16.msra.mxu0 %v7474
        %10169 = vmatpush.bf16.msra.mxu0 %v7462
        %10170 = vmatpush.bf16.msra.mxu0 %v7450
        %10171 = vmatpush.bf16.msra.mxu0 %v7438
        %10172 = vmatpush.bf16.msra.mxu0 %v7426
        %10173 = vmatmul.bf16.gmra.mxu0 %v409
        %v10174 = vpop.f32.mrf.mxu0
        %v10175 = vadd.f32 %v10162, %v10174
        %v10176 = vpop.f32.mrf.mxu0
        %10177 = vdwg.mxu0
        %10178 = vmatpush.bf16.msra.mxu0 %v7606
        %10179 = vmatpush.bf16.msra.mxu0 %v7594
        %10180 = vmatpush.bf16.msra.mxu0 %v7582
        %10181 = vmatpush.bf16.msra.mxu0 %v7570
        %10182 = vmatpush.bf16.msra.mxu0 %v7558
        %10183 = vmatpush.bf16.msra.mxu0 %v7546
        %10184 = vmatpush.bf16.msra.mxu0 %v7534
        %10185 = vmatpush.bf16.msra.mxu0 %v7522
        %10186 = vmatmul.bf16.gmra.mxu0 %v410
        %v10187 = vpop.f32.mrf.mxu0
        %v10188 = vadd.f32 %v10175, %v10187
        %v10189 = vpop.f32.mrf.mxu0
        %10190 = vdwg.mxu0
        %10191 = vmatpush.bf16.msra.mxu0 %v7702
        %10192 = vmatpush.bf16.msra.mxu0 %v7690
        %10193 = vmatpush.bf16.msra.mxu0 %v7678
        %10194 = vmatpush.bf16.msra.mxu0 %v7666
        %10195 = vmatpush.bf16.msra.mxu0 %v7654
        %10196 = vmatpush.bf16.msra.mxu0 %v7642
        %10197 = vmatpush.bf16.msra.mxu0 %v7630
        %10198 = vmatpush.bf16.msra.mxu0 %v7618
        %10199 = vmatmul.bf16.gmra.mxu0 %v411
        %v10200 = vpop.f32.mrf.mxu0
        %v10201 = vadd.f32 %v10188, %v10200
        %v10202 = vpop.f32.mrf.mxu0
        %10203 = vdwg.mxu0
        %10204 = vmatpush.bf16.msra.mxu0 %v7798
        %10205 = vmatpush.bf16.msra.mxu0 %v7786
        %10206 = vmatpush.bf16.msra.mxu0 %v7774
        %10207 = vmatpush.bf16.msra.mxu0 %v7762
        %10208 = vmatpush.bf16.msra.mxu0 %v7750
        %10209 = vmatpush.bf16.msra.mxu0 %v7738
        %10210 = vmatpush.bf16.msra.mxu0 %v7726
        %10211 = vmatpush.bf16.msra.mxu0 %v7714
        %10212 = vmatmul.bf16.gmra.mxu0 %v412
        %v10213 = vpop.f32.mrf.mxu0
        %v10214 = vadd.f32 %v10201, %v10213
        %v10215 = vpop.f32.mrf.mxu0
        %10216 = vdwg.mxu0
        %10217 = vmatpush.bf16.msra.mxu0 %v7894
        %10218 = vmatpush.bf16.msra.mxu0 %v7882
        %10219 = vmatpush.bf16.msra.mxu0 %v7870
        %10220 = vmatpush.bf16.msra.mxu0 %v7858
        %10221 = vmatpush.bf16.msra.mxu0 %v7846
        %10222 = vmatpush.bf16.msra.mxu0 %v7834
        %10223 = vmatpush.bf16.msra.mxu0 %v7822
        %10224 = vmatpush.bf16.msra.mxu0 %v7810
        %10225 = vmatmul.bf16.gmra.mxu0 %v413
        %v10226 = vpop.f32.mrf.mxu0
        %v10227 = vadd.f32 %v10214, %v10226
        %v10228 = vpop.f32.mrf.mxu0
        %10229 = vdwg.mxu0
        %10230 = vmatpush.bf16.msra.mxu0 %v7990
        %10231 = vmatpush.bf16.msra.mxu0 %v7978
        %10232 = vmatpush.bf16.msra.mxu0 %v7966
        %10233 = vmatpush.bf16.msra.mxu0 %v7954
        %10234 = vmatpush.bf16.msra.mxu0 %v7942
        %10235 = vmatpush.bf16.msra.mxu0 %v7930
        %10236 = vmatpush.bf16.msra.mxu0 %v7918
        %10237 = vmatpush.bf16.msra.mxu0 %v7906
        %10238 = vmatmul.bf16.gmra.mxu0 %v414
        %v10239 = vpop.f32.mrf.mxu0
        %v10240 = vadd.f32 %v10227, %v10239
        %v10241 = vpop.f32.mrf.mxu0
        %10242 = vdwg.mxu0
        %10243 = vmatpush.bf16.msra.mxu0 %v8086
        %10244 = vmatpush.bf16.msra.mxu0 %v8074
        %10245 = vmatpush.bf16.msra.mxu0 %v8062
        %10246 = vmatpush.bf16.msra.mxu0 %v8050
        %10247 = vmatpush.bf16.msra.mxu0 %v8038
        %10248 = vmatpush.bf16.msra.mxu0 %v8026
        %10249 = vmatpush.bf16.msra.mxu0 %v8014
        %10250 = vmatpush.bf16.msra.mxu0 %v8002
        %10251 = vmatmul.bf16.gmra.mxu0 %v415
        %v10252 = vpop.f32.mrf.mxu0
        %v10253 = vadd.f32 %v10240, %v10252
        %v10254 = vpop.f32.mrf.mxu0
        %10255 = vdwg.mxu0
        %10256 = vmatpush.bf16.msra.mxu0 %v6647
        %10257 = vmatpush.bf16.msra.mxu0 %v6635
        %10258 = vmatpush.bf16.msra.mxu0 %v6623
        %10259 = vmatpush.bf16.msra.mxu0 %v6611
        %10260 = vmatpush.bf16.msra.mxu0 %v6599
        %10261 = vmatpush.bf16.msra.mxu0 %v6587
        %10262 = vmatpush.bf16.msra.mxu0 %v6575
        %10263 = vmatpush.bf16.msra.mxu0 %v6563
        %10264 = vmatmul.bf16.gmra.mxu0 %v400
        %v10265 = vpop.f32.mrf.mxu0
        %v10266 = vadd.f32 0.0, %v10265
        %v10267 = vpop.f32.mrf.mxu0
        %10268 = vdwg.mxu0
        %10269 = vmatpush.bf16.msra.mxu0 %v6743
        %10270 = vmatpush.bf16.msra.mxu0 %v6731
        %10271 = vmatpush.bf16.msra.mxu0 %v6719
        %10272 = vmatpush.bf16.msra.mxu0 %v6707
        %10273 = vmatpush.bf16.msra.mxu0 %v6695
        %10274 = vmatpush.bf16.msra.mxu0 %v6683
        %10275 = vmatpush.bf16.msra.mxu0 %v6671
        %10276 = vmatpush.bf16.msra.mxu0 %v6659
        %10277 = vmatmul.bf16.gmra.mxu0 %v401
        %v10278 = vpop.f32.mrf.mxu0
        %v10279 = vadd.f32 %v10266, %v10278
        %v10280 = vpop.f32.mrf.mxu0
        %10281 = vdwg.mxu0
        %10282 = vmatpush.bf16.msra.mxu0 %v6839
        %10283 = vmatpush.bf16.msra.mxu0 %v6827
        %10284 = vmatpush.bf16.msra.mxu0 %v6815
        %10285 = vmatpush.bf16.msra.mxu0 %v6803
        %10286 = vmatpush.bf16.msra.mxu0 %v6791
        %10287 = vmatpush.bf16.msra.mxu0 %v6779
        %10288 = vmatpush.bf16.msra.mxu0 %v6767
        %10289 = vmatpush.bf16.msra.mxu0 %v6755
        %10290 = vmatmul.bf16.gmra.mxu0 %v402
        %v10291 = vpop.f32.mrf.mxu0
        %v10292 = vadd.f32 %v10279, %v10291
        %v10293 = vpop.f32.mrf.mxu0
        %10294 = vdwg.mxu0
        %10295 = vmatpush.bf16.msra.mxu0 %v6935
        %10296 = vmatpush.bf16.msra.mxu0 %v6923
        %10297 = vmatpush.bf16.msra.mxu0 %v6911
        %10298 = vmatpush.bf16.msra.mxu0 %v6899
        %10299 = vmatpush.bf16.msra.mxu0 %v6887
        %10300 = vmatpush.bf16.msra.mxu0 %v6875
        %10301 = vmatpush.bf16.msra.mxu0 %v6863
        %10302 = vmatpush.bf16.msra.mxu0 %v6851
        %10303 = vmatmul.bf16.gmra.mxu0 %v403
        %v10304 = vpop.f32.mrf.mxu0
        %v10305 = vadd.f32 %v10292, %v10304
        %v10306 = vpop.f32.mrf.mxu0
        %10307 = vdwg.mxu0
        %10308 = vmatpush.bf16.msra.mxu0 %v7031
        %10309 = vmatpush.bf16.msra.mxu0 %v7019
        %10310 = vmatpush.bf16.msra.mxu0 %v7007
        %10311 = vmatpush.bf16.msra.mxu0 %v6995
        %10312 = vmatpush.bf16.msra.mxu0 %v6983
        %10313 = vmatpush.bf16.msra.mxu0 %v6971
        %10314 = vmatpush.bf16.msra.mxu0 %v6959
        %10315 = vmatpush.bf16.msra.mxu0 %v6947
        %10316 = vmatmul.bf16.gmra.mxu0 %v404
        %v10317 = vpop.f32.mrf.mxu0
        %v10318 = vadd.f32 %v10305, %v10317
        %v10319 = vpop.f32.mrf.mxu0
        %10320 = vdwg.mxu0
        %10321 = vmatpush.bf16.msra.mxu0 %v7127
        %10322 = vmatpush.bf16.msra.mxu0 %v7115
        %10323 = vmatpush.bf16.msra.mxu0 %v7103
        %10324 = vmatpush.bf16.msra.mxu0 %v7091
        %10325 = vmatpush.bf16.msra.mxu0 %v7079
        %10326 = vmatpush.bf16.msra.mxu0 %v7067
        %10327 = vmatpush.bf16.msra.mxu0 %v7055
        %10328 = vmatpush.bf16.msra.mxu0 %v7043
        %10329 = vmatmul.bf16.gmra.mxu0 %v405
        %v10330 = vpop.f32.mrf.mxu0
        %v10331 = vadd.f32 %v10318, %v10330
        %v10332 = vpop.f32.mrf.mxu0
        %10333 = vdwg.mxu0
        %10334 = vmatpush.bf16.msra.mxu0 %v7223
        %10335 = vmatpush.bf16.msra.mxu0 %v7211
        %10336 = vmatpush.bf16.msra.mxu0 %v7199
        %10337 = vmatpush.bf16.msra.mxu0 %v7187
        %10338 = vmatpush.bf16.msra.mxu0 %v7175
        %10339 = vmatpush.bf16.msra.mxu0 %v7163
        %10340 = vmatpush.bf16.msra.mxu0 %v7151
        %10341 = vmatpush.bf16.msra.mxu0 %v7139
        %10342 = vmatmul.bf16.gmra.mxu0 %v406
        %v10343 = vpop.f32.mrf.mxu0
        %v10344 = vadd.f32 %v10331, %v10343
        %v10345 = vpop.f32.mrf.mxu0
        %10346 = vdwg.mxu0
        %10347 = vmatpush.bf16.msra.mxu0 %v7319
        %10348 = vmatpush.bf16.msra.mxu0 %v7307
        %10349 = vmatpush.bf16.msra.mxu0 %v7295
        %10350 = vmatpush.bf16.msra.mxu0 %v7283
        %10351 = vmatpush.bf16.msra.mxu0 %v7271
        %10352 = vmatpush.bf16.msra.mxu0 %v7259
        %10353 = vmatpush.bf16.msra.mxu0 %v7247
        %10354 = vmatpush.bf16.msra.mxu0 %v7235
        %10355 = vmatmul.bf16.gmra.mxu0 %v407
        %v10356 = vpop.f32.mrf.mxu0
        %v10357 = vadd.f32 %v10344, %v10356
        %v10358 = vpop.f32.mrf.mxu0
        %10359 = vdwg.mxu0
        %10360 = vmatpush.bf16.msra.mxu0 %v7415
        %10361 = vmatpush.bf16.msra.mxu0 %v7403
        %10362 = vmatpush.bf16.msra.mxu0 %v7391
        %10363 = vmatpush.bf16.msra.mxu0 %v7379
        %10364 = vmatpush.bf16.msra.mxu0 %v7367
        %10365 = vmatpush.bf16.msra.mxu0 %v7355
        %10366 = vmatpush.bf16.msra.mxu0 %v7343
        %10367 = vmatpush.bf16.msra.mxu0 %v7331
        %10368 = vmatmul.bf16.gmra.mxu0 %v408
        %v10369 = vpop.f32.mrf.mxu0
        %v10370 = vadd.f32 %v10357, %v10369
        %v10371 = vpop.f32.mrf.mxu0
        %10372 = vdwg.mxu0
        %10373 = vmatpush.bf16.msra.mxu0 %v7511
        %10374 = vmatpush.bf16.msra.mxu0 %v7499
        %10375 = vmatpush.bf16.msra.mxu0 %v7487
        %10376 = vmatpush.bf16.msra.mxu0 %v7475
        %10377 = vmatpush.bf16.msra.mxu0 %v7463
        %10378 = vmatpush.bf16.msra.mxu0 %v7451
        %10379 = vmatpush.bf16.msra.mxu0 %v7439
        %10380 = vmatpush.bf16.msra.mxu0 %v7427
        %10381 = vmatmul.bf16.gmra.mxu0 %v409
        %v10382 = vpop.f32.mrf.mxu0
        %v10383 = vadd.f32 %v10370, %v10382
        %v10384 = vpop.f32.mrf.mxu0
        %10385 = vdwg.mxu0
        %10386 = vmatpush.bf16.msra.mxu0 %v7607
        %10387 = vmatpush.bf16.msra.mxu0 %v7595
        %10388 = vmatpush.bf16.msra.mxu0 %v7583
        %10389 = vmatpush.bf16.msra.mxu0 %v7571
        %10390 = vmatpush.bf16.msra.mxu0 %v7559
        %10391 = vmatpush.bf16.msra.mxu0 %v7547
        %10392 = vmatpush.bf16.msra.mxu0 %v7535
        %10393 = vmatpush.bf16.msra.mxu0 %v7523
        %10394 = vmatmul.bf16.gmra.mxu0 %v410
        %v10395 = vpop.f32.mrf.mxu0
        %v10396 = vadd.f32 %v10383, %v10395
        %v10397 = vpop.f32.mrf.mxu0
        %10398 = vdwg.mxu0
        %10399 = vmatpush.bf16.msra.mxu0 %v7703
        %10400 = vmatpush.bf16.msra.mxu0 %v7691
        %10401 = vmatpush.bf16.msra.mxu0 %v7679
        %10402 = vmatpush.bf16.msra.mxu0 %v7667
        %10403 = vmatpush.bf16.msra.mxu0 %v7655
        %10404 = vmatpush.bf16.msra.mxu0 %v7643
        %10405 = vmatpush.bf16.msra.mxu0 %v7631
        %10406 = vmatpush.bf16.msra.mxu0 %v7619
        %10407 = vmatmul.bf16.gmra.mxu0 %v411
        %v10408 = vpop.f32.mrf.mxu0
        %v10409 = vadd.f32 %v10396, %v10408
        %v10410 = vpop.f32.mrf.mxu0
        %10411 = vdwg.mxu0
        %10412 = vmatpush.bf16.msra.mxu0 %v7799
        %10413 = vmatpush.bf16.msra.mxu0 %v7787
        %10414 = vmatpush.bf16.msra.mxu0 %v7775
        %10415 = vmatpush.bf16.msra.mxu0 %v7763
        %10416 = vmatpush.bf16.msra.mxu0 %v7751
        %10417 = vmatpush.bf16.msra.mxu0 %v7739
        %10418 = vmatpush.bf16.msra.mxu0 %v7727
        %10419 = vmatpush.bf16.msra.mxu0 %v7715
        %10420 = vmatmul.bf16.gmra.mxu0 %v412
        %v10421 = vpop.f32.mrf.mxu0
        %v10422 = vadd.f32 %v10409, %v10421
        %v10423 = vpop.f32.mrf.mxu0
        %10424 = vdwg.mxu0
        %10425 = vmatpush.bf16.msra.mxu0 %v7895
        %10426 = vmatpush.bf16.msra.mxu0 %v7883
        %10427 = vmatpush.bf16.msra.mxu0 %v7871
        %10428 = vmatpush.bf16.msra.mxu0 %v7859
        %10429 = vmatpush.bf16.msra.mxu0 %v7847
        %10430 = vmatpush.bf16.msra.mxu0 %v7835
        %10431 = vmatpush.bf16.msra.mxu0 %v7823
        %10432 = vmatpush.bf16.msra.mxu0 %v7811
        %10433 = vmatmul.bf16.gmra.mxu0 %v413
        %v10434 = vpop.f32.mrf.mxu0
        %v10435 = vadd.f32 %v10422, %v10434
        %v10436 = vpop.f32.mrf.mxu0
        %10437 = vdwg.mxu0
        %10438 = vmatpush.bf16.msra.mxu0 %v7991
        %10439 = vmatpush.bf16.msra.mxu0 %v7979
        %10440 = vmatpush.bf16.msra.mxu0 %v7967
        %10441 = vmatpush.bf16.msra.mxu0 %v7955
        %10442 = vmatpush.bf16.msra.mxu0 %v7943
        %10443 = vmatpush.bf16.msra.mxu0 %v7931
        %10444 = vmatpush.bf16.msra.mxu0 %v7919
        %10445 = vmatpush.bf16.msra.mxu0 %v7907
        %10446 = vmatmul.bf16.gmra.mxu0 %v414
        %v10447 = vpop.f32.mrf.mxu0
        %v10448 = vadd.f32 %v10435, %v10447
        %v10449 = vpop.f32.mrf.mxu0
        %10450 = vdwg.mxu0
        %10451 = vmatpush.bf16.msra.mxu0 %v8087
        %10452 = vmatpush.bf16.msra.mxu0 %v8075
        %10453 = vmatpush.bf16.msra.mxu0 %v8063
        %10454 = vmatpush.bf16.msra.mxu0 %v8051
        %10455 = vmatpush.bf16.msra.mxu0 %v8039
        %10456 = vmatpush.bf16.msra.mxu0 %v8027
        %10457 = vmatpush.bf16.msra.mxu0 %v8015
        %10458 = vmatpush.bf16.msra.mxu0 %v8003
        %10459 = vmatmul.bf16.gmra.mxu0 %v415
        %v10460 = vpop.f32.mrf.mxu0
        %v10461 = vadd.f32 %v10448, %v10460
        %v10462 = vpop.f32.mrf.mxu0
        %10463 = vdwg.mxu0
        %10464 = vmatpush.bf16.msra.mxu0 %v6648
        %10465 = vmatpush.bf16.msra.mxu0 %v6636
        %10466 = vmatpush.bf16.msra.mxu0 %v6624
        %10467 = vmatpush.bf16.msra.mxu0 %v6612
        %10468 = vmatpush.bf16.msra.mxu0 %v6600
        %10469 = vmatpush.bf16.msra.mxu0 %v6588
        %10470 = vmatpush.bf16.msra.mxu0 %v6576
        %10471 = vmatpush.bf16.msra.mxu0 %v6564
        %10472 = vmatmul.bf16.gmra.mxu0 %v400
        %v10473 = vpop.f32.mrf.mxu0
        %v10474 = vadd.f32 0.0, %v10473
        %v10475 = vpop.f32.mrf.mxu0
        %10476 = vdwg.mxu0
        %10477 = vmatpush.bf16.msra.mxu0 %v6744
        %10478 = vmatpush.bf16.msra.mxu0 %v6732
        %10479 = vmatpush.bf16.msra.mxu0 %v6720
        %10480 = vmatpush.bf16.msra.mxu0 %v6708
        %10481 = vmatpush.bf16.msra.mxu0 %v6696
        %10482 = vmatpush.bf16.msra.mxu0 %v6684
        %10483 = vmatpush.bf16.msra.mxu0 %v6672
        %10484 = vmatpush.bf16.msra.mxu0 %v6660
        %10485 = vmatmul.bf16.gmra.mxu0 %v401
        %v10486 = vpop.f32.mrf.mxu0
        %v10487 = vadd.f32 %v10474, %v10486
        %v10488 = vpop.f32.mrf.mxu0
        %10489 = vdwg.mxu0
        %10490 = vmatpush.bf16.msra.mxu0 %v6840
        %10491 = vmatpush.bf16.msra.mxu0 %v6828
        %10492 = vmatpush.bf16.msra.mxu0 %v6816
        %10493 = vmatpush.bf16.msra.mxu0 %v6804
        %10494 = vmatpush.bf16.msra.mxu0 %v6792
        %10495 = vmatpush.bf16.msra.mxu0 %v6780
        %10496 = vmatpush.bf16.msra.mxu0 %v6768
        %10497 = vmatpush.bf16.msra.mxu0 %v6756
        %10498 = vmatmul.bf16.gmra.mxu0 %v402
        %v10499 = vpop.f32.mrf.mxu0
        %v10500 = vadd.f32 %v10487, %v10499
        %v10501 = vpop.f32.mrf.mxu0
        %10502 = vdwg.mxu0
        %10503 = vmatpush.bf16.msra.mxu0 %v6936
        %10504 = vmatpush.bf16.msra.mxu0 %v6924
        %10505 = vmatpush.bf16.msra.mxu0 %v6912
        %10506 = vmatpush.bf16.msra.mxu0 %v6900
        %10507 = vmatpush.bf16.msra.mxu0 %v6888
        %10508 = vmatpush.bf16.msra.mxu0 %v6876
        %10509 = vmatpush.bf16.msra.mxu0 %v6864
        %10510 = vmatpush.bf16.msra.mxu0 %v6852
        %10511 = vmatmul.bf16.gmra.mxu0 %v403
        %v10512 = vpop.f32.mrf.mxu0
        %v10513 = vadd.f32 %v10500, %v10512
        %v10514 = vpop.f32.mrf.mxu0
        %10515 = vdwg.mxu0
        %10516 = vmatpush.bf16.msra.mxu0 %v7032
        %10517 = vmatpush.bf16.msra.mxu0 %v7020
        %10518 = vmatpush.bf16.msra.mxu0 %v7008
        %10519 = vmatpush.bf16.msra.mxu0 %v6996
        %10520 = vmatpush.bf16.msra.mxu0 %v6984
        %10521 = vmatpush.bf16.msra.mxu0 %v6972
        %10522 = vmatpush.bf16.msra.mxu0 %v6960
        %10523 = vmatpush.bf16.msra.mxu0 %v6948
        %10524 = vmatmul.bf16.gmra.mxu0 %v404
        %v10525 = vpop.f32.mrf.mxu0
        %v10526 = vadd.f32 %v10513, %v10525
        %v10527 = vpop.f32.mrf.mxu0
        %10528 = vdwg.mxu0
        %10529 = vmatpush.bf16.msra.mxu0 %v7128
        %10530 = vmatpush.bf16.msra.mxu0 %v7116
        %10531 = vmatpush.bf16.msra.mxu0 %v7104
        %10532 = vmatpush.bf16.msra.mxu0 %v7092
        %10533 = vmatpush.bf16.msra.mxu0 %v7080
        %10534 = vmatpush.bf16.msra.mxu0 %v7068
        %10535 = vmatpush.bf16.msra.mxu0 %v7056
        %10536 = vmatpush.bf16.msra.mxu0 %v7044
        %10537 = vmatmul.bf16.gmra.mxu0 %v405
        %v10538 = vpop.f32.mrf.mxu0
        %v10539 = vadd.f32 %v10526, %v10538
        %v10540 = vpop.f32.mrf.mxu0
        %10541 = vdwg.mxu0
        %10542 = vmatpush.bf16.msra.mxu0 %v7224
        %10543 = vmatpush.bf16.msra.mxu0 %v7212
        %10544 = vmatpush.bf16.msra.mxu0 %v7200
        %10545 = vmatpush.bf16.msra.mxu0 %v7188
        %10546 = vmatpush.bf16.msra.mxu0 %v7176
        %10547 = vmatpush.bf16.msra.mxu0 %v7164
        %10548 = vmatpush.bf16.msra.mxu0 %v7152
        %10549 = vmatpush.bf16.msra.mxu0 %v7140
        %10550 = vmatmul.bf16.gmra.mxu0 %v406
        %v10551 = vpop.f32.mrf.mxu0
        %v10552 = vadd.f32 %v10539, %v10551
        %v10553 = vpop.f32.mrf.mxu0
        %10554 = vdwg.mxu0
        %10555 = vmatpush.bf16.msra.mxu0 %v7320
        %10556 = vmatpush.bf16.msra.mxu0 %v7308
        %10557 = vmatpush.bf16.msra.mxu0 %v7296
        %10558 = vmatpush.bf16.msra.mxu0 %v7284
        %10559 = vmatpush.bf16.msra.mxu0 %v7272
        %10560 = vmatpush.bf16.msra.mxu0 %v7260
        %10561 = vmatpush.bf16.msra.mxu0 %v7248
        %10562 = vmatpush.bf16.msra.mxu0 %v7236
        %10563 = vmatmul.bf16.gmra.mxu0 %v407
        %v10564 = vpop.f32.mrf.mxu0
        %v10565 = vadd.f32 %v10552, %v10564
        %v10566 = vpop.f32.mrf.mxu0
        %10567 = vdwg.mxu0
        %10568 = vmatpush.bf16.msra.mxu0 %v7416
        %10569 = vmatpush.bf16.msra.mxu0 %v7404
        %10570 = vmatpush.bf16.msra.mxu0 %v7392
        %10571 = vmatpush.bf16.msra.mxu0 %v7380
        %10572 = vmatpush.bf16.msra.mxu0 %v7368
        %10573 = vmatpush.bf16.msra.mxu0 %v7356
        %10574 = vmatpush.bf16.msra.mxu0 %v7344
        %10575 = vmatpush.bf16.msra.mxu0 %v7332
        %10576 = vmatmul.bf16.gmra.mxu0 %v408
        %v10577 = vpop.f32.mrf.mxu0
        %v10578 = vadd.f32 %v10565, %v10577
        %v10579 = vpop.f32.mrf.mxu0
        %10580 = vdwg.mxu0
        %10581 = vmatpush.bf16.msra.mxu0 %v7512
        %10582 = vmatpush.bf16.msra.mxu0 %v7500
        %10583 = vmatpush.bf16.msra.mxu0 %v7488
        %10584 = vmatpush.bf16.msra.mxu0 %v7476
        %10585 = vmatpush.bf16.msra.mxu0 %v7464
        %10586 = vmatpush.bf16.msra.mxu0 %v7452
        %10587 = vmatpush.bf16.msra.mxu0 %v7440
        %10588 = vmatpush.bf16.msra.mxu0 %v7428
        %10589 = vmatmul.bf16.gmra.mxu0 %v409
        %v10590 = vpop.f32.mrf.mxu0
        %v10591 = vadd.f32 %v10578, %v10590
        %v10592 = vpop.f32.mrf.mxu0
        %10593 = vdwg.mxu0
        %10594 = vmatpush.bf16.msra.mxu0 %v7608
        %10595 = vmatpush.bf16.msra.mxu0 %v7596
        %10596 = vmatpush.bf16.msra.mxu0 %v7584
        %10597 = vmatpush.bf16.msra.mxu0 %v7572
        %10598 = vmatpush.bf16.msra.mxu0 %v7560
        %10599 = vmatpush.bf16.msra.mxu0 %v7548
        %10600 = vmatpush.bf16.msra.mxu0 %v7536
        %10601 = vmatpush.bf16.msra.mxu0 %v7524
        %10602 = vmatmul.bf16.gmra.mxu0 %v410
        %v10603 = vpop.f32.mrf.mxu0
        %v10604 = vadd.f32 %v10591, %v10603
        %v10605 = vpop.f32.mrf.mxu0
        %10606 = vdwg.mxu0
        %10607 = vmatpush.bf16.msra.mxu0 %v7704
        %10608 = vmatpush.bf16.msra.mxu0 %v7692
        %10609 = vmatpush.bf16.msra.mxu0 %v7680
        %10610 = vmatpush.bf16.msra.mxu0 %v7668
        %10611 = vmatpush.bf16.msra.mxu0 %v7656
        %10612 = vmatpush.bf16.msra.mxu0 %v7644
        %10613 = vmatpush.bf16.msra.mxu0 %v7632
        %10614 = vmatpush.bf16.msra.mxu0 %v7620
        %10615 = vmatmul.bf16.gmra.mxu0 %v411
        %v10616 = vpop.f32.mrf.mxu0
        %v10617 = vadd.f32 %v10604, %v10616
        %v10618 = vpop.f32.mrf.mxu0
        %10619 = vdwg.mxu0
        %10620 = vmatpush.bf16.msra.mxu0 %v7800
        %10621 = vmatpush.bf16.msra.mxu0 %v7788
        %10622 = vmatpush.bf16.msra.mxu0 %v7776
        %10623 = vmatpush.bf16.msra.mxu0 %v7764
        %10624 = vmatpush.bf16.msra.mxu0 %v7752
        %10625 = vmatpush.bf16.msra.mxu0 %v7740
        %10626 = vmatpush.bf16.msra.mxu0 %v7728
        %10627 = vmatpush.bf16.msra.mxu0 %v7716
        %10628 = vmatmul.bf16.gmra.mxu0 %v412
        %v10629 = vpop.f32.mrf.mxu0
        %v10630 = vadd.f32 %v10617, %v10629
        %v10631 = vpop.f32.mrf.mxu0
        %10632 = vdwg.mxu0
        %10633 = vmatpush.bf16.msra.mxu0 %v7896
        %10634 = vmatpush.bf16.msra.mxu0 %v7884
        %10635 = vmatpush.bf16.msra.mxu0 %v7872
        %10636 = vmatpush.bf16.msra.mxu0 %v7860
        %10637 = vmatpush.bf16.msra.mxu0 %v7848
        %10638 = vmatpush.bf16.msra.mxu0 %v7836
        %10639 = vmatpush.bf16.msra.mxu0 %v7824
        %10640 = vmatpush.bf16.msra.mxu0 %v7812
        %10641 = vmatmul.bf16.gmra.mxu0 %v413
        %v10642 = vpop.f32.mrf.mxu0
        %v10643 = vadd.f32 %v10630, %v10642
        %v10644 = vpop.f32.mrf.mxu0
        %10645 = vdwg.mxu0
        %10646 = vmatpush.bf16.msra.mxu0 %v7992
        %10647 = vmatpush.bf16.msra.mxu0 %v7980
        %10648 = vmatpush.bf16.msra.mxu0 %v7968
        %10649 = vmatpush.bf16.msra.mxu0 %v7956
        %10650 = vmatpush.bf16.msra.mxu0 %v7944
        %10651 = vmatpush.bf16.msra.mxu0 %v7932
        %10652 = vmatpush.bf16.msra.mxu0 %v7920
        %10653 = vmatpush.bf16.msra.mxu0 %v7908
        %10654 = vmatmul.bf16.gmra.mxu0 %v414
        %v10655 = vpop.f32.mrf.mxu0
        %v10656 = vadd.f32 %v10643, %v10655
        %v10657 = vpop.f32.mrf.mxu0
        %10658 = vdwg.mxu0
        %10659 = vmatpush.bf16.msra.mxu0 %v8088
        %10660 = vmatpush.bf16.msra.mxu0 %v8076
        %10661 = vmatpush.bf16.msra.mxu0 %v8064
        %10662 = vmatpush.bf16.msra.mxu0 %v8052
        %10663 = vmatpush.bf16.msra.mxu0 %v8040
        %10664 = vmatpush.bf16.msra.mxu0 %v8028
        %10665 = vmatpush.bf16.msra.mxu0 %v8016
        %10666 = vmatpush.bf16.msra.mxu0 %v8004
        %10667 = vmatmul.bf16.gmra.mxu0 %v415
        %v10668 = vpop.f32.mrf.mxu0
        %v10669 = vadd.f32 %v10656, %v10668
        %v10670 = vpop.f32.mrf.mxu0
        %10671 = vdwg.mxu0
        %10672 = vmatpush.bf16.msra.mxu0 %v6649
        %10673 = vmatpush.bf16.msra.mxu0 %v6637
        %10674 = vmatpush.bf16.msra.mxu0 %v6625
        %10675 = vmatpush.bf16.msra.mxu0 %v6613
        %10676 = vmatpush.bf16.msra.mxu0 %v6601
        %10677 = vmatpush.bf16.msra.mxu0 %v6589
        %10678 = vmatpush.bf16.msra.mxu0 %v6577
        %10679 = vmatpush.bf16.msra.mxu0 %v6565
        %10680 = vmatmul.bf16.gmra.mxu0 %v400
        %v10681 = vpop.f32.mrf.mxu0
        %v10682 = vadd.f32 0.0, %v10681
        %v10683 = vpop.f32.mrf.mxu0
        %10684 = vdwg.mxu0
        %10685 = vmatpush.bf16.msra.mxu0 %v6745
        %10686 = vmatpush.bf16.msra.mxu0 %v6733
        %10687 = vmatpush.bf16.msra.mxu0 %v6721
        %10688 = vmatpush.bf16.msra.mxu0 %v6709
        %10689 = vmatpush.bf16.msra.mxu0 %v6697
        %10690 = vmatpush.bf16.msra.mxu0 %v6685
        %10691 = vmatpush.bf16.msra.mxu0 %v6673
        %10692 = vmatpush.bf16.msra.mxu0 %v6661
        %10693 = vmatmul.bf16.gmra.mxu0 %v401
        %v10694 = vpop.f32.mrf.mxu0
        %v10695 = vadd.f32 %v10682, %v10694
        %v10696 = vpop.f32.mrf.mxu0
        %10697 = vdwg.mxu0
        %10698 = vmatpush.bf16.msra.mxu0 %v6841
        %10699 = vmatpush.bf16.msra.mxu0 %v6829
        %10700 = vmatpush.bf16.msra.mxu0 %v6817
        %10701 = vmatpush.bf16.msra.mxu0 %v6805
        %10702 = vmatpush.bf16.msra.mxu0 %v6793
        %10703 = vmatpush.bf16.msra.mxu0 %v6781
        %10704 = vmatpush.bf16.msra.mxu0 %v6769
        %10705 = vmatpush.bf16.msra.mxu0 %v6757
        %10706 = vmatmul.bf16.gmra.mxu0 %v402
        %v10707 = vpop.f32.mrf.mxu0
        %v10708 = vadd.f32 %v10695, %v10707
        %v10709 = vpop.f32.mrf.mxu0
        %10710 = vdwg.mxu0
        %10711 = vmatpush.bf16.msra.mxu0 %v6937
        %10712 = vmatpush.bf16.msra.mxu0 %v6925
        %10713 = vmatpush.bf16.msra.mxu0 %v6913
        %10714 = vmatpush.bf16.msra.mxu0 %v6901
        %10715 = vmatpush.bf16.msra.mxu0 %v6889
        %10716 = vmatpush.bf16.msra.mxu0 %v6877
        %10717 = vmatpush.bf16.msra.mxu0 %v6865
        %10718 = vmatpush.bf16.msra.mxu0 %v6853
        %10719 = vmatmul.bf16.gmra.mxu0 %v403
        %v10720 = vpop.f32.mrf.mxu0
        %v10721 = vadd.f32 %v10708, %v10720
        %v10722 = vpop.f32.mrf.mxu0
        %10723 = vdwg.mxu0
        %10724 = vmatpush.bf16.msra.mxu0 %v7033
        %10725 = vmatpush.bf16.msra.mxu0 %v7021
        %10726 = vmatpush.bf16.msra.mxu0 %v7009
        %10727 = vmatpush.bf16.msra.mxu0 %v6997
        %10728 = vmatpush.bf16.msra.mxu0 %v6985
        %10729 = vmatpush.bf16.msra.mxu0 %v6973
        %10730 = vmatpush.bf16.msra.mxu0 %v6961
        %10731 = vmatpush.bf16.msra.mxu0 %v6949
        %10732 = vmatmul.bf16.gmra.mxu0 %v404
        %v10733 = vpop.f32.mrf.mxu0
        %v10734 = vadd.f32 %v10721, %v10733
        %v10735 = vpop.f32.mrf.mxu0
        %10736 = vdwg.mxu0
        %10737 = vmatpush.bf16.msra.mxu0 %v7129
        %10738 = vmatpush.bf16.msra.mxu0 %v7117
        %10739 = vmatpush.bf16.msra.mxu0 %v7105
        %10740 = vmatpush.bf16.msra.mxu0 %v7093
        %10741 = vmatpush.bf16.msra.mxu0 %v7081
        %10742 = vmatpush.bf16.msra.mxu0 %v7069
        %10743 = vmatpush.bf16.msra.mxu0 %v7057
        %10744 = vmatpush.bf16.msra.mxu0 %v7045
        %10745 = vmatmul.bf16.gmra.mxu0 %v405
        %v10746 = vpop.f32.mrf.mxu0
        %v10747 = vadd.f32 %v10734, %v10746
        %v10748 = vpop.f32.mrf.mxu0
        %10749 = vdwg.mxu0
        %10750 = vmatpush.bf16.msra.mxu0 %v7225
        %10751 = vmatpush.bf16.msra.mxu0 %v7213
        %10752 = vmatpush.bf16.msra.mxu0 %v7201
        %10753 = vmatpush.bf16.msra.mxu0 %v7189
        %10754 = vmatpush.bf16.msra.mxu0 %v7177
        %10755 = vmatpush.bf16.msra.mxu0 %v7165
        %10756 = vmatpush.bf16.msra.mxu0 %v7153
        %10757 = vmatpush.bf16.msra.mxu0 %v7141
        %10758 = vmatmul.bf16.gmra.mxu0 %v406
        %v10759 = vpop.f32.mrf.mxu0
        %v10760 = vadd.f32 %v10747, %v10759
        %v10761 = vpop.f32.mrf.mxu0
        %10762 = vdwg.mxu0
        %10763 = vmatpush.bf16.msra.mxu0 %v7321
        %10764 = vmatpush.bf16.msra.mxu0 %v7309
        %10765 = vmatpush.bf16.msra.mxu0 %v7297
        %10766 = vmatpush.bf16.msra.mxu0 %v7285
        %10767 = vmatpush.bf16.msra.mxu0 %v7273
        %10768 = vmatpush.bf16.msra.mxu0 %v7261
        %10769 = vmatpush.bf16.msra.mxu0 %v7249
        %10770 = vmatpush.bf16.msra.mxu0 %v7237
        %10771 = vmatmul.bf16.gmra.mxu0 %v407
        %v10772 = vpop.f32.mrf.mxu0
        %v10773 = vadd.f32 %v10760, %v10772
        %v10774 = vpop.f32.mrf.mxu0
        %10775 = vdwg.mxu0
        %10776 = vmatpush.bf16.msra.mxu0 %v7417
        %10777 = vmatpush.bf16.msra.mxu0 %v7405
        %10778 = vmatpush.bf16.msra.mxu0 %v7393
        %10779 = vmatpush.bf16.msra.mxu0 %v7381
        %10780 = vmatpush.bf16.msra.mxu0 %v7369
        %10781 = vmatpush.bf16.msra.mxu0 %v7357
        %10782 = vmatpush.bf16.msra.mxu0 %v7345
        %10783 = vmatpush.bf16.msra.mxu0 %v7333
        %10784 = vmatmul.bf16.gmra.mxu0 %v408
        %v10785 = vpop.f32.mrf.mxu0
        %v10786 = vadd.f32 %v10773, %v10785
        %v10787 = vpop.f32.mrf.mxu0
        %10788 = vdwg.mxu0
        %10789 = vmatpush.bf16.msra.mxu0 %v7513
        %10790 = vmatpush.bf16.msra.mxu0 %v7501
        %10791 = vmatpush.bf16.msra.mxu0 %v7489
        %10792 = vmatpush.bf16.msra.mxu0 %v7477
        %10793 = vmatpush.bf16.msra.mxu0 %v7465
        %10794 = vmatpush.bf16.msra.mxu0 %v7453
        %10795 = vmatpush.bf16.msra.mxu0 %v7441
        %10796 = vmatpush.bf16.msra.mxu0 %v7429
        %10797 = vmatmul.bf16.gmra.mxu0 %v409
        %v10798 = vpop.f32.mrf.mxu0
        %v10799 = vadd.f32 %v10786, %v10798
        %v10800 = vpop.f32.mrf.mxu0
        %10801 = vdwg.mxu0
        %10802 = vmatpush.bf16.msra.mxu0 %v7609
        %10803 = vmatpush.bf16.msra.mxu0 %v7597
        %10804 = vmatpush.bf16.msra.mxu0 %v7585
        %10805 = vmatpush.bf16.msra.mxu0 %v7573
        %10806 = vmatpush.bf16.msra.mxu0 %v7561
        %10807 = vmatpush.bf16.msra.mxu0 %v7549
        %10808 = vmatpush.bf16.msra.mxu0 %v7537
        %10809 = vmatpush.bf16.msra.mxu0 %v7525
        %10810 = vmatmul.bf16.gmra.mxu0 %v410
        %v10811 = vpop.f32.mrf.mxu0
        %v10812 = vadd.f32 %v10799, %v10811
        %v10813 = vpop.f32.mrf.mxu0
        %10814 = vdwg.mxu0
        %10815 = vmatpush.bf16.msra.mxu0 %v7705
        %10816 = vmatpush.bf16.msra.mxu0 %v7693
        %10817 = vmatpush.bf16.msra.mxu0 %v7681
        %10818 = vmatpush.bf16.msra.mxu0 %v7669
        %10819 = vmatpush.bf16.msra.mxu0 %v7657
        %10820 = vmatpush.bf16.msra.mxu0 %v7645
        %10821 = vmatpush.bf16.msra.mxu0 %v7633
        %10822 = vmatpush.bf16.msra.mxu0 %v7621
        %10823 = vmatmul.bf16.gmra.mxu0 %v411
        %v10824 = vpop.f32.mrf.mxu0
        %v10825 = vadd.f32 %v10812, %v10824
        %v10826 = vpop.f32.mrf.mxu0
        %10827 = vdwg.mxu0
        %10828 = vmatpush.bf16.msra.mxu0 %v7801
        %10829 = vmatpush.bf16.msra.mxu0 %v7789
        %10830 = vmatpush.bf16.msra.mxu0 %v7777
        %10831 = vmatpush.bf16.msra.mxu0 %v7765
        %10832 = vmatpush.bf16.msra.mxu0 %v7753
        %10833 = vmatpush.bf16.msra.mxu0 %v7741
        %10834 = vmatpush.bf16.msra.mxu0 %v7729
        %10835 = vmatpush.bf16.msra.mxu0 %v7717
        %10836 = vmatmul.bf16.gmra.mxu0 %v412
        %v10837 = vpop.f32.mrf.mxu0
        %v10838 = vadd.f32 %v10825, %v10837
        %v10839 = vpop.f32.mrf.mxu0
        %10840 = vdwg.mxu0
        %10841 = vmatpush.bf16.msra.mxu0 %v7897
        %10842 = vmatpush.bf16.msra.mxu0 %v7885
        %10843 = vmatpush.bf16.msra.mxu0 %v7873
        %10844 = vmatpush.bf16.msra.mxu0 %v7861
        %10845 = vmatpush.bf16.msra.mxu0 %v7849
        %10846 = vmatpush.bf16.msra.mxu0 %v7837
        %10847 = vmatpush.bf16.msra.mxu0 %v7825
        %10848 = vmatpush.bf16.msra.mxu0 %v7813
        %10849 = vmatmul.bf16.gmra.mxu0 %v413
        %v10850 = vpop.f32.mrf.mxu0
        %v10851 = vadd.f32 %v10838, %v10850
        %v10852 = vpop.f32.mrf.mxu0
        %10853 = vdwg.mxu0
        %10854 = vmatpush.bf16.msra.mxu0 %v7993
        %10855 = vmatpush.bf16.msra.mxu0 %v7981
        %10856 = vmatpush.bf16.msra.mxu0 %v7969
        %10857 = vmatpush.bf16.msra.mxu0 %v7957
        %10858 = vmatpush.bf16.msra.mxu0 %v7945
        %10859 = vmatpush.bf16.msra.mxu0 %v7933
        %10860 = vmatpush.bf16.msra.mxu0 %v7921
        %10861 = vmatpush.bf16.msra.mxu0 %v7909
        %10862 = vmatmul.bf16.gmra.mxu0 %v414
        %v10863 = vpop.f32.mrf.mxu0
        %v10864 = vadd.f32 %v10851, %v10863
        %v10865 = vpop.f32.mrf.mxu0
        %10866 = vdwg.mxu0
        %10867 = vmatpush.bf16.msra.mxu0 %v8089
        %10868 = vmatpush.bf16.msra.mxu0 %v8077
        %10869 = vmatpush.bf16.msra.mxu0 %v8065
        %10870 = vmatpush.bf16.msra.mxu0 %v8053
        %10871 = vmatpush.bf16.msra.mxu0 %v8041
        %10872 = vmatpush.bf16.msra.mxu0 %v8029
        %10873 = vmatpush.bf16.msra.mxu0 %v8017
        %10874 = vmatpush.bf16.msra.mxu0 %v8005
        %10875 = vmatmul.bf16.gmra.mxu0 %v415
        %v10876 = vpop.f32.mrf.mxu0
        %v10877 = vadd.f32 %v10864, %v10876
        %v10878 = vpop.f32.mrf.mxu0
        %10879 = vdwg.mxu0
        %10880 = vmatpush.bf16.msra.mxu0 %v6650
        %10881 = vmatpush.bf16.msra.mxu0 %v6638
        %10882 = vmatpush.bf16.msra.mxu0 %v6626
        %10883 = vmatpush.bf16.msra.mxu0 %v6614
        %10884 = vmatpush.bf16.msra.mxu0 %v6602
        %10885 = vmatpush.bf16.msra.mxu0 %v6590
        %10886 = vmatpush.bf16.msra.mxu0 %v6578
        %10887 = vmatpush.bf16.msra.mxu0 %v6566
        %10888 = vmatmul.bf16.gmra.mxu0 %v400
        %v10889 = vpop.f32.mrf.mxu0
        %v10890 = vadd.f32 0.0, %v10889
        %v10891 = vpop.f32.mrf.mxu0
        %10892 = vdwg.mxu0
        %10893 = vmatpush.bf16.msra.mxu0 %v6746
        %10894 = vmatpush.bf16.msra.mxu0 %v6734
        %10895 = vmatpush.bf16.msra.mxu0 %v6722
        %10896 = vmatpush.bf16.msra.mxu0 %v6710
        %10897 = vmatpush.bf16.msra.mxu0 %v6698
        %10898 = vmatpush.bf16.msra.mxu0 %v6686
        %10899 = vmatpush.bf16.msra.mxu0 %v6674
        %10900 = vmatpush.bf16.msra.mxu0 %v6662
        %10901 = vmatmul.bf16.gmra.mxu0 %v401
        %v10902 = vpop.f32.mrf.mxu0
        %v10903 = vadd.f32 %v10890, %v10902
        %v10904 = vpop.f32.mrf.mxu0
        %10905 = vdwg.mxu0
        %10906 = vmatpush.bf16.msra.mxu0 %v6842
        %10907 = vmatpush.bf16.msra.mxu0 %v6830
        %10908 = vmatpush.bf16.msra.mxu0 %v6818
        %10909 = vmatpush.bf16.msra.mxu0 %v6806
        %10910 = vmatpush.bf16.msra.mxu0 %v6794
        %10911 = vmatpush.bf16.msra.mxu0 %v6782
        %10912 = vmatpush.bf16.msra.mxu0 %v6770
        %10913 = vmatpush.bf16.msra.mxu0 %v6758
        %10914 = vmatmul.bf16.gmra.mxu0 %v402
        %v10915 = vpop.f32.mrf.mxu0
        %v10916 = vadd.f32 %v10903, %v10915
        %v10917 = vpop.f32.mrf.mxu0
        %10918 = vdwg.mxu0
        %10919 = vmatpush.bf16.msra.mxu0 %v6938
        %10920 = vmatpush.bf16.msra.mxu0 %v6926
        %10921 = vmatpush.bf16.msra.mxu0 %v6914
        %10922 = vmatpush.bf16.msra.mxu0 %v6902
        %10923 = vmatpush.bf16.msra.mxu0 %v6890
        %10924 = vmatpush.bf16.msra.mxu0 %v6878
        %10925 = vmatpush.bf16.msra.mxu0 %v6866
        %10926 = vmatpush.bf16.msra.mxu0 %v6854
        %10927 = vmatmul.bf16.gmra.mxu0 %v403
        %v10928 = vpop.f32.mrf.mxu0
        %v10929 = vadd.f32 %v10916, %v10928
        %v10930 = vpop.f32.mrf.mxu0
        %10931 = vdwg.mxu0
        %10932 = vmatpush.bf16.msra.mxu0 %v7034
        %10933 = vmatpush.bf16.msra.mxu0 %v7022
        %10934 = vmatpush.bf16.msra.mxu0 %v7010
        %10935 = vmatpush.bf16.msra.mxu0 %v6998
        %10936 = vmatpush.bf16.msra.mxu0 %v6986
        %10937 = vmatpush.bf16.msra.mxu0 %v6974
        %10938 = vmatpush.bf16.msra.mxu0 %v6962
        %10939 = vmatpush.bf16.msra.mxu0 %v6950
        %10940 = vmatmul.bf16.gmra.mxu0 %v404
        %v10941 = vpop.f32.mrf.mxu0
        %v10942 = vadd.f32 %v10929, %v10941
        %v10943 = vpop.f32.mrf.mxu0
        %10944 = vdwg.mxu0
        %10945 = vmatpush.bf16.msra.mxu0 %v7130
        %10946 = vmatpush.bf16.msra.mxu0 %v7118
        %10947 = vmatpush.bf16.msra.mxu0 %v7106
        %10948 = vmatpush.bf16.msra.mxu0 %v7094
        %10949 = vmatpush.bf16.msra.mxu0 %v7082
        %10950 = vmatpush.bf16.msra.mxu0 %v7070
        %10951 = vmatpush.bf16.msra.mxu0 %v7058
        %10952 = vmatpush.bf16.msra.mxu0 %v7046
        %10953 = vmatmul.bf16.gmra.mxu0 %v405
        %v10954 = vpop.f32.mrf.mxu0
        %v10955 = vadd.f32 %v10942, %v10954
        %v10956 = vpop.f32.mrf.mxu0
        %10957 = vdwg.mxu0
        %10958 = vmatpush.bf16.msra.mxu0 %v7226
        %10959 = vmatpush.bf16.msra.mxu0 %v7214
        %10960 = vmatpush.bf16.msra.mxu0 %v7202
        %10961 = vmatpush.bf16.msra.mxu0 %v7190
        %10962 = vmatpush.bf16.msra.mxu0 %v7178
        %10963 = vmatpush.bf16.msra.mxu0 %v7166
        %10964 = vmatpush.bf16.msra.mxu0 %v7154
        %10965 = vmatpush.bf16.msra.mxu0 %v7142
        %10966 = vmatmul.bf16.gmra.mxu0 %v406
        %v10967 = vpop.f32.mrf.mxu0
        %v10968 = vadd.f32 %v10955, %v10967
        %v10969 = vpop.f32.mrf.mxu0
        %10970 = vdwg.mxu0
        %10971 = vmatpush.bf16.msra.mxu0 %v7322
        %10972 = vmatpush.bf16.msra.mxu0 %v7310
        %10973 = vmatpush.bf16.msra.mxu0 %v7298
        %10974 = vmatpush.bf16.msra.mxu0 %v7286
        %10975 = vmatpush.bf16.msra.mxu0 %v7274
        %10976 = vmatpush.bf16.msra.mxu0 %v7262
        %10977 = vmatpush.bf16.msra.mxu0 %v7250
        %10978 = vmatpush.bf16.msra.mxu0 %v7238
        %10979 = vmatmul.bf16.gmra.mxu0 %v407
        %v10980 = vpop.f32.mrf.mxu0
        %v10981 = vadd.f32 %v10968, %v10980
        %v10982 = vpop.f32.mrf.mxu0
        %10983 = vdwg.mxu0
        %10984 = vmatpush.bf16.msra.mxu0 %v7418
        %10985 = vmatpush.bf16.msra.mxu0 %v7406
        %10986 = vmatpush.bf16.msra.mxu0 %v7394
        %10987 = vmatpush.bf16.msra.mxu0 %v7382
        %10988 = vmatpush.bf16.msra.mxu0 %v7370
        %10989 = vmatpush.bf16.msra.mxu0 %v7358
        %10990 = vmatpush.bf16.msra.mxu0 %v7346
        %10991 = vmatpush.bf16.msra.mxu0 %v7334
        %10992 = vmatmul.bf16.gmra.mxu0 %v408
        %v10993 = vpop.f32.mrf.mxu0
        %v10994 = vadd.f32 %v10981, %v10993
        %v10995 = vpop.f32.mrf.mxu0
        %10996 = vdwg.mxu0
        %10997 = vmatpush.bf16.msra.mxu0 %v7514
        %10998 = vmatpush.bf16.msra.mxu0 %v7502
        %10999 = vmatpush.bf16.msra.mxu0 %v7490
        %11000 = vmatpush.bf16.msra.mxu0 %v7478
        %11001 = vmatpush.bf16.msra.mxu0 %v7466
        %11002 = vmatpush.bf16.msra.mxu0 %v7454
        %11003 = vmatpush.bf16.msra.mxu0 %v7442
        %11004 = vmatpush.bf16.msra.mxu0 %v7430
        %11005 = vmatmul.bf16.gmra.mxu0 %v409
        %v11006 = vpop.f32.mrf.mxu0
        %v11007 = vadd.f32 %v10994, %v11006
        %v11008 = vpop.f32.mrf.mxu0
        %11009 = vdwg.mxu0
        %11010 = vmatpush.bf16.msra.mxu0 %v7610
        %11011 = vmatpush.bf16.msra.mxu0 %v7598
        %11012 = vmatpush.bf16.msra.mxu0 %v7586
        %11013 = vmatpush.bf16.msra.mxu0 %v7574
        %11014 = vmatpush.bf16.msra.mxu0 %v7562
        %11015 = vmatpush.bf16.msra.mxu0 %v7550
        %11016 = vmatpush.bf16.msra.mxu0 %v7538
        %11017 = vmatpush.bf16.msra.mxu0 %v7526
        %11018 = vmatmul.bf16.gmra.mxu0 %v410
        %v11019 = vpop.f32.mrf.mxu0
        %v11020 = vadd.f32 %v11007, %v11019
        %v11021 = vpop.f32.mrf.mxu0
        %11022 = vdwg.mxu0
        %11023 = vmatpush.bf16.msra.mxu0 %v7706
        %11024 = vmatpush.bf16.msra.mxu0 %v7694
        %11025 = vmatpush.bf16.msra.mxu0 %v7682
        %11026 = vmatpush.bf16.msra.mxu0 %v7670
        %11027 = vmatpush.bf16.msra.mxu0 %v7658
        %11028 = vmatpush.bf16.msra.mxu0 %v7646
        %11029 = vmatpush.bf16.msra.mxu0 %v7634
        %11030 = vmatpush.bf16.msra.mxu0 %v7622
        %11031 = vmatmul.bf16.gmra.mxu0 %v411
        %v11032 = vpop.f32.mrf.mxu0
        %v11033 = vadd.f32 %v11020, %v11032
        %v11034 = vpop.f32.mrf.mxu0
        %11035 = vdwg.mxu0
        %11036 = vmatpush.bf16.msra.mxu0 %v7802
        %11037 = vmatpush.bf16.msra.mxu0 %v7790
        %11038 = vmatpush.bf16.msra.mxu0 %v7778
        %11039 = vmatpush.bf16.msra.mxu0 %v7766
        %11040 = vmatpush.bf16.msra.mxu0 %v7754
        %11041 = vmatpush.bf16.msra.mxu0 %v7742
        %11042 = vmatpush.bf16.msra.mxu0 %v7730
        %11043 = vmatpush.bf16.msra.mxu0 %v7718
        %11044 = vmatmul.bf16.gmra.mxu0 %v412
        %v11045 = vpop.f32.mrf.mxu0
        %v11046 = vadd.f32 %v11033, %v11045
        %v11047 = vpop.f32.mrf.mxu0
        %11048 = vdwg.mxu0
        %11049 = vmatpush.bf16.msra.mxu0 %v7898
        %11050 = vmatpush.bf16.msra.mxu0 %v7886
        %11051 = vmatpush.bf16.msra.mxu0 %v7874
        %11052 = vmatpush.bf16.msra.mxu0 %v7862
        %11053 = vmatpush.bf16.msra.mxu0 %v7850
        %11054 = vmatpush.bf16.msra.mxu0 %v7838
        %11055 = vmatpush.bf16.msra.mxu0 %v7826
        %11056 = vmatpush.bf16.msra.mxu0 %v7814
        %11057 = vmatmul.bf16.gmra.mxu0 %v413
        %v11058 = vpop.f32.mrf.mxu0
        %v11059 = vadd.f32 %v11046, %v11058
        %v11060 = vpop.f32.mrf.mxu0
        %11061 = vdwg.mxu0
        %11062 = vmatpush.bf16.msra.mxu0 %v7994
        %11063 = vmatpush.bf16.msra.mxu0 %v7982
        %11064 = vmatpush.bf16.msra.mxu0 %v7970
        %11065 = vmatpush.bf16.msra.mxu0 %v7958
        %11066 = vmatpush.bf16.msra.mxu0 %v7946
        %11067 = vmatpush.bf16.msra.mxu0 %v7934
        %11068 = vmatpush.bf16.msra.mxu0 %v7922
        %11069 = vmatpush.bf16.msra.mxu0 %v7910
        %11070 = vmatmul.bf16.gmra.mxu0 %v414
        %v11071 = vpop.f32.mrf.mxu0
        %v11072 = vadd.f32 %v11059, %v11071
        %v11073 = vpop.f32.mrf.mxu0
        %11074 = vdwg.mxu0
        %11075 = vmatpush.bf16.msra.mxu0 %v8090
        %11076 = vmatpush.bf16.msra.mxu0 %v8078
        %11077 = vmatpush.bf16.msra.mxu0 %v8066
        %11078 = vmatpush.bf16.msra.mxu0 %v8054
        %11079 = vmatpush.bf16.msra.mxu0 %v8042
        %11080 = vmatpush.bf16.msra.mxu0 %v8030
        %11081 = vmatpush.bf16.msra.mxu0 %v8018
        %11082 = vmatpush.bf16.msra.mxu0 %v8006
        %11083 = vmatmul.bf16.gmra.mxu0 %v415
        %v11084 = vpop.f32.mrf.mxu0
        %v11085 = vadd.f32 %v11072, %v11084
        %v11086 = vpop.f32.mrf.mxu0
        %11087 = vdwg.mxu0
        %11088 = vmatpush.bf16.msra.mxu0 %v6651
        %11089 = vmatpush.bf16.msra.mxu0 %v6639
        %11090 = vmatpush.bf16.msra.mxu0 %v6627
        %11091 = vmatpush.bf16.msra.mxu0 %v6615
        %11092 = vmatpush.bf16.msra.mxu0 %v6603
        %11093 = vmatpush.bf16.msra.mxu0 %v6591
        %11094 = vmatpush.bf16.msra.mxu0 %v6579
        %11095 = vmatpush.bf16.msra.mxu0 %v6567
        %11096 = vmatmul.bf16.gmra.mxu0 %v400
        %v11097 = vpop.f32.mrf.mxu0
        %v11098 = vadd.f32 0.0, %v11097
        %v11099 = vpop.f32.mrf.mxu0
        %11100 = vdwg.mxu0
        %11101 = vmatpush.bf16.msra.mxu0 %v6747
        %11102 = vmatpush.bf16.msra.mxu0 %v6735
        %11103 = vmatpush.bf16.msra.mxu0 %v6723
        %11104 = vmatpush.bf16.msra.mxu0 %v6711
        %11105 = vmatpush.bf16.msra.mxu0 %v6699
        %11106 = vmatpush.bf16.msra.mxu0 %v6687
        %11107 = vmatpush.bf16.msra.mxu0 %v6675
        %11108 = vmatpush.bf16.msra.mxu0 %v6663
        %11109 = vmatmul.bf16.gmra.mxu0 %v401
        %v11110 = vpop.f32.mrf.mxu0
        %v11111 = vadd.f32 %v11098, %v11110
        %v11112 = vpop.f32.mrf.mxu0
        %11113 = vdwg.mxu0
        %11114 = vmatpush.bf16.msra.mxu0 %v6843
        %11115 = vmatpush.bf16.msra.mxu0 %v6831
        %11116 = vmatpush.bf16.msra.mxu0 %v6819
        %11117 = vmatpush.bf16.msra.mxu0 %v6807
        %11118 = vmatpush.bf16.msra.mxu0 %v6795
        %11119 = vmatpush.bf16.msra.mxu0 %v6783
        %11120 = vmatpush.bf16.msra.mxu0 %v6771
        %11121 = vmatpush.bf16.msra.mxu0 %v6759
        %11122 = vmatmul.bf16.gmra.mxu0 %v402
        %v11123 = vpop.f32.mrf.mxu0
        %v11124 = vadd.f32 %v11111, %v11123
        %v11125 = vpop.f32.mrf.mxu0
        %11126 = vdwg.mxu0
        %11127 = vmatpush.bf16.msra.mxu0 %v6939
        %11128 = vmatpush.bf16.msra.mxu0 %v6927
        %11129 = vmatpush.bf16.msra.mxu0 %v6915
        %11130 = vmatpush.bf16.msra.mxu0 %v6903
        %11131 = vmatpush.bf16.msra.mxu0 %v6891
        %11132 = vmatpush.bf16.msra.mxu0 %v6879
        %11133 = vmatpush.bf16.msra.mxu0 %v6867
        %11134 = vmatpush.bf16.msra.mxu0 %v6855
        %11135 = vmatmul.bf16.gmra.mxu0 %v403
        %v11136 = vpop.f32.mrf.mxu0
        %v11137 = vadd.f32 %v11124, %v11136
        %v11138 = vpop.f32.mrf.mxu0
        %11139 = vdwg.mxu0
        %11140 = vmatpush.bf16.msra.mxu0 %v7035
        %11141 = vmatpush.bf16.msra.mxu0 %v7023
        %11142 = vmatpush.bf16.msra.mxu0 %v7011
        %11143 = vmatpush.bf16.msra.mxu0 %v6999
        %11144 = vmatpush.bf16.msra.mxu0 %v6987
        %11145 = vmatpush.bf16.msra.mxu0 %v6975
        %11146 = vmatpush.bf16.msra.mxu0 %v6963
        %11147 = vmatpush.bf16.msra.mxu0 %v6951
        %11148 = vmatmul.bf16.gmra.mxu0 %v404
        %v11149 = vpop.f32.mrf.mxu0
        %v11150 = vadd.f32 %v11137, %v11149
        %v11151 = vpop.f32.mrf.mxu0
        %11152 = vdwg.mxu0
        %11153 = vmatpush.bf16.msra.mxu0 %v7131
        %11154 = vmatpush.bf16.msra.mxu0 %v7119
        %11155 = vmatpush.bf16.msra.mxu0 %v7107
        %11156 = vmatpush.bf16.msra.mxu0 %v7095
        %11157 = vmatpush.bf16.msra.mxu0 %v7083
        %11158 = vmatpush.bf16.msra.mxu0 %v7071
        %11159 = vmatpush.bf16.msra.mxu0 %v7059
        %11160 = vmatpush.bf16.msra.mxu0 %v7047
        %11161 = vmatmul.bf16.gmra.mxu0 %v405
        %v11162 = vpop.f32.mrf.mxu0
        %v11163 = vadd.f32 %v11150, %v11162
        %v11164 = vpop.f32.mrf.mxu0
        %11165 = vdwg.mxu0
        %11166 = vmatpush.bf16.msra.mxu0 %v7227
        %11167 = vmatpush.bf16.msra.mxu0 %v7215
        %11168 = vmatpush.bf16.msra.mxu0 %v7203
        %11169 = vmatpush.bf16.msra.mxu0 %v7191
        %11170 = vmatpush.bf16.msra.mxu0 %v7179
        %11171 = vmatpush.bf16.msra.mxu0 %v7167
        %11172 = vmatpush.bf16.msra.mxu0 %v7155
        %11173 = vmatpush.bf16.msra.mxu0 %v7143
        %11174 = vmatmul.bf16.gmra.mxu0 %v406
        %v11175 = vpop.f32.mrf.mxu0
        %v11176 = vadd.f32 %v11163, %v11175
        %v11177 = vpop.f32.mrf.mxu0
        %11178 = vdwg.mxu0
        %11179 = vmatpush.bf16.msra.mxu0 %v7323
        %11180 = vmatpush.bf16.msra.mxu0 %v7311
        %11181 = vmatpush.bf16.msra.mxu0 %v7299
        %11182 = vmatpush.bf16.msra.mxu0 %v7287
        %11183 = vmatpush.bf16.msra.mxu0 %v7275
        %11184 = vmatpush.bf16.msra.mxu0 %v7263
        %11185 = vmatpush.bf16.msra.mxu0 %v7251
        %11186 = vmatpush.bf16.msra.mxu0 %v7239
        %11187 = vmatmul.bf16.gmra.mxu0 %v407
        %v11188 = vpop.f32.mrf.mxu0
        %v11189 = vadd.f32 %v11176, %v11188
        %v11190 = vpop.f32.mrf.mxu0
        %11191 = vdwg.mxu0
        %11192 = vmatpush.bf16.msra.mxu0 %v7419
        %11193 = vmatpush.bf16.msra.mxu0 %v7407
        %11194 = vmatpush.bf16.msra.mxu0 %v7395
        %11195 = vmatpush.bf16.msra.mxu0 %v7383
        %11196 = vmatpush.bf16.msra.mxu0 %v7371
        %11197 = vmatpush.bf16.msra.mxu0 %v7359
        %11198 = vmatpush.bf16.msra.mxu0 %v7347
        %11199 = vmatpush.bf16.msra.mxu0 %v7335
        %11200 = vmatmul.bf16.gmra.mxu0 %v408
        %v11201 = vpop.f32.mrf.mxu0
        %v11202 = vadd.f32 %v11189, %v11201
        %v11203 = vpop.f32.mrf.mxu0
        %11204 = vdwg.mxu0
        %11205 = vmatpush.bf16.msra.mxu0 %v7515
        %11206 = vmatpush.bf16.msra.mxu0 %v7503
        %11207 = vmatpush.bf16.msra.mxu0 %v7491
        %11208 = vmatpush.bf16.msra.mxu0 %v7479
        %11209 = vmatpush.bf16.msra.mxu0 %v7467
        %11210 = vmatpush.bf16.msra.mxu0 %v7455
        %11211 = vmatpush.bf16.msra.mxu0 %v7443
        %11212 = vmatpush.bf16.msra.mxu0 %v7431
        %11213 = vmatmul.bf16.gmra.mxu0 %v409
        %v11214 = vpop.f32.mrf.mxu0
        %v11215 = vadd.f32 %v11202, %v11214
        %v11216 = vpop.f32.mrf.mxu0
        %11217 = vdwg.mxu0
        %11218 = vmatpush.bf16.msra.mxu0 %v7611
        %11219 = vmatpush.bf16.msra.mxu0 %v7599
        %11220 = vmatpush.bf16.msra.mxu0 %v7587
        %11221 = vmatpush.bf16.msra.mxu0 %v7575
        %11222 = vmatpush.bf16.msra.mxu0 %v7563
        %11223 = vmatpush.bf16.msra.mxu0 %v7551
        %11224 = vmatpush.bf16.msra.mxu0 %v7539
        %11225 = vmatpush.bf16.msra.mxu0 %v7527
        %11226 = vmatmul.bf16.gmra.mxu0 %v410
        %v11227 = vpop.f32.mrf.mxu0
        %v11228 = vadd.f32 %v11215, %v11227
        %v11229 = vpop.f32.mrf.mxu0
        %11230 = vdwg.mxu0
        %11231 = vmatpush.bf16.msra.mxu0 %v7707
        %11232 = vmatpush.bf16.msra.mxu0 %v7695
        %11233 = vmatpush.bf16.msra.mxu0 %v7683
        %11234 = vmatpush.bf16.msra.mxu0 %v7671
        %11235 = vmatpush.bf16.msra.mxu0 %v7659
        %11236 = vmatpush.bf16.msra.mxu0 %v7647
        %11237 = vmatpush.bf16.msra.mxu0 %v7635
        %11238 = vmatpush.bf16.msra.mxu0 %v7623
        %11239 = vmatmul.bf16.gmra.mxu0 %v411
        %v11240 = vpop.f32.mrf.mxu0
        %v11241 = vadd.f32 %v11228, %v11240
        %v11242 = vpop.f32.mrf.mxu0
        %11243 = vdwg.mxu0
        %11244 = vmatpush.bf16.msra.mxu0 %v7803
        %11245 = vmatpush.bf16.msra.mxu0 %v7791
        %11246 = vmatpush.bf16.msra.mxu0 %v7779
        %11247 = vmatpush.bf16.msra.mxu0 %v7767
        %11248 = vmatpush.bf16.msra.mxu0 %v7755
        %11249 = vmatpush.bf16.msra.mxu0 %v7743
        %11250 = vmatpush.bf16.msra.mxu0 %v7731
        %11251 = vmatpush.bf16.msra.mxu0 %v7719
        %11252 = vmatmul.bf16.gmra.mxu0 %v412
        %v11253 = vpop.f32.mrf.mxu0
        %v11254 = vadd.f32 %v11241, %v11253
        %v11255 = vpop.f32.mrf.mxu0
        %11256 = vdwg.mxu0
        %11257 = vmatpush.bf16.msra.mxu0 %v7899
        %11258 = vmatpush.bf16.msra.mxu0 %v7887
        %11259 = vmatpush.bf16.msra.mxu0 %v7875
        %11260 = vmatpush.bf16.msra.mxu0 %v7863
        %11261 = vmatpush.bf16.msra.mxu0 %v7851
        %11262 = vmatpush.bf16.msra.mxu0 %v7839
        %11263 = vmatpush.bf16.msra.mxu0 %v7827
        %11264 = vmatpush.bf16.msra.mxu0 %v7815
        %11265 = vmatmul.bf16.gmra.mxu0 %v413
        %v11266 = vpop.f32.mrf.mxu0
        %v11267 = vadd.f32 %v11254, %v11266
        %v11268 = vpop.f32.mrf.mxu0
        %11269 = vdwg.mxu0
        %11270 = vmatpush.bf16.msra.mxu0 %v7995
        %11271 = vmatpush.bf16.msra.mxu0 %v7983
        %11272 = vmatpush.bf16.msra.mxu0 %v7971
        %11273 = vmatpush.bf16.msra.mxu0 %v7959
        %11274 = vmatpush.bf16.msra.mxu0 %v7947
        %11275 = vmatpush.bf16.msra.mxu0 %v7935
        %11276 = vmatpush.bf16.msra.mxu0 %v7923
        %11277 = vmatpush.bf16.msra.mxu0 %v7911
        %11278 = vmatmul.bf16.gmra.mxu0 %v414
        %v11279 = vpop.f32.mrf.mxu0
        %v11280 = vadd.f32 %v11267, %v11279
        %v11281 = vpop.f32.mrf.mxu0
        %11282 = vdwg.mxu0
        %11283 = vmatpush.bf16.msra.mxu0 %v8091
        %11284 = vmatpush.bf16.msra.mxu0 %v8079
        %11285 = vmatpush.bf16.msra.mxu0 %v8067
        %11286 = vmatpush.bf16.msra.mxu0 %v8055
        %11287 = vmatpush.bf16.msra.mxu0 %v8043
        %11288 = vmatpush.bf16.msra.mxu0 %v8031
        %11289 = vmatpush.bf16.msra.mxu0 %v8019
        %11290 = vmatpush.bf16.msra.mxu0 %v8007
        %11291 = vmatmul.bf16.gmra.mxu0 %v415
        %v11292 = vpop.f32.mrf.mxu0
        %v11293 = vadd.f32 %v11280, %v11292
        %v11294 = vpop.f32.mrf.mxu0
        %11295 = vdwg.mxu0
        %11296 = vmatpush.bf16.msra.mxu0 %v6652
        %11297 = vmatpush.bf16.msra.mxu0 %v6640
        %11298 = vmatpush.bf16.msra.mxu0 %v6628
        %11299 = vmatpush.bf16.msra.mxu0 %v6616
        %11300 = vmatpush.bf16.msra.mxu0 %v6604
        %11301 = vmatpush.bf16.msra.mxu0 %v6592
        %11302 = vmatpush.bf16.msra.mxu0 %v6580
        %11303 = vmatpush.bf16.msra.mxu0 %v6568
        %11304 = vmatmul.bf16.gmra.mxu0 %v400
        %v11305 = vpop.f32.mrf.mxu0
        %v11306 = vadd.f32 0.0, %v11305
        %v11307 = vpop.f32.mrf.mxu0
        %11308 = vdwg.mxu0
        %11309 = vmatpush.bf16.msra.mxu0 %v6748
        %11310 = vmatpush.bf16.msra.mxu0 %v6736
        %11311 = vmatpush.bf16.msra.mxu0 %v6724
        %11312 = vmatpush.bf16.msra.mxu0 %v6712
        %11313 = vmatpush.bf16.msra.mxu0 %v6700
        %11314 = vmatpush.bf16.msra.mxu0 %v6688
        %11315 = vmatpush.bf16.msra.mxu0 %v6676
        %11316 = vmatpush.bf16.msra.mxu0 %v6664
        %11317 = vmatmul.bf16.gmra.mxu0 %v401
        %v11318 = vpop.f32.mrf.mxu0
        %v11319 = vadd.f32 %v11306, %v11318
        %v11320 = vpop.f32.mrf.mxu0
        %11321 = vdwg.mxu0
        %11322 = vmatpush.bf16.msra.mxu0 %v6844
        %11323 = vmatpush.bf16.msra.mxu0 %v6832
        %11324 = vmatpush.bf16.msra.mxu0 %v6820
        %11325 = vmatpush.bf16.msra.mxu0 %v6808
        %11326 = vmatpush.bf16.msra.mxu0 %v6796
        %11327 = vmatpush.bf16.msra.mxu0 %v6784
        %11328 = vmatpush.bf16.msra.mxu0 %v6772
        %11329 = vmatpush.bf16.msra.mxu0 %v6760
        %11330 = vmatmul.bf16.gmra.mxu0 %v402
        %v11331 = vpop.f32.mrf.mxu0
        %v11332 = vadd.f32 %v11319, %v11331
        %v11333 = vpop.f32.mrf.mxu0
        %11334 = vdwg.mxu0
        %11335 = vmatpush.bf16.msra.mxu0 %v6940
        %11336 = vmatpush.bf16.msra.mxu0 %v6928
        %11337 = vmatpush.bf16.msra.mxu0 %v6916
        %11338 = vmatpush.bf16.msra.mxu0 %v6904
        %11339 = vmatpush.bf16.msra.mxu0 %v6892
        %11340 = vmatpush.bf16.msra.mxu0 %v6880
        %11341 = vmatpush.bf16.msra.mxu0 %v6868
        %11342 = vmatpush.bf16.msra.mxu0 %v6856
        %11343 = vmatmul.bf16.gmra.mxu0 %v403
        %v11344 = vpop.f32.mrf.mxu0
        %v11345 = vadd.f32 %v11332, %v11344
        %v11346 = vpop.f32.mrf.mxu0
        %11347 = vdwg.mxu0
        %11348 = vmatpush.bf16.msra.mxu0 %v7036
        %11349 = vmatpush.bf16.msra.mxu0 %v7024
        %11350 = vmatpush.bf16.msra.mxu0 %v7012
        %11351 = vmatpush.bf16.msra.mxu0 %v7000
        %11352 = vmatpush.bf16.msra.mxu0 %v6988
        %11353 = vmatpush.bf16.msra.mxu0 %v6976
        %11354 = vmatpush.bf16.msra.mxu0 %v6964
        %11355 = vmatpush.bf16.msra.mxu0 %v6952
        %11356 = vmatmul.bf16.gmra.mxu0 %v404
        %v11357 = vpop.f32.mrf.mxu0
        %v11358 = vadd.f32 %v11345, %v11357
        %v11359 = vpop.f32.mrf.mxu0
        %11360 = vdwg.mxu0
        %11361 = vmatpush.bf16.msra.mxu0 %v7132
        %11362 = vmatpush.bf16.msra.mxu0 %v7120
        %11363 = vmatpush.bf16.msra.mxu0 %v7108
        %11364 = vmatpush.bf16.msra.mxu0 %v7096
        %11365 = vmatpush.bf16.msra.mxu0 %v7084
        %11366 = vmatpush.bf16.msra.mxu0 %v7072
        %11367 = vmatpush.bf16.msra.mxu0 %v7060
        %11368 = vmatpush.bf16.msra.mxu0 %v7048
        %11369 = vmatmul.bf16.gmra.mxu0 %v405
        %v11370 = vpop.f32.mrf.mxu0
        %v11371 = vadd.f32 %v11358, %v11370
        %v11372 = vpop.f32.mrf.mxu0
        %11373 = vdwg.mxu0
        %11374 = vmatpush.bf16.msra.mxu0 %v7228
        %11375 = vmatpush.bf16.msra.mxu0 %v7216
        %11376 = vmatpush.bf16.msra.mxu0 %v7204
        %11377 = vmatpush.bf16.msra.mxu0 %v7192
        %11378 = vmatpush.bf16.msra.mxu0 %v7180
        %11379 = vmatpush.bf16.msra.mxu0 %v7168
        %11380 = vmatpush.bf16.msra.mxu0 %v7156
        %11381 = vmatpush.bf16.msra.mxu0 %v7144
        %11382 = vmatmul.bf16.gmra.mxu0 %v406
        %v11383 = vpop.f32.mrf.mxu0
        %v11384 = vadd.f32 %v11371, %v11383
        %v11385 = vpop.f32.mrf.mxu0
        %11386 = vdwg.mxu0
        %11387 = vmatpush.bf16.msra.mxu0 %v7324
        %11388 = vmatpush.bf16.msra.mxu0 %v7312
        %11389 = vmatpush.bf16.msra.mxu0 %v7300
        %11390 = vmatpush.bf16.msra.mxu0 %v7288
        %11391 = vmatpush.bf16.msra.mxu0 %v7276
        %11392 = vmatpush.bf16.msra.mxu0 %v7264
        %11393 = vmatpush.bf16.msra.mxu0 %v7252
        %11394 = vmatpush.bf16.msra.mxu0 %v7240
        %11395 = vmatmul.bf16.gmra.mxu0 %v407
        %v11396 = vpop.f32.mrf.mxu0
        %v11397 = vadd.f32 %v11384, %v11396
        %v11398 = vpop.f32.mrf.mxu0
        %11399 = vdwg.mxu0
        %11400 = vmatpush.bf16.msra.mxu0 %v7420
        %11401 = vmatpush.bf16.msra.mxu0 %v7408
        %11402 = vmatpush.bf16.msra.mxu0 %v7396
        %11403 = vmatpush.bf16.msra.mxu0 %v7384
        %11404 = vmatpush.bf16.msra.mxu0 %v7372
        %11405 = vmatpush.bf16.msra.mxu0 %v7360
        %11406 = vmatpush.bf16.msra.mxu0 %v7348
        %11407 = vmatpush.bf16.msra.mxu0 %v7336
        %11408 = vmatmul.bf16.gmra.mxu0 %v408
        %v11409 = vpop.f32.mrf.mxu0
        %v11410 = vadd.f32 %v11397, %v11409
        %v11411 = vpop.f32.mrf.mxu0
        %11412 = vdwg.mxu0
        %11413 = vmatpush.bf16.msra.mxu0 %v7516
        %11414 = vmatpush.bf16.msra.mxu0 %v7504
        %11415 = vmatpush.bf16.msra.mxu0 %v7492
        %11416 = vmatpush.bf16.msra.mxu0 %v7480
        %11417 = vmatpush.bf16.msra.mxu0 %v7468
        %11418 = vmatpush.bf16.msra.mxu0 %v7456
        %11419 = vmatpush.bf16.msra.mxu0 %v7444
        %11420 = vmatpush.bf16.msra.mxu0 %v7432
        %11421 = vmatmul.bf16.gmra.mxu0 %v409
        %v11422 = vpop.f32.mrf.mxu0
        %v11423 = vadd.f32 %v11410, %v11422
        %v11424 = vpop.f32.mrf.mxu0
        %11425 = vdwg.mxu0
        %11426 = vmatpush.bf16.msra.mxu0 %v7612
        %11427 = vmatpush.bf16.msra.mxu0 %v7600
        %11428 = vmatpush.bf16.msra.mxu0 %v7588
        %11429 = vmatpush.bf16.msra.mxu0 %v7576
        %11430 = vmatpush.bf16.msra.mxu0 %v7564
        %11431 = vmatpush.bf16.msra.mxu0 %v7552
        %11432 = vmatpush.bf16.msra.mxu0 %v7540
        %11433 = vmatpush.bf16.msra.mxu0 %v7528
        %11434 = vmatmul.bf16.gmra.mxu0 %v410
        %v11435 = vpop.f32.mrf.mxu0
        %v11436 = vadd.f32 %v11423, %v11435
        %v11437 = vpop.f32.mrf.mxu0
        %11438 = vdwg.mxu0
        %11439 = vmatpush.bf16.msra.mxu0 %v7708
        %11440 = vmatpush.bf16.msra.mxu0 %v7696
        %11441 = vmatpush.bf16.msra.mxu0 %v7684
        %11442 = vmatpush.bf16.msra.mxu0 %v7672
        %11443 = vmatpush.bf16.msra.mxu0 %v7660
        %11444 = vmatpush.bf16.msra.mxu0 %v7648
        %11445 = vmatpush.bf16.msra.mxu0 %v7636
        %11446 = vmatpush.bf16.msra.mxu0 %v7624
        %11447 = vmatmul.bf16.gmra.mxu0 %v411
        %v11448 = vpop.f32.mrf.mxu0
        %v11449 = vadd.f32 %v11436, %v11448
        %v11450 = vpop.f32.mrf.mxu0
        %11451 = vdwg.mxu0
        %11452 = vmatpush.bf16.msra.mxu0 %v7804
        %11453 = vmatpush.bf16.msra.mxu0 %v7792
        %11454 = vmatpush.bf16.msra.mxu0 %v7780
        %11455 = vmatpush.bf16.msra.mxu0 %v7768
        %11456 = vmatpush.bf16.msra.mxu0 %v7756
        %11457 = vmatpush.bf16.msra.mxu0 %v7744
        %11458 = vmatpush.bf16.msra.mxu0 %v7732
        %11459 = vmatpush.bf16.msra.mxu0 %v7720
        %11460 = vmatmul.bf16.gmra.mxu0 %v412
        %v11461 = vpop.f32.mrf.mxu0
        %v11462 = vadd.f32 %v11449, %v11461
        %v11463 = vpop.f32.mrf.mxu0
        %11464 = vdwg.mxu0
        %11465 = vmatpush.bf16.msra.mxu0 %v7900
        %11466 = vmatpush.bf16.msra.mxu0 %v7888
        %11467 = vmatpush.bf16.msra.mxu0 %v7876
        %11468 = vmatpush.bf16.msra.mxu0 %v7864
        %11469 = vmatpush.bf16.msra.mxu0 %v7852
        %11470 = vmatpush.bf16.msra.mxu0 %v7840
        %11471 = vmatpush.bf16.msra.mxu0 %v7828
        %11472 = vmatpush.bf16.msra.mxu0 %v7816
        %11473 = vmatmul.bf16.gmra.mxu0 %v413
        %v11474 = vpop.f32.mrf.mxu0
        %v11475 = vadd.f32 %v11462, %v11474
        %v11476 = vpop.f32.mrf.mxu0
        %11477 = vdwg.mxu0
        %11478 = vmatpush.bf16.msra.mxu0 %v7996
        %11479 = vmatpush.bf16.msra.mxu0 %v7984
        %11480 = vmatpush.bf16.msra.mxu0 %v7972
        %11481 = vmatpush.bf16.msra.mxu0 %v7960
        %11482 = vmatpush.bf16.msra.mxu0 %v7948
        %11483 = vmatpush.bf16.msra.mxu0 %v7936
        %11484 = vmatpush.bf16.msra.mxu0 %v7924
        %11485 = vmatpush.bf16.msra.mxu0 %v7912
        %11486 = vmatmul.bf16.gmra.mxu0 %v414
        %v11487 = vpop.f32.mrf.mxu0
        %v11488 = vadd.f32 %v11475, %v11487
        %v11489 = vpop.f32.mrf.mxu0
        %11490 = vdwg.mxu0
        %11491 = vmatpush.bf16.msra.mxu0 %v8092
        %11492 = vmatpush.bf16.msra.mxu0 %v8080
        %11493 = vmatpush.bf16.msra.mxu0 %v8068
        %11494 = vmatpush.bf16.msra.mxu0 %v8056
        %11495 = vmatpush.bf16.msra.mxu0 %v8044
        %11496 = vmatpush.bf16.msra.mxu0 %v8032
        %11497 = vmatpush.bf16.msra.mxu0 %v8020
        %11498 = vmatpush.bf16.msra.mxu0 %v8008
        %11499 = vmatmul.bf16.gmra.mxu0 %v415
        %v11500 = vpop.f32.mrf.mxu0
        %v11501 = vadd.f32 %v11488, %v11500
        %v11502 = vpop.f32.mrf.mxu0
        %11503 = vdwg.mxu0
        %11504 = vmatpush.bf16.msra.mxu0 %v6653
        %11505 = vmatpush.bf16.msra.mxu0 %v6641
        %11506 = vmatpush.bf16.msra.mxu0 %v6629
        %11507 = vmatpush.bf16.msra.mxu0 %v6617
        %11508 = vmatpush.bf16.msra.mxu0 %v6605
        %11509 = vmatpush.bf16.msra.mxu0 %v6593
        %11510 = vmatpush.bf16.msra.mxu0 %v6581
        %11511 = vmatpush.bf16.msra.mxu0 %v6569
        %11512 = vmatmul.bf16.gmra.mxu0 %v400
        %v11513 = vpop.f32.mrf.mxu0
        %v11514 = vadd.f32 0.0, %v11513
        %v11515 = vpop.f32.mrf.mxu0
        %11516 = vdwg.mxu0
        %11517 = vmatpush.bf16.msra.mxu0 %v6749
        %11518 = vmatpush.bf16.msra.mxu0 %v6737
        %11519 = vmatpush.bf16.msra.mxu0 %v6725
        %11520 = vmatpush.bf16.msra.mxu0 %v6713
        %11521 = vmatpush.bf16.msra.mxu0 %v6701
        %11522 = vmatpush.bf16.msra.mxu0 %v6689
        %11523 = vmatpush.bf16.msra.mxu0 %v6677
        %11524 = vmatpush.bf16.msra.mxu0 %v6665
        %11525 = vmatmul.bf16.gmra.mxu0 %v401
        %v11526 = vpop.f32.mrf.mxu0
        %v11527 = vadd.f32 %v11514, %v11526
        %v11528 = vpop.f32.mrf.mxu0
        %11529 = vdwg.mxu0
        %11530 = vmatpush.bf16.msra.mxu0 %v6845
        %11531 = vmatpush.bf16.msra.mxu0 %v6833
        %11532 = vmatpush.bf16.msra.mxu0 %v6821
        %11533 = vmatpush.bf16.msra.mxu0 %v6809
        %11534 = vmatpush.bf16.msra.mxu0 %v6797
        %11535 = vmatpush.bf16.msra.mxu0 %v6785
        %11536 = vmatpush.bf16.msra.mxu0 %v6773
        %11537 = vmatpush.bf16.msra.mxu0 %v6761
        %11538 = vmatmul.bf16.gmra.mxu0 %v402
        %v11539 = vpop.f32.mrf.mxu0
        %v11540 = vadd.f32 %v11527, %v11539
        %v11541 = vpop.f32.mrf.mxu0
        %11542 = vdwg.mxu0
        %11543 = vmatpush.bf16.msra.mxu0 %v6941
        %11544 = vmatpush.bf16.msra.mxu0 %v6929
        %11545 = vmatpush.bf16.msra.mxu0 %v6917
        %11546 = vmatpush.bf16.msra.mxu0 %v6905
        %11547 = vmatpush.bf16.msra.mxu0 %v6893
        %11548 = vmatpush.bf16.msra.mxu0 %v6881
        %11549 = vmatpush.bf16.msra.mxu0 %v6869
        %11550 = vmatpush.bf16.msra.mxu0 %v6857
        %11551 = vmatmul.bf16.gmra.mxu0 %v403
        %v11552 = vpop.f32.mrf.mxu0
        %v11553 = vadd.f32 %v11540, %v11552
        %v11554 = vpop.f32.mrf.mxu0
        %11555 = vdwg.mxu0
        %11556 = vmatpush.bf16.msra.mxu0 %v7037
        %11557 = vmatpush.bf16.msra.mxu0 %v7025
        %11558 = vmatpush.bf16.msra.mxu0 %v7013
        %11559 = vmatpush.bf16.msra.mxu0 %v7001
        %11560 = vmatpush.bf16.msra.mxu0 %v6989
        %11561 = vmatpush.bf16.msra.mxu0 %v6977
        %11562 = vmatpush.bf16.msra.mxu0 %v6965
        %11563 = vmatpush.bf16.msra.mxu0 %v6953
        %11564 = vmatmul.bf16.gmra.mxu0 %v404
        %v11565 = vpop.f32.mrf.mxu0
        %v11566 = vadd.f32 %v11553, %v11565
        %v11567 = vpop.f32.mrf.mxu0
        %11568 = vdwg.mxu0
        %11569 = vmatpush.bf16.msra.mxu0 %v7133
        %11570 = vmatpush.bf16.msra.mxu0 %v7121
        %11571 = vmatpush.bf16.msra.mxu0 %v7109
        %11572 = vmatpush.bf16.msra.mxu0 %v7097
        %11573 = vmatpush.bf16.msra.mxu0 %v7085
        %11574 = vmatpush.bf16.msra.mxu0 %v7073
        %11575 = vmatpush.bf16.msra.mxu0 %v7061
        %11576 = vmatpush.bf16.msra.mxu0 %v7049
        %11577 = vmatmul.bf16.gmra.mxu0 %v405
        %v11578 = vpop.f32.mrf.mxu0
        %v11579 = vadd.f32 %v11566, %v11578
        %v11580 = vpop.f32.mrf.mxu0
        %11581 = vdwg.mxu0
        %11582 = vmatpush.bf16.msra.mxu0 %v7229
        %11583 = vmatpush.bf16.msra.mxu0 %v7217
        %11584 = vmatpush.bf16.msra.mxu0 %v7205
        %11585 = vmatpush.bf16.msra.mxu0 %v7193
        %11586 = vmatpush.bf16.msra.mxu0 %v7181
        %11587 = vmatpush.bf16.msra.mxu0 %v7169
        %11588 = vmatpush.bf16.msra.mxu0 %v7157
        %11589 = vmatpush.bf16.msra.mxu0 %v7145
        %11590 = vmatmul.bf16.gmra.mxu0 %v406
        %v11591 = vpop.f32.mrf.mxu0
        %v11592 = vadd.f32 %v11579, %v11591
        %v11593 = vpop.f32.mrf.mxu0
        %11594 = vdwg.mxu0
        %11595 = vmatpush.bf16.msra.mxu0 %v7325
        %11596 = vmatpush.bf16.msra.mxu0 %v7313
        %11597 = vmatpush.bf16.msra.mxu0 %v7301
        %11598 = vmatpush.bf16.msra.mxu0 %v7289
        %11599 = vmatpush.bf16.msra.mxu0 %v7277
        %11600 = vmatpush.bf16.msra.mxu0 %v7265
        %11601 = vmatpush.bf16.msra.mxu0 %v7253
        %11602 = vmatpush.bf16.msra.mxu0 %v7241
        %11603 = vmatmul.bf16.gmra.mxu0 %v407
        %v11604 = vpop.f32.mrf.mxu0
        %v11605 = vadd.f32 %v11592, %v11604
        %v11606 = vpop.f32.mrf.mxu0
        %11607 = vdwg.mxu0
        %11608 = vmatpush.bf16.msra.mxu0 %v7421
        %11609 = vmatpush.bf16.msra.mxu0 %v7409
        %11610 = vmatpush.bf16.msra.mxu0 %v7397
        %11611 = vmatpush.bf16.msra.mxu0 %v7385
        %11612 = vmatpush.bf16.msra.mxu0 %v7373
        %11613 = vmatpush.bf16.msra.mxu0 %v7361
        %11614 = vmatpush.bf16.msra.mxu0 %v7349
        %11615 = vmatpush.bf16.msra.mxu0 %v7337
        %11616 = vmatmul.bf16.gmra.mxu0 %v408
        %v11617 = vpop.f32.mrf.mxu0
        %v11618 = vadd.f32 %v11605, %v11617
        %v11619 = vpop.f32.mrf.mxu0
        %11620 = vdwg.mxu0
        %11621 = vmatpush.bf16.msra.mxu0 %v7517
        %11622 = vmatpush.bf16.msra.mxu0 %v7505
        %11623 = vmatpush.bf16.msra.mxu0 %v7493
        %11624 = vmatpush.bf16.msra.mxu0 %v7481
        %11625 = vmatpush.bf16.msra.mxu0 %v7469
        %11626 = vmatpush.bf16.msra.mxu0 %v7457
        %11627 = vmatpush.bf16.msra.mxu0 %v7445
        %11628 = vmatpush.bf16.msra.mxu0 %v7433
        %11629 = vmatmul.bf16.gmra.mxu0 %v409
        %v11630 = vpop.f32.mrf.mxu0
        %v11631 = vadd.f32 %v11618, %v11630
        %v11632 = vpop.f32.mrf.mxu0
        %11633 = vdwg.mxu0
        %11634 = vmatpush.bf16.msra.mxu0 %v7613
        %11635 = vmatpush.bf16.msra.mxu0 %v7601
        %11636 = vmatpush.bf16.msra.mxu0 %v7589
        %11637 = vmatpush.bf16.msra.mxu0 %v7577
        %11638 = vmatpush.bf16.msra.mxu0 %v7565
        %11639 = vmatpush.bf16.msra.mxu0 %v7553
        %11640 = vmatpush.bf16.msra.mxu0 %v7541
        %11641 = vmatpush.bf16.msra.mxu0 %v7529
        %11642 = vmatmul.bf16.gmra.mxu0 %v410
        %v11643 = vpop.f32.mrf.mxu0
        %v11644 = vadd.f32 %v11631, %v11643
        %v11645 = vpop.f32.mrf.mxu0
        %11646 = vdwg.mxu0
        %11647 = vmatpush.bf16.msra.mxu0 %v7709
        %11648 = vmatpush.bf16.msra.mxu0 %v7697
        %11649 = vmatpush.bf16.msra.mxu0 %v7685
        %11650 = vmatpush.bf16.msra.mxu0 %v7673
        %11651 = vmatpush.bf16.msra.mxu0 %v7661
        %11652 = vmatpush.bf16.msra.mxu0 %v7649
        %11653 = vmatpush.bf16.msra.mxu0 %v7637
        %11654 = vmatpush.bf16.msra.mxu0 %v7625
        %11655 = vmatmul.bf16.gmra.mxu0 %v411
        %v11656 = vpop.f32.mrf.mxu0
        %v11657 = vadd.f32 %v11644, %v11656
        %v11658 = vpop.f32.mrf.mxu0
        %11659 = vdwg.mxu0
        %11660 = vmatpush.bf16.msra.mxu0 %v7805
        %11661 = vmatpush.bf16.msra.mxu0 %v7793
        %11662 = vmatpush.bf16.msra.mxu0 %v7781
        %11663 = vmatpush.bf16.msra.mxu0 %v7769
        %11664 = vmatpush.bf16.msra.mxu0 %v7757
        %11665 = vmatpush.bf16.msra.mxu0 %v7745
        %11666 = vmatpush.bf16.msra.mxu0 %v7733
        %11667 = vmatpush.bf16.msra.mxu0 %v7721
        %11668 = vmatmul.bf16.gmra.mxu0 %v412
        %v11669 = vpop.f32.mrf.mxu0
        %v11670 = vadd.f32 %v11657, %v11669
        %v11671 = vpop.f32.mrf.mxu0
        %11672 = vdwg.mxu0
        %11673 = vmatpush.bf16.msra.mxu0 %v7901
        %11674 = vmatpush.bf16.msra.mxu0 %v7889
        %11675 = vmatpush.bf16.msra.mxu0 %v7877
        %11676 = vmatpush.bf16.msra.mxu0 %v7865
        %11677 = vmatpush.bf16.msra.mxu0 %v7853
        %11678 = vmatpush.bf16.msra.mxu0 %v7841
        %11679 = vmatpush.bf16.msra.mxu0 %v7829
        %11680 = vmatpush.bf16.msra.mxu0 %v7817
        %11681 = vmatmul.bf16.gmra.mxu0 %v413
        %v11682 = vpop.f32.mrf.mxu0
        %v11683 = vadd.f32 %v11670, %v11682
        %v11684 = vpop.f32.mrf.mxu0
        %11685 = vdwg.mxu0
        %11686 = vmatpush.bf16.msra.mxu0 %v7997
        %11687 = vmatpush.bf16.msra.mxu0 %v7985
        %11688 = vmatpush.bf16.msra.mxu0 %v7973
        %11689 = vmatpush.bf16.msra.mxu0 %v7961
        %11690 = vmatpush.bf16.msra.mxu0 %v7949
        %11691 = vmatpush.bf16.msra.mxu0 %v7937
        %11692 = vmatpush.bf16.msra.mxu0 %v7925
        %11693 = vmatpush.bf16.msra.mxu0 %v7913
        %11694 = vmatmul.bf16.gmra.mxu0 %v414
        %v11695 = vpop.f32.mrf.mxu0
        %v11696 = vadd.f32 %v11683, %v11695
        %v11697 = vpop.f32.mrf.mxu0
        %11698 = vdwg.mxu0
        %11699 = vmatpush.bf16.msra.mxu0 %v8093
        %11700 = vmatpush.bf16.msra.mxu0 %v8081
        %11701 = vmatpush.bf16.msra.mxu0 %v8069
        %11702 = vmatpush.bf16.msra.mxu0 %v8057
        %11703 = vmatpush.bf16.msra.mxu0 %v8045
        %11704 = vmatpush.bf16.msra.mxu0 %v8033
        %11705 = vmatpush.bf16.msra.mxu0 %v8021
        %11706 = vmatpush.bf16.msra.mxu0 %v8009
        %11707 = vmatmul.bf16.gmra.mxu0 %v415
        %v11708 = vpop.f32.mrf.mxu0
        %v11709 = vadd.f32 %v11696, %v11708
        %v11710 = vpop.f32.mrf.mxu0
        %11711 = vdwg.mxu0
        %11712 = vmatpush.bf16.msra.mxu0 %v6654
        %11713 = vmatpush.bf16.msra.mxu0 %v6642
        %11714 = vmatpush.bf16.msra.mxu0 %v6630
        %11715 = vmatpush.bf16.msra.mxu0 %v6618
        %11716 = vmatpush.bf16.msra.mxu0 %v6606
        %11717 = vmatpush.bf16.msra.mxu0 %v6594
        %11718 = vmatpush.bf16.msra.mxu0 %v6582
        %11719 = vmatpush.bf16.msra.mxu0 %v6570
        %11720 = vmatmul.bf16.gmra.mxu0 %v400
        %v11721 = vpop.f32.mrf.mxu0
        %v11722 = vadd.f32 0.0, %v11721
        %v11723 = vpop.f32.mrf.mxu0
        %11724 = vdwg.mxu0
        %11725 = vmatpush.bf16.msra.mxu0 %v6750
        %11726 = vmatpush.bf16.msra.mxu0 %v6738
        %11727 = vmatpush.bf16.msra.mxu0 %v6726
        %11728 = vmatpush.bf16.msra.mxu0 %v6714
        %11729 = vmatpush.bf16.msra.mxu0 %v6702
        %11730 = vmatpush.bf16.msra.mxu0 %v6690
        %11731 = vmatpush.bf16.msra.mxu0 %v6678
        %11732 = vmatpush.bf16.msra.mxu0 %v6666
        %11733 = vmatmul.bf16.gmra.mxu0 %v401
        %v11734 = vpop.f32.mrf.mxu0
        %v11735 = vadd.f32 %v11722, %v11734
        %v11736 = vpop.f32.mrf.mxu0
        %11737 = vdwg.mxu0
        %11738 = vmatpush.bf16.msra.mxu0 %v6846
        %11739 = vmatpush.bf16.msra.mxu0 %v6834
        %11740 = vmatpush.bf16.msra.mxu0 %v6822
        %11741 = vmatpush.bf16.msra.mxu0 %v6810
        %11742 = vmatpush.bf16.msra.mxu0 %v6798
        %11743 = vmatpush.bf16.msra.mxu0 %v6786
        %11744 = vmatpush.bf16.msra.mxu0 %v6774
        %11745 = vmatpush.bf16.msra.mxu0 %v6762
        %11746 = vmatmul.bf16.gmra.mxu0 %v402
        %v11747 = vpop.f32.mrf.mxu0
        %v11748 = vadd.f32 %v11735, %v11747
        %v11749 = vpop.f32.mrf.mxu0
        %11750 = vdwg.mxu0
        %11751 = vmatpush.bf16.msra.mxu0 %v6942
        %11752 = vmatpush.bf16.msra.mxu0 %v6930
        %11753 = vmatpush.bf16.msra.mxu0 %v6918
        %11754 = vmatpush.bf16.msra.mxu0 %v6906
        %11755 = vmatpush.bf16.msra.mxu0 %v6894
        %11756 = vmatpush.bf16.msra.mxu0 %v6882
        %11757 = vmatpush.bf16.msra.mxu0 %v6870
        %11758 = vmatpush.bf16.msra.mxu0 %v6858
        %11759 = vmatmul.bf16.gmra.mxu0 %v403
        %v11760 = vpop.f32.mrf.mxu0
        %v11761 = vadd.f32 %v11748, %v11760
        %v11762 = vpop.f32.mrf.mxu0
        %11763 = vdwg.mxu0
        %11764 = vmatpush.bf16.msra.mxu0 %v7038
        %11765 = vmatpush.bf16.msra.mxu0 %v7026
        %11766 = vmatpush.bf16.msra.mxu0 %v7014
        %11767 = vmatpush.bf16.msra.mxu0 %v7002
        %11768 = vmatpush.bf16.msra.mxu0 %v6990
        %11769 = vmatpush.bf16.msra.mxu0 %v6978
        %11770 = vmatpush.bf16.msra.mxu0 %v6966
        %11771 = vmatpush.bf16.msra.mxu0 %v6954
        %11772 = vmatmul.bf16.gmra.mxu0 %v404
        %v11773 = vpop.f32.mrf.mxu0
        %v11774 = vadd.f32 %v11761, %v11773
        %v11775 = vpop.f32.mrf.mxu0
        %11776 = vdwg.mxu0
        %11777 = vmatpush.bf16.msra.mxu0 %v7134
        %11778 = vmatpush.bf16.msra.mxu0 %v7122
        %11779 = vmatpush.bf16.msra.mxu0 %v7110
        %11780 = vmatpush.bf16.msra.mxu0 %v7098
        %11781 = vmatpush.bf16.msra.mxu0 %v7086
        %11782 = vmatpush.bf16.msra.mxu0 %v7074
        %11783 = vmatpush.bf16.msra.mxu0 %v7062
        %11784 = vmatpush.bf16.msra.mxu0 %v7050
        %11785 = vmatmul.bf16.gmra.mxu0 %v405
        %v11786 = vpop.f32.mrf.mxu0
        %v11787 = vadd.f32 %v11774, %v11786
        %v11788 = vpop.f32.mrf.mxu0
        %11789 = vdwg.mxu0
        %11790 = vmatpush.bf16.msra.mxu0 %v7230
        %11791 = vmatpush.bf16.msra.mxu0 %v7218
        %11792 = vmatpush.bf16.msra.mxu0 %v7206
        %11793 = vmatpush.bf16.msra.mxu0 %v7194
        %11794 = vmatpush.bf16.msra.mxu0 %v7182
        %11795 = vmatpush.bf16.msra.mxu0 %v7170
        %11796 = vmatpush.bf16.msra.mxu0 %v7158
        %11797 = vmatpush.bf16.msra.mxu0 %v7146
        %11798 = vmatmul.bf16.gmra.mxu0 %v406
        %v11799 = vpop.f32.mrf.mxu0
        %v11800 = vadd.f32 %v11787, %v11799
        %v11801 = vpop.f32.mrf.mxu0
        %11802 = vdwg.mxu0
        %11803 = vmatpush.bf16.msra.mxu0 %v7326
        %11804 = vmatpush.bf16.msra.mxu0 %v7314
        %11805 = vmatpush.bf16.msra.mxu0 %v7302
        %11806 = vmatpush.bf16.msra.mxu0 %v7290
        %11807 = vmatpush.bf16.msra.mxu0 %v7278
        %11808 = vmatpush.bf16.msra.mxu0 %v7266
        %11809 = vmatpush.bf16.msra.mxu0 %v7254
        %11810 = vmatpush.bf16.msra.mxu0 %v7242
        %11811 = vmatmul.bf16.gmra.mxu0 %v407
        %v11812 = vpop.f32.mrf.mxu0
        %v11813 = vadd.f32 %v11800, %v11812
        %v11814 = vpop.f32.mrf.mxu0
        %11815 = vdwg.mxu0
        %11816 = vmatpush.bf16.msra.mxu0 %v7422
        %11817 = vmatpush.bf16.msra.mxu0 %v7410
        %11818 = vmatpush.bf16.msra.mxu0 %v7398
        %11819 = vmatpush.bf16.msra.mxu0 %v7386
        %11820 = vmatpush.bf16.msra.mxu0 %v7374
        %11821 = vmatpush.bf16.msra.mxu0 %v7362
        %11822 = vmatpush.bf16.msra.mxu0 %v7350
        %11823 = vmatpush.bf16.msra.mxu0 %v7338
        %11824 = vmatmul.bf16.gmra.mxu0 %v408
        %v11825 = vpop.f32.mrf.mxu0
        %v11826 = vadd.f32 %v11813, %v11825
        %v11827 = vpop.f32.mrf.mxu0
        %11828 = vdwg.mxu0
        %11829 = vmatpush.bf16.msra.mxu0 %v7518
        %11830 = vmatpush.bf16.msra.mxu0 %v7506
        %11831 = vmatpush.bf16.msra.mxu0 %v7494
        %11832 = vmatpush.bf16.msra.mxu0 %v7482
        %11833 = vmatpush.bf16.msra.mxu0 %v7470
        %11834 = vmatpush.bf16.msra.mxu0 %v7458
        %11835 = vmatpush.bf16.msra.mxu0 %v7446
        %11836 = vmatpush.bf16.msra.mxu0 %v7434
        %11837 = vmatmul.bf16.gmra.mxu0 %v409
        %v11838 = vpop.f32.mrf.mxu0
        %v11839 = vadd.f32 %v11826, %v11838
        %v11840 = vpop.f32.mrf.mxu0
        %11841 = vdwg.mxu0
        %11842 = vmatpush.bf16.msra.mxu0 %v7614
        %11843 = vmatpush.bf16.msra.mxu0 %v7602
        %11844 = vmatpush.bf16.msra.mxu0 %v7590
        %11845 = vmatpush.bf16.msra.mxu0 %v7578
        %11846 = vmatpush.bf16.msra.mxu0 %v7566
        %11847 = vmatpush.bf16.msra.mxu0 %v7554
        %11848 = vmatpush.bf16.msra.mxu0 %v7542
        %11849 = vmatpush.bf16.msra.mxu0 %v7530
        %11850 = vmatmul.bf16.gmra.mxu0 %v410
        %v11851 = vpop.f32.mrf.mxu0
        %v11852 = vadd.f32 %v11839, %v11851
        %v11853 = vpop.f32.mrf.mxu0
        %11854 = vdwg.mxu0
        %11855 = vmatpush.bf16.msra.mxu0 %v7710
        %11856 = vmatpush.bf16.msra.mxu0 %v7698
        %11857 = vmatpush.bf16.msra.mxu0 %v7686
        %11858 = vmatpush.bf16.msra.mxu0 %v7674
        %11859 = vmatpush.bf16.msra.mxu0 %v7662
        %11860 = vmatpush.bf16.msra.mxu0 %v7650
        %11861 = vmatpush.bf16.msra.mxu0 %v7638
        %11862 = vmatpush.bf16.msra.mxu0 %v7626
        %11863 = vmatmul.bf16.gmra.mxu0 %v411
        %v11864 = vpop.f32.mrf.mxu0
        %v11865 = vadd.f32 %v11852, %v11864
        %v11866 = vpop.f32.mrf.mxu0
        %11867 = vdwg.mxu0
        %11868 = vmatpush.bf16.msra.mxu0 %v7806
        %11869 = vmatpush.bf16.msra.mxu0 %v7794
        %11870 = vmatpush.bf16.msra.mxu0 %v7782
        %11871 = vmatpush.bf16.msra.mxu0 %v7770
        %11872 = vmatpush.bf16.msra.mxu0 %v7758
        %11873 = vmatpush.bf16.msra.mxu0 %v7746
        %11874 = vmatpush.bf16.msra.mxu0 %v7734
        %11875 = vmatpush.bf16.msra.mxu0 %v7722
        %11876 = vmatmul.bf16.gmra.mxu0 %v412
        %v11877 = vpop.f32.mrf.mxu0
        %v11878 = vadd.f32 %v11865, %v11877
        %v11879 = vpop.f32.mrf.mxu0
        %11880 = vdwg.mxu0
        %11881 = vmatpush.bf16.msra.mxu0 %v7902
        %11882 = vmatpush.bf16.msra.mxu0 %v7890
        %11883 = vmatpush.bf16.msra.mxu0 %v7878
        %11884 = vmatpush.bf16.msra.mxu0 %v7866
        %11885 = vmatpush.bf16.msra.mxu0 %v7854
        %11886 = vmatpush.bf16.msra.mxu0 %v7842
        %11887 = vmatpush.bf16.msra.mxu0 %v7830
        %11888 = vmatpush.bf16.msra.mxu0 %v7818
        %11889 = vmatmul.bf16.gmra.mxu0 %v413
        %v11890 = vpop.f32.mrf.mxu0
        %v11891 = vadd.f32 %v11878, %v11890
        %v11892 = vpop.f32.mrf.mxu0
        %11893 = vdwg.mxu0
        %11894 = vmatpush.bf16.msra.mxu0 %v7998
        %11895 = vmatpush.bf16.msra.mxu0 %v7986
        %11896 = vmatpush.bf16.msra.mxu0 %v7974
        %11897 = vmatpush.bf16.msra.mxu0 %v7962
        %11898 = vmatpush.bf16.msra.mxu0 %v7950
        %11899 = vmatpush.bf16.msra.mxu0 %v7938
        %11900 = vmatpush.bf16.msra.mxu0 %v7926
        %11901 = vmatpush.bf16.msra.mxu0 %v7914
        %11902 = vmatmul.bf16.gmra.mxu0 %v414
        %v11903 = vpop.f32.mrf.mxu0
        %v11904 = vadd.f32 %v11891, %v11903
        %v11905 = vpop.f32.mrf.mxu0
        %11906 = vdwg.mxu0
        %11907 = vmatpush.bf16.msra.mxu0 %v8094
        %11908 = vmatpush.bf16.msra.mxu0 %v8082
        %11909 = vmatpush.bf16.msra.mxu0 %v8070
        %11910 = vmatpush.bf16.msra.mxu0 %v8058
        %11911 = vmatpush.bf16.msra.mxu0 %v8046
        %11912 = vmatpush.bf16.msra.mxu0 %v8034
        %11913 = vmatpush.bf16.msra.mxu0 %v8022
        %11914 = vmatpush.bf16.msra.mxu0 %v8010
        %11915 = vmatmul.bf16.gmra.mxu0 %v415
        %v11916 = vpop.f32.mrf.mxu0
        %v11917 = vadd.f32 %v11904, %v11916
        %v11918 = vpop.f32.mrf.mxu0
        %11919 = vdwg.mxu0
        %11920 = vmatpush.bf16.msra.mxu0 %v6655
        %11921 = vmatpush.bf16.msra.mxu0 %v6643
        %11922 = vmatpush.bf16.msra.mxu0 %v6631
        %11923 = vmatpush.bf16.msra.mxu0 %v6619
        %11924 = vmatpush.bf16.msra.mxu0 %v6607
        %11925 = vmatpush.bf16.msra.mxu0 %v6595
        %11926 = vmatpush.bf16.msra.mxu0 %v6583
        %11927 = vmatpush.bf16.msra.mxu0 %v6571
        %11928 = vmatmul.bf16.gmra.mxu0 %v400
        %v11929 = vpop.f32.mrf.mxu0
        %v11930 = vadd.f32 0.0, %v11929
        %v11931 = vpop.f32.mrf.mxu0
        %11932 = vdwg.mxu0
        %11933 = vmatpush.bf16.msra.mxu0 %v6751
        %11934 = vmatpush.bf16.msra.mxu0 %v6739
        %11935 = vmatpush.bf16.msra.mxu0 %v6727
        %11936 = vmatpush.bf16.msra.mxu0 %v6715
        %11937 = vmatpush.bf16.msra.mxu0 %v6703
        %11938 = vmatpush.bf16.msra.mxu0 %v6691
        %11939 = vmatpush.bf16.msra.mxu0 %v6679
        %11940 = vmatpush.bf16.msra.mxu0 %v6667
        %11941 = vmatmul.bf16.gmra.mxu0 %v401
        %v11942 = vpop.f32.mrf.mxu0
        %v11943 = vadd.f32 %v11930, %v11942
        %v11944 = vpop.f32.mrf.mxu0
        %11945 = vdwg.mxu0
        %11946 = vmatpush.bf16.msra.mxu0 %v6847
        %11947 = vmatpush.bf16.msra.mxu0 %v6835
        %11948 = vmatpush.bf16.msra.mxu0 %v6823
        %11949 = vmatpush.bf16.msra.mxu0 %v6811
        %11950 = vmatpush.bf16.msra.mxu0 %v6799
        %11951 = vmatpush.bf16.msra.mxu0 %v6787
        %11952 = vmatpush.bf16.msra.mxu0 %v6775
        %11953 = vmatpush.bf16.msra.mxu0 %v6763
        %11954 = vmatmul.bf16.gmra.mxu0 %v402
        %v11955 = vpop.f32.mrf.mxu0
        %v11956 = vadd.f32 %v11943, %v11955
        %v11957 = vpop.f32.mrf.mxu0
        %11958 = vdwg.mxu0
        %11959 = vmatpush.bf16.msra.mxu0 %v6943
        %11960 = vmatpush.bf16.msra.mxu0 %v6931
        %11961 = vmatpush.bf16.msra.mxu0 %v6919
        %11962 = vmatpush.bf16.msra.mxu0 %v6907
        %11963 = vmatpush.bf16.msra.mxu0 %v6895
        %11964 = vmatpush.bf16.msra.mxu0 %v6883
        %11965 = vmatpush.bf16.msra.mxu0 %v6871
        %11966 = vmatpush.bf16.msra.mxu0 %v6859
        %11967 = vmatmul.bf16.gmra.mxu0 %v403
        %v11968 = vpop.f32.mrf.mxu0
        %v11969 = vadd.f32 %v11956, %v11968
        %v11970 = vpop.f32.mrf.mxu0
        %11971 = vdwg.mxu0
        %11972 = vmatpush.bf16.msra.mxu0 %v7039
        %11973 = vmatpush.bf16.msra.mxu0 %v7027
        %11974 = vmatpush.bf16.msra.mxu0 %v7015
        %11975 = vmatpush.bf16.msra.mxu0 %v7003
        %11976 = vmatpush.bf16.msra.mxu0 %v6991
        %11977 = vmatpush.bf16.msra.mxu0 %v6979
        %11978 = vmatpush.bf16.msra.mxu0 %v6967
        %11979 = vmatpush.bf16.msra.mxu0 %v6955
        %11980 = vmatmul.bf16.gmra.mxu0 %v404
        %v11981 = vpop.f32.mrf.mxu0
        %v11982 = vadd.f32 %v11969, %v11981
        %v11983 = vpop.f32.mrf.mxu0
        %11984 = vdwg.mxu0
        %11985 = vmatpush.bf16.msra.mxu0 %v7135
        %11986 = vmatpush.bf16.msra.mxu0 %v7123
        %11987 = vmatpush.bf16.msra.mxu0 %v7111
        %11988 = vmatpush.bf16.msra.mxu0 %v7099
        %11989 = vmatpush.bf16.msra.mxu0 %v7087
        %11990 = vmatpush.bf16.msra.mxu0 %v7075
        %11991 = vmatpush.bf16.msra.mxu0 %v7063
        %11992 = vmatpush.bf16.msra.mxu0 %v7051
        %11993 = vmatmul.bf16.gmra.mxu0 %v405
        %v11994 = vpop.f32.mrf.mxu0
        %v11995 = vadd.f32 %v11982, %v11994
        %v11996 = vpop.f32.mrf.mxu0
        %11997 = vdwg.mxu0
        %11998 = vmatpush.bf16.msra.mxu0 %v7231
        %11999 = vmatpush.bf16.msra.mxu0 %v7219
        %12000 = vmatpush.bf16.msra.mxu0 %v7207
        %12001 = vmatpush.bf16.msra.mxu0 %v7195
        %12002 = vmatpush.bf16.msra.mxu0 %v7183
        %12003 = vmatpush.bf16.msra.mxu0 %v7171
        %12004 = vmatpush.bf16.msra.mxu0 %v7159
        %12005 = vmatpush.bf16.msra.mxu0 %v7147
        %12006 = vmatmul.bf16.gmra.mxu0 %v406
        %v12007 = vpop.f32.mrf.mxu0
        %v12008 = vadd.f32 %v11995, %v12007
        %v12009 = vpop.f32.mrf.mxu0
        %12010 = vdwg.mxu0
        %12011 = vmatpush.bf16.msra.mxu0 %v7327
        %12012 = vmatpush.bf16.msra.mxu0 %v7315
        %12013 = vmatpush.bf16.msra.mxu0 %v7303
        %12014 = vmatpush.bf16.msra.mxu0 %v7291
        %12015 = vmatpush.bf16.msra.mxu0 %v7279
        %12016 = vmatpush.bf16.msra.mxu0 %v7267
        %12017 = vmatpush.bf16.msra.mxu0 %v7255
        %12018 = vmatpush.bf16.msra.mxu0 %v7243
        %12019 = vmatmul.bf16.gmra.mxu0 %v407
        %v12020 = vpop.f32.mrf.mxu0
        %v12021 = vadd.f32 %v12008, %v12020
        %v12022 = vpop.f32.mrf.mxu0
        %12023 = vdwg.mxu0
        %12024 = vmatpush.bf16.msra.mxu0 %v7423
        %12025 = vmatpush.bf16.msra.mxu0 %v7411
        %12026 = vmatpush.bf16.msra.mxu0 %v7399
        %12027 = vmatpush.bf16.msra.mxu0 %v7387
        %12028 = vmatpush.bf16.msra.mxu0 %v7375
        %12029 = vmatpush.bf16.msra.mxu0 %v7363
        %12030 = vmatpush.bf16.msra.mxu0 %v7351
        %12031 = vmatpush.bf16.msra.mxu0 %v7339
        %12032 = vmatmul.bf16.gmra.mxu0 %v408
        %v12033 = vpop.f32.mrf.mxu0
        %v12034 = vadd.f32 %v12021, %v12033
        %v12035 = vpop.f32.mrf.mxu0
        %12036 = vdwg.mxu0
        %12037 = vmatpush.bf16.msra.mxu0 %v7519
        %12038 = vmatpush.bf16.msra.mxu0 %v7507
        %12039 = vmatpush.bf16.msra.mxu0 %v7495
        %12040 = vmatpush.bf16.msra.mxu0 %v7483
        %12041 = vmatpush.bf16.msra.mxu0 %v7471
        %12042 = vmatpush.bf16.msra.mxu0 %v7459
        %12043 = vmatpush.bf16.msra.mxu0 %v7447
        %12044 = vmatpush.bf16.msra.mxu0 %v7435
        %12045 = vmatmul.bf16.gmra.mxu0 %v409
        %v12046 = vpop.f32.mrf.mxu0
        %v12047 = vadd.f32 %v12034, %v12046
        %v12048 = vpop.f32.mrf.mxu0
        %12049 = vdwg.mxu0
        %12050 = vmatpush.bf16.msra.mxu0 %v7615
        %12051 = vmatpush.bf16.msra.mxu0 %v7603
        %12052 = vmatpush.bf16.msra.mxu0 %v7591
        %12053 = vmatpush.bf16.msra.mxu0 %v7579
        %12054 = vmatpush.bf16.msra.mxu0 %v7567
        %12055 = vmatpush.bf16.msra.mxu0 %v7555
        %12056 = vmatpush.bf16.msra.mxu0 %v7543
        %12057 = vmatpush.bf16.msra.mxu0 %v7531
        %12058 = vmatmul.bf16.gmra.mxu0 %v410
        %v12059 = vpop.f32.mrf.mxu0
        %v12060 = vadd.f32 %v12047, %v12059
        %v12061 = vpop.f32.mrf.mxu0
        %12062 = vdwg.mxu0
        %12063 = vmatpush.bf16.msra.mxu0 %v7711
        %12064 = vmatpush.bf16.msra.mxu0 %v7699
        %12065 = vmatpush.bf16.msra.mxu0 %v7687
        %12066 = vmatpush.bf16.msra.mxu0 %v7675
        %12067 = vmatpush.bf16.msra.mxu0 %v7663
        %12068 = vmatpush.bf16.msra.mxu0 %v7651
        %12069 = vmatpush.bf16.msra.mxu0 %v7639
        %12070 = vmatpush.bf16.msra.mxu0 %v7627
        %12071 = vmatmul.bf16.gmra.mxu0 %v411
        %v12072 = vpop.f32.mrf.mxu0
        %v12073 = vadd.f32 %v12060, %v12072
        %v12074 = vpop.f32.mrf.mxu0
        %12075 = vdwg.mxu0
        %12076 = vmatpush.bf16.msra.mxu0 %v7807
        %12077 = vmatpush.bf16.msra.mxu0 %v7795
        %12078 = vmatpush.bf16.msra.mxu0 %v7783
        %12079 = vmatpush.bf16.msra.mxu0 %v7771
        %12080 = vmatpush.bf16.msra.mxu0 %v7759
        %12081 = vmatpush.bf16.msra.mxu0 %v7747
        %12082 = vmatpush.bf16.msra.mxu0 %v7735
        %12083 = vmatpush.bf16.msra.mxu0 %v7723
        %12084 = vmatmul.bf16.gmra.mxu0 %v412
        %v12085 = vpop.f32.mrf.mxu0
        %v12086 = vadd.f32 %v12073, %v12085
        %v12087 = vpop.f32.mrf.mxu0
        %12088 = vdwg.mxu0
        %12089 = vmatpush.bf16.msra.mxu0 %v7903
        %12090 = vmatpush.bf16.msra.mxu0 %v7891
        %12091 = vmatpush.bf16.msra.mxu0 %v7879
        %12092 = vmatpush.bf16.msra.mxu0 %v7867
        %12093 = vmatpush.bf16.msra.mxu0 %v7855
        %12094 = vmatpush.bf16.msra.mxu0 %v7843
        %12095 = vmatpush.bf16.msra.mxu0 %v7831
        %12096 = vmatpush.bf16.msra.mxu0 %v7819
        %12097 = vmatmul.bf16.gmra.mxu0 %v413
        %v12098 = vpop.f32.mrf.mxu0
        %v12099 = vadd.f32 %v12086, %v12098
        %v12100 = vpop.f32.mrf.mxu0
        %12101 = vdwg.mxu0
        %12102 = vmatpush.bf16.msra.mxu0 %v7999
        %12103 = vmatpush.bf16.msra.mxu0 %v7987
        %12104 = vmatpush.bf16.msra.mxu0 %v7975
        %12105 = vmatpush.bf16.msra.mxu0 %v7963
        %12106 = vmatpush.bf16.msra.mxu0 %v7951
        %12107 = vmatpush.bf16.msra.mxu0 %v7939
        %12108 = vmatpush.bf16.msra.mxu0 %v7927
        %12109 = vmatpush.bf16.msra.mxu0 %v7915
        %12110 = vmatmul.bf16.gmra.mxu0 %v414
        %v12111 = vpop.f32.mrf.mxu0
        %v12112 = vadd.f32 %v12099, %v12111
        %v12113 = vpop.f32.mrf.mxu0
        %12114 = vdwg.mxu0
        %12115 = vmatpush.bf16.msra.mxu0 %v8095
        %12116 = vmatpush.bf16.msra.mxu0 %v8083
        %12117 = vmatpush.bf16.msra.mxu0 %v8071
        %12118 = vmatpush.bf16.msra.mxu0 %v8059
        %12119 = vmatpush.bf16.msra.mxu0 %v8047
        %12120 = vmatpush.bf16.msra.mxu0 %v8035
        %12121 = vmatpush.bf16.msra.mxu0 %v8023
        %12122 = vmatpush.bf16.msra.mxu0 %v8011
        %12123 = vmatmul.bf16.gmra.mxu0 %v415
        %v12124 = vpop.f32.mrf.mxu0
        %v12125 = vadd.f32 %v12112, %v12124
        %v12126 = vpop.f32.mrf.mxu0
        %12127 = vdwg.mxu0
        %v12128 = vadd.f32 %v372, %v9837
        %v12129 = vadd.f32 %v373, %v10045
        %v12130 = vadd.f32 %v374, %v10253
        %v12131 = vadd.f32 %v375, %v10461
        %v12132 = vadd.f32 %v376, %v10669
        %v12133 = vadd.f32 %v377, %v10877
        %v12134 = vadd.f32 %v378, %v11085
        %v12135 = vadd.f32 %v379, %v11293
        %v12136 = vadd.f32 %v380, %v11501
        %v12137 = vadd.f32 %v381, %v11709
        %v12138 = vadd.f32 %v382, %v11917
        %v12139 = vadd.f32 %v383, %v12125
        %12140 = vst [vmem:[#allocation2] sm:$0xff] %v12128
        %12141 = vst [vmem:[#allocation2 + $0x8] sm:$0xff] %v12129
        %12142 = vst [vmem:[#allocation2 + $0x10] sm:$0xff] %v12130
        %12143 = vst [vmem:[#allocation2 + $0x18] sm:$0xff] %v12131
        %12144 = vst [vmem:[#allocation2 + $0x20] sm:$0xff] %v12132
        %12145 = vst [vmem:[#allocation2 + $0x28] sm:$0xff] %v12133
        %12146 = vst [vmem:[#allocation2 + $0x30] sm:$0xff] %v12134
        %12147 = vst [vmem:[#allocation2 + $0x38] sm:$0xff] %v12135
        %12148 = vst [vmem:[#allocation2 + $0x40] sm:$0xff] %v12136
        %12149 = vst [vmem:[#allocation2 + $0x48] sm:$0xff] %v12137
        %12150 = vst [vmem:[#allocation2 + $0x50] sm:$0xff] %v12138
        %12151 = vst [vmem:[#allocation2 + $0x58] sm:$0xff] %v12139
        %p12152 = scmp.eq.s32.totalorder %s32, 3
        // Predicated region
        $region57: #{tpu_custom_call.1} parent=35 // pred_check
          %p12153 = pneg %p12152
        $region58: #{tpu_custom_call.1} parent=35 // pred_check_branch
          %12155 = sbr.rel (%p12153) target = $region60
        $region59: #{tpu_custom_call.1} parent=35 // pred_region
          %v12156 = vld [vmem:[#allocation2] sm:$0xff]
          %v12157 = vld [vmem:[#allocation2 + $0x8] sm:$0xff]
          %v12158 = vld [vmem:[#allocation2 + $0x10] sm:$0xff]
          %v12159 = vld [vmem:[#allocation2 + $0x18] sm:$0xff]
          %v12160 = vld [vmem:[#allocation2 + $0x20] sm:$0xff]
          %v12161 = vld [vmem:[#allocation2 + $0x28] sm:$0xff]
          %v12162 = vld [vmem:[#allocation2 + $0x30] sm:$0xff]
          %v12163 = vld [vmem:[#allocation2 + $0x38] sm:$0xff]
          %v12164 = vld [vmem:[#allocation2 + $0x40] sm:$0xff]
          %v12165 = vld [vmem:[#allocation2 + $0x48] sm:$0xff]
          %v12166 = vld [vmem:[#allocation2 + $0x50] sm:$0xff]
          %v12167 = vld [vmem:[#allocation2 + $0x58] sm:$0xff]
          %v12168 = vlaneseq
          %v12169 = vshrl.u32 %v12168, 7
          %vm12170 = vcmp.lt.s32.totalorder %v12169, 4
          %v12171 = vrot.slane %v12156, 4
          %v12172 = vadd.f32 %v12156, %v12171
          %v12173 = vrot.slane %v12172, 2
          %v12174 = vadd.f32 %v12172, %v12173
          %v12175 = vrot.slane %v12174, 1
          %v12176 = vadd.f32 %v12174, %v12175
          %v12177 = vrot.slane %v12157, 4
          %v12178 = vadd.f32 %v12157, %v12177
          %v12179 = vrot.slane %v12178, 2
          %v12180 = vadd.f32 %v12178, %v12179
          %v12181 = vrot.slane %v12180, 1
          %v12182 = vadd.f32 %v12180, %v12181
          %v12183 = vrot.slane %v12158, 4
          %v12184 = vadd.f32 %v12158, %v12183
          %v12185 = vrot.slane %v12184, 2
          %v12186 = vadd.f32 %v12184, %v12185
          %v12187 = vrot.slane %v12186, 1
          %v12188 = vadd.f32 %v12186, %v12187
          %v12189 = vrot.slane %v12159, 4
          %v12190 = vadd.f32 %v12159, %v12189
          %v12191 = vrot.slane %v12190, 2
          %v12192 = vadd.f32 %v12190, %v12191
          %v12193 = vrot.slane %v12192, 1
          %v12194 = vadd.f32 %v12192, %v12193
          %v12195 = vrot.slane %v12160, 4
          %v12196 = vadd.f32 %v12160, %v12195
          %v12197 = vrot.slane %v12196, 2
          %v12198 = vadd.f32 %v12196, %v12197
          %v12199 = vrot.slane %v12198, 1
          %v12200 = vadd.f32 %v12198, %v12199
          %v12201 = vrot.slane %v12161, 4
          %v12202 = vadd.f32 %v12161, %v12201
          %v12203 = vrot.slane %v12202, 2
          %v12204 = vadd.f32 %v12202, %v12203
          %v12205 = vrot.slane %v12204, 1
          %v12206 = vadd.f32 %v12204, %v12205
          %v12207 = vrot.slane %v12162, 4
          %v12208 = vadd.f32 %v12162, %v12207
          %v12209 = vrot.slane %v12208, 2
          %v12210 = vadd.f32 %v12208, %v12209
          %v12211 = vrot.slane %v12210, 1
          %v12212 = vadd.f32 %v12210, %v12211
          %v12213 = vrot.slane %v12163, 4
          %v12214 = vadd.f32 %v12163, %v12213
          %v12215 = vrot.slane %v12214, 2
          %v12216 = vadd.f32 %v12214, %v12215
          %v12217 = vrot.slane %v12216, 1
          %v12218 = vadd.f32 %v12216, %v12217
          %v12219 = vrot.slane %v12164, 4
          %v12220 = vadd.f32 %v12164, %v12219
          %v12221 = vrot.slane %v12220, 2
          %v12222 = vadd.f32 %v12220, %v12221
          %v12223 = vrot.slane %v12222, 1
          %v12224 = vadd.f32 %v12222, %v12223
          %v12225 = vrot.slane %v12165, 4
          %v12226 = vadd.f32 %v12165, %v12225
          %v12227 = vrot.slane %v12226, 2
          %v12228 = vadd.f32 %v12226, %v12227
          %v12229 = vrot.slane %v12228, 1
          %v12230 = vadd.f32 %v12228, %v12229
          %v12231 = vrot.slane %v12166, 4
          %v12232 = vadd.f32 %v12166, %v12231
          %v12233 = vrot.slane %v12232, 2
          %v12234 = vadd.f32 %v12232, %v12233
          %v12235 = vrot.slane %v12234, 1
          %v12236 = vadd.f32 %v12234, %v12235
          %v12237 = vrot.slane %v12167, 4
          %v12238 = vadd.f32 %v12167, %v12237
          %v12239 = vrot.slane %v12238, 2
          %v12240 = vadd.f32 %v12238, %v12239
          %v12241 = vrot.slane %v12240, 1
          %v12242 = vadd.f32 %v12240, %v12241
          %v12243 = vmul.f32 %v12176, 0.25
          %v12244 = vmul.f32 %v12182, 0.25
          %v12245 = vmul.f32 %v12188, 0.25
          %v12246 = vmul.f32 %v12194, 0.25
          %v12247 = vmul.f32 %v12200, 0.25
          %v12248 = vmul.f32 %v12206, 0.25
          %v12249 = vmul.f32 %v12212, 0.25
          %v12250 = vmul.f32 %v12218, 0.25
          %v12251 = vmul.f32 %v12224, 0.25
          %v12252 = vmul.f32 %v12230, 0.25
          %v12253 = vmul.f32 %v12236, 0.25
          %v12254 = vmul.f32 %v12242, 0.25
          %v12255 = vsub.f32 %v12156, %v12243
          %v12256 = vsub.f32 %v12157, %v12244
          %v12257 = vsub.f32 %v12158, %v12245
          %v12258 = vsub.f32 %v12159, %v12246
          %v12259 = vsub.f32 %v12160, %v12247
          %v12260 = vsub.f32 %v12161, %v12248
          %v12261 = vsub.f32 %v12162, %v12249
          %v12262 = vsub.f32 %v12163, %v12250
          %v12263 = vsub.f32 %v12164, %v12251
          %v12264 = vsub.f32 %v12165, %v12252
          %v12265 = vsub.f32 %v12166, %v12253
          %v12266 = vsub.f32 %v12167, %v12254
          %v12267 = vsel %vm12170, %v12255, 0.0
          %v12268 = vsel %vm12170, %v12256, 0.0
          %v12269 = vsel %vm12170, %v12257, 0.0
          %v12270 = vsel %vm12170, %v12258, 0.0
          %v12271 = vsel %vm12170, %v12259, 0.0
          %v12272 = vsel %vm12170, %v12260, 0.0
          %v12273 = vsel %vm12170, %v12261, 0.0
          %v12274 = vsel %vm12170, %v12262, 0.0
          %v12275 = vsel %vm12170, %v12263, 0.0
          %v12276 = vsel %vm12170, %v12264, 0.0
          %v12277 = vsel %vm12170, %v12265, 0.0
          %v12278 = vsel %vm12170, %v12266, 0.0
          %v12279 = vmul.f32 %v12267, %v12267
          %v12280 = vmul.f32 %v12268, %v12268
          %v12281 = vmul.f32 %v12269, %v12269
          %v12282 = vmul.f32 %v12270, %v12270
          %v12283 = vmul.f32 %v12271, %v12271
          %v12284 = vmul.f32 %v12272, %v12272
          %v12285 = vmul.f32 %v12273, %v12273
          %v12286 = vmul.f32 %v12274, %v12274
          %v12287 = vmul.f32 %v12275, %v12275
          %v12288 = vmul.f32 %v12276, %v12276
          %v12289 = vmul.f32 %v12277, %v12277
          %v12290 = vmul.f32 %v12278, %v12278
          %v12291 = vrot.slane %v12279, 4
          %v12292 = vadd.f32 %v12279, %v12291
          %v12293 = vrot.slane %v12292, 2
          %v12294 = vadd.f32 %v12292, %v12293
          %v12295 = vrot.slane %v12294, 1
          %v12296 = vadd.f32 %v12294, %v12295
          %v12297 = vrot.slane %v12280, 4
          %v12298 = vadd.f32 %v12280, %v12297
          %v12299 = vrot.slane %v12298, 2
          %v12300 = vadd.f32 %v12298, %v12299
          %v12301 = vrot.slane %v12300, 1
          %v12302 = vadd.f32 %v12300, %v12301
          %v12303 = vrot.slane %v12281, 4
          %v12304 = vadd.f32 %v12281, %v12303
          %v12305 = vrot.slane %v12304, 2
          %v12306 = vadd.f32 %v12304, %v12305
          %v12307 = vrot.slane %v12306, 1
          %v12308 = vadd.f32 %v12306, %v12307
          %v12309 = vrot.slane %v12282, 4
          %v12310 = vadd.f32 %v12282, %v12309
          %v12311 = vrot.slane %v12310, 2
          %v12312 = vadd.f32 %v12310, %v12311
          %v12313 = vrot.slane %v12312, 1
          %v12314 = vadd.f32 %v12312, %v12313
          %v12315 = vrot.slane %v12283, 4
          %v12316 = vadd.f32 %v12283, %v12315
          %v12317 = vrot.slane %v12316, 2
          %v12318 = vadd.f32 %v12316, %v12317
          %v12319 = vrot.slane %v12318, 1
          %v12320 = vadd.f32 %v12318, %v12319
          %v12321 = vrot.slane %v12284, 4
          %v12322 = vadd.f32 %v12284, %v12321
          %v12323 = vrot.slane %v12322, 2
          %v12324 = vadd.f32 %v12322, %v12323
          %v12325 = vrot.slane %v12324, 1
          %v12326 = vadd.f32 %v12324, %v12325
          %v12327 = vrot.slane %v12285, 4
          %v12328 = vadd.f32 %v12285, %v12327
          %v12329 = vrot.slane %v12328, 2
          %v12330 = vadd.f32 %v12328, %v12329
          %v12331 = vrot.slane %v12330, 1
          %v12332 = vadd.f32 %v12330, %v12331
          %v12333 = vrot.slane %v12286, 4
          %v12334 = vadd.f32 %v12286, %v12333
          %v12335 = vrot.slane %v12334, 2
          %v12336 = vadd.f32 %v12334, %v12335
          %v12337 = vrot.slane %v12336, 1
          %v12338 = vadd.f32 %v12336, %v12337
          %v12339 = vrot.slane %v12287, 4
          %v12340 = vadd.f32 %v12287, %v12339
          %v12341 = vrot.slane %v12340, 2
          %v12342 = vadd.f32 %v12340, %v12341
          %v12343 = vrot.slane %v12342, 1
          %v12344 = vadd.f32 %v12342, %v12343
          %v12345 = vrot.slane %v12288, 4
          %v12346 = vadd.f32 %v12288, %v12345
          %v12347 = vrot.slane %v12346, 2
          %v12348 = vadd.f32 %v12346, %v12347
          %v12349 = vrot.slane %v12348, 1
          %v12350 = vadd.f32 %v12348, %v12349
          %v12351 = vrot.slane %v12289, 4
          %v12352 = vadd.f32 %v12289, %v12351
          %v12353 = vrot.slane %v12352, 2
          %v12354 = vadd.f32 %v12352, %v12353
          %v12355 = vrot.slane %v12354, 1
          %v12356 = vadd.f32 %v12354, %v12355
          %v12357 = vrot.slane %v12290, 4
          %v12358 = vadd.f32 %v12290, %v12357
          %v12359 = vrot.slane %v12358, 2
          %v12360 = vadd.f32 %v12358, %v12359
          %v12361 = vrot.slane %v12360, 1
          %v12362 = vadd.f32 %v12360, %v12361
          %v12363 = vmul.f32 %v12296, 0.25
          %v12364 = vmul.f32 %v12302, 0.25
          %v12365 = vmul.f32 %v12308, 0.25
          %v12366 = vmul.f32 %v12314, 0.25
          %v12367 = vmul.f32 %v12320, 0.25
          %v12368 = vmul.f32 %v12326, 0.25
          %v12369 = vmul.f32 %v12332, 0.25
          %v12370 = vmul.f32 %v12338, 0.25
          %v12371 = vmul.f32 %v12344, 0.25
          %v12372 = vmul.f32 %v12350, 0.25
          %v12373 = vmul.f32 %v12356, 0.25
          %v12374 = vmul.f32 %v12362, 0.25
          %v12375 = vadd.f32 %v12363, 1e-05
          %v12376 = vadd.f32 %v12364, 1e-05
          %v12377 = vadd.f32 %v12365, 1e-05
          %v12378 = vadd.f32 %v12366, 1e-05
          %v12379 = vadd.f32 %v12367, 1e-05
          %v12380 = vadd.f32 %v12368, 1e-05
          %v12381 = vadd.f32 %v12369, 1e-05
          %v12382 = vadd.f32 %v12370, 1e-05
          %v12383 = vadd.f32 %v12371, 1e-05
          %v12384 = vadd.f32 %v12372, 1e-05
          %v12385 = vadd.f32 %v12373, 1e-05
          %v12386 = vadd.f32 %v12374, 1e-05
          %v12387 = vrsqrt.pop %v12375
          %v12388 = vmul.f32 %v12387, %v12375
          %v12389 = vmul.f32 %v12388, %v12387
          %v12390 = vmul.f32 0.5, %v12389
          %v12391 = vsub.f32 1.5, %v12390
          %v12392 = vmul.f32 %v12387, %v12391
          %vm12393 = vweird.f32 %v12375
          %vm12394 = vweird.f32 %v12387
          %vm12395 = vmor %vm12393, %vm12394
          %v12396 = vsel %vm12395, %v12387, %v12392
          %v12397 = vrsqrt.pop %v12376
          %v12398 = vmul.f32 %v12397, %v12376
          %v12399 = vmul.f32 %v12398, %v12397
          %v12400 = vmul.f32 0.5, %v12399
          %v12401 = vsub.f32 1.5, %v12400
          %v12402 = vmul.f32 %v12397, %v12401
          %vm12403 = vweird.f32 %v12376
          %vm12404 = vweird.f32 %v12397
          %vm12405 = vmor %vm12403, %vm12404
          %v12406 = vsel %vm12405, %v12397, %v12402
          %v12407 = vrsqrt.pop %v12377
          %v12408 = vmul.f32 %v12407, %v12377
          %v12409 = vmul.f32 %v12408, %v12407
          %v12410 = vmul.f32 0.5, %v12409
          %v12411 = vsub.f32 1.5, %v12410
          %v12412 = vmul.f32 %v12407, %v12411
          %vm12413 = vweird.f32 %v12377
          %vm12414 = vweird.f32 %v12407
          %vm12415 = vmor %vm12413, %vm12414
          %v12416 = vsel %vm12415, %v12407, %v12412
          %v12417 = vrsqrt.pop %v12378
          %v12418 = vmul.f32 %v12417, %v12378
          %v12419 = vmul.f32 %v12418, %v12417
          %v12420 = vmul.f32 0.5, %v12419
          %v12421 = vsub.f32 1.5, %v12420
          %v12422 = vmul.f32 %v12417, %v12421
          %vm12423 = vweird.f32 %v12378
          %vm12424 = vweird.f32 %v12417
          %vm12425 = vmor %vm12423, %vm12424
          %v12426 = vsel %vm12425, %v12417, %v12422
          %v12427 = vrsqrt.pop %v12379
          %v12428 = vmul.f32 %v12427, %v12379
          %v12429 = vmul.f32 %v12428, %v12427
          %v12430 = vmul.f32 0.5, %v12429
          %v12431 = vsub.f32 1.5, %v12430
          %v12432 = vmul.f32 %v12427, %v12431
          %vm12433 = vweird.f32 %v12379
          %vm12434 = vweird.f32 %v12427
          %vm12435 = vmor %vm12433, %vm12434
          %v12436 = vsel %vm12435, %v12427, %v12432
          %v12437 = vrsqrt.pop %v12380
          %v12438 = vmul.f32 %v12437, %v12380
          %v12439 = vmul.f32 %v12438, %v12437
          %v12440 = vmul.f32 0.5, %v12439
          %v12441 = vsub.f32 1.5, %v12440
          %v12442 = vmul.f32 %v12437, %v12441
          %vm12443 = vweird.f32 %v12380
          %vm12444 = vweird.f32 %v12437
          %vm12445 = vmor %vm12443, %vm12444
          %v12446 = vsel %vm12445, %v12437, %v12442
          %v12447 = vrsqrt.pop %v12381
          %v12448 = vmul.f32 %v12447, %v12381
          %v12449 = vmul.f32 %v12448, %v12447
          %v12450 = vmul.f32 0.5, %v12449
          %v12451 = vsub.f32 1.5, %v12450
          %v12452 = vmul.f32 %v12447, %v12451
          %vm12453 = vweird.f32 %v12381
          %vm12454 = vweird.f32 %v12447
          %vm12455 = vmor %vm12453, %vm12454
          %v12456 = vsel %vm12455, %v12447, %v12452
          %v12457 = vrsqrt.pop %v12382
          %v12458 = vmul.f32 %v12457, %v12382
          %v12459 = vmul.f32 %v12458, %v12457
          %v12460 = vmul.f32 0.5, %v12459
          %v12461 = vsub.f32 1.5, %v12460
          %v12462 = vmul.f32 %v12457, %v12461
          %vm12463 = vweird.f32 %v12382
          %vm12464 = vweird.f32 %v12457
          %vm12465 = vmor %vm12463, %vm12464
          %v12466 = vsel %vm12465, %v12457, %v12462
          %v12467 = vrsqrt.pop %v12383
          %v12468 = vmul.f32 %v12467, %v12383
          %v12469 = vmul.f32 %v12468, %v12467
          %v12470 = vmul.f32 0.5, %v12469
          %v12471 = vsub.f32 1.5, %v12470
          %v12472 = vmul.f32 %v12467, %v12471
          %vm12473 = vweird.f32 %v12383
          %vm12474 = vweird.f32 %v12467
          %vm12475 = vmor %vm12473, %vm12474
          %v12476 = vsel %vm12475, %v12467, %v12472
          %v12477 = vrsqrt.pop %v12384
          %v12478 = vmul.f32 %v12477, %v12384
          %v12479 = vmul.f32 %v12478, %v12477
          %v12480 = vmul.f32 0.5, %v12479
          %v12481 = vsub.f32 1.5, %v12480
          %v12482 = vmul.f32 %v12477, %v12481
          %vm12483 = vweird.f32 %v12384
          %vm12484 = vweird.f32 %v12477
          %vm12485 = vmor %vm12483, %vm12484
          %v12486 = vsel %vm12485, %v12477, %v12482
          %v12487 = vrsqrt.pop %v12385
          %v12488 = vmul.f32 %v12487, %v12385
          %v12489 = vmul.f32 %v12488, %v12487
          %v12490 = vmul.f32 0.5, %v12489
          %v12491 = vsub.f32 1.5, %v12490
          %v12492 = vmul.f32 %v12487, %v12491
          %vm12493 = vweird.f32 %v12385
          %vm12494 = vweird.f32 %v12487
          %vm12495 = vmor %vm12493, %vm12494
          %v12496 = vsel %vm12495, %v12487, %v12492
          %v12497 = vrsqrt.pop %v12386
          %v12498 = vmul.f32 %v12497, %v12386
          %v12499 = vmul.f32 %v12498, %v12497
          %v12500 = vmul.f32 0.5, %v12499
          %v12501 = vsub.f32 1.5, %v12500
          %v12502 = vmul.f32 %v12497, %v12501
          %vm12503 = vweird.f32 %v12386
          %vm12504 = vweird.f32 %v12497
          %vm12505 = vmor %vm12503, %vm12504
          %v12506 = vsel %vm12505, %v12497, %v12502
          %v12507 = vmul.f32 %v12267, %v12396
          %v12508 = vmul.f32 %v12268, %v12406
          %v12509 = vmul.f32 %v12269, %v12416
          %v12510 = vmul.f32 %v12270, %v12426
          %v12511 = vmul.f32 %v12271, %v12436
          %v12512 = vmul.f32 %v12272, %v12446
          %v12513 = vmul.f32 %v12273, %v12456
          %v12514 = vmul.f32 %v12274, %v12466
          %v12515 = vmul.f32 %v12275, %v12476
          %v12516 = vmul.f32 %v12276, %v12486
          %v12517 = vmul.f32 %v12277, %v12496
          %v12518 = vmul.f32 %v12278, %v12506
          %v12519 = vld [vmem:[%s299] sm:$0xff]
          %v12520 = vld [vmem:[%s299 + $0x8] sm:$0xf]
          %v12523 = vperm.slane %v12519, 0
          %v12524 = vperm.slane %v12519, 1
          %v12525 = vperm.slane %v12519, 2
          %v12526 = vperm.slane %v12519, 3
          %v12527 = vperm.slane %v12519, 4
          %v12528 = vperm.slane %v12519, 5
          %v12529 = vperm.slane %v12519, 6
          %v12530 = vperm.slane %v12519, 7
          %v12531 = vperm.slane %v12520, 0
          %v12532 = vperm.slane %v12520, 1
          %v12533 = vperm.slane %v12520, 2
          %v12534 = vperm.slane %v12520, 3
          %v12547 = vmul.f32 %v12523, %v12507
          %v12548 = vmul.f32 %v12524, %v12508
          %v12549 = vmul.f32 %v12525, %v12509
          %v12550 = vmul.f32 %v12526, %v12510
          %v12551 = vmul.f32 %v12527, %v12511
          %v12552 = vmul.f32 %v12528, %v12512
          %v12553 = vmul.f32 %v12529, %v12513
          %v12554 = vmul.f32 %v12530, %v12514
          %v12555 = vmul.f32 %v12531, %v12515
          %v12556 = vmul.f32 %v12532, %v12516
          %v12557 = vmul.f32 %v12533, %v12517
          %v12558 = vmul.f32 %v12534, %v12518
          %v12559 = vld [vmem:[%s309] sm:$0xff]
          %v12560 = vld [vmem:[%s309 + $0x8] sm:$0xf]
          %v12563 = vperm.slane %v12559, 0
          %v12564 = vperm.slane %v12559, 1
          %v12565 = vperm.slane %v12559, 2
          %v12566 = vperm.slane %v12559, 3
          %v12567 = vperm.slane %v12559, 4
          %v12568 = vperm.slane %v12559, 5
          %v12569 = vperm.slane %v12559, 6
          %v12570 = vperm.slane %v12559, 7
          %v12571 = vperm.slane %v12560, 0
          %v12572 = vperm.slane %v12560, 1
          %v12573 = vperm.slane %v12560, 2
          %v12574 = vperm.slane %v12560, 3
          %v12587 = vadd.f32 %v12547, %v12563
          %v12588 = vadd.f32 %v12548, %v12564
          %v12589 = vadd.f32 %v12549, %v12565
          %v12590 = vadd.f32 %v12550, %v12566
          %v12591 = vadd.f32 %v12551, %v12567
          %v12592 = vadd.f32 %v12552, %v12568
          %v12593 = vadd.f32 %v12553, %v12569
          %v12594 = vadd.f32 %v12554, %v12570
          %v12595 = vadd.f32 %v12555, %v12571
          %v12596 = vadd.f32 %v12556, %v12572
          %v12597 = vadd.f32 %v12557, %v12573
          %v12598 = vadd.f32 %v12558, %v12574
          %v12599 = vmax.f32 %v12587, 0.0
          %v12600 = vmax.f32 %v12588, 0.0
          %v12601 = vmax.f32 %v12589, 0.0
          %v12602 = vmax.f32 %v12590, 0.0
          %v12603 = vmax.f32 %v12591, 0.0
          %v12604 = vmax.f32 %v12592, 0.0
          %v12605 = vmax.f32 %v12593, 0.0
          %v12606 = vmax.f32 %v12594, 0.0
          %v12607 = vmax.f32 %v12595, 0.0
          %v12608 = vmax.f32 %v12596, 0.0
          %v12609 = vmax.f32 %v12597, 0.0
          %v12610 = vmax.f32 %v12598, 0.0
          %v12611 = vsel %vm12170, %v12599, 0.0
          %v12612 = vsel %vm12170, %v12600, 0.0
          %v12613 = vsel %vm12170, %v12601, 0.0
          %v12614 = vsel %vm12170, %v12602, 0.0
          %v12615 = vsel %vm12170, %v12603, 0.0
          %v12616 = vsel %vm12170, %v12604, 0.0
          %v12617 = vsel %vm12170, %v12605, 0.0
          %v12618 = vsel %vm12170, %v12606, 0.0
          %v12619 = vsel %vm12170, %v12607, 0.0
          %v12620 = vsel %vm12170, %v12608, 0.0
          %v12621 = vsel %vm12170, %v12609, 0.0
          %v12622 = vsel %vm12170, %v12610, 0.0
          %12623 = vst [vmem:[%s349] sm:$0xff] %v12611
          %12624 = vst [vmem:[%s349 + $0x8] sm:$0xff] %v12612
          %12625 = vst [vmem:[%s349 + $0x10] sm:$0xff] %v12613
          %12626 = vst [vmem:[%s349 + $0x18] sm:$0xff] %v12614
          %12627 = vst [vmem:[%s349 + $0x20] sm:$0xff] %v12615
          %12628 = vst [vmem:[%s349 + $0x28] sm:$0xff] %v12616
          %12629 = vst [vmem:[%s349 + $0x30] sm:$0xff] %v12617
          %12630 = vst [vmem:[%s349 + $0x38] sm:$0xff] %v12618
          %12631 = vst [vmem:[%s349 + $0x40] sm:$0xff] %v12619
          %12632 = vst [vmem:[%s349 + $0x48] sm:$0xff] %v12620
          %12633 = vst [vmem:[%s349 + $0x50] sm:$0xff] %v12621
          %12634 = vst [vmem:[%s349 + $0x58] sm:$0xff] %v12622
        $region60: #{tpu_custom_call.1} parent=35 // pred_fallthru
          _
        %s12635 = sand.u32 %s153, 1
        %s12636 = scalar_lea.sflag [#allocation5], %s12635
        %s12637 = sand.u32 %s153, 1
        %s12638 = smul.addr %s12637, 96
        %s12639 = scalar_lea.vmem [#allocation11], %s12638
        // Predicated region
        $region61: #{tpu_custom_call.1} parent=35 // pred_check
          %p12640 = pneg %p163
        $region62: #{tpu_custom_call.1} parent=35 // pred_check_branch
          %12642 = sbr.rel (%p12640) target = $region64
        $region63: #{tpu_custom_call.1} parent=35 // pred_region
          %s12643 = smul.u32 12, %s31
          %12645 = vsyncadd %s12636, 0
          %s12646 = smul.addr %s12643, 8
          %s12647 = scalar_lea.hbm %s4, %s12646
          %s12649 = sshll.u32 %s12639, 4
          %s12650 = int_to_ptr.vmem [resolvable:$true] %s12649
          %s12651 = sshll.u32 %s12647, 4
          %s12652 = int_to_ptr.hbm [resolvable:$true] %s12651
          %12654 = dma.vmem_to_hbm [thread:$0]  %s12650, 1536, %s12652, %s12636
        $region64: #{tpu_custom_call.1} parent=35 // pred_fallthru
          _
      $region36: #{tpu_custom_call.1} parent=5 // pred_fallthru
        _
      %p12655 = scmp.le.s32.totalorder 2, %s22
      // Predicated region
      $region65: #{tpu_custom_call.1} parent=5 // pred_check
        %p12656 = pneg %p12655
      $region66: #{tpu_custom_call.1} parent=5 // pred_check_branch
        %12658 = sbr.rel (%p12656) target = $region68
      $region67: #{tpu_custom_call.1} parent=5 // pred_region
        %s12659 = ssub.s32 %s22, 2
        // Predicated region
        $region69: #{tpu_custom_call.1} parent=67 // pred_check
          %p12660 = pneg %p169
        $region70: #{tpu_custom_call.1} parent=67 // pred_check_branch
          %12662 = sbr.rel (%p12660) target = $region72
        $region71: #{tpu_custom_call.1} parent=67 // pred_region
          %s12663 = sand.u32 %s154, 1
          %s12664 = scalar_lea.sflag [#allocation5], %s12663
          %s12665 = sand.u32 %s154, 1
          %s12666 = smul.addr %s12665, 96
          %s12667 = scalar_lea.vmem [#allocation11], %s12666
          %12669 = dma.done %s12664, 1536
        $region72: #{tpu_custom_call.1} parent=67 // pred_fallthru
          _
      $region68: #{tpu_custom_call.1} parent=5 // pred_fallthru
        _
    $region6: #{tpu_custom_call.1} parent=1 // loop_footer
      %s26 = sadd.s32 1, %s22
    $region7: #{tpu_custom_call.1} parent=1 // loop_footer_branch
      %21 = sbr.rel target = $region3
    $region8: #{tpu_custom_call.1} parent=1 // loop_exit
      _
    %12670 = vsyncpa [#allocation4], 1
    %s12671 = scalar_lea.sflag [#allocation4], 1
    %12672 = vsyncpa %s12671, 1
    %12673 = vsyncpa [#allocation7], 1
    %s12674 = scalar_lea.sflag [#allocation7], 1
    %12675 = vsyncpa %s12674, 1
    %12676 = vsyncpa [#allocation10], 1
    %s12677 = scalar_lea.sflag [#allocation10], 1
    %12678 = vsyncpa %s12677, 1
    %12679 = vsyncpa [#allocation5], 1
    %s12680 = scalar_lea.sflag [#allocation5], 1
    %12681 = vsyncpa %s12680, 1

</llo_original>
